<compile_context>
chip_gen: v7x
topology: tpu7x:2x2x1
jax: 0.10.0
libtpu: 0.0.40
codegen_flags: <defaults>
</compile_context>

<pallas_src>
import jax
import jax.numpy as jnp
from jax.experimental import pallas as pl
from jax.experimental.pallas import tpu as pltpu


def _round_up(v, m):
    return (v + m - 1) // m * m


def ffn_kernel(x_ref, w1_ref, b1_ref, w2_ref, b2_ref, o_ref, acc_ref):
    # x_ref:  (tm, C)  bf16     w1_ref: (C, th) bf16    b1_ref: (1, th) f32
    # w2_ref: (th, C)  bf16     b2_ref: (1, C)  f32
    # o_ref:  (tm, C)  out      acc_ref:(tm, C) f32 scratch (persists over h)
    h_idx = pl.program_id(1)

    @pl.when(h_idx == 0)
    def _():
        acc_ref[...] = jnp.zeros_like(acc_ref)

    # First matmul on this hidden chunk (MXU, bf16 in / f32 accumulate).
    h = jnp.dot(x_ref[...], w1_ref[...], preferred_element_type=jnp.float32)
    # Bias + ReLU in f32 (VPU; avoids bf16 elementwise emulation on v5e).
    h = jnp.maximum(h + b1_ref[...], 0.0)

    # Second matmul: accumulate this chunk's contribution to the output tile.
    acc_ref[...] += jnp.dot(h.astype(w2_ref.dtype), w2_ref[...],
                            preferred_element_type=jnp.float32)

    @pl.when(h_idx == pl.num_programs(1) - 1)
    def _():
        # Dropout (eval mode) == identity.
        o_ref[...] = (acc_ref[...] + b2_ref[...]).astype(o_ref.dtype)


def feed_forward(x, w1, b1, w2, b2, *, tm=None, th=None,
                 vmem_limit_bytes=56 * 1024 * 1024):
    """x: (B, T, C). Weights stored as (in_features, out_features). Returns (B, T, C)."""
    B, T, C = x.shape
    H = w1.shape[1]
    M = B * T
    out_dtype = x.dtype

    # ---- row tile: multiple of 8 sublanes; >= 2 grid steps whenever possible ----
    if tm is None:
        if M <= 8:
            tm = 8
        elif M <= 1024:
            tm = min(512, _round_up(pl.cdiv(M, 2), 8))
        else:
            tm = 512
    assert tm % 8 == 0
    M_pad = _round_up(M, tm)

    # ---- hidden tile: bound f32 intermediate + bf16 weight-chunk VMEM footprint ----
    if th is None:
        th = H
        while (th % 256 == 0 and th > 512 and
               (tm * th * 4 > (8 << 20) or 4 * C * th > (24 << 20))):
            th //= 2
    assert H % th == 0 and (th == H or th % 128 == 0)
    n_i, n_h = M_pad // tm, H // th

    # bf16 matmul operands; biases (and accumulation) stay f32.
    x2 = x.reshape(M, C)
    if M_pad != M:
        x2 = jnp.pad(x2, ((0, M_pad - M), (0, 0)))
    x2 = x2.astype(jnp.bfloat16)
    w1b = w1.astype(jnp.bfloat16)
    w2b = w2.astype(jnp.bfloat16)
    b1_2d = b1.reshape(1, H).astype(jnp.float32)
    b2_2d = b2.reshape(1, C).astype(jnp.float32)

    cost = pl.CostEstimate(
        flops=4 * M_pad * C * H,
        transcendentals=0,
        bytes_accessed=(x2.size * 2
                        + M_pad * C * jnp.dtype(out_dtype).itemsize
                        + (w1b.size + w2b.size) * 2
                        + (b1.size + b2.size) * 4),
    )

    def run(weights_resident):
        if weights_resident:
            # Whole weights/biases fit comfortably: one VMEM copy for the whole
            # kernel, no per-grid-step double buffering.
            resident = pl.BlockSpec(memory_space=pltpu.MemorySpace.VMEM)
            w1_spec, b1_spec, w2_spec, b2_spec = resident, resident, resident, resident
        else:
            # H-chunked (or fallback) path: stream weight chunks, default
            # double buffering overlaps their DMA with compute.
            w1_spec = pl.BlockSpec((C, th), lambda i, h: (0, h))
            b1_spec = pl.BlockSpec((1, th), lambda i, h: (0, h))
            w2_spec = pl.BlockSpec((th, C), lambda i, h: (h, 0))
            b2_spec = pl.BlockSpec((1, C), lambda i, h: (0, 0))

        return pl.pallas_call(
            ffn_kernel,
            out_shape=jax.ShapeDtypeStruct((M_pad, C), out_dtype),
            grid_spec=pltpu.PrefetchScalarGridSpec(
                num_scalar_prefetch=0,
                grid=(n_i, n_h),
                in_specs=[
                    pl.BlockSpec((tm, C), lambda i, h: (i, 0)),   # x row tile
                    w1_spec,                                      # W1
                    b1_spec,                                      # b1
                    w2_spec,                                      # W2
                    b2_spec,                                      # b2
                ],
                out_specs=pl.BlockSpec((tm, C), lambda i, h: (i, 0)),
                scratch_shapes=[pltpu.VMEM((tm, C), jnp.float32)],
            ),
            compiler_params=pltpu.CompilerParams(
                dimension_semantics=("parallel", "arbitrary"),
                vmem_limit_bytes=vmem_limit_bytes,
            ),
            cost_estimate=cost,
        )(x2, w1b, b1_2d, w2b, b2_2d)

    try:
        out = run(weights_resident=(n_h == 1))
    except Exception:
        # Conservative fallback: fully blocked specs (proven path).
        out = run(weights_resident=False)

    if M_pad != M:
        out = out[:M]
    return out.reshape(B, T, C)


def init_params(key, n_embd):
    """Deterministic init matching nn.Linear's U(-1/sqrt(fan_in), 1/sqrt(fan_in))."""
    hidden = 4 * n_embd
    k1, k2, k3, k4 = jax.random.split(key, 4)
    lim1 = 1.0 / jnp.sqrt(n_embd)
    lim2 = 1.0 / jnp.sqrt(hidden)
    # stored as (in_features, out_features) == torch weight.T
    w1 = jax.random.uniform(k1, (n_embd, hidden), jnp.float32, -lim1, lim1)
    b1 = jax.random.uniform(k2, (hidden,), jnp.float32, -lim1, lim1)
    w2 = jax.random.uniform(k3, (hidden, n_embd), jnp.float32, -lim2, lim2)
    b2 = jax.random.uniform(k4, (n_embd,), jnp.float32, -lim2, lim2)
    return w1, b1, w2, b2


def feed_forward_ref(x, w1, b1, w2, b2):
    h = jnp.maximum(x @ w1 + b1, 0.0)
    return h @ w2 + b2


if __name__ == "__main__":
    # Shapes consistent with the module: (B, T, n_embd) with n_embd=384.
    n_embd = 384
    B, T = 2, 8
    key = jax.random.PRNGKey(0)
    kx, kp = jax.random.split(key)

    x = jax.random.normal(kx, (B, T, n_embd), jnp.float32)
    w1, b1, w2, b2 = init_params(kp, n_embd)

    y_ref = feed_forward_ref(x, w1, b1, w2, b2)

    # Path 1: single hidden chunk, weights fully VMEM-resident (default heuristic).
    y = jax.block_until_ready(feed_forward(x, w1, b1, w2, b2))
    assert y.shape == (B, T, n_embd)
    assert jnp.allclose(y, y_ref, atol=3e-2, rtol=3e-2), "mismatch (resident path)"

    # Path 2: hidden-dim chunking (exercises the f32 accumulator over the
    # 'arbitrary' H grid axis, as used for 4096-class layers).
    y2 = jax.block_until_ready(feed_forward(x, w1, b1, w2, b2, tm=8, th=512))
    assert y2.shape == (B, T, n_embd)
    assert jnp.allclose(y2, y_ref, atol=3e-2, rtol=3e-2), "mismatch (chunked path)"

    print("KERNEL_OK")
</pallas_src>

<mosaic_0001>
module attributes {stable_mosaic.version = 11 : i64} {
  func.func @ffn_kernel(%arg0: i32, %arg1: i32, %arg2: memref<8x384xbf16, #tpu.memory_space<vmem>>, %arg3: memref<384x1536xbf16, #tpu.memory_space<vmem>>, %arg4: memref<1x1536xf32, #tpu.memory_space<vmem>>, %arg5: memref<1536x384xbf16, #tpu.memory_space<vmem>>, %arg6: memref<1x384xf32, #tpu.memory_space<vmem>>, %arg7: memref<8x384xf32, #tpu.memory_space<vmem>>, %arg8: memref<8x384xf32, #tpu.memory_space<vmem>>) attributes {dimension_semantics = [#tpu.dimension_semantics<parallel>, #tpu.dimension_semantics<arbitrary>], iteration_bounds = array<i64: 2, 1>, scalar_prefetch = 0 : i64, scratch_operands = 1 : i64, tpu.core_type = #tpu.core_type<tc>, window_params = [{transform_indices = @transform_0, window_bounds = array<i64: 8, 384>}, {pipeline_mode = #tpu.pipeline_mode<synchronous>, transform_indices = @transform_1, window_bounds = array<i64: 384, 1536>}, {pipeline_mode = #tpu.pipeline_mode<synchronous>, transform_indices = @transform_2, window_bounds = array<i64: 1, 1536>}, {pipeline_mode = #tpu.pipeline_mode<synchronous>, transform_indices = @transform_3, window_bounds = array<i64: 1536, 384>}, {pipeline_mode = #tpu.pipeline_mode<synchronous>, transform_indices = @transform_4, window_bounds = array<i64: 1, 384>}, {transform_indices = @transform_5, window_bounds = array<i64: 8, 384>}]} {
    %c0_i32 = arith.constant 0 : i32
    %0 = arith.cmpi eq, %arg1, %c0_i32 : i32
    %1 = arith.extui %0 : i1 to i32
    %c0_i32_0 = arith.constant 0 : i32
    %2 = arith.cmpi ne, %1, %c0_i32_0 : i32
    scf.if %2 {
      %cst_16 = arith.constant 0.000000e+00 : f32
      %20 = vector.broadcast %cst_16 : f32 to vector<8x384xf32>
      %c0_17 = arith.constant 0 : index
      %c0_18 = arith.constant 0 : index
      %21 = vector.load %arg8[%c0_17, %c0_18] : memref<8x384xf32, #tpu.memory_space<vmem>>, vector<8x384xf32>
      tpu.vector_store %arg8[%c0_17, %c0_18], %20 {strides = array<i32>} : memref<8x384xf32, #tpu.memory_space<vmem>>, vector<8x384xf32>,
    } else {
    }
    %c0 = arith.constant 0 : index
    %c0_1 = arith.constant 0 : index
    %3 = vector.load %arg2[%c0, %c0_1] : memref<8x384xbf16, #tpu.memory_space<vmem>>, vector<8x384xbf16>
    %c0_2 = arith.constant 0 : index
    %c0_3 = arith.constant 0 : index
    %4 = vector.load %arg3[%c0_2, %c0_3] : memref<384x1536xbf16, #tpu.memory_space<vmem>>, vector<384x1536xbf16>
    %cst = arith.constant dense<0.000000e+00> : vector<8x1536xf32>
    %5 = tpu.matmul %3, %4, %cst {dimension_numbers = #tpu.dot_dimension_numbers<[1], [0], [0], [1], [0, 0, 1, 1], [], []>} : vector<8x384xbf16>, vector<384x1536xbf16>, vector<8x1536xf32> -> vector<8x1536xf32>
    %c0_4 = arith.constant 0 : index
    %c0_5 = arith.constant 0 : index
    %6 = vector.load %arg4[%c0_4, %c0_5] : memref<1x1536xf32, #tpu.memory_space<vmem>>, vector<1x1536xf32>
    %7 = vector.broadcast %6 : vector<1x1536xf32> to vector<8x1536xf32>
    %8 = arith.addf %5, %7 : vector<8x1536xf32>
    %cst_6 = arith.constant 0.000000e+00 : f32
    %9 = vector.broadcast %cst_6 : f32 to vector<8x1536xf32>
    %10 = arith.maximumf %8, %9 : vector<8x1536xf32>
    %c0_7 = arith.constant 0 : index
    %c0_8 = arith.constant 0 : index
    %11 = vector.load %arg8[%c0_7, %c0_8] : memref<8x384xf32, #tpu.memory_space<vmem>>, vector<8x384xf32>
    %12 = arith.truncf %10 : vector<8x1536xf32> to vector<8x1536xbf16>
    %c0_9 = arith.constant 0 : index
    %c0_10 = arith.constant 0 : index
    %13 = vector.load %arg5[%c0_9, %c0_10] : memref<1536x384xbf16, #tpu.memory_space<vmem>>, vector<1536x384xbf16>
    %cst_11 = arith.constant dense<0.000000e+00> : vector<8x384xf32>
    %14 = tpu.matmul %12, %13, %cst_11 {dimension_numbers = #tpu.dot_dimension_numbers<[1], [0], [0], [1], [0, 0, 1, 1], [], []>} : vector<8x1536xbf16>, vector<1536x384xbf16>, vector<8x384xf32> -> vector<8x384xf32>
    %15 = arith.addf %11, %14 : vector<8x384xf32>
    %c0_12 = arith.constant 0 : index
    %c0_13 = arith.constant 0 : index
    %16 = vector.load %arg8[%c0_12, %c0_13] : memref<8x384xf32, #tpu.memory_space<vmem>>, vector<8x384xf32>
    tpu.vector_store %arg8[%c0_12, %c0_13], %15 {strides = array<i32>} : memref<8x384xf32, #tpu.memory_space<vmem>>, vector<8x384xf32>,
    %c0_i32_14 = arith.constant 0 : i32
    %17 = arith.cmpi eq, %arg1, %c0_i32_14 : i32
    %18 = arith.extui %17 : i1 to i32
    %c0_i32_15 = arith.constant 0 : i32
    %19 = arith.cmpi ne, %18, %c0_i32_15 : i32
    scf.if %19 {
      %c0_16 = arith.constant 0 : index
      %c0_17 = arith.constant 0 : index
      %20 = vector.load %arg8[%c0_16, %c0_17] : memref<8x384xf32, #tpu.memory_space<vmem>>, vector<8x384xf32>
      %c0_18 = arith.constant 0 : index
      %c0_19 = arith.constant 0 : index
      %21 = vector.load %arg6[%c0_18, %c0_19] : memref<1x384xf32, #tpu.memory_space<vmem>>, vector<1x384xf32>
      %22 = vector.broadcast %21 : vector<1x384xf32> to vector<8x384xf32>
      %23 = arith.addf %20, %22 : vector<8x384xf32>
      %c0_20 = arith.constant 0 : index
      %c0_21 = arith.constant 0 : index
      %24 = vector.load %arg7[%c0_20, %c0_21] : memref<8x384xf32, #tpu.memory_space<vmem>>, vector<8x384xf32>
      tpu.vector_store %arg7[%c0_20, %c0_21], %23 {strides = array<i32>} : memref<8x384xf32, #tpu.memory_space<vmem>>, vector<8x384xf32>,
    } else {
    }
    return
  }
  func.func @transform_0(%arg0: i32, %arg1: i32) -> (i32, i32) {
    %c0_i32 = arith.constant 0 : i32
    %c0_i32_0 = arith.constant 0 : i32
    return %arg0, %c0_i32 : i32, i32
  }
  func.func @transform_1(%arg0: i32, %arg1: i32) -> (i32, i32) {
    %c0_i32 = arith.constant 0 : i32
    %c0_i32_0 = arith.constant 0 : i32
    %c0_i32_1 = arith.constant 0 : i32
    return %c0_i32, %c0_i32_0 : i32, i32
  }
  func.func @transform_2(%arg0: i32, %arg1: i32) -> (i32, i32) {
    %c0_i32 = arith.constant 0 : i32
    %c0_i32_0 = arith.constant 0 : i32
    %c0_i32_1 = arith.constant 0 : i32
    return %c0_i32, %c0_i32_0 : i32, i32
  }
  func.func @transform_3(%arg0: i32, %arg1: i32) -> (i32, i32) {
    %c0_i32 = arith.constant 0 : i32
    %c0_i32_0 = arith.constant 0 : i32
    %c0_i32_1 = arith.constant 0 : i32
    return %c0_i32, %c0_i32_0 : i32, i32
  }
  func.func @transform_4(%arg0: i32, %arg1: i32) -> (i32, i32) {
    %c0_i32 = arith.constant 0 : i32
    %c0_i32_0 = arith.constant 0 : i32
    %c0_i32_1 = arith.constant 0 : i32
    return %c0_i32, %c0_i32_0 : i32, i32
  }
  func.func @transform_5(%arg0: i32, %arg1: i32) -> (i32, i32) {
    %c0_i32 = arith.constant 0 : i32
    %c0_i32_0 = arith.constant 0 : i32
    return %arg0, %c0_i32 : i32, i32
  }
}

module attributes {stable_mosaic.version = 11 : i64} {
  func.func @ffn_kernel(%arg0: i32, %arg1: i32, %arg2: memref<8x384xbf16, #tpu.memory_space<vmem>>, %arg3: memref<384x1536xbf16, #tpu.memory_space<vmem>>, %arg4: memref<1x1536xf32, #tpu.memory_space<vmem>>, %arg5: memref<1536x384xbf16, #tpu.memory_space<vmem>>, %arg6: memref<1x384xf32, #tpu.memory_space<vmem>>, %arg7: memref<8x384xf32, #tpu.memory_space<vmem>>, %arg8: memref<8x384xf32, #tpu.memory_space<vmem>>) attributes {dimension_semantics = [#tpu.dimension_semantics<parallel>, #tpu.dimension_semantics<arbitrary>], iteration_bounds = array<i64: 2, 1>, scalar_prefetch = 0 : i64, scratch_operands = 1 : i64, tpu.core_type = #tpu.core_type<tc>, window_params = [{transform_indices = @transform_0, window_bounds = array<i64: 8, 384>}, {transform_indices = @transform_1, window_bounds = array<i64: 384, 1536>}, {transform_indices = @transform_2, window_bounds = array<i64: 1, 1536>}, {transform_indices = @transform_3, window_bounds = array<i64: 1536, 384>}, {pipeline_mode = #tpu.pipeline_mode<synchronous>, transform_indices = @transform_4, window_bounds = array<i64: 1, 384>}, {transform_indices = @transform_5, window_bounds = array<i64: 8, 384>}]} {
    %c0_i32 = arith.constant 0 : i32
    %0 = arith.cmpi eq, %arg1, %c0_i32 : i32
    %1 = arith.extui %0 : i1 to i32
    %c0_i32_0 = arith.constant 0 : i32
    %2 = arith.cmpi ne, %1, %c0_i32_0 : i32
    scf.if %2 {
      %cst_16 = arith.constant 0.000000e+00 : f32
      %20 = vector.broadcast %cst_16 : f32 to vector<8x384xf32>
      %c0_17 = arith.constant 0 : index
      %c0_18 = arith.constant 0 : index
      %21 = vector.load %arg8[%c0_17, %c0_18] : memref<8x384xf32, #tpu.memory_space<vmem>>, vector<8x384xf32>
      tpu.vector_store %arg8[%c0_17, %c0_18], %20 {strides = array<i32>} : memref<8x384xf32, #tpu.memory_space<vmem>>, vector<8x384xf32>,
    } else {
    }
    %c0 = arith.constant 0 : index
    %c0_1 = arith.constant 0 : index
    %3 = vector.load %arg2[%c0, %c0_1] : memref<8x384xbf16, #tpu.memory_space<vmem>>, vector<8x384xbf16>
    %c0_2 = arith.constant 0 : index
    %c0_3 = arith.constant 0 : index
    %4 = vector.load %arg3[%c0_2, %c0_3] : memref<384x1536xbf16, #tpu.memory_space<vmem>>, vector<384x1536xbf16>
    %cst = arith.constant dense<0.000000e+00> : vector<8x1536xf32>
    %5 = tpu.matmul %3, %4, %cst {dimension_numbers = #tpu.dot_dimension_numbers<[1], [0], [0], [1], [0, 0, 1, 1], [], []>} : vector<8x384xbf16>, vector<384x1536xbf16>, vector<8x1536xf32> -> vector<8x1536xf32>
    %c0_4 = arith.constant 0 : index
    %c0_5 = arith.constant 0 : index
    %6 = vector.load %arg4[%c0_4, %c0_5] : memref<1x1536xf32, #tpu.memory_space<vmem>>, vector<1x1536xf32>
    %7 = vector.broadcast %6 : vector<1x1536xf32> to vector<8x1536xf32>
    %8 = arith.addf %5, %7 : vector<8x1536xf32>
    %cst_6 = arith.constant 0.000000e+00 : f32
    %9 = vector.broadcast %cst_6 : f32 to vector<8x1536xf32>
    %10 = arith.maximumf %8, %9 : vector<8x1536xf32>
    %c0_7 = arith.constant 0 : index
    %c0_8 = arith.constant 0 : index
    %11 = vector.load %arg8[%c0_7, %c0_8] : memref<8x384xf32, #tpu.memory_space<vmem>>, vector<8x384xf32>
    %12 = arith.truncf %10 : vector<8x1536xf32> to vector<8x1536xbf16>
    %c0_9 = arith.constant 0 : index
    %c0_10 = arith.constant 0 : index
    %13 = vector.load %arg5[%c0_9, %c0_10] : memref<1536x384xbf16, #tpu.memory_space<vmem>>, vector<1536x384xbf16>
    %cst_11 = arith.constant dense<0.000000e+00> : vector<8x384xf32>
    %14 = tpu.matmul %12, %13, %cst_11 {dimension_numbers = #tpu.dot_dimension_numbers<[1], [0], [0], [1], [0, 0, 1, 1], [], []>} : vector<8x1536xbf16>, vector<1536x384xbf16>, vector<8x384xf32> -> vector<8x384xf32>
    %15 = arith.addf %11, %14 : vector<8x384xf32>
    %c0_12 = arith.constant 0 : index
    %c0_13 = arith.constant 0 : index
    %16 = vector.load %arg8[%c0_12, %c0_13] : memref<8x384xf32, #tpu.memory_space<vmem>>, vector<8x384xf32>
    tpu.vector_store %arg8[%c0_12, %c0_13], %15 {strides = array<i32>} : memref<8x384xf32, #tpu.memory_space<vmem>>, vector<8x384xf32>,
    %c0_i32_14 = arith.constant 0 : i32
    %17 = arith.cmpi eq, %arg1, %c0_i32_14 : i32
    %18 = arith.extui %17 : i1 to i32
    %c0_i32_15 = arith.constant 0 : i32
    %19 = arith.cmpi ne, %18, %c0_i32_15 : i32
    scf.if %19 {
      %c0_16 = arith.constant 0 : index
      %c0_17 = arith.constant 0 : index
      %20 = vector.load %arg8[%c0_16, %c0_17] : memref<8x384xf32, #tpu.memory_space<vmem>>, vector<8x384xf32>
      %c0_18 = arith.constant 0 : index
      %c0_19 = arith.constant 0 : index
      %21 = vector.load %arg6[%c0_18, %c0_19] : memref<1x384xf32, #tpu.memory_space<vmem>>, vector<1x384xf32>
      %22 = vector.broadcast %21 : vector<1x384xf32> to vector<8x384xf32>
      %23 = arith.addf %20, %22 : vector<8x384xf32>
      %c0_20 = arith.constant 0 : index
      %c0_21 = arith.constant 0 : index
      %24 = vector.load %arg7[%c0_20, %c0_21] : memref<8x384xf32, #tpu.memory_space<vmem>>, vector<8x384xf32>
      tpu.vector_store %arg7[%c0_20, %c0_21], %23 {strides = array<i32>} : memref<8x384xf32, #tpu.memory_space<vmem>>, vector<8x384xf32>,
    } else {
    }
    return
  }
  func.func @transform_0(%arg0: i32, %arg1: i32) -> (i32, i32) {
    %c0_i32 = arith.constant 0 : i32
    %c0_i32_0 = arith.constant 0 : i32
    return %arg0, %c0_i32 : i32, i32
  }
  func.func @transform_1(%arg0: i32, %arg1: i32) -> (i32, i32) {
    %c0_i32 = arith.constant 0 : i32
    %c0_i32_0 = arith.constant 0 : i32
    return %c0_i32, %arg1 : i32, i32
  }
  func.func @transform_2(%arg0: i32, %arg1: i32) -> (i32, i32) {
    %c0_i32 = arith.constant 0 : i32
    %c0_i32_0 = arith.constant 0 : i32
    return %c0_i32, %arg1 : i32, i32
  }
  func.func @transform_3(%arg0: i32, %arg1: i32) -> (i32, i32) {
    %c0_i32 = arith.constant 0 : i32
    %c0_i32_0 = arith.constant 0 : i32
    return %arg1, %c0_i32 : i32, i32
  }
  func.func @transform_4(%arg0: i32, %arg1: i32) -> (i32, i32) {
    %c0_i32 = arith.constant 0 : i32
    %c0_i32_0 = arith.constant 0 : i32
    %c0_i32_1 = arith.constant 0 : i32
    return %c0_i32, %c0_i32_0 : i32, i32
  }
  func.func @transform_5(%arg0: i32, %arg1: i32) -> (i32, i32) {
    %c0_i32 = arith.constant 0 : i32
    %c0_i32_0 = arith.constant 0 : i32
    return %arg0, %c0_i32 : i32, i32
  }
}

</mosaic_0001>

<llo_original>
// kernel: tpu_custom_call.1
$region0: #{tpu_custom_call.1}
  #allocation0 [shape = 'u32[]', space=smem, size = 0x4, offset = 0x4, fixed_abs, tag = 'smem constant byte address 0x4 - core index']
  #allocation1 [shape = 'u32[144,128]{1,0:T(1,128)}', space=vmem, size = 0x12000, scoped, tag = 'internal scratch']
  #allocation2 [shape = 'f32[8,384]{1,0:T(8,128)}', space=vmem, size = 0x3000, scoped, tag = 'scratch operand']
  %s0 = inlined_call_operand.hbm [shape: bf16[16,384], index: 0, kind: input, shape index: {}]
  %s1 = inlined_call_operand.hbm [shape: bf16[384,1536], index: 1, kind: input, shape index: {}]
  %s2 = inlined_call_operand.hbm [shape: f32[1,1536], index: 2, kind: input, shape index: {}]
  %s3 = inlined_call_operand.hbm [shape: bf16[1536,384], index: 3, kind: input, shape index: {}]
  %s4 = inlined_call_operand.hbm [shape: f32[1,384], index: 4, kind: input, shape index: {}]
  %s5 = inlined_call_operand.hbm [shape: f32[16,384], index: 5, kind: output, shape index: {}]
  %s6 = sld [smem:[#allocation0]]
  $region81: #{tpu_custom_call.1} parent=0
    _
  %s8 = ssub.s32 1, %s6
  %s9 = scalar_select 0, %s8, %s6
  $region1: #{tpu_custom_call.1} parent=0
    #allocation3 [shape = 'u8[12288]{0}', space=vmem, size = 0x3000, scoped, tag = 'input window, operand 0']
    #allocation4 [shape = 's32[2]{0}', space=sflag, size = 0x8, scoped, tag = 'scoped memory for tpu_custom_call.1']
    #allocation5 [shape = 's32[2]{0}', space=sflag, size = 0x8, scoped, tag = 'scoped memory for tpu_custom_call.1']
    #allocation6 [shape = 'u8[1179648]{0}', space=vmem, size = 0x120000, scoped, tag = 'input window, operand 1, single buffered']
    #allocation7 [shape = 's32[1]{0}', space=sflag, size = 0x4, scoped, tag = 'scoped memory for tpu_custom_call.1']
    #allocation8 [shape = 'u8[6144]{0}', space=vmem, size = 0x1800, scoped, tag = 'input window, operand 2, single buffered']
    #allocation9 [shape = 'u8[1179648]{0}', space=vmem, size = 0x120000, scoped, tag = 'input window, operand 3, single buffered']
    #allocation10 [shape = 's32[1]{0}', space=sflag, size = 0x4, scoped, tag = 'scoped memory for tpu_custom_call.1']
    #allocation11 [shape = 'u8[1536]{0}', space=vmem, size = 0x800, scoped, tag = 'input window, operand 4, single buffered']
    #allocation12 [shape = 'u8[24576]{0}', space=vmem, size = 0x6000, scoped, tag = 'output window, operand 0']
    %10 = vsyncpa [#allocation4], 0
    %s11 = scalar_lea.sflag [#allocation4], 1
    %12 = vsyncpa %s11, 0
    %13 = vsyncpa [#allocation7], 0
    %14 = vsyncpa [#allocation10], 0
    %15 = vsyncpa [#allocation5], 0
    %s16 = scalar_lea.sflag [#allocation5], 1
    %17 = vsyncpa %s16, 0
    loop: start=0, step=1, limit=4
    $region2: #{tpu_custom_call.1} parent=1 // loop_pre_header
      _
    $region3: #{tpu_custom_call.1} parent=1 // loop_header
      %s19 = sphi 0, %s23
      %p20 = scmp.ge.s32.totalorder %s19, 4
      %s26 = sphi 0, %s38
      %s27 = sphi 0, %s34
      %s28 = sphi 0, %s26
      %s29 = sphi 0, %s27
      %s30 = sphi 0, %s28
      %s31 = sphi 0, %s29
      %s41 = sphi 0, %s43
      %s44 = sphi 0, %s41
      %s45 = sphi 0, %s44
      %s61 = sphi 0, %s45
      %s65 = sphi 0, %s65
      %s67 = sphi 0, %s65
      %s68 = sphi 0, %s67
      %s82 = sphi 0, %s68
      %s86 = sphi 0, %s86
      %s88 = sphi 0, %s86
      %s89 = sphi 0, %s88
      %s103 = sphi 0, %s89
      %s107 = sphi 0, %s107
      %s109 = sphi 0, %s107
      %s110 = sphi 0, %s109
      %s124 = sphi 0, %s110
      %s128 = sphi 0, %s128
      %s130 = sphi 0, %s128
      %s131 = sphi 0, %s130
      %s145 = sphi 0, %s131
      %s151 = sphi 0, %s153
      %s154 = sphi 0, %s151
      %s155 = sphi 0, %s154
      %s171 = sphi 0, %s155
    $region4: #{tpu_custom_call.1} parent=1 // loop_header_branch
      %22 = sbr.rel (%p20) target = $region8
    $region5: #{tpu_custom_call.1} parent=1 // loop_body
      %s24 = ssub.s32 %s19, 1
      %s25 = ssub.s32 %s19, 2
      %s32 = sadd.s32 1, %s27
      %p33 = scmp.ge.s32.totalorder %s32, 1
      %s34 = scalar_select %p33, 0, %s32
      %s35 = sadd.s32 1, %s26
      %s36 = scalar_select %p33, %s35, %s26
      %p37 = scmp.ge.s32.totalorder %s36, 2
      %s38 = scalar_select %p37, 0, %s36
      %s39 = ssub.s32 %s26, %s38
      %p40 = scmp.eq.s32.totalorder %s39, 0
      %s42 = sadd.s32 %s41, 1
      %s43 = scalar_select %p40, %s41, %s42
      %p46 = pneg %p40
      %p47 = scmp.eq.s32.totalorder %s19, 1
      %p48 = por %p46, %p47
      %p49 = scmp.ne.s32.totalorder %s41, %s44
      %p50 = scmp.eq.s32.totalorder %s19, 0
      %p51 = por %p49, %p50
      %p52 = scmp.ne.s32.totalorder %s41, %s44
      %p53 = scmp.eq.s32.totalorder %s24, 1
      %p54 = por %p52, %p53
      %p55 = scmp.ne.s32.totalorder %s44, %s45
      %p56 = scmp.eq.s32.totalorder %s24, 0
      %p57 = por %p55, %p56
      %p58 = scmp.ne.s32.totalorder %s44, %s45
      %p59 = scmp.eq.s32.totalorder %s25, 1
      %p60 = por %p58, %p59
      %p62 = scmp.ne.s32.totalorder %s45, %s61
      %p63 = scmp.eq.s32.totalorder %s25, 0
      %p64 = por %p62, %p63
      %s66 = sadd.s32 %s65, 1
      %p69 = scmp.eq.s32.totalorder %s19, 1
      %p70 = scmp.ne.s32.totalorder %s65, %s67
      %p71 = scmp.eq.s32.totalorder %s19, 0
      %p72 = por %p70, %p71
      %p73 = scmp.ne.s32.totalorder %s65, %s67
      %p74 = scmp.eq.s32.totalorder %s24, 1
      %p75 = por %p73, %p74
      %p76 = scmp.ne.s32.totalorder %s67, %s68
      %p77 = scmp.eq.s32.totalorder %s24, 0
      %p78 = por %p76, %p77
      %p79 = scmp.ne.s32.totalorder %s67, %s68
      %p80 = scmp.eq.s32.totalorder %s25, 1
      %p81 = por %p79, %p80
      %p83 = scmp.ne.s32.totalorder %s68, %s82
      %p84 = scmp.eq.s32.totalorder %s25, 0
      %p85 = por %p83, %p84
      %s87 = sadd.s32 %s86, 1
      %p90 = scmp.eq.s32.totalorder %s19, 1
      %p91 = scmp.ne.s32.totalorder %s86, %s88
      %p92 = scmp.eq.s32.totalorder %s19, 0
      %p93 = por %p91, %p92
      %p94 = scmp.ne.s32.totalorder %s86, %s88
      %p95 = scmp.eq.s32.totalorder %s24, 1
      %p96 = por %p94, %p95
      %p97 = scmp.ne.s32.totalorder %s88, %s89
      %p98 = scmp.eq.s32.totalorder %s24, 0
      %p99 = por %p97, %p98
      %p100 = scmp.ne.s32.totalorder %s88, %s89
      %p101 = scmp.eq.s32.totalorder %s25, 1
      %p102 = por %p100, %p101
      %p104 = scmp.ne.s32.totalorder %s89, %s103
      %p105 = scmp.eq.s32.totalorder %s25, 0
      %p106 = por %p104, %p105
      %s108 = sadd.s32 %s107, 1
      %p111 = scmp.eq.s32.totalorder %s19, 1
      %p112 = scmp.ne.s32.totalorder %s107, %s109
      %p113 = scmp.eq.s32.totalorder %s19, 0
      %p114 = por %p112, %p113
      %p115 = scmp.ne.s32.totalorder %s107, %s109
      %p116 = scmp.eq.s32.totalorder %s24, 1
      %p117 = por %p115, %p116
      %p118 = scmp.ne.s32.totalorder %s109, %s110
      %p119 = scmp.eq.s32.totalorder %s24, 0
      %p120 = por %p118, %p119
      %p121 = scmp.ne.s32.totalorder %s109, %s110
      %p122 = scmp.eq.s32.totalorder %s25, 1
      %p123 = por %p121, %p122
      %p125 = scmp.ne.s32.totalorder %s110, %s124
      %p126 = scmp.eq.s32.totalorder %s25, 0
      %p127 = por %p125, %p126
      %s129 = sadd.s32 %s128, 1
      %p132 = scmp.eq.s32.totalorder %s19, 1
      %p133 = scmp.ne.s32.totalorder %s128, %s130
      %p134 = scmp.eq.s32.totalorder %s19, 0
      %p135 = por %p133, %p134
      %p136 = scmp.ne.s32.totalorder %s128, %s130
      %p137 = scmp.eq.s32.totalorder %s24, 1
      %p138 = por %p136, %p137
      %p139 = scmp.ne.s32.totalorder %s130, %s131
      %p140 = scmp.eq.s32.totalorder %s24, 0
      %p141 = por %p139, %p140
      %p142 = scmp.ne.s32.totalorder %s130, %s131
      %p143 = scmp.eq.s32.totalorder %s25, 1
      %p144 = por %p142, %p143
      %p146 = scmp.ne.s32.totalorder %s131, %s145
      %p147 = scmp.eq.s32.totalorder %s25, 0
      %p148 = por %p146, %p147
      %s149 = ssub.s32 %s26, %s38
      %p150 = scmp.eq.s32.totalorder %s149, 0
      %s152 = sadd.s32 %s151, 1
      %s153 = scalar_select %p150, %s151, %s152
      %p156 = pneg %p150
      %p157 = scmp.eq.s32.totalorder %s19, 1
      %p158 = por %p156, %p157
      %p159 = scmp.ne.s32.totalorder %s151, %s154
      %p160 = scmp.eq.s32.totalorder %s19, 0
      %p161 = por %p159, %p160
      %p162 = scmp.ne.s32.totalorder %s151, %s154
      %p163 = scmp.eq.s32.totalorder %s24, 1
      %p164 = por %p162, %p163
      %p165 = scmp.ne.s32.totalorder %s154, %s155
      %p166 = scmp.eq.s32.totalorder %s24, 0
      %p167 = por %p165, %p166
      %p168 = scmp.ne.s32.totalorder %s154, %s155
      %p169 = scmp.eq.s32.totalorder %s25, 1
      %p170 = por %p168, %p169
      %p172 = scmp.ne.s32.totalorder %s155, %s171
      %p173 = scmp.eq.s32.totalorder %s25, 0
      %p174 = por %p172, %p173
      %p175 = scmp.le.s32.totalorder 1, %s19
      %p176 = scmp.lt.s32.totalorder %s19, 3
      %p177 = pnand %p175, %p176
      %p178 = pneg %p177
      // Predicated region
      $region9: #{tpu_custom_call.1} parent=5 // pred_check
        _
      $region10: #{tpu_custom_call.1} parent=5 // pred_check_branch
        %180 = sbr.rel (%p177) target = $region12
      $region11: #{tpu_custom_call.1} parent=5 // pred_region
        %s181 = ssub.s32 %s19, 1
        // Predicated region
        $region13: #{tpu_custom_call.1} parent=11 // pred_check
          %p182 = pneg %p78
        $region14: #{tpu_custom_call.1} parent=11 // pred_check_branch
          %184 = sbr.rel (%p182) target = $region16
        $region15: #{tpu_custom_call.1} parent=11 // pred_region
          %s186 = ssub.s32 36864, 36864
          %187 = vsyncadd [#allocation7], %s186
          %s188 = sshll.u32 [#allocation6], 4
          %s189 = int_to_ptr.vmem [resolvable:$true] %s188
          %194 = dma.hbm_to_vmem [thread:$0]  %s1, 36864, %s189, [#allocation7], 768, 768, 48
        $region16: #{tpu_custom_call.1} parent=11 // pred_fallthru
          _
        // Predicated region
        $region17: #{tpu_custom_call.1} parent=11 // pred_check
          %p195 = pneg %p99
        $region18: #{tpu_custom_call.1} parent=11 // pred_check_branch
          %197 = sbr.rel (%p195) target = $region20
        $region19: #{tpu_custom_call.1} parent=11 // pred_region
          %s199 = ssub.s32 192, 192
          %200 = vsyncadd [#allocation7], %s199
          %s202 = sshll.u32 [#allocation8], 4
          %s203 = int_to_ptr.vmem [resolvable:$true] %s202
          %205 = dma.hbm_to_vmem [thread:$0]  %s2, 192, %s203, [#allocation7]
        $region20: #{tpu_custom_call.1} parent=11 // pred_fallthru
          _
        // Predicated region
        $region21: #{tpu_custom_call.1} parent=11 // pred_check
          %p206 = pneg %p120
        $region22: #{tpu_custom_call.1} parent=11 // pred_check_branch
          %208 = sbr.rel (%p206) target = $region24
        $region23: #{tpu_custom_call.1} parent=11 // pred_region
          %s210 = ssub.s32 36864, 36864
          %211 = vsyncadd [#allocation10], %s210
          %s212 = sshll.u32 [#allocation9], 4
          %s213 = int_to_ptr.vmem [resolvable:$true] %s212
          %218 = dma.hbm_to_vmem [thread:$0]  %s3, 36864, %s213, [#allocation10], 192, 192, 12
        $region24: #{tpu_custom_call.1} parent=11 // pred_fallthru
          _
        // Predicated region
        $region25: #{tpu_custom_call.1} parent=11 // pred_check
          %p219 = pneg %p141
        $region26: #{tpu_custom_call.1} parent=11 // pred_check_branch
          %221 = sbr.rel (%p219) target = $region28
        $region27: #{tpu_custom_call.1} parent=11 // pred_region
          %s223 = ssub.s32 48, 48
          %224 = vsyncadd [#allocation10], %s223
          %s226 = sshll.u32 [#allocation11], 4
          %s227 = int_to_ptr.vmem [resolvable:$true] %s226
          %229 = dma.hbm_to_vmem [thread:$0]  %s4, 48, %s227, [#allocation10]
        $region28: #{tpu_custom_call.1} parent=11 // pred_fallthru
          _
      $region12: #{tpu_custom_call.1} parent=5 // pred_fallthru
        _
      %p230 = scmp.lt.s32.totalorder %s19, 2
      // Predicated region
      $region29: #{tpu_custom_call.1} parent=5 // pred_check
        %p231 = pneg %p230
      $region30: #{tpu_custom_call.1} parent=5 // pred_check_branch
        %233 = sbr.rel (%p231) target = $region32
      $region31: #{tpu_custom_call.1} parent=5 // pred_region
        // Predicated region
        $region33: #{tpu_custom_call.1} parent=31 // pred_check
          %p234 = pneg %p51
        $region34: #{tpu_custom_call.1} parent=31 // pred_check_branch
          %236 = sbr.rel (%p234) target = $region36
        $region35: #{tpu_custom_call.1} parent=31 // pred_region
          %s237 = sand.u32 %s41, 1
          %s238 = scalar_lea.sflag [#allocation4], %s237
          %s239 = sand.u32 %s41, 1
          %s240 = smul.addr %s239, 12
          %s241 = scalar_lea.vmem [#allocation3], %s240
          %s243 = ssub.s32 192, 192
          %244 = vsyncadd %s238, %s243
          %s245 = smul.addr %s26, 3
          %s246 = smul.addr %s245, 64
          %s247 = scalar_lea.hbm %s0, %s246
          %s249 = sshll.u32 %s241, 4
          %s250 = int_to_ptr.vmem [resolvable:$true] %s249
          %252 = dma.hbm_to_vmem [thread:$0]  %s247, 192, %s250, %s238
        $region36: #{tpu_custom_call.1} parent=31 // pred_fallthru
          _
      $region32: #{tpu_custom_call.1} parent=5 // pred_fallthru
        _
      %p253 = scmp.le.s32.totalorder 1, %s19
      %p254 = scmp.lt.s32.totalorder %s19, 3
      %p255 = pnand %p253, %p254
      %p256 = pneg %p255
      // Predicated region
      $region37: #{tpu_custom_call.1} parent=5 // pred_check
        _
      $region38: #{tpu_custom_call.1} parent=5 // pred_check_branch
        %258 = sbr.rel (%p255) target = $region40
      $region39: #{tpu_custom_call.1} parent=5 // pred_region
        %s259 = ssub.s32 %s19, 1
        %s260 = sand.u32 %s44, 1
        %s261 = scalar_lea.sflag [#allocation4], %s260
        %s262 = sand.u32 %s44, 1
        %s263 = smul.addr %s262, 12
        %s264 = scalar_lea.vmem [#allocation3], %s263
        // Predicated region
        $region41: #{tpu_custom_call.1} parent=39 // pred_check
          %p265 = pneg %p57
        $region42: #{tpu_custom_call.1} parent=39 // pred_check_branch
          %267 = sbr.rel (%p265) target = $region44
        $region43: #{tpu_custom_call.1} parent=39 // pred_region
          %268 = dma.done %s261, 192
        $region44: #{tpu_custom_call.1} parent=39 // pred_fallthru
          _
        // Predicated region
        $region45: #{tpu_custom_call.1} parent=39 // pred_check
          %p269 = pneg %p78
        $region46: #{tpu_custom_call.1} parent=39 // pred_check_branch
          %271 = sbr.rel (%p269) target = $region48
        $region47: #{tpu_custom_call.1} parent=39 // pred_region
          %272 = dma.done [#allocation7], 36864
        $region48: #{tpu_custom_call.1} parent=39 // pred_fallthru
          _
        // Predicated region
        $region49: #{tpu_custom_call.1} parent=39 // pred_check
          %p273 = pneg %p99
        $region50: #{tpu_custom_call.1} parent=39 // pred_check_branch
          %275 = sbr.rel (%p273) target = $region52
        $region51: #{tpu_custom_call.1} parent=39 // pred_region
          %276 = dma.done [#allocation7], 192
        $region52: #{tpu_custom_call.1} parent=39 // pred_fallthru
          _
        // Predicated region
        $region53: #{tpu_custom_call.1} parent=39 // pred_check
          %p277 = pneg %p120
        $region54: #{tpu_custom_call.1} parent=39 // pred_check_branch
          %279 = sbr.rel (%p277) target = $region56
        $region55: #{tpu_custom_call.1} parent=39 // pred_region
          %280 = dma.done [#allocation10], 36864
        $region56: #{tpu_custom_call.1} parent=39 // pred_fallthru
          _
        // Predicated region
        $region57: #{tpu_custom_call.1} parent=39 // pred_check
          %p281 = pneg %p141
        $region58: #{tpu_custom_call.1} parent=39 // pred_check_branch
          %283 = sbr.rel (%p281) target = $region60
        $region59: #{tpu_custom_call.1} parent=39 // pred_region
          %284 = dma.done [#allocation10], 48
        $region60: #{tpu_custom_call.1} parent=39 // pred_fallthru
          _
        %s285 = sand.u32 %s44, 1
        %s286 = scalar_lea.sflag [#allocation4], %s285
        %s287 = sand.u32 %s44, 1
        %s288 = smul.addr %s287, 12
        %s289 = scalar_lea.vmem [#allocation3], %s288
        %p290 = pneg %p57
        %p291 = pneg %p54
        %p292 = pneg %p78
        %p293 = pneg %p75
        %p294 = pneg %p99
        %p295 = pneg %p96
        %p296 = pneg %p120
        %p297 = pneg %p117
        %p298 = pneg %p141
        %p299 = pneg %p138
        %p300 = pneg %p167
        %p301 = pneg %p164
        %s302 = sand.u32 %s154, 1
        %s303 = scalar_lea.sflag [#allocation5], %s302
        %s304 = sand.u32 %s154, 1
        %s305 = smul.addr %s304, 24
        %s306 = scalar_lea.vmem [#allocation12], %s305
        %p308 = scmp.eq.s32.totalorder %s29, 0
        // Predicated region
        $region61: #{tpu_custom_call.1} parent=39 // pred_check
          %p309 = pneg %p308
        $region62: #{tpu_custom_call.1} parent=39 // pred_check_branch
          %311 = sbr.rel (%p309) target = $region64
        $region63: #{tpu_custom_call.1} parent=39 // pred_region
          %312 = vst [vmem:[#allocation2] sm:$0xff] 0.0
          %313 = vst [vmem:[#allocation2 + $0x8] sm:$0xff] 0.0
          %314 = vst [vmem:[#allocation2 + $0x10] sm:$0xff] 0.0
        $region64: #{tpu_custom_call.1} parent=39 // pred_fallthru
          _
        %v315 = vld [vmem:[%s264] sm:$0xff]
        %v316 = vld [vmem:[%s264 + $0x8] sm:$0xf]
        %v317 = vld [vmem:[#allocation6] sm:$0xff]
        %v318 = vld [vmem:[#allocation6 + $0x8] sm:$0xff]
        %v319 = vld [vmem:[#allocation6 + $0x10] sm:$0xff]
        %v320 = vld [vmem:[#allocation6 + $0x18] sm:$0xff]
        %v321 = vld [vmem:[#allocation6 + $0x20] sm:$0xff]
        %v322 = vld [vmem:[#allocation6 + $0x28] sm:$0xff]
        %v323 = vld [vmem:[#allocation6 + $0x30] sm:$0xff]
        %v324 = vld [vmem:[#allocation6 + $0x38] sm:$0xff]
        %v325 = vld [vmem:[#allocation6 + $0x40] sm:$0xff]
        %v326 = vld [vmem:[#allocation6 + $0x48] sm:$0xff]
        %v327 = vld [vmem:[#allocation6 + $0x50] sm:$0xff]
        %v328 = vld [vmem:[#allocation6 + $0x58] sm:$0xff]
        %v329 = vld [vmem:[#allocation6 + $0x60] sm:$0xff]
        %v330 = vld [vmem:[#allocation6 + $0x68] sm:$0xff]
        %v331 = vld [vmem:[#allocation6 + $0x70] sm:$0xff]
        %v332 = vld [vmem:[#allocation6 + $0x78] sm:$0xff]
        %v333 = vld [vmem:[#allocation6 + $0x80] sm:$0xff]
        %v334 = vld [vmem:[#allocation6 + $0x88] sm:$0xff]
        %v335 = vld [vmem:[#allocation6 + $0x90] sm:$0xff]
        %v336 = vld [vmem:[#allocation6 + $0x98] sm:$0xff]
        %v337 = vld [vmem:[#allocation6 + $0xa0] sm:$0xff]
        %v338 = vld [vmem:[#allocation6 + $0xa8] sm:$0xff]
        %v339 = vld [vmem:[#allocation6 + $0xb0] sm:$0xff]
        %v340 = vld [vmem:[#allocation6 + $0xb8] sm:$0xff]
        %v341 = vld [vmem:[#allocation6 + $0xc0] sm:$0xff]
        %v342 = vld [vmem:[#allocation6 + $0xc8] sm:$0xff]
        %v343 = vld [vmem:[#allocation6 + $0xd0] sm:$0xff]
        %v344 = vld [vmem:[#allocation6 + $0xd8] sm:$0xff]
        %v345 = vld [vmem:[#allocation6 + $0xe0] sm:$0xff]
        %v346 = vld [vmem:[#allocation6 + $0xe8] sm:$0xff]
        %v347 = vld [vmem:[#allocation6 + $0xf0] sm:$0xff]
        %v348 = vld [vmem:[#allocation6 + $0xf8] sm:$0xff]
        %v349 = vld [vmem:[#allocation6 + $0x100] sm:$0xff]
        %v350 = vld [vmem:[#allocation6 + $0x108] sm:$0xff]
        %v351 = vld [vmem:[#allocation6 + $0x110] sm:$0xff]
        %v352 = vld [vmem:[#allocation6 + $0x118] sm:$0xff]
        %v353 = vld [vmem:[#allocation6 + $0x120] sm:$0xff]
        %v354 = vld [vmem:[#allocation6 + $0x128] sm:$0xff]
        %v355 = vld [vmem:[#allocation6 + $0x130] sm:$0xff]
        %v356 = vld [vmem:[#allocation6 + $0x138] sm:$0xff]
        %v357 = vld [vmem:[#allocation6 + $0x140] sm:$0xff]
        %v358 = vld [vmem:[#allocation6 + $0x148] sm:$0xff]
        %v359 = vld [vmem:[#allocation6 + $0x150] sm:$0xff]
        %v360 = vld [vmem:[#allocation6 + $0x158] sm:$0xff]
        %v361 = vld [vmem:[#allocation6 + $0x160] sm:$0xff]
        %v362 = vld [vmem:[#allocation6 + $0x168] sm:$0xff]
        %v363 = vld [vmem:[#allocation6 + $0x170] sm:$0xff]
        %v364 = vld [vmem:[#allocation6 + $0x178] sm:$0xff]
        %v365 = vld [vmem:[#allocation6 + $0x180] sm:$0xff]
        %v366 = vld [vmem:[#allocation6 + $0x188] sm:$0xff]
        %v367 = vld [vmem:[#allocation6 + $0x190] sm:$0xff]
        %v368 = vld [vmem:[#allocation6 + $0x198] sm:$0xff]
        %v369 = vld [vmem:[#allocation6 + $0x1a0] sm:$0xff]
        %v370 = vld [vmem:[#allocation6 + $0x1a8] sm:$0xff]
        %v371 = vld [vmem:[#allocation6 + $0x1b0] sm:$0xff]
        %v372 = vld [vmem:[#allocation6 + $0x1b8] sm:$0xff]
        %v373 = vld [vmem:[#allocation6 + $0x1c0] sm:$0xff]
        %v374 = vld [vmem:[#allocation6 + $0x1c8] sm:$0xff]
        %v375 = vld [vmem:[#allocation6 + $0x1d0] sm:$0xff]
        %v376 = vld [vmem:[#allocation6 + $0x1d8] sm:$0xff]
        %v377 = vld [vmem:[#allocation6 + $0x1e0] sm:$0xff]
        %v378 = vld [vmem:[#allocation6 + $0x1e8] sm:$0xff]
        %v379 = vld [vmem:[#allocation6 + $0x1f0] sm:$0xff]
        %v380 = vld [vmem:[#allocation6 + $0x1f8] sm:$0xff]
        %v381 = vld [vmem:[#allocation6 + $0x200] sm:$0xff]
        %v382 = vld [vmem:[#allocation6 + $0x208] sm:$0xff]
        %v383 = vld [vmem:[#allocation6 + $0x210] sm:$0xff]
        %v384 = vld [vmem:[#allocation6 + $0x218] sm:$0xff]
        %v385 = vld [vmem:[#allocation6 + $0x220] sm:$0xff]
        %v386 = vld [vmem:[#allocation6 + $0x228] sm:$0xff]
        %v387 = vld [vmem:[#allocation6 + $0x230] sm:$0xff]
        %v388 = vld [vmem:[#allocation6 + $0x238] sm:$0xff]
        %v389 = vld [vmem:[#allocation6 + $0x240] sm:$0xff]
        %v390 = vld [vmem:[#allocation6 + $0x248] sm:$0xff]
        %v391 = vld [vmem:[#allocation6 + $0x250] sm:$0xff]
        %v392 = vld [vmem:[#allocation6 + $0x258] sm:$0xff]
        %v393 = vld [vmem:[#allocation6 + $0x260] sm:$0xff]
        %v394 = vld [vmem:[#allocation6 + $0x268] sm:$0xff]
        %v395 = vld [vmem:[#allocation6 + $0x270] sm:$0xff]
        %v396 = vld [vmem:[#allocation6 + $0x278] sm:$0xff]
        %v397 = vld [vmem:[#allocation6 + $0x280] sm:$0xff]
        %v398 = vld [vmem:[#allocation6 + $0x288] sm:$0xff]
        %v399 = vld [vmem:[#allocation6 + $0x290] sm:$0xff]
        %v400 = vld [vmem:[#allocation6 + $0x298] sm:$0xff]
        %v401 = vld [vmem:[#allocation6 + $0x2a0] sm:$0xff]
        %v402 = vld [vmem:[#allocation6 + $0x2a8] sm:$0xff]
        %v403 = vld [vmem:[#allocation6 + $0x2b0] sm:$0xff]
        %v404 = vld [vmem:[#allocation6 + $0x2b8] sm:$0xff]
        %v405 = vld [vmem:[#allocation6 + $0x2c0] sm:$0xff]
        %v406 = vld [vmem:[#allocation6 + $0x2c8] sm:$0xff]
        %v407 = vld [vmem:[#allocation6 + $0x2d0] sm:$0xff]
        %v408 = vld [vmem:[#allocation6 + $0x2d8] sm:$0xff]
        %v409 = vld [vmem:[#allocation6 + $0x2e0] sm:$0xff]
        %v410 = vld [vmem:[#allocation6 + $0x2e8] sm:$0xff]
        %v411 = vld [vmem:[#allocation6 + $0x2f0] sm:$0xff]
        %v412 = vld [vmem:[#allocation6 + $0x2f8] sm:$0xff]
        %v413 = vld [vmem:[#allocation6 + $0x300] sm:$0xff]
        %v414 = vld [vmem:[#allocation6 + $0x308] sm:$0xff]
        %v415 = vld [vmem:[#allocation6 + $0x310] sm:$0xff]
        %v416 = vld [vmem:[#allocation6 + $0x318] sm:$0xff]
        %v417 = vld [vmem:[#allocation6 + $0x320] sm:$0xff]
        %v418 = vld [vmem:[#allocation6 + $0x328] sm:$0xff]
        %v419 = vld [vmem:[#allocation6 + $0x330] sm:$0xff]
        %v420 = vld [vmem:[#allocation6 + $0x338] sm:$0xff]
        %v421 = vld [vmem:[#allocation6 + $0x340] sm:$0xff]
        %v422 = vld [vmem:[#allocation6 + $0x348] sm:$0xff]
        %v423 = vld [vmem:[#allocation6 + $0x350] sm:$0xff]
        %v424 = vld [vmem:[#allocation6 + $0x358] sm:$0xff]
        %v425 = vld [vmem:[#allocation6 + $0x360] sm:$0xff]
        %v426 = vld [vmem:[#allocation6 + $0x368] sm:$0xff]
        %v427 = vld [vmem:[#allocation6 + $0x370] sm:$0xff]
        %v428 = vld [vmem:[#allocation6 + $0x378] sm:$0xff]
        %v429 = vld [vmem:[#allocation6 + $0x380] sm:$0xff]
        %v430 = vld [vmem:[#allocation6 + $0x388] sm:$0xff]
        %v431 = vld [vmem:[#allocation6 + $0x390] sm:$0xff]
        %v432 = vld [vmem:[#allocation6 + $0x398] sm:$0xff]
        %v433 = vld [vmem:[#allocation6 + $0x3a0] sm:$0xff]
        %v434 = vld [vmem:[#allocation6 + $0x3a8] sm:$0xff]
        %v435 = vld [vmem:[#allocation6 + $0x3b0] sm:$0xff]
        %v436 = vld [vmem:[#allocation6 + $0x3b8] sm:$0xff]
        %v437 = vld [vmem:[#allocation6 + $0x3c0] sm:$0xff]
        %v438 = vld [vmem:[#allocation6 + $0x3c8] sm:$0xff]
        %v439 = vld [vmem:[#allocation6 + $0x3d0] sm:$0xff]
        %v440 = vld [vmem:[#allocation6 + $0x3d8] sm:$0xff]
        %v441 = vld [vmem:[#allocation6 + $0x3e0] sm:$0xff]
        %v442 = vld [vmem:[#allocation6 + $0x3e8] sm:$0xff]
        %v443 = vld [vmem:[#allocation6 + $0x3f0] sm:$0xff]
        %v444 = vld [vmem:[#allocation6 + $0x3f8] sm:$0xff]
        %v445 = vld [vmem:[#allocation6 + $0x400] sm:$0xff]
        %v446 = vld [vmem:[#allocation6 + $0x408] sm:$0xff]
        %v447 = vld [vmem:[#allocation6 + $0x410] sm:$0xff]
        %v448 = vld [vmem:[#allocation6 + $0x418] sm:$0xff]
        %v449 = vld [vmem:[#allocation6 + $0x420] sm:$0xff]
        %v450 = vld [vmem:[#allocation6 + $0x428] sm:$0xff]
        %v451 = vld [vmem:[#allocation6 + $0x430] sm:$0xff]
        %v452 = vld [vmem:[#allocation6 + $0x438] sm:$0xff]
        %v453 = vld [vmem:[#allocation6 + $0x440] sm:$0xff]
        %v454 = vld [vmem:[#allocation6 + $0x448] sm:$0xff]
        %v455 = vld [vmem:[#allocation6 + $0x450] sm:$0xff]
        %v456 = vld [vmem:[#allocation6 + $0x458] sm:$0xff]
        %v457 = vld [vmem:[#allocation6 + $0x460] sm:$0xff]
        %v458 = vld [vmem:[#allocation6 + $0x468] sm:$0xff]
        %v459 = vld [vmem:[#allocation6 + $0x470] sm:$0xff]
        %v460 = vld [vmem:[#allocation6 + $0x478] sm:$0xff]
        %v461 = vld [vmem:[#allocation6 + $0x480] sm:$0xff]
        %v462 = vld [vmem:[#allocation6 + $0x488] sm:$0xff]
        %v463 = vld [vmem:[#allocation6 + $0x490] sm:$0xff]
        %v464 = vld [vmem:[#allocation6 + $0x498] sm:$0xff]
        %v465 = vld [vmem:[#allocation6 + $0x4a0] sm:$0xff]
        %v466 = vld [vmem:[#allocation6 + $0x4a8] sm:$0xff]
        %v467 = vld [vmem:[#allocation6 + $0x4b0] sm:$0xff]
        %v468 = vld [vmem:[#allocation6 + $0x4b8] sm:$0xff]
        %v469 = vld [vmem:[#allocation6 + $0x4c0] sm:$0xff]
        %v470 = vld [vmem:[#allocation6 + $0x4c8] sm:$0xff]
        %v471 = vld [vmem:[#allocation6 + $0x4d0] sm:$0xff]
        %v472 = vld [vmem:[#allocation6 + $0x4d8] sm:$0xff]
        %v473 = vld [vmem:[#allocation6 + $0x4e0] sm:$0xff]
        %v474 = vld [vmem:[#allocation6 + $0x4e8] sm:$0xff]
        %v475 = vld [vmem:[#allocation6 + $0x4f0] sm:$0xff]
        %v476 = vld [vmem:[#allocation6 + $0x4f8] sm:$0xff]
        %v477 = vld [vmem:[#allocation6 + $0x500] sm:$0xff]
        %v478 = vld [vmem:[#allocation6 + $0x508] sm:$0xff]
        %v479 = vld [vmem:[#allocation6 + $0x510] sm:$0xff]
        %v480 = vld [vmem:[#allocation6 + $0x518] sm:$0xff]
        %v481 = vld [vmem:[#allocation6 + $0x520] sm:$0xff]
        %v482 = vld [vmem:[#allocation6 + $0x528] sm:$0xff]
        %v483 = vld [vmem:[#allocation6 + $0x530] sm:$0xff]
        %v484 = vld [vmem:[#allocation6 + $0x538] sm:$0xff]
        %v485 = vld [vmem:[#allocation6 + $0x540] sm:$0xff]
        %v486 = vld [vmem:[#allocation6 + $0x548] sm:$0xff]
        %v487 = vld [vmem:[#allocation6 + $0x550] sm:$0xff]
        %v488 = vld [vmem:[#allocation6 + $0x558] sm:$0xff]
        %v489 = vld [vmem:[#allocation6 + $0x560] sm:$0xff]
        %v490 = vld [vmem:[#allocation6 + $0x568] sm:$0xff]
        %v491 = vld [vmem:[#allocation6 + $0x570] sm:$0xff]
        %v492 = vld [vmem:[#allocation6 + $0x578] sm:$0xff]
        %v493 = vld [vmem:[#allocation6 + $0x580] sm:$0xff]
        %v494 = vld [vmem:[#allocation6 + $0x588] sm:$0xff]
        %v495 = vld [vmem:[#allocation6 + $0x590] sm:$0xff]
        %v496 = vld [vmem:[#allocation6 + $0x598] sm:$0xff]
        %v497 = vld [vmem:[#allocation6 + $0x5a0] sm:$0xff]
        %v498 = vld [vmem:[#allocation6 + $0x5a8] sm:$0xff]
        %v499 = vld [vmem:[#allocation6 + $0x5b0] sm:$0xff]
        %v500 = vld [vmem:[#allocation6 + $0x5b8] sm:$0xff]
        %v501 = vld [vmem:[#allocation6 + $0x5c0] sm:$0xff]
        %v502 = vld [vmem:[#allocation6 + $0x5c8] sm:$0xff]
        %v503 = vld [vmem:[#allocation6 + $0x5d0] sm:$0xff]
        %v504 = vld [vmem:[#allocation6 + $0x5d8] sm:$0xff]
        %v505 = vld [vmem:[#allocation6 + $0x5e0] sm:$0xff]
        %v506 = vld [vmem:[#allocation6 + $0x5e8] sm:$0xff]
        %v507 = vld [vmem:[#allocation6 + $0x5f0] sm:$0xff]
        %v508 = vld [vmem:[#allocation6 + $0x5f8] sm:$0xff]
        %v509 = vld [vmem:[#allocation6 + $0x600] sm:$0xff]
        %v510 = vld [vmem:[#allocation6 + $0x608] sm:$0xff]
        %v511 = vld [vmem:[#allocation6 + $0x610] sm:$0xff]
        %v512 = vld [vmem:[#allocation6 + $0x618] sm:$0xff]
        %v513 = vld [vmem:[#allocation6 + $0x620] sm:$0xff]
        %v514 = vld [vmem:[#allocation6 + $0x628] sm:$0xff]
        %v515 = vld [vmem:[#allocation6 + $0x630] sm:$0xff]
        %v516 = vld [vmem:[#allocation6 + $0x638] sm:$0xff]
        %v517 = vld [vmem:[#allocation6 + $0x640] sm:$0xff]
        %v518 = vld [vmem:[#allocation6 + $0x648] sm:$0xff]
        %v519 = vld [vmem:[#allocation6 + $0x650] sm:$0xff]
        %v520 = vld [vmem:[#allocation6 + $0x658] sm:$0xff]
        %v521 = vld [vmem:[#allocation6 + $0x660] sm:$0xff]
        %v522 = vld [vmem:[#allocation6 + $0x668] sm:$0xff]
        %v523 = vld [vmem:[#allocation6 + $0x670] sm:$0xff]
        %v524 = vld [vmem:[#allocation6 + $0x678] sm:$0xff]
        %v525 = vld [vmem:[#allocation6 + $0x680] sm:$0xff]
        %v526 = vld [vmem:[#allocation6 + $0x688] sm:$0xff]
        %v527 = vld [vmem:[#allocation6 + $0x690] sm:$0xff]
        %v528 = vld [vmem:[#allocation6 + $0x698] sm:$0xff]
        %v529 = vld [vmem:[#allocation6 + $0x6a0] sm:$0xff]
        %v530 = vld [vmem:[#allocation6 + $0x6a8] sm:$0xff]
        %v531 = vld [vmem:[#allocation6 + $0x6b0] sm:$0xff]
        %v532 = vld [vmem:[#allocation6 + $0x6b8] sm:$0xff]
        %v533 = vld [vmem:[#allocation6 + $0x6c0] sm:$0xff]
        %v534 = vld [vmem:[#allocation6 + $0x6c8] sm:$0xff]
        %v535 = vld [vmem:[#allocation6 + $0x6d0] sm:$0xff]
        %v536 = vld [vmem:[#allocation6 + $0x6d8] sm:$0xff]
        %v537 = vld [vmem:[#allocation6 + $0x6e0] sm:$0xff]
        %v538 = vld [vmem:[#allocation6 + $0x6e8] sm:$0xff]
        %v539 = vld [vmem:[#allocation6 + $0x6f0] sm:$0xff]
        %v540 = vld [vmem:[#allocation6 + $0x6f8] sm:$0xff]
        %v541 = vld [vmem:[#allocation6 + $0x700] sm:$0xff]
        %v542 = vld [vmem:[#allocation6 + $0x708] sm:$0xff]
        %v543 = vld [vmem:[#allocation6 + $0x710] sm:$0xff]
        %v544 = vld [vmem:[#allocation6 + $0x718] sm:$0xff]
        %v545 = vld [vmem:[#allocation6 + $0x720] sm:$0xff]
        %v546 = vld [vmem:[#allocation6 + $0x728] sm:$0xff]
        %v547 = vld [vmem:[#allocation6 + $0x730] sm:$0xff]
        %v548 = vld [vmem:[#allocation6 + $0x738] sm:$0xff]
        %v549 = vld [vmem:[#allocation6 + $0x740] sm:$0xff]
        %v550 = vld [vmem:[#allocation6 + $0x748] sm:$0xff]
        %v551 = vld [vmem:[#allocation6 + $0x750] sm:$0xff]
        %v552 = vld [vmem:[#allocation6 + $0x758] sm:$0xff]
        %v553 = vld [vmem:[#allocation6 + $0x760] sm:$0xff]
        %v554 = vld [vmem:[#allocation6 + $0x768] sm:$0xff]
        %v555 = vld [vmem:[#allocation6 + $0x770] sm:$0xff]
        %v556 = vld [vmem:[#allocation6 + $0x778] sm:$0xff]
        %v557 = vld [vmem:[#allocation6 + $0x780] sm:$0xff]
        %v558 = vld [vmem:[#allocation6 + $0x788] sm:$0xff]
        %v559 = vld [vmem:[#allocation6 + $0x790] sm:$0xff]
        %v560 = vld [vmem:[#allocation6 + $0x798] sm:$0xff]
        %v561 = vld [vmem:[#allocation6 + $0x7a0] sm:$0xff]
        %v562 = vld [vmem:[#allocation6 + $0x7a8] sm:$0xff]
        %v563 = vld [vmem:[#allocation6 + $0x7b0] sm:$0xff]
        %v564 = vld [vmem:[#allocation6 + $0x7b8] sm:$0xff]
        %v565 = vld [vmem:[#allocation6 + $0x7c0] sm:$0xff]
        %v566 = vld [vmem:[#allocation6 + $0x7c8] sm:$0xff]
        %v567 = vld [vmem:[#allocation6 + $0x7d0] sm:$0xff]
        %v568 = vld [vmem:[#allocation6 + $0x7d8] sm:$0xff]
        %v569 = vld [vmem:[#allocation6 + $0x7e0] sm:$0xff]
        %v570 = vld [vmem:[#allocation6 + $0x7e8] sm:$0xff]
        %v571 = vld [vmem:[#allocation6 + $0x7f0] sm:$0xff]
        %v572 = vld [vmem:[#allocation6 + $0x7f8] sm:$0xff]
        %v573 = vld [vmem:[#allocation6 + $0x800] sm:$0xff]
        %v574 = vld [vmem:[#allocation6 + $0x808] sm:$0xff]
        %v575 = vld [vmem:[#allocation6 + $0x810] sm:$0xff]
        %v576 = vld [vmem:[#allocation6 + $0x818] sm:$0xff]
        %v577 = vld [vmem:[#allocation6 + $0x820] sm:$0xff]
        %v578 = vld [vmem:[#allocation6 + $0x828] sm:$0xff]
        %v579 = vld [vmem:[#allocation6 + $0x830] sm:$0xff]
        %v580 = vld [vmem:[#allocation6 + $0x838] sm:$0xff]
        %v581 = vld [vmem:[#allocation6 + $0x840] sm:$0xff]
        %v582 = vld [vmem:[#allocation6 + $0x848] sm:$0xff]
        %v583 = vld [vmem:[#allocation6 + $0x850] sm:$0xff]
        %v584 = vld [vmem:[#allocation6 + $0x858] sm:$0xff]
        %v585 = vld [vmem:[#allocation6 + $0x860] sm:$0xff]
        %v586 = vld [vmem:[#allocation6 + $0x868] sm:$0xff]
        %v587 = vld [vmem:[#allocation6 + $0x870] sm:$0xff]
        %v588 = vld [vmem:[#allocation6 + $0x878] sm:$0xff]
        %v589 = vld [vmem:[#allocation6 + $0x880] sm:$0xff]
        %v590 = vld [vmem:[#allocation6 + $0x888] sm:$0xff]
        %v591 = vld [vmem:[#allocation6 + $0x890] sm:$0xff]
        %v592 = vld [vmem:[#allocation6 + $0x898] sm:$0xff]
        %v593 = vld [vmem:[#allocation6 + $0x8a0] sm:$0xff]
        %v594 = vld [vmem:[#allocation6 + $0x8a8] sm:$0xff]
        %v595 = vld [vmem:[#allocation6 + $0x8b0] sm:$0xff]
        %v596 = vld [vmem:[#allocation6 + $0x8b8] sm:$0xff]
        %v597 = vld [vmem:[#allocation6 + $0x8c0] sm:$0xff]
        %v598 = vld [vmem:[#allocation6 + $0x8c8] sm:$0xff]
        %v599 = vld [vmem:[#allocation6 + $0x8d0] sm:$0xff]
        %v600 = vld [vmem:[#allocation6 + $0x8d8] sm:$0xff]
        %v601 = vld [vmem:[#allocation6 + $0x8e0] sm:$0xff]
        %v602 = vld [vmem:[#allocation6 + $0x8e8] sm:$0xff]
        %v603 = vld [vmem:[#allocation6 + $0x8f0] sm:$0xff]
        %v604 = vld [vmem:[#allocation6 + $0x8f8] sm:$0xff]
        %v605 = vld [vmem:[#allocation8] sm:$0xff]
        %v606 = vld [vmem:[#allocation8 + $0x8] sm:$0xf]
        %v609 = vlaneseq
        %v610 = vshrl.u32 %v609, 7
        %v611 = vsub.s32 0, %v610
        %v612 = vrot.slane %v605, %v611
        %v613 = vlaneseq
        %v614 = vshrl.u32 %v613, 7
        %v615 = vsub.s32 1, %v614
        %v616 = vrot.slane %v605, %v615
        %v617 = vlaneseq
        %v618 = vshrl.u32 %v617, 7
        %v619 = vsub.s32 2, %v618
        %v620 = vrot.slane %v605, %v619
        %v621 = vlaneseq
        %v622 = vshrl.u32 %v621, 7
        %v623 = vsub.s32 3, %v622
        %v624 = vrot.slane %v605, %v623
        %v625 = vlaneseq
        %v626 = vshrl.u32 %v625, 7
        %v627 = vsub.s32 4, %v626
        %v628 = vrot.slane %v605, %v627
        %v629 = vlaneseq
        %v630 = vshrl.u32 %v629, 7
        %v631 = vsub.s32 5, %v630
        %v632 = vrot.slane %v605, %v631
        %v633 = vlaneseq
        %v634 = vshrl.u32 %v633, 7
        %v635 = vsub.s32 6, %v634
        %v636 = vrot.slane %v605, %v635
        %v637 = vlaneseq
        %v638 = vshrl.u32 %v637, 7
        %v639 = vsub.s32 7, %v638
        %v640 = vrot.slane %v605, %v639
        %v641 = vlaneseq
        %v642 = vshrl.u32 %v641, 7
        %v643 = vsub.s32 0, %v642
        %v644 = vrot.slane %v606, %v643
        %v645 = vlaneseq
        %v646 = vshrl.u32 %v645, 7
        %v647 = vsub.s32 1, %v646
        %v648 = vrot.slane %v606, %v647
        %v649 = vlaneseq
        %v650 = vshrl.u32 %v649, 7
        %v651 = vsub.s32 2, %v650
        %v652 = vrot.slane %v606, %v651
        %v653 = vlaneseq
        %v654 = vshrl.u32 %v653, 7
        %v655 = vsub.s32 3, %v654
        %v656 = vrot.slane %v606, %v655
        %v671 = vunpack.c.l.b16 %v315
        %v672 = vunpack.c.h.b16 %v315
        %v673 = vunpack.c.l.b16 %v316
        %v674 = vpack.c.b16 %v671, %v671
        %v675 = vpack.c.b16 %v672, %v672
        %v676 = vpack.c.b16 %v673, %v673
        %v968 = vunpack.c.l.b16 %v317
        %v969 = vunpack.c.h.b16 %v317
        %v970 = vunpack.c.l.b16 %v318
        %v971 = vunpack.c.h.b16 %v318
        %v972 = vunpack.c.l.b16 %v319
        %v973 = vunpack.c.h.b16 %v319
        %v974 = vunpack.c.l.b16 %v320
        %v975 = vunpack.c.h.b16 %v320
        %v976 = vunpack.c.l.b16 %v321
        %v977 = vunpack.c.h.b16 %v321
        %v978 = vunpack.c.l.b16 %v322
        %v979 = vunpack.c.h.b16 %v322
        %v980 = vunpack.c.l.b16 %v323
        %v981 = vunpack.c.h.b16 %v323
        %v982 = vunpack.c.l.b16 %v324
        %v983 = vunpack.c.h.b16 %v324
        %v984 = vunpack.c.l.b16 %v325
        %v985 = vunpack.c.h.b16 %v325
        %v986 = vunpack.c.l.b16 %v326
        %v987 = vunpack.c.h.b16 %v326
        %v988 = vunpack.c.l.b16 %v327
        %v989 = vunpack.c.h.b16 %v327
        %v990 = vunpack.c.l.b16 %v328
        %v991 = vunpack.c.h.b16 %v328
        %v992 = vunpack.c.l.b16 %v329
        %v993 = vunpack.c.h.b16 %v329
        %v994 = vunpack.c.l.b16 %v330
        %v995 = vunpack.c.h.b16 %v330
        %v996 = vunpack.c.l.b16 %v331
        %v997 = vunpack.c.h.b16 %v331
        %v998 = vunpack.c.l.b16 %v332
        %v999 = vunpack.c.h.b16 %v332
        %v1000 = vunpack.c.l.b16 %v333
        %v1001 = vunpack.c.h.b16 %v333
        %v1002 = vunpack.c.l.b16 %v334
        %v1003 = vunpack.c.h.b16 %v334
        %v1004 = vunpack.c.l.b16 %v335
        %v1005 = vunpack.c.h.b16 %v335
        %v1006 = vunpack.c.l.b16 %v336
        %v1007 = vunpack.c.h.b16 %v336
        %v1008 = vunpack.c.l.b16 %v337
        %v1009 = vunpack.c.h.b16 %v337
        %v1010 = vunpack.c.l.b16 %v338
        %v1011 = vunpack.c.h.b16 %v338
        %v1012 = vunpack.c.l.b16 %v339
        %v1013 = vunpack.c.h.b16 %v339
        %v1014 = vunpack.c.l.b16 %v340
        %v1015 = vunpack.c.h.b16 %v340
        %v1016 = vunpack.c.l.b16 %v341
        %v1017 = vunpack.c.h.b16 %v341
        %v1018 = vunpack.c.l.b16 %v342
        %v1019 = vunpack.c.h.b16 %v342
        %v1020 = vunpack.c.l.b16 %v343
        %v1021 = vunpack.c.h.b16 %v343
        %v1022 = vunpack.c.l.b16 %v344
        %v1023 = vunpack.c.h.b16 %v344
        %v1024 = vunpack.c.l.b16 %v345
        %v1025 = vunpack.c.h.b16 %v345
        %v1026 = vunpack.c.l.b16 %v346
        %v1027 = vunpack.c.h.b16 %v346
        %v1028 = vunpack.c.l.b16 %v347
        %v1029 = vunpack.c.h.b16 %v347
        %v1030 = vunpack.c.l.b16 %v348
        %v1031 = vunpack.c.h.b16 %v348
        %v1032 = vunpack.c.l.b16 %v349
        %v1033 = vunpack.c.h.b16 %v349
        %v1034 = vunpack.c.l.b16 %v350
        %v1035 = vunpack.c.h.b16 %v350
        %v1036 = vunpack.c.l.b16 %v351
        %v1037 = vunpack.c.h.b16 %v351
        %v1038 = vunpack.c.l.b16 %v352
        %v1039 = vunpack.c.h.b16 %v352
        %v1040 = vunpack.c.l.b16 %v353
        %v1041 = vunpack.c.h.b16 %v353
        %v1042 = vunpack.c.l.b16 %v354
        %v1043 = vunpack.c.h.b16 %v354
        %v1044 = vunpack.c.l.b16 %v355
        %v1045 = vunpack.c.h.b16 %v355
        %v1046 = vunpack.c.l.b16 %v356
        %v1047 = vunpack.c.h.b16 %v356
        %v1048 = vunpack.c.l.b16 %v357
        %v1049 = vunpack.c.h.b16 %v357
        %v1050 = vunpack.c.l.b16 %v358
        %v1051 = vunpack.c.h.b16 %v358
        %v1052 = vunpack.c.l.b16 %v359
        %v1053 = vunpack.c.h.b16 %v359
        %v1054 = vunpack.c.l.b16 %v360
        %v1055 = vunpack.c.h.b16 %v360
        %v1056 = vunpack.c.l.b16 %v361
        %v1057 = vunpack.c.h.b16 %v361
        %v1058 = vunpack.c.l.b16 %v362
        %v1059 = vunpack.c.h.b16 %v362
        %v1060 = vunpack.c.l.b16 %v363
        %v1061 = vunpack.c.h.b16 %v363
        %v1062 = vunpack.c.l.b16 %v364
        %v1063 = vunpack.c.h.b16 %v364
        %v1064 = vunpack.c.l.b16 %v365
        %v1065 = vunpack.c.h.b16 %v365
        %v1066 = vunpack.c.l.b16 %v366
        %v1067 = vunpack.c.h.b16 %v366
        %v1068 = vunpack.c.l.b16 %v367
        %v1069 = vunpack.c.h.b16 %v367
        %v1070 = vunpack.c.l.b16 %v368
        %v1071 = vunpack.c.h.b16 %v368
        %v1072 = vunpack.c.l.b16 %v369
        %v1073 = vunpack.c.h.b16 %v369
        %v1074 = vunpack.c.l.b16 %v370
        %v1075 = vunpack.c.h.b16 %v370
        %v1076 = vunpack.c.l.b16 %v371
        %v1077 = vunpack.c.h.b16 %v371
        %v1078 = vunpack.c.l.b16 %v372
        %v1079 = vunpack.c.h.b16 %v372
        %v1080 = vunpack.c.l.b16 %v373
        %v1081 = vunpack.c.h.b16 %v373
        %v1082 = vunpack.c.l.b16 %v374
        %v1083 = vunpack.c.h.b16 %v374
        %v1084 = vunpack.c.l.b16 %v375
        %v1085 = vunpack.c.h.b16 %v375
        %v1086 = vunpack.c.l.b16 %v376
        %v1087 = vunpack.c.h.b16 %v376
        %v1088 = vunpack.c.l.b16 %v377
        %v1089 = vunpack.c.h.b16 %v377
        %v1090 = vunpack.c.l.b16 %v378
        %v1091 = vunpack.c.h.b16 %v378
        %v1092 = vunpack.c.l.b16 %v379
        %v1093 = vunpack.c.h.b16 %v379
        %v1094 = vunpack.c.l.b16 %v380
        %v1095 = vunpack.c.h.b16 %v380
        %v1096 = vunpack.c.l.b16 %v381
        %v1097 = vunpack.c.h.b16 %v381
        %v1098 = vunpack.c.l.b16 %v382
        %v1099 = vunpack.c.h.b16 %v382
        %v1100 = vunpack.c.l.b16 %v383
        %v1101 = vunpack.c.h.b16 %v383
        %v1102 = vunpack.c.l.b16 %v384
        %v1103 = vunpack.c.h.b16 %v384
        %v1104 = vunpack.c.l.b16 %v385
        %v1105 = vunpack.c.h.b16 %v385
        %v1106 = vunpack.c.l.b16 %v386
        %v1107 = vunpack.c.h.b16 %v386
        %v1108 = vunpack.c.l.b16 %v387
        %v1109 = vunpack.c.h.b16 %v387
        %v1110 = vunpack.c.l.b16 %v388
        %v1111 = vunpack.c.h.b16 %v388
        %v1112 = vunpack.c.l.b16 %v389
        %v1113 = vunpack.c.h.b16 %v389
        %v1114 = vunpack.c.l.b16 %v390
        %v1115 = vunpack.c.h.b16 %v390
        %v1116 = vunpack.c.l.b16 %v391
        %v1117 = vunpack.c.h.b16 %v391
        %v1118 = vunpack.c.l.b16 %v392
        %v1119 = vunpack.c.h.b16 %v392
        %v1120 = vunpack.c.l.b16 %v393
        %v1121 = vunpack.c.h.b16 %v393
        %v1122 = vunpack.c.l.b16 %v394
        %v1123 = vunpack.c.h.b16 %v394
        %v1124 = vunpack.c.l.b16 %v395
        %v1125 = vunpack.c.h.b16 %v395
        %v1126 = vunpack.c.l.b16 %v396
        %v1127 = vunpack.c.h.b16 %v396
        %v1128 = vunpack.c.l.b16 %v397
        %v1129 = vunpack.c.h.b16 %v397
        %v1130 = vunpack.c.l.b16 %v398
        %v1131 = vunpack.c.h.b16 %v398
        %v1132 = vunpack.c.l.b16 %v399
        %v1133 = vunpack.c.h.b16 %v399
        %v1134 = vunpack.c.l.b16 %v400
        %v1135 = vunpack.c.h.b16 %v400
        %v1136 = vunpack.c.l.b16 %v401
        %v1137 = vunpack.c.h.b16 %v401
        %v1138 = vunpack.c.l.b16 %v402
        %v1139 = vunpack.c.h.b16 %v402
        %v1140 = vunpack.c.l.b16 %v403
        %v1141 = vunpack.c.h.b16 %v403
        %v1142 = vunpack.c.l.b16 %v404
        %v1143 = vunpack.c.h.b16 %v404
        %v1144 = vunpack.c.l.b16 %v405
        %v1145 = vunpack.c.h.b16 %v405
        %v1146 = vunpack.c.l.b16 %v406
        %v1147 = vunpack.c.h.b16 %v406
        %v1148 = vunpack.c.l.b16 %v407
        %v1149 = vunpack.c.h.b16 %v407
        %v1150 = vunpack.c.l.b16 %v408
        %v1151 = vunpack.c.h.b16 %v408
        %v1152 = vunpack.c.l.b16 %v409
        %v1153 = vunpack.c.h.b16 %v409
        %v1154 = vunpack.c.l.b16 %v410
        %v1155 = vunpack.c.h.b16 %v410
        %v1156 = vunpack.c.l.b16 %v411
        %v1157 = vunpack.c.h.b16 %v411
        %v1158 = vunpack.c.l.b16 %v412
        %v1159 = vunpack.c.h.b16 %v412
        %v1160 = vunpack.c.l.b16 %v413
        %v1161 = vunpack.c.h.b16 %v413
        %v1162 = vunpack.c.l.b16 %v414
        %v1163 = vunpack.c.h.b16 %v414
        %v1164 = vunpack.c.l.b16 %v415
        %v1165 = vunpack.c.h.b16 %v415
        %v1166 = vunpack.c.l.b16 %v416
        %v1167 = vunpack.c.h.b16 %v416
        %v1168 = vunpack.c.l.b16 %v417
        %v1169 = vunpack.c.h.b16 %v417
        %v1170 = vunpack.c.l.b16 %v418
        %v1171 = vunpack.c.h.b16 %v418
        %v1172 = vunpack.c.l.b16 %v419
        %v1173 = vunpack.c.h.b16 %v419
        %v1174 = vunpack.c.l.b16 %v420
        %v1175 = vunpack.c.h.b16 %v420
        %v1176 = vunpack.c.l.b16 %v421
        %v1177 = vunpack.c.h.b16 %v421
        %v1178 = vunpack.c.l.b16 %v422
        %v1179 = vunpack.c.h.b16 %v422
        %v1180 = vunpack.c.l.b16 %v423
        %v1181 = vunpack.c.h.b16 %v423
        %v1182 = vunpack.c.l.b16 %v424
        %v1183 = vunpack.c.h.b16 %v424
        %v1184 = vunpack.c.l.b16 %v425
        %v1185 = vunpack.c.h.b16 %v425
        %v1186 = vunpack.c.l.b16 %v426
        %v1187 = vunpack.c.h.b16 %v426
        %v1188 = vunpack.c.l.b16 %v427
        %v1189 = vunpack.c.h.b16 %v427
        %v1190 = vunpack.c.l.b16 %v428
        %v1191 = vunpack.c.h.b16 %v428
        %v1192 = vunpack.c.l.b16 %v429
        %v1193 = vunpack.c.h.b16 %v429
        %v1194 = vunpack.c.l.b16 %v430
        %v1195 = vunpack.c.h.b16 %v430
        %v1196 = vunpack.c.l.b16 %v431
        %v1197 = vunpack.c.h.b16 %v431
        %v1198 = vunpack.c.l.b16 %v432
        %v1199 = vunpack.c.h.b16 %v432
        %v1200 = vunpack.c.l.b16 %v433
        %v1201 = vunpack.c.h.b16 %v433
        %v1202 = vunpack.c.l.b16 %v434
        %v1203 = vunpack.c.h.b16 %v434
        %v1204 = vunpack.c.l.b16 %v435
        %v1205 = vunpack.c.h.b16 %v435
        %v1206 = vunpack.c.l.b16 %v436
        %v1207 = vunpack.c.h.b16 %v436
        %v1208 = vunpack.c.l.b16 %v437
        %v1209 = vunpack.c.h.b16 %v437
        %v1210 = vunpack.c.l.b16 %v438
        %v1211 = vunpack.c.h.b16 %v438
        %v1212 = vunpack.c.l.b16 %v439
        %v1213 = vunpack.c.h.b16 %v439
        %v1214 = vunpack.c.l.b16 %v440
        %v1215 = vunpack.c.h.b16 %v440
        %v1216 = vunpack.c.l.b16 %v441
        %v1217 = vunpack.c.h.b16 %v441
        %v1218 = vunpack.c.l.b16 %v442
        %v1219 = vunpack.c.h.b16 %v442
        %v1220 = vunpack.c.l.b16 %v443
        %v1221 = vunpack.c.h.b16 %v443
        %v1222 = vunpack.c.l.b16 %v444
        %v1223 = vunpack.c.h.b16 %v444
        %v1224 = vunpack.c.l.b16 %v445
        %v1225 = vunpack.c.h.b16 %v445
        %v1226 = vunpack.c.l.b16 %v446
        %v1227 = vunpack.c.h.b16 %v446
        %v1228 = vunpack.c.l.b16 %v447
        %v1229 = vunpack.c.h.b16 %v447
        %v1230 = vunpack.c.l.b16 %v448
        %v1231 = vunpack.c.h.b16 %v448
        %v1232 = vunpack.c.l.b16 %v449
        %v1233 = vunpack.c.h.b16 %v449
        %v1234 = vunpack.c.l.b16 %v450
        %v1235 = vunpack.c.h.b16 %v450
        %v1236 = vunpack.c.l.b16 %v451
        %v1237 = vunpack.c.h.b16 %v451
        %v1238 = vunpack.c.l.b16 %v452
        %v1239 = vunpack.c.h.b16 %v452
        %v1240 = vunpack.c.l.b16 %v453
        %v1241 = vunpack.c.h.b16 %v453
        %v1242 = vunpack.c.l.b16 %v454
        %v1243 = vunpack.c.h.b16 %v454
        %v1244 = vunpack.c.l.b16 %v455
        %v1245 = vunpack.c.h.b16 %v455
        %v1246 = vunpack.c.l.b16 %v456
        %v1247 = vunpack.c.h.b16 %v456
        %v1248 = vunpack.c.l.b16 %v457
        %v1249 = vunpack.c.h.b16 %v457
        %v1250 = vunpack.c.l.b16 %v458
        %v1251 = vunpack.c.h.b16 %v458
        %v1252 = vunpack.c.l.b16 %v459
        %v1253 = vunpack.c.h.b16 %v459
        %v1254 = vunpack.c.l.b16 %v460
        %v1255 = vunpack.c.h.b16 %v460
        %v1256 = vunpack.c.l.b16 %v461
        %v1257 = vunpack.c.h.b16 %v461
        %v1258 = vunpack.c.l.b16 %v462
        %v1259 = vunpack.c.h.b16 %v462
        %v1260 = vunpack.c.l.b16 %v463
        %v1261 = vunpack.c.h.b16 %v463
        %v1262 = vunpack.c.l.b16 %v464
        %v1263 = vunpack.c.h.b16 %v464
        %v1264 = vunpack.c.l.b16 %v465
        %v1265 = vunpack.c.h.b16 %v465
        %v1266 = vunpack.c.l.b16 %v466
        %v1267 = vunpack.c.h.b16 %v466
        %v1268 = vunpack.c.l.b16 %v467
        %v1269 = vunpack.c.h.b16 %v467
        %v1270 = vunpack.c.l.b16 %v468
        %v1271 = vunpack.c.h.b16 %v468
        %v1272 = vunpack.c.l.b16 %v469
        %v1273 = vunpack.c.h.b16 %v469
        %v1274 = vunpack.c.l.b16 %v470
        %v1275 = vunpack.c.h.b16 %v470
        %v1276 = vunpack.c.l.b16 %v471
        %v1277 = vunpack.c.h.b16 %v471
        %v1278 = vunpack.c.l.b16 %v472
        %v1279 = vunpack.c.h.b16 %v472
        %v1280 = vunpack.c.l.b16 %v473
        %v1281 = vunpack.c.h.b16 %v473
        %v1282 = vunpack.c.l.b16 %v474
        %v1283 = vunpack.c.h.b16 %v474
        %v1284 = vunpack.c.l.b16 %v475
        %v1285 = vunpack.c.h.b16 %v475
        %v1286 = vunpack.c.l.b16 %v476
        %v1287 = vunpack.c.h.b16 %v476
        %v1288 = vunpack.c.l.b16 %v477
        %v1289 = vunpack.c.h.b16 %v477
        %v1290 = vunpack.c.l.b16 %v478
        %v1291 = vunpack.c.h.b16 %v478
        %v1292 = vunpack.c.l.b16 %v479
        %v1293 = vunpack.c.h.b16 %v479
        %v1294 = vunpack.c.l.b16 %v480
        %v1295 = vunpack.c.h.b16 %v480
        %v1296 = vunpack.c.l.b16 %v481
        %v1297 = vunpack.c.h.b16 %v481
        %v1298 = vunpack.c.l.b16 %v482
        %v1299 = vunpack.c.h.b16 %v482
        %v1300 = vunpack.c.l.b16 %v483
        %v1301 = vunpack.c.h.b16 %v483
        %v1302 = vunpack.c.l.b16 %v484
        %v1303 = vunpack.c.h.b16 %v484
        %v1304 = vunpack.c.l.b16 %v485
        %v1305 = vunpack.c.h.b16 %v485
        %v1306 = vunpack.c.l.b16 %v486
        %v1307 = vunpack.c.h.b16 %v486
        %v1308 = vunpack.c.l.b16 %v487
        %v1309 = vunpack.c.h.b16 %v487
        %v1310 = vunpack.c.l.b16 %v488
        %v1311 = vunpack.c.h.b16 %v488
        %v1312 = vunpack.c.l.b16 %v489
        %v1313 = vunpack.c.h.b16 %v489
        %v1314 = vunpack.c.l.b16 %v490
        %v1315 = vunpack.c.h.b16 %v490
        %v1316 = vunpack.c.l.b16 %v491
        %v1317 = vunpack.c.h.b16 %v491
        %v1318 = vunpack.c.l.b16 %v492
        %v1319 = vunpack.c.h.b16 %v492
        %v1320 = vunpack.c.l.b16 %v493
        %v1321 = vunpack.c.h.b16 %v493
        %v1322 = vunpack.c.l.b16 %v494
        %v1323 = vunpack.c.h.b16 %v494
        %v1324 = vunpack.c.l.b16 %v495
        %v1325 = vunpack.c.h.b16 %v495
        %v1326 = vunpack.c.l.b16 %v496
        %v1327 = vunpack.c.h.b16 %v496
        %v1328 = vunpack.c.l.b16 %v497
        %v1329 = vunpack.c.h.b16 %v497
        %v1330 = vunpack.c.l.b16 %v498
        %v1331 = vunpack.c.h.b16 %v498
        %v1332 = vunpack.c.l.b16 %v499
        %v1333 = vunpack.c.h.b16 %v499
        %v1334 = vunpack.c.l.b16 %v500
        %v1335 = vunpack.c.h.b16 %v500
        %v1336 = vunpack.c.l.b16 %v501
        %v1337 = vunpack.c.h.b16 %v501
        %v1338 = vunpack.c.l.b16 %v502
        %v1339 = vunpack.c.h.b16 %v502
        %v1340 = vunpack.c.l.b16 %v503
        %v1341 = vunpack.c.h.b16 %v503
        %v1342 = vunpack.c.l.b16 %v504
        %v1343 = vunpack.c.h.b16 %v504
        %v1344 = vunpack.c.l.b16 %v505
        %v1345 = vunpack.c.h.b16 %v505
        %v1346 = vunpack.c.l.b16 %v506
        %v1347 = vunpack.c.h.b16 %v506
        %v1348 = vunpack.c.l.b16 %v507
        %v1349 = vunpack.c.h.b16 %v507
        %v1350 = vunpack.c.l.b16 %v508
        %v1351 = vunpack.c.h.b16 %v508
        %v1352 = vunpack.c.l.b16 %v509
        %v1353 = vunpack.c.h.b16 %v509
        %v1354 = vunpack.c.l.b16 %v510
        %v1355 = vunpack.c.h.b16 %v510
        %v1356 = vunpack.c.l.b16 %v511
        %v1357 = vunpack.c.h.b16 %v511
        %v1358 = vunpack.c.l.b16 %v512
        %v1359 = vunpack.c.h.b16 %v512
        %v1360 = vunpack.c.l.b16 %v513
        %v1361 = vunpack.c.h.b16 %v513
        %v1362 = vunpack.c.l.b16 %v514
        %v1363 = vunpack.c.h.b16 %v514
        %v1364 = vunpack.c.l.b16 %v515
        %v1365 = vunpack.c.h.b16 %v515
        %v1366 = vunpack.c.l.b16 %v516
        %v1367 = vunpack.c.h.b16 %v516
        %v1368 = vunpack.c.l.b16 %v517
        %v1369 = vunpack.c.h.b16 %v517
        %v1370 = vunpack.c.l.b16 %v518
        %v1371 = vunpack.c.h.b16 %v518
        %v1372 = vunpack.c.l.b16 %v519
        %v1373 = vunpack.c.h.b16 %v519
        %v1374 = vunpack.c.l.b16 %v520
        %v1375 = vunpack.c.h.b16 %v520
        %v1376 = vunpack.c.l.b16 %v521
        %v1377 = vunpack.c.h.b16 %v521
        %v1378 = vunpack.c.l.b16 %v522
        %v1379 = vunpack.c.h.b16 %v522
        %v1380 = vunpack.c.l.b16 %v523
        %v1381 = vunpack.c.h.b16 %v523
        %v1382 = vunpack.c.l.b16 %v524
        %v1383 = vunpack.c.h.b16 %v524
        %v1384 = vunpack.c.l.b16 %v525
        %v1385 = vunpack.c.h.b16 %v525
        %v1386 = vunpack.c.l.b16 %v526
        %v1387 = vunpack.c.h.b16 %v526
        %v1388 = vunpack.c.l.b16 %v527
        %v1389 = vunpack.c.h.b16 %v527
        %v1390 = vunpack.c.l.b16 %v528
        %v1391 = vunpack.c.h.b16 %v528
        %v1392 = vunpack.c.l.b16 %v529
        %v1393 = vunpack.c.h.b16 %v529
        %v1394 = vunpack.c.l.b16 %v530
        %v1395 = vunpack.c.h.b16 %v530
        %v1396 = vunpack.c.l.b16 %v531
        %v1397 = vunpack.c.h.b16 %v531
        %v1398 = vunpack.c.l.b16 %v532
        %v1399 = vunpack.c.h.b16 %v532
        %v1400 = vunpack.c.l.b16 %v533
        %v1401 = vunpack.c.h.b16 %v533
        %v1402 = vunpack.c.l.b16 %v534
        %v1403 = vunpack.c.h.b16 %v534
        %v1404 = vunpack.c.l.b16 %v535
        %v1405 = vunpack.c.h.b16 %v535
        %v1406 = vunpack.c.l.b16 %v536
        %v1407 = vunpack.c.h.b16 %v536
        %v1408 = vunpack.c.l.b16 %v537
        %v1409 = vunpack.c.h.b16 %v537
        %v1410 = vunpack.c.l.b16 %v538
        %v1411 = vunpack.c.h.b16 %v538
        %v1412 = vunpack.c.l.b16 %v539
        %v1413 = vunpack.c.h.b16 %v539
        %v1414 = vunpack.c.l.b16 %v540
        %v1415 = vunpack.c.h.b16 %v540
        %v1416 = vunpack.c.l.b16 %v541
        %v1417 = vunpack.c.h.b16 %v541
        %v1418 = vunpack.c.l.b16 %v542
        %v1419 = vunpack.c.h.b16 %v542
        %v1420 = vunpack.c.l.b16 %v543
        %v1421 = vunpack.c.h.b16 %v543
        %v1422 = vunpack.c.l.b16 %v544
        %v1423 = vunpack.c.h.b16 %v544
        %v1424 = vunpack.c.l.b16 %v545
        %v1425 = vunpack.c.h.b16 %v545
        %v1426 = vunpack.c.l.b16 %v546
        %v1427 = vunpack.c.h.b16 %v546
        %v1428 = vunpack.c.l.b16 %v547
        %v1429 = vunpack.c.h.b16 %v547
        %v1430 = vunpack.c.l.b16 %v548
        %v1431 = vunpack.c.h.b16 %v548
        %v1432 = vunpack.c.l.b16 %v549
        %v1433 = vunpack.c.h.b16 %v549
        %v1434 = vunpack.c.l.b16 %v550
        %v1435 = vunpack.c.h.b16 %v550
        %v1436 = vunpack.c.l.b16 %v551
        %v1437 = vunpack.c.h.b16 %v551
        %v1438 = vunpack.c.l.b16 %v552
        %v1439 = vunpack.c.h.b16 %v552
        %v1440 = vunpack.c.l.b16 %v553
        %v1441 = vunpack.c.h.b16 %v553
        %v1442 = vunpack.c.l.b16 %v554
        %v1443 = vunpack.c.h.b16 %v554
        %v1444 = vunpack.c.l.b16 %v555
        %v1445 = vunpack.c.h.b16 %v555
        %v1446 = vunpack.c.l.b16 %v556
        %v1447 = vunpack.c.h.b16 %v556
        %v1448 = vunpack.c.l.b16 %v557
        %v1449 = vunpack.c.h.b16 %v557
        %v1450 = vunpack.c.l.b16 %v558
        %v1451 = vunpack.c.h.b16 %v558
        %v1452 = vunpack.c.l.b16 %v559
        %v1453 = vunpack.c.h.b16 %v559
        %v1454 = vunpack.c.l.b16 %v560
        %v1455 = vunpack.c.h.b16 %v560
        %v1456 = vunpack.c.l.b16 %v561
        %v1457 = vunpack.c.h.b16 %v561
        %v1458 = vunpack.c.l.b16 %v562
        %v1459 = vunpack.c.h.b16 %v562
        %v1460 = vunpack.c.l.b16 %v563
        %v1461 = vunpack.c.h.b16 %v563
        %v1462 = vunpack.c.l.b16 %v564
        %v1463 = vunpack.c.h.b16 %v564
        %v1464 = vunpack.c.l.b16 %v565
        %v1465 = vunpack.c.h.b16 %v565
        %v1466 = vunpack.c.l.b16 %v566
        %v1467 = vunpack.c.h.b16 %v566
        %v1468 = vunpack.c.l.b16 %v567
        %v1469 = vunpack.c.h.b16 %v567
        %v1470 = vunpack.c.l.b16 %v568
        %v1471 = vunpack.c.h.b16 %v568
        %v1472 = vunpack.c.l.b16 %v569
        %v1473 = vunpack.c.h.b16 %v569
        %v1474 = vunpack.c.l.b16 %v570
        %v1475 = vunpack.c.h.b16 %v570
        %v1476 = vunpack.c.l.b16 %v571
        %v1477 = vunpack.c.h.b16 %v571
        %v1478 = vunpack.c.l.b16 %v572
        %v1479 = vunpack.c.h.b16 %v572
        %v1480 = vunpack.c.l.b16 %v573
        %v1481 = vunpack.c.h.b16 %v573
        %v1482 = vunpack.c.l.b16 %v574
        %v1483 = vunpack.c.h.b16 %v574
        %v1484 = vunpack.c.l.b16 %v575
        %v1485 = vunpack.c.h.b16 %v575
        %v1486 = vunpack.c.l.b16 %v576
        %v1487 = vunpack.c.h.b16 %v576
        %v1488 = vunpack.c.l.b16 %v577
        %v1489 = vunpack.c.h.b16 %v577
        %v1490 = vunpack.c.l.b16 %v578
        %v1491 = vunpack.c.h.b16 %v578
        %v1492 = vunpack.c.l.b16 %v579
        %v1493 = vunpack.c.h.b16 %v579
        %v1494 = vunpack.c.l.b16 %v580
        %v1495 = vunpack.c.h.b16 %v580
        %v1496 = vunpack.c.l.b16 %v581
        %v1497 = vunpack.c.h.b16 %v581
        %v1498 = vunpack.c.l.b16 %v582
        %v1499 = vunpack.c.h.b16 %v582
        %v1500 = vunpack.c.l.b16 %v583
        %v1501 = vunpack.c.h.b16 %v583
        %v1502 = vunpack.c.l.b16 %v584
        %v1503 = vunpack.c.h.b16 %v584
        %v1504 = vunpack.c.l.b16 %v585
        %v1505 = vunpack.c.h.b16 %v585
        %v1506 = vunpack.c.l.b16 %v586
        %v1507 = vunpack.c.h.b16 %v586
        %v1508 = vunpack.c.l.b16 %v587
        %v1509 = vunpack.c.h.b16 %v587
        %v1510 = vunpack.c.l.b16 %v588
        %v1511 = vunpack.c.h.b16 %v588
        %v1512 = vunpack.c.l.b16 %v589
        %v1513 = vunpack.c.h.b16 %v589
        %v1514 = vunpack.c.l.b16 %v590
        %v1515 = vunpack.c.h.b16 %v590
        %v1516 = vunpack.c.l.b16 %v591
        %v1517 = vunpack.c.h.b16 %v591
        %v1518 = vunpack.c.l.b16 %v592
        %v1519 = vunpack.c.h.b16 %v592
        %v1520 = vunpack.c.l.b16 %v593
        %v1521 = vunpack.c.h.b16 %v593
        %v1522 = vunpack.c.l.b16 %v594
        %v1523 = vunpack.c.h.b16 %v594
        %v1524 = vunpack.c.l.b16 %v595
        %v1525 = vunpack.c.h.b16 %v595
        %v1526 = vunpack.c.l.b16 %v596
        %v1527 = vunpack.c.h.b16 %v596
        %v1528 = vunpack.c.l.b16 %v597
        %v1529 = vunpack.c.h.b16 %v597
        %v1530 = vunpack.c.l.b16 %v598
        %v1531 = vunpack.c.h.b16 %v598
        %v1532 = vunpack.c.l.b16 %v599
        %v1533 = vunpack.c.h.b16 %v599
        %v1534 = vunpack.c.l.b16 %v600
        %v1535 = vunpack.c.h.b16 %v600
        %v1536 = vunpack.c.l.b16 %v601
        %v1537 = vunpack.c.h.b16 %v601
        %v1538 = vunpack.c.l.b16 %v602
        %v1539 = vunpack.c.h.b16 %v602
        %v1540 = vunpack.c.l.b16 %v603
        %v1541 = vunpack.c.h.b16 %v603
        %v1542 = vunpack.c.l.b16 %v604
        %v1543 = vunpack.c.h.b16 %v604
        %v1544 = vpack.c.b16 %v980, %v968
        %v1545 = vpack.c.b16 %v981, %v969
        %v1546 = vpack.c.b16 %v982, %v970
        %v1547 = vpack.c.b16 %v983, %v971
        %v1548 = vpack.c.b16 %v984, %v972
        %v1549 = vpack.c.b16 %v985, %v973
        %v1550 = vpack.c.b16 %v986, %v974
        %v1551 = vpack.c.b16 %v987, %v975
        %v1552 = vpack.c.b16 %v988, %v976
        %v1553 = vpack.c.b16 %v989, %v977
        %v1554 = vpack.c.b16 %v990, %v978
        %v1555 = vpack.c.b16 %v991, %v979
        %v1556 = vpack.c.b16 %v1004, %v992
        %v1557 = vpack.c.b16 %v1005, %v993
        %v1558 = vpack.c.b16 %v1006, %v994
        %v1559 = vpack.c.b16 %v1007, %v995
        %v1560 = vpack.c.b16 %v1008, %v996
        %v1561 = vpack.c.b16 %v1009, %v997
        %v1562 = vpack.c.b16 %v1010, %v998
        %v1563 = vpack.c.b16 %v1011, %v999
        %v1564 = vpack.c.b16 %v1012, %v1000
        %v1565 = vpack.c.b16 %v1013, %v1001
        %v1566 = vpack.c.b16 %v1014, %v1002
        %v1567 = vpack.c.b16 %v1015, %v1003
        %v1568 = vpack.c.b16 %v1028, %v1016
        %v1569 = vpack.c.b16 %v1029, %v1017
        %v1570 = vpack.c.b16 %v1030, %v1018
        %v1571 = vpack.c.b16 %v1031, %v1019
        %v1572 = vpack.c.b16 %v1032, %v1020
        %v1573 = vpack.c.b16 %v1033, %v1021
        %v1574 = vpack.c.b16 %v1034, %v1022
        %v1575 = vpack.c.b16 %v1035, %v1023
        %v1576 = vpack.c.b16 %v1036, %v1024
        %v1577 = vpack.c.b16 %v1037, %v1025
        %v1578 = vpack.c.b16 %v1038, %v1026
        %v1579 = vpack.c.b16 %v1039, %v1027
        %v1580 = vpack.c.b16 %v1052, %v1040
        %v1581 = vpack.c.b16 %v1053, %v1041
        %v1582 = vpack.c.b16 %v1054, %v1042
        %v1583 = vpack.c.b16 %v1055, %v1043
        %v1584 = vpack.c.b16 %v1056, %v1044
        %v1585 = vpack.c.b16 %v1057, %v1045
        %v1586 = vpack.c.b16 %v1058, %v1046
        %v1587 = vpack.c.b16 %v1059, %v1047
        %v1588 = vpack.c.b16 %v1060, %v1048
        %v1589 = vpack.c.b16 %v1061, %v1049
        %v1590 = vpack.c.b16 %v1062, %v1050
        %v1591 = vpack.c.b16 %v1063, %v1051
        %v1592 = vpack.c.b16 %v1076, %v1064
        %v1593 = vpack.c.b16 %v1077, %v1065
        %v1594 = vpack.c.b16 %v1078, %v1066
        %v1595 = vpack.c.b16 %v1079, %v1067
        %v1596 = vpack.c.b16 %v1080, %v1068
        %v1597 = vpack.c.b16 %v1081, %v1069
        %v1598 = vpack.c.b16 %v1082, %v1070
        %v1599 = vpack.c.b16 %v1083, %v1071
        %v1600 = vpack.c.b16 %v1084, %v1072
        %v1601 = vpack.c.b16 %v1085, %v1073
        %v1602 = vpack.c.b16 %v1086, %v1074
        %v1603 = vpack.c.b16 %v1087, %v1075
        %v1604 = vpack.c.b16 %v1100, %v1088
        %v1605 = vpack.c.b16 %v1101, %v1089
        %v1606 = vpack.c.b16 %v1102, %v1090
        %v1607 = vpack.c.b16 %v1103, %v1091
        %v1608 = vpack.c.b16 %v1104, %v1092
        %v1609 = vpack.c.b16 %v1105, %v1093
        %v1610 = vpack.c.b16 %v1106, %v1094
        %v1611 = vpack.c.b16 %v1107, %v1095
        %v1612 = vpack.c.b16 %v1108, %v1096
        %v1613 = vpack.c.b16 %v1109, %v1097
        %v1614 = vpack.c.b16 %v1110, %v1098
        %v1615 = vpack.c.b16 %v1111, %v1099
        %v1616 = vpack.c.b16 %v1124, %v1112
        %v1617 = vpack.c.b16 %v1125, %v1113
        %v1618 = vpack.c.b16 %v1126, %v1114
        %v1619 = vpack.c.b16 %v1127, %v1115
        %v1620 = vpack.c.b16 %v1128, %v1116
        %v1621 = vpack.c.b16 %v1129, %v1117
        %v1622 = vpack.c.b16 %v1130, %v1118
        %v1623 = vpack.c.b16 %v1131, %v1119
        %v1624 = vpack.c.b16 %v1132, %v1120
        %v1625 = vpack.c.b16 %v1133, %v1121
        %v1626 = vpack.c.b16 %v1134, %v1122
        %v1627 = vpack.c.b16 %v1135, %v1123
        %v1628 = vpack.c.b16 %v1148, %v1136
        %v1629 = vpack.c.b16 %v1149, %v1137
        %v1630 = vpack.c.b16 %v1150, %v1138
        %v1631 = vpack.c.b16 %v1151, %v1139
        %v1632 = vpack.c.b16 %v1152, %v1140
        %v1633 = vpack.c.b16 %v1153, %v1141
        %v1634 = vpack.c.b16 %v1154, %v1142
        %v1635 = vpack.c.b16 %v1155, %v1143
        %v1636 = vpack.c.b16 %v1156, %v1144
        %v1637 = vpack.c.b16 %v1157, %v1145
        %v1638 = vpack.c.b16 %v1158, %v1146
        %v1639 = vpack.c.b16 %v1159, %v1147
        %v1640 = vpack.c.b16 %v1172, %v1160
        %v1641 = vpack.c.b16 %v1173, %v1161
        %v1642 = vpack.c.b16 %v1174, %v1162
        %v1643 = vpack.c.b16 %v1175, %v1163
        %v1644 = vpack.c.b16 %v1176, %v1164
        %v1645 = vpack.c.b16 %v1177, %v1165
        %v1646 = vpack.c.b16 %v1178, %v1166
        %v1647 = vpack.c.b16 %v1179, %v1167
        %v1648 = vpack.c.b16 %v1180, %v1168
        %v1649 = vpack.c.b16 %v1181, %v1169
        %v1650 = vpack.c.b16 %v1182, %v1170
        %v1651 = vpack.c.b16 %v1183, %v1171
        %v1652 = vpack.c.b16 %v1196, %v1184
        %v1653 = vpack.c.b16 %v1197, %v1185
        %v1654 = vpack.c.b16 %v1198, %v1186
        %v1655 = vpack.c.b16 %v1199, %v1187
        %v1656 = vpack.c.b16 %v1200, %v1188
        %v1657 = vpack.c.b16 %v1201, %v1189
        %v1658 = vpack.c.b16 %v1202, %v1190
        %v1659 = vpack.c.b16 %v1203, %v1191
        %v1660 = vpack.c.b16 %v1204, %v1192
        %v1661 = vpack.c.b16 %v1205, %v1193
        %v1662 = vpack.c.b16 %v1206, %v1194
        %v1663 = vpack.c.b16 %v1207, %v1195
        %v1664 = vpack.c.b16 %v1220, %v1208
        %v1665 = vpack.c.b16 %v1221, %v1209
        %v1666 = vpack.c.b16 %v1222, %v1210
        %v1667 = vpack.c.b16 %v1223, %v1211
        %v1668 = vpack.c.b16 %v1224, %v1212
        %v1669 = vpack.c.b16 %v1225, %v1213
        %v1670 = vpack.c.b16 %v1226, %v1214
        %v1671 = vpack.c.b16 %v1227, %v1215
        %v1672 = vpack.c.b16 %v1228, %v1216
        %v1673 = vpack.c.b16 %v1229, %v1217
        %v1674 = vpack.c.b16 %v1230, %v1218
        %v1675 = vpack.c.b16 %v1231, %v1219
        %v1676 = vpack.c.b16 %v1244, %v1232
        %v1677 = vpack.c.b16 %v1245, %v1233
        %v1678 = vpack.c.b16 %v1246, %v1234
        %v1679 = vpack.c.b16 %v1247, %v1235
        %v1680 = vpack.c.b16 %v1248, %v1236
        %v1681 = vpack.c.b16 %v1249, %v1237
        %v1682 = vpack.c.b16 %v1250, %v1238
        %v1683 = vpack.c.b16 %v1251, %v1239
        %v1684 = vpack.c.b16 %v1252, %v1240
        %v1685 = vpack.c.b16 %v1253, %v1241
        %v1686 = vpack.c.b16 %v1254, %v1242
        %v1687 = vpack.c.b16 %v1255, %v1243
        %v1688 = vpack.c.b16 %v1268, %v1256
        %v1689 = vpack.c.b16 %v1269, %v1257
        %v1690 = vpack.c.b16 %v1270, %v1258
        %v1691 = vpack.c.b16 %v1271, %v1259
        %v1692 = vpack.c.b16 %v1272, %v1260
        %v1693 = vpack.c.b16 %v1273, %v1261
        %v1694 = vpack.c.b16 %v1274, %v1262
        %v1695 = vpack.c.b16 %v1275, %v1263
        %v1696 = vpack.c.b16 %v1276, %v1264
        %v1697 = vpack.c.b16 %v1277, %v1265
        %v1698 = vpack.c.b16 %v1278, %v1266
        %v1699 = vpack.c.b16 %v1279, %v1267
        %v1700 = vpack.c.b16 %v1292, %v1280
        %v1701 = vpack.c.b16 %v1293, %v1281
        %v1702 = vpack.c.b16 %v1294, %v1282
        %v1703 = vpack.c.b16 %v1295, %v1283
        %v1704 = vpack.c.b16 %v1296, %v1284
        %v1705 = vpack.c.b16 %v1297, %v1285
        %v1706 = vpack.c.b16 %v1298, %v1286
        %v1707 = vpack.c.b16 %v1299, %v1287
        %v1708 = vpack.c.b16 %v1300, %v1288
        %v1709 = vpack.c.b16 %v1301, %v1289
        %v1710 = vpack.c.b16 %v1302, %v1290
        %v1711 = vpack.c.b16 %v1303, %v1291
        %v1712 = vpack.c.b16 %v1316, %v1304
        %v1713 = vpack.c.b16 %v1317, %v1305
        %v1714 = vpack.c.b16 %v1318, %v1306
        %v1715 = vpack.c.b16 %v1319, %v1307
        %v1716 = vpack.c.b16 %v1320, %v1308
        %v1717 = vpack.c.b16 %v1321, %v1309
        %v1718 = vpack.c.b16 %v1322, %v1310
        %v1719 = vpack.c.b16 %v1323, %v1311
        %v1720 = vpack.c.b16 %v1324, %v1312
        %v1721 = vpack.c.b16 %v1325, %v1313
        %v1722 = vpack.c.b16 %v1326, %v1314
        %v1723 = vpack.c.b16 %v1327, %v1315
        %v1724 = vpack.c.b16 %v1340, %v1328
        %v1725 = vpack.c.b16 %v1341, %v1329
        %v1726 = vpack.c.b16 %v1342, %v1330
        %v1727 = vpack.c.b16 %v1343, %v1331
        %v1728 = vpack.c.b16 %v1344, %v1332
        %v1729 = vpack.c.b16 %v1345, %v1333
        %v1730 = vpack.c.b16 %v1346, %v1334
        %v1731 = vpack.c.b16 %v1347, %v1335
        %v1732 = vpack.c.b16 %v1348, %v1336
        %v1733 = vpack.c.b16 %v1349, %v1337
        %v1734 = vpack.c.b16 %v1350, %v1338
        %v1735 = vpack.c.b16 %v1351, %v1339
        %v1736 = vpack.c.b16 %v1364, %v1352
        %v1737 = vpack.c.b16 %v1365, %v1353
        %v1738 = vpack.c.b16 %v1366, %v1354
        %v1739 = vpack.c.b16 %v1367, %v1355
        %v1740 = vpack.c.b16 %v1368, %v1356
        %v1741 = vpack.c.b16 %v1369, %v1357
        %v1742 = vpack.c.b16 %v1370, %v1358
        %v1743 = vpack.c.b16 %v1371, %v1359
        %v1744 = vpack.c.b16 %v1372, %v1360
        %v1745 = vpack.c.b16 %v1373, %v1361
        %v1746 = vpack.c.b16 %v1374, %v1362
        %v1747 = vpack.c.b16 %v1375, %v1363
        %v1748 = vpack.c.b16 %v1388, %v1376
        %v1749 = vpack.c.b16 %v1389, %v1377
        %v1750 = vpack.c.b16 %v1390, %v1378
        %v1751 = vpack.c.b16 %v1391, %v1379
        %v1752 = vpack.c.b16 %v1392, %v1380
        %v1753 = vpack.c.b16 %v1393, %v1381
        %v1754 = vpack.c.b16 %v1394, %v1382
        %v1755 = vpack.c.b16 %v1395, %v1383
        %v1756 = vpack.c.b16 %v1396, %v1384
        %v1757 = vpack.c.b16 %v1397, %v1385
        %v1758 = vpack.c.b16 %v1398, %v1386
        %v1759 = vpack.c.b16 %v1399, %v1387
        %v1760 = vpack.c.b16 %v1412, %v1400
        %v1761 = vpack.c.b16 %v1413, %v1401
        %v1762 = vpack.c.b16 %v1414, %v1402
        %v1763 = vpack.c.b16 %v1415, %v1403
        %v1764 = vpack.c.b16 %v1416, %v1404
        %v1765 = vpack.c.b16 %v1417, %v1405
        %v1766 = vpack.c.b16 %v1418, %v1406
        %v1767 = vpack.c.b16 %v1419, %v1407
        %v1768 = vpack.c.b16 %v1420, %v1408
        %v1769 = vpack.c.b16 %v1421, %v1409
        %v1770 = vpack.c.b16 %v1422, %v1410
        %v1771 = vpack.c.b16 %v1423, %v1411
        %v1772 = vpack.c.b16 %v1436, %v1424
        %v1773 = vpack.c.b16 %v1437, %v1425
        %v1774 = vpack.c.b16 %v1438, %v1426
        %v1775 = vpack.c.b16 %v1439, %v1427
        %v1776 = vpack.c.b16 %v1440, %v1428
        %v1777 = vpack.c.b16 %v1441, %v1429
        %v1778 = vpack.c.b16 %v1442, %v1430
        %v1779 = vpack.c.b16 %v1443, %v1431
        %v1780 = vpack.c.b16 %v1444, %v1432
        %v1781 = vpack.c.b16 %v1445, %v1433
        %v1782 = vpack.c.b16 %v1446, %v1434
        %v1783 = vpack.c.b16 %v1447, %v1435
        %v1784 = vpack.c.b16 %v1460, %v1448
        %v1785 = vpack.c.b16 %v1461, %v1449
        %v1786 = vpack.c.b16 %v1462, %v1450
        %v1787 = vpack.c.b16 %v1463, %v1451
        %v1788 = vpack.c.b16 %v1464, %v1452
        %v1789 = vpack.c.b16 %v1465, %v1453
        %v1790 = vpack.c.b16 %v1466, %v1454
        %v1791 = vpack.c.b16 %v1467, %v1455
        %v1792 = vpack.c.b16 %v1468, %v1456
        %v1793 = vpack.c.b16 %v1469, %v1457
        %v1794 = vpack.c.b16 %v1470, %v1458
        %v1795 = vpack.c.b16 %v1471, %v1459
        %v1796 = vpack.c.b16 %v1484, %v1472
        %v1797 = vpack.c.b16 %v1485, %v1473
        %v1798 = vpack.c.b16 %v1486, %v1474
        %v1799 = vpack.c.b16 %v1487, %v1475
        %v1800 = vpack.c.b16 %v1488, %v1476
        %v1801 = vpack.c.b16 %v1489, %v1477
        %v1802 = vpack.c.b16 %v1490, %v1478
        %v1803 = vpack.c.b16 %v1491, %v1479
        %v1804 = vpack.c.b16 %v1492, %v1480
        %v1805 = vpack.c.b16 %v1493, %v1481
        %v1806 = vpack.c.b16 %v1494, %v1482
        %v1807 = vpack.c.b16 %v1495, %v1483
        %v1808 = vpack.c.b16 %v1508, %v1496
        %v1809 = vpack.c.b16 %v1509, %v1497
        %v1810 = vpack.c.b16 %v1510, %v1498
        %v1811 = vpack.c.b16 %v1511, %v1499
        %v1812 = vpack.c.b16 %v1512, %v1500
        %v1813 = vpack.c.b16 %v1513, %v1501
        %v1814 = vpack.c.b16 %v1514, %v1502
        %v1815 = vpack.c.b16 %v1515, %v1503
        %v1816 = vpack.c.b16 %v1516, %v1504
        %v1817 = vpack.c.b16 %v1517, %v1505
        %v1818 = vpack.c.b16 %v1518, %v1506
        %v1819 = vpack.c.b16 %v1519, %v1507
        %v1820 = vpack.c.b16 %v1532, %v1520
        %v1821 = vpack.c.b16 %v1533, %v1521
        %v1822 = vpack.c.b16 %v1534, %v1522
        %v1823 = vpack.c.b16 %v1535, %v1523
        %v1824 = vpack.c.b16 %v1536, %v1524
        %v1825 = vpack.c.b16 %v1537, %v1525
        %v1826 = vpack.c.b16 %v1538, %v1526
        %v1827 = vpack.c.b16 %v1539, %v1527
        %v1828 = vpack.c.b16 %v1540, %v1528
        %v1829 = vpack.c.b16 %v1541, %v1529
        %v1830 = vpack.c.b16 %v1542, %v1530
        %v1831 = vpack.c.b16 %v1543, %v1531
        %2120 = vmatprep.subr.bf16.mxu0 %v1545
        %2121 = vmatpush1.bf16.msra.mxu0 %v1544
        %2122 = vmatprep.subr.bf16.mxu0 %v1557
        %2123 = vmatpush1.bf16.msra.mxu0 %v1556
        %2124 = vmatprep.subr.bf16.mxu0 %v1569
        %2125 = vmatpush1.bf16.msra.mxu0 %v1568
        %2126 = vmatprep.subr.bf16.mxu0 %v1581
        %2127 = vmatpush1.bf16.msra.mxu0 %v1580
        %2128 = vmatprep.subr.bf16.mxu0 %v1593
        %2129 = vmatpush1.bf16.msra.mxu0 %v1592
        %2130 = vmatprep.subr.bf16.mxu0 %v1605
        %2131 = vmatpush1.bf16.msra.mxu0 %v1604
        %2132 = vmatprep.subr.bf16.mxu0 %v1617
        %2133 = vmatpush1.bf16.msra.mxu0 %v1616
        %2134 = vmatprep.subr.bf16.mxu0 %v1629
        %2135 = vmatpush1.bf16.msra.mxu0 %v1628
        %2136 = vmatprep.subr.bf16.mxu0 %v1641
        %2137 = vmatpush1.bf16.msra.mxu0 %v1640
        %2138 = vmatprep.subr.bf16.mxu0 %v1653
        %2139 = vmatpush1.bf16.msra.mxu0 %v1652
        %2140 = vmatprep.subr.bf16.mxu0 %v1665
        %2141 = vmatpush1.bf16.msra.mxu0 %v1664
        %2142 = vmatprep.subr.bf16.mxu0 %v1677
        %2143 = vmatpush1.bf16.msra.mxu0 %v1676
        %2144 = vmatprep.subr.bf16.mxu0 %v1689
        %2145 = vmatpush1.bf16.msra.mxu0 %v1688
        %2146 = vmatprep.subr.bf16.mxu0 %v1701
        %2147 = vmatpush1.bf16.msra.mxu0 %v1700
        %2148 = vmatprep.subr.bf16.mxu0 %v1713
        %2149 = vmatpush1.bf16.msra.mxu0 %v1712
        %2150 = vmatprep.subr.bf16.mxu0 %v1725
        %2151 = vmatpush1.bf16.msra.mxu0 %v1724
        %2152 = vmatprep.mubr.bf16.mxu0 %v675
        %2153 = vmatmul.mubr.bf16.gmra.mrb[0].mxu0 %v674
        %v2154 = vpop.f32.mrb[0].mxu0
        %v2155 = vadd.f32 %v612, %v2154
        %v2156 = vpop.f32.mrb[0].mxu0
        %v2157 = vadd.f32 %v616, %v2156
        %v2158 = vpop.f32.mrb[0].mxu0
        %v2159 = vpop.f32.mrb[0].mxu0
        %2160 = vdwg.mxu0
        %2161 = vmatprep.subr.bf16.mxu0 %v1737
        %2162 = vmatpush1.bf16.msra.mxu0 %v1736
        %2163 = vmatprep.subr.bf16.mxu0 %v1749
        %2164 = vmatpush1.bf16.msra.mxu0 %v1748
        %2165 = vmatprep.subr.bf16.mxu0 %v1761
        %2166 = vmatpush1.bf16.msra.mxu0 %v1760
        %2167 = vmatprep.subr.bf16.mxu0 %v1773
        %2168 = vmatpush1.bf16.msra.mxu0 %v1772
        %2169 = vmatprep.subr.bf16.mxu0 %v1785
        %2170 = vmatpush1.bf16.msra.mxu0 %v1784
        %2171 = vmatprep.subr.bf16.mxu0 %v1797
        %2172 = vmatpush1.bf16.msra.mxu0 %v1796
        %2173 = vmatprep.subr.bf16.mxu0 %v1809
        %2174 = vmatpush1.bf16.msra.mxu0 %v1808
        %2175 = vmatprep.subr.bf16.mxu0 %v1821
        %2176 = vmatpush1.bf16.msra.mxu0 %v1820
        %2177 = vmatprep.subr.bf16.mxu0 0
        %2178 = vmatpush1.bf16.msra.mxu0 0
        %2179 = vmatprep.subr.bf16.mxu0 0
        %2180 = vmatpush1.bf16.msra.mxu0 0
        %2181 = vmatprep.subr.bf16.mxu0 0
        %2182 = vmatpush1.bf16.msra.mxu0 0
        %2183 = vmatprep.subr.bf16.mxu0 0
        %2184 = vmatpush1.bf16.msra.mxu0 0
        %2185 = vmatprep.subr.bf16.mxu0 0
        %2186 = vmatpush1.bf16.msra.mxu0 0
        %2187 = vmatprep.subr.bf16.mxu0 0
        %2188 = vmatpush1.bf16.msra.mxu0 0
        %2189 = vmatprep.subr.bf16.mxu0 0
        %2190 = vmatpush1.bf16.msra.mxu0 0
        %2191 = vmatprep.subr.bf16.mxu0 0
        %2192 = vmatpush1.bf16.msra.mxu0 0
        %2193 = vmatprep.mubr.bf16.mxu0 0
        %2194 = vmatmul.mubr.bf16.gmra.mrb[0].mxu0 %v676
        %v2195 = vpop.f32.mrb[0].mxu0
        %v2196 = vadd.f32 %v2155, %v2195
        %v2197 = vpop.f32.mrb[0].mxu0
        %v2198 = vadd.f32 %v2157, %v2197
        %v2199 = vpop.f32.mrb[0].mxu0
        %v2200 = vpop.f32.mrb[0].mxu0
        %2201 = vdwg.mxu0
        %2202 = vmatprep.subr.bf16.mxu0 %v1547
        %2203 = vmatpush1.bf16.msra.mxu0 %v1546
        %2204 = vmatprep.subr.bf16.mxu0 %v1559
        %2205 = vmatpush1.bf16.msra.mxu0 %v1558
        %2206 = vmatprep.subr.bf16.mxu0 %v1571
        %2207 = vmatpush1.bf16.msra.mxu0 %v1570
        %2208 = vmatprep.subr.bf16.mxu0 %v1583
        %2209 = vmatpush1.bf16.msra.mxu0 %v1582
        %2210 = vmatprep.subr.bf16.mxu0 %v1595
        %2211 = vmatpush1.bf16.msra.mxu0 %v1594
        %2212 = vmatprep.subr.bf16.mxu0 %v1607
        %2213 = vmatpush1.bf16.msra.mxu0 %v1606
        %2214 = vmatprep.subr.bf16.mxu0 %v1619
        %2215 = vmatpush1.bf16.msra.mxu0 %v1618
        %2216 = vmatprep.subr.bf16.mxu0 %v1631
        %2217 = vmatpush1.bf16.msra.mxu0 %v1630
        %2218 = vmatprep.subr.bf16.mxu0 %v1643
        %2219 = vmatpush1.bf16.msra.mxu0 %v1642
        %2220 = vmatprep.subr.bf16.mxu0 %v1655
        %2221 = vmatpush1.bf16.msra.mxu0 %v1654
        %2222 = vmatprep.subr.bf16.mxu0 %v1667
        %2223 = vmatpush1.bf16.msra.mxu0 %v1666
        %2224 = vmatprep.subr.bf16.mxu0 %v1679
        %2225 = vmatpush1.bf16.msra.mxu0 %v1678
        %2226 = vmatprep.subr.bf16.mxu0 %v1691
        %2227 = vmatpush1.bf16.msra.mxu0 %v1690
        %2228 = vmatprep.subr.bf16.mxu0 %v1703
        %2229 = vmatpush1.bf16.msra.mxu0 %v1702
        %2230 = vmatprep.subr.bf16.mxu0 %v1715
        %2231 = vmatpush1.bf16.msra.mxu0 %v1714
        %2232 = vmatprep.subr.bf16.mxu0 %v1727
        %2233 = vmatpush1.bf16.msra.mxu0 %v1726
        %2234 = vmatprep.mubr.bf16.mxu0 %v675
        %2235 = vmatmul.mubr.bf16.gmra.mrb[0].mxu0 %v674
        %v2236 = vpop.f32.mrb[0].mxu0
        %v2237 = vadd.f32 %v620, %v2236
        %v2238 = vpop.f32.mrb[0].mxu0
        %v2239 = vadd.f32 %v624, %v2238
        %v2240 = vpop.f32.mrb[0].mxu0
        %v2241 = vpop.f32.mrb[0].mxu0
        %2242 = vdwg.mxu0
        %2243 = vmatprep.subr.bf16.mxu0 %v1739
        %2244 = vmatpush1.bf16.msra.mxu0 %v1738
        %2245 = vmatprep.subr.bf16.mxu0 %v1751
        %2246 = vmatpush1.bf16.msra.mxu0 %v1750
        %2247 = vmatprep.subr.bf16.mxu0 %v1763
        %2248 = vmatpush1.bf16.msra.mxu0 %v1762
        %2249 = vmatprep.subr.bf16.mxu0 %v1775
        %2250 = vmatpush1.bf16.msra.mxu0 %v1774
        %2251 = vmatprep.subr.bf16.mxu0 %v1787
        %2252 = vmatpush1.bf16.msra.mxu0 %v1786
        %2253 = vmatprep.subr.bf16.mxu0 %v1799
        %2254 = vmatpush1.bf16.msra.mxu0 %v1798
        %2255 = vmatprep.subr.bf16.mxu0 %v1811
        %2256 = vmatpush1.bf16.msra.mxu0 %v1810
        %2257 = vmatprep.subr.bf16.mxu0 %v1823
        %2258 = vmatpush1.bf16.msra.mxu0 %v1822
        %2259 = vmatprep.subr.bf16.mxu0 0
        %2260 = vmatpush1.bf16.msra.mxu0 0
        %2261 = vmatprep.subr.bf16.mxu0 0
        %2262 = vmatpush1.bf16.msra.mxu0 0
        %2263 = vmatprep.subr.bf16.mxu0 0
        %2264 = vmatpush1.bf16.msra.mxu0 0
        %2265 = vmatprep.subr.bf16.mxu0 0
        %2266 = vmatpush1.bf16.msra.mxu0 0
        %2267 = vmatprep.subr.bf16.mxu0 0
        %2268 = vmatpush1.bf16.msra.mxu0 0
        %2269 = vmatprep.subr.bf16.mxu0 0
        %2270 = vmatpush1.bf16.msra.mxu0 0
        %2271 = vmatprep.subr.bf16.mxu0 0
        %2272 = vmatpush1.bf16.msra.mxu0 0
        %2273 = vmatprep.subr.bf16.mxu0 0
        %2274 = vmatpush1.bf16.msra.mxu0 0
        %2275 = vmatprep.mubr.bf16.mxu0 0
        %2276 = vmatmul.mubr.bf16.gmra.mrb[0].mxu0 %v676
        %v2277 = vpop.f32.mrb[0].mxu0
        %v2278 = vadd.f32 %v2237, %v2277
        %v2279 = vpop.f32.mrb[0].mxu0
        %v2280 = vadd.f32 %v2239, %v2279
        %v2281 = vpop.f32.mrb[0].mxu0
        %v2282 = vpop.f32.mrb[0].mxu0
        %2283 = vdwg.mxu0
        %2284 = vmatprep.subr.bf16.mxu0 %v1549
        %2285 = vmatpush1.bf16.msra.mxu0 %v1548
        %2286 = vmatprep.subr.bf16.mxu0 %v1561
        %2287 = vmatpush1.bf16.msra.mxu0 %v1560
        %2288 = vmatprep.subr.bf16.mxu0 %v1573
        %2289 = vmatpush1.bf16.msra.mxu0 %v1572
        %2290 = vmatprep.subr.bf16.mxu0 %v1585
        %2291 = vmatpush1.bf16.msra.mxu0 %v1584
        %2292 = vmatprep.subr.bf16.mxu0 %v1597
        %2293 = vmatpush1.bf16.msra.mxu0 %v1596
        %2294 = vmatprep.subr.bf16.mxu0 %v1609
        %2295 = vmatpush1.bf16.msra.mxu0 %v1608
        %2296 = vmatprep.subr.bf16.mxu0 %v1621
        %2297 = vmatpush1.bf16.msra.mxu0 %v1620
        %2298 = vmatprep.subr.bf16.mxu0 %v1633
        %2299 = vmatpush1.bf16.msra.mxu0 %v1632
        %2300 = vmatprep.subr.bf16.mxu0 %v1645
        %2301 = vmatpush1.bf16.msra.mxu0 %v1644
        %2302 = vmatprep.subr.bf16.mxu0 %v1657
        %2303 = vmatpush1.bf16.msra.mxu0 %v1656
        %2304 = vmatprep.subr.bf16.mxu0 %v1669
        %2305 = vmatpush1.bf16.msra.mxu0 %v1668
        %2306 = vmatprep.subr.bf16.mxu0 %v1681
        %2307 = vmatpush1.bf16.msra.mxu0 %v1680
        %2308 = vmatprep.subr.bf16.mxu0 %v1693
        %2309 = vmatpush1.bf16.msra.mxu0 %v1692
        %2310 = vmatprep.subr.bf16.mxu0 %v1705
        %2311 = vmatpush1.bf16.msra.mxu0 %v1704
        %2312 = vmatprep.subr.bf16.mxu0 %v1717
        %2313 = vmatpush1.bf16.msra.mxu0 %v1716
        %2314 = vmatprep.subr.bf16.mxu0 %v1729
        %2315 = vmatpush1.bf16.msra.mxu0 %v1728
        %2316 = vmatprep.mubr.bf16.mxu0 %v675
        %2317 = vmatmul.mubr.bf16.gmra.mrb[0].mxu0 %v674
        %v2318 = vpop.f32.mrb[0].mxu0
        %v2319 = vadd.f32 %v628, %v2318
        %v2320 = vpop.f32.mrb[0].mxu0
        %v2321 = vadd.f32 %v632, %v2320
        %v2322 = vpop.f32.mrb[0].mxu0
        %v2323 = vpop.f32.mrb[0].mxu0
        %2324 = vdwg.mxu0
        %2325 = vmatprep.subr.bf16.mxu0 %v1741
        %2326 = vmatpush1.bf16.msra.mxu0 %v1740
        %2327 = vmatprep.subr.bf16.mxu0 %v1753
        %2328 = vmatpush1.bf16.msra.mxu0 %v1752
        %2329 = vmatprep.subr.bf16.mxu0 %v1765
        %2330 = vmatpush1.bf16.msra.mxu0 %v1764
        %2331 = vmatprep.subr.bf16.mxu0 %v1777
        %2332 = vmatpush1.bf16.msra.mxu0 %v1776
        %2333 = vmatprep.subr.bf16.mxu0 %v1789
        %2334 = vmatpush1.bf16.msra.mxu0 %v1788
        %2335 = vmatprep.subr.bf16.mxu0 %v1801
        %2336 = vmatpush1.bf16.msra.mxu0 %v1800
        %2337 = vmatprep.subr.bf16.mxu0 %v1813
        %2338 = vmatpush1.bf16.msra.mxu0 %v1812
        %2339 = vmatprep.subr.bf16.mxu0 %v1825
        %2340 = vmatpush1.bf16.msra.mxu0 %v1824
        %2341 = vmatprep.subr.bf16.mxu0 0
        %2342 = vmatpush1.bf16.msra.mxu0 0
        %2343 = vmatprep.subr.bf16.mxu0 0
        %2344 = vmatpush1.bf16.msra.mxu0 0
        %2345 = vmatprep.subr.bf16.mxu0 0
        %2346 = vmatpush1.bf16.msra.mxu0 0
        %2347 = vmatprep.subr.bf16.mxu0 0
        %2348 = vmatpush1.bf16.msra.mxu0 0
        %2349 = vmatprep.subr.bf16.mxu0 0
        %2350 = vmatpush1.bf16.msra.mxu0 0
        %2351 = vmatprep.subr.bf16.mxu0 0
        %2352 = vmatpush1.bf16.msra.mxu0 0
        %2353 = vmatprep.subr.bf16.mxu0 0
        %2354 = vmatpush1.bf16.msra.mxu0 0
        %2355 = vmatprep.subr.bf16.mxu0 0
        %2356 = vmatpush1.bf16.msra.mxu0 0
        %2357 = vmatprep.mubr.bf16.mxu0 0
        %2358 = vmatmul.mubr.bf16.gmra.mrb[0].mxu0 %v676
        %v2359 = vpop.f32.mrb[0].mxu0
        %v2360 = vadd.f32 %v2319, %v2359
        %v2361 = vpop.f32.mrb[0].mxu0
        %v2362 = vadd.f32 %v2321, %v2361
        %v2363 = vpop.f32.mrb[0].mxu0
        %v2364 = vpop.f32.mrb[0].mxu0
        %2365 = vdwg.mxu0
        %2366 = vmatprep.subr.bf16.mxu0 %v1551
        %2367 = vmatpush1.bf16.msra.mxu0 %v1550
        %2368 = vmatprep.subr.bf16.mxu0 %v1563
        %2369 = vmatpush1.bf16.msra.mxu0 %v1562
        %2370 = vmatprep.subr.bf16.mxu0 %v1575
        %2371 = vmatpush1.bf16.msra.mxu0 %v1574
        %2372 = vmatprep.subr.bf16.mxu0 %v1587
        %2373 = vmatpush1.bf16.msra.mxu0 %v1586
        %2374 = vmatprep.subr.bf16.mxu0 %v1599
        %2375 = vmatpush1.bf16.msra.mxu0 %v1598
        %2376 = vmatprep.subr.bf16.mxu0 %v1611
        %2377 = vmatpush1.bf16.msra.mxu0 %v1610
        %2378 = vmatprep.subr.bf16.mxu0 %v1623
        %2379 = vmatpush1.bf16.msra.mxu0 %v1622
        %2380 = vmatprep.subr.bf16.mxu0 %v1635
        %2381 = vmatpush1.bf16.msra.mxu0 %v1634
        %2382 = vmatprep.subr.bf16.mxu0 %v1647
        %2383 = vmatpush1.bf16.msra.mxu0 %v1646
        %2384 = vmatprep.subr.bf16.mxu0 %v1659
        %2385 = vmatpush1.bf16.msra.mxu0 %v1658
        %2386 = vmatprep.subr.bf16.mxu0 %v1671
        %2387 = vmatpush1.bf16.msra.mxu0 %v1670
        %2388 = vmatprep.subr.bf16.mxu0 %v1683
        %2389 = vmatpush1.bf16.msra.mxu0 %v1682
        %2390 = vmatprep.subr.bf16.mxu0 %v1695
        %2391 = vmatpush1.bf16.msra.mxu0 %v1694
        %2392 = vmatprep.subr.bf16.mxu0 %v1707
        %2393 = vmatpush1.bf16.msra.mxu0 %v1706
        %2394 = vmatprep.subr.bf16.mxu0 %v1719
        %2395 = vmatpush1.bf16.msra.mxu0 %v1718
        %2396 = vmatprep.subr.bf16.mxu0 %v1731
        %2397 = vmatpush1.bf16.msra.mxu0 %v1730
        %2398 = vmatprep.mubr.bf16.mxu0 %v675
        %2399 = vmatmul.mubr.bf16.gmra.mrb[0].mxu0 %v674
        %v2400 = vpop.f32.mrb[0].mxu0
        %v2401 = vadd.f32 %v636, %v2400
        %v2402 = vpop.f32.mrb[0].mxu0
        %v2403 = vadd.f32 %v640, %v2402
        %v2404 = vpop.f32.mrb[0].mxu0
        %v2405 = vpop.f32.mrb[0].mxu0
        %2406 = vdwg.mxu0
        %2407 = vmatprep.subr.bf16.mxu0 %v1743
        %2408 = vmatpush1.bf16.msra.mxu0 %v1742
        %2409 = vmatprep.subr.bf16.mxu0 %v1755
        %2410 = vmatpush1.bf16.msra.mxu0 %v1754
        %2411 = vmatprep.subr.bf16.mxu0 %v1767
        %2412 = vmatpush1.bf16.msra.mxu0 %v1766
        %2413 = vmatprep.subr.bf16.mxu0 %v1779
        %2414 = vmatpush1.bf16.msra.mxu0 %v1778
        %2415 = vmatprep.subr.bf16.mxu0 %v1791
        %2416 = vmatpush1.bf16.msra.mxu0 %v1790
        %2417 = vmatprep.subr.bf16.mxu0 %v1803
        %2418 = vmatpush1.bf16.msra.mxu0 %v1802
        %2419 = vmatprep.subr.bf16.mxu0 %v1815
        %2420 = vmatpush1.bf16.msra.mxu0 %v1814
        %2421 = vmatprep.subr.bf16.mxu0 %v1827
        %2422 = vmatpush1.bf16.msra.mxu0 %v1826
        %2423 = vmatprep.subr.bf16.mxu0 0
        %2424 = vmatpush1.bf16.msra.mxu0 0
        %2425 = vmatprep.subr.bf16.mxu0 0
        %2426 = vmatpush1.bf16.msra.mxu0 0
        %2427 = vmatprep.subr.bf16.mxu0 0
        %2428 = vmatpush1.bf16.msra.mxu0 0
        %2429 = vmatprep.subr.bf16.mxu0 0
        %2430 = vmatpush1.bf16.msra.mxu0 0
        %2431 = vmatprep.subr.bf16.mxu0 0
        %2432 = vmatpush1.bf16.msra.mxu0 0
        %2433 = vmatprep.subr.bf16.mxu0 0
        %2434 = vmatpush1.bf16.msra.mxu0 0
        %2435 = vmatprep.subr.bf16.mxu0 0
        %2436 = vmatpush1.bf16.msra.mxu0 0
        %2437 = vmatprep.subr.bf16.mxu0 0
        %2438 = vmatpush1.bf16.msra.mxu0 0
        %2439 = vmatprep.mubr.bf16.mxu0 0
        %2440 = vmatmul.mubr.bf16.gmra.mrb[0].mxu0 %v676
        %v2441 = vpop.f32.mrb[0].mxu0
        %v2442 = vadd.f32 %v2401, %v2441
        %v2443 = vpop.f32.mrb[0].mxu0
        %v2444 = vadd.f32 %v2403, %v2443
        %v2445 = vpop.f32.mrb[0].mxu0
        %v2446 = vpop.f32.mrb[0].mxu0
        %2447 = vdwg.mxu0
        %2448 = vmatprep.subr.bf16.mxu0 %v1553
        %2449 = vmatpush1.bf16.msra.mxu0 %v1552
        %2450 = vmatprep.subr.bf16.mxu0 %v1565
        %2451 = vmatpush1.bf16.msra.mxu0 %v1564
        %2452 = vmatprep.subr.bf16.mxu0 %v1577
        %2453 = vmatpush1.bf16.msra.mxu0 %v1576
        %2454 = vmatprep.subr.bf16.mxu0 %v1589
        %2455 = vmatpush1.bf16.msra.mxu0 %v1588
        %2456 = vmatprep.subr.bf16.mxu0 %v1601
        %2457 = vmatpush1.bf16.msra.mxu0 %v1600
        %2458 = vmatprep.subr.bf16.mxu0 %v1613
        %2459 = vmatpush1.bf16.msra.mxu0 %v1612
        %2460 = vmatprep.subr.bf16.mxu0 %v1625
        %2461 = vmatpush1.bf16.msra.mxu0 %v1624
        %2462 = vmatprep.subr.bf16.mxu0 %v1637
        %2463 = vmatpush1.bf16.msra.mxu0 %v1636
        %2464 = vmatprep.subr.bf16.mxu0 %v1649
        %2465 = vmatpush1.bf16.msra.mxu0 %v1648
        %2466 = vmatprep.subr.bf16.mxu0 %v1661
        %2467 = vmatpush1.bf16.msra.mxu0 %v1660
        %2468 = vmatprep.subr.bf16.mxu0 %v1673
        %2469 = vmatpush1.bf16.msra.mxu0 %v1672
        %2470 = vmatprep.subr.bf16.mxu0 %v1685
        %2471 = vmatpush1.bf16.msra.mxu0 %v1684
        %2472 = vmatprep.subr.bf16.mxu0 %v1697
        %2473 = vmatpush1.bf16.msra.mxu0 %v1696
        %2474 = vmatprep.subr.bf16.mxu0 %v1709
        %2475 = vmatpush1.bf16.msra.mxu0 %v1708
        %2476 = vmatprep.subr.bf16.mxu0 %v1721
        %2477 = vmatpush1.bf16.msra.mxu0 %v1720
        %2478 = vmatprep.subr.bf16.mxu0 %v1733
        %2479 = vmatpush1.bf16.msra.mxu0 %v1732
        %2480 = vmatprep.mubr.bf16.mxu0 %v675
        %2481 = vmatmul.mubr.bf16.gmra.mrb[0].mxu0 %v674
        %v2482 = vpop.f32.mrb[0].mxu0
        %v2483 = vadd.f32 %v644, %v2482
        %v2484 = vpop.f32.mrb[0].mxu0
        %v2485 = vadd.f32 %v648, %v2484
        %v2486 = vpop.f32.mrb[0].mxu0
        %v2487 = vpop.f32.mrb[0].mxu0
        %2488 = vdwg.mxu0
        %2489 = vmatprep.subr.bf16.mxu0 %v1745
        %2490 = vmatpush1.bf16.msra.mxu0 %v1744
        %2491 = vmatprep.subr.bf16.mxu0 %v1757
        %2492 = vmatpush1.bf16.msra.mxu0 %v1756
        %2493 = vmatprep.subr.bf16.mxu0 %v1769
        %2494 = vmatpush1.bf16.msra.mxu0 %v1768
        %2495 = vmatprep.subr.bf16.mxu0 %v1781
        %2496 = vmatpush1.bf16.msra.mxu0 %v1780
        %2497 = vmatprep.subr.bf16.mxu0 %v1793
        %2498 = vmatpush1.bf16.msra.mxu0 %v1792
        %2499 = vmatprep.subr.bf16.mxu0 %v1805
        %2500 = vmatpush1.bf16.msra.mxu0 %v1804
        %2501 = vmatprep.subr.bf16.mxu0 %v1817
        %2502 = vmatpush1.bf16.msra.mxu0 %v1816
        %2503 = vmatprep.subr.bf16.mxu0 %v1829
        %2504 = vmatpush1.bf16.msra.mxu0 %v1828
        %2505 = vmatprep.subr.bf16.mxu0 0
        %2506 = vmatpush1.bf16.msra.mxu0 0
        %2507 = vmatprep.subr.bf16.mxu0 0
        %2508 = vmatpush1.bf16.msra.mxu0 0
        %2509 = vmatprep.subr.bf16.mxu0 0
        %2510 = vmatpush1.bf16.msra.mxu0 0
        %2511 = vmatprep.subr.bf16.mxu0 0
        %2512 = vmatpush1.bf16.msra.mxu0 0
        %2513 = vmatprep.subr.bf16.mxu0 0
        %2514 = vmatpush1.bf16.msra.mxu0 0
        %2515 = vmatprep.subr.bf16.mxu0 0
        %2516 = vmatpush1.bf16.msra.mxu0 0
        %2517 = vmatprep.subr.bf16.mxu0 0
        %2518 = vmatpush1.bf16.msra.mxu0 0
        %2519 = vmatprep.subr.bf16.mxu0 0
        %2520 = vmatpush1.bf16.msra.mxu0 0
        %2521 = vmatprep.mubr.bf16.mxu0 0
        %2522 = vmatmul.mubr.bf16.gmra.mrb[0].mxu0 %v676
        %v2523 = vpop.f32.mrb[0].mxu0
        %v2524 = vadd.f32 %v2483, %v2523
        %v2525 = vpop.f32.mrb[0].mxu0
        %v2526 = vadd.f32 %v2485, %v2525
        %v2527 = vpop.f32.mrb[0].mxu0
        %v2528 = vpop.f32.mrb[0].mxu0
        %2529 = vdwg.mxu0
        %2530 = vmatprep.subr.bf16.mxu0 %v1555
        %2531 = vmatpush1.bf16.msra.mxu0 %v1554
        %2532 = vmatprep.subr.bf16.mxu0 %v1567
        %2533 = vmatpush1.bf16.msra.mxu0 %v1566
        %2534 = vmatprep.subr.bf16.mxu0 %v1579
        %2535 = vmatpush1.bf16.msra.mxu0 %v1578
        %2536 = vmatprep.subr.bf16.mxu0 %v1591
        %2537 = vmatpush1.bf16.msra.mxu0 %v1590
        %2538 = vmatprep.subr.bf16.mxu0 %v1603
        %2539 = vmatpush1.bf16.msra.mxu0 %v1602
        %2540 = vmatprep.subr.bf16.mxu0 %v1615
        %2541 = vmatpush1.bf16.msra.mxu0 %v1614
        %2542 = vmatprep.subr.bf16.mxu0 %v1627
        %2543 = vmatpush1.bf16.msra.mxu0 %v1626
        %2544 = vmatprep.subr.bf16.mxu0 %v1639
        %2545 = vmatpush1.bf16.msra.mxu0 %v1638
        %2546 = vmatprep.subr.bf16.mxu0 %v1651
        %2547 = vmatpush1.bf16.msra.mxu0 %v1650
        %2548 = vmatprep.subr.bf16.mxu0 %v1663
        %2549 = vmatpush1.bf16.msra.mxu0 %v1662
        %2550 = vmatprep.subr.bf16.mxu0 %v1675
        %2551 = vmatpush1.bf16.msra.mxu0 %v1674
        %2552 = vmatprep.subr.bf16.mxu0 %v1687
        %2553 = vmatpush1.bf16.msra.mxu0 %v1686
        %2554 = vmatprep.subr.bf16.mxu0 %v1699
        %2555 = vmatpush1.bf16.msra.mxu0 %v1698
        %2556 = vmatprep.subr.bf16.mxu0 %v1711
        %2557 = vmatpush1.bf16.msra.mxu0 %v1710
        %2558 = vmatprep.subr.bf16.mxu0 %v1723
        %2559 = vmatpush1.bf16.msra.mxu0 %v1722
        %2560 = vmatprep.subr.bf16.mxu0 %v1735
        %2561 = vmatpush1.bf16.msra.mxu0 %v1734
        %2562 = vmatprep.mubr.bf16.mxu0 %v675
        %2563 = vmatmul.mubr.bf16.gmra.mrb[0].mxu0 %v674
        %v2564 = vpop.f32.mrb[0].mxu0
        %v2565 = vadd.f32 %v652, %v2564
        %v2566 = vpop.f32.mrb[0].mxu0
        %v2567 = vadd.f32 %v656, %v2566
        %v2568 = vpop.f32.mrb[0].mxu0
        %v2569 = vpop.f32.mrb[0].mxu0
        %2570 = vdwg.mxu0
        %2571 = vmatprep.subr.bf16.mxu0 %v1747
        %2572 = vmatpush1.bf16.msra.mxu0 %v1746
        %2573 = vmatprep.subr.bf16.mxu0 %v1759
        %2574 = vmatpush1.bf16.msra.mxu0 %v1758
        %2575 = vmatprep.subr.bf16.mxu0 %v1771
        %2576 = vmatpush1.bf16.msra.mxu0 %v1770
        %2577 = vmatprep.subr.bf16.mxu0 %v1783
        %2578 = vmatpush1.bf16.msra.mxu0 %v1782
        %2579 = vmatprep.subr.bf16.mxu0 %v1795
        %2580 = vmatpush1.bf16.msra.mxu0 %v1794
        %2581 = vmatprep.subr.bf16.mxu0 %v1807
        %2582 = vmatpush1.bf16.msra.mxu0 %v1806
        %2583 = vmatprep.subr.bf16.mxu0 %v1819
        %2584 = vmatpush1.bf16.msra.mxu0 %v1818
        %2585 = vmatprep.subr.bf16.mxu0 %v1831
        %2586 = vmatpush1.bf16.msra.mxu0 %v1830
        %2587 = vmatprep.subr.bf16.mxu0 0
        %2588 = vmatpush1.bf16.msra.mxu0 0
        %2589 = vmatprep.subr.bf16.mxu0 0
        %2590 = vmatpush1.bf16.msra.mxu0 0
        %2591 = vmatprep.subr.bf16.mxu0 0
        %2592 = vmatpush1.bf16.msra.mxu0 0
        %2593 = vmatprep.subr.bf16.mxu0 0
        %2594 = vmatpush1.bf16.msra.mxu0 0
        %2595 = vmatprep.subr.bf16.mxu0 0
        %2596 = vmatpush1.bf16.msra.mxu0 0
        %2597 = vmatprep.subr.bf16.mxu0 0
        %2598 = vmatpush1.bf16.msra.mxu0 0
        %2599 = vmatprep.subr.bf16.mxu0 0
        %2600 = vmatpush1.bf16.msra.mxu0 0
        %2601 = vmatprep.subr.bf16.mxu0 0
        %2602 = vmatpush1.bf16.msra.mxu0 0
        %2603 = vmatprep.mubr.bf16.mxu0 0
        %2604 = vmatmul.mubr.bf16.gmra.mrb[0].mxu0 %v676
        %v2605 = vpop.f32.mrb[0].mxu0
        %v2606 = vadd.f32 %v2565, %v2605
        %v2607 = vpop.f32.mrb[0].mxu0
        %v2608 = vadd.f32 %v2567, %v2607
        %v2609 = vpop.f32.mrb[0].mxu0
        %v2610 = vpop.f32.mrb[0].mxu0
        %2611 = vdwg.mxu0
        %v2612 = vmax.f32 %v2196, 0.0
        %v2613 = vmax.f32 %v2198, 0.0
        %v2614 = vmax.f32 %v2278, 0.0
        %v2615 = vmax.f32 %v2280, 0.0
        %v2616 = vmax.f32 %v2360, 0.0
        %v2617 = vmax.f32 %v2362, 0.0
        %v2618 = vmax.f32 %v2442, 0.0
        %v2619 = vmax.f32 %v2444, 0.0
        %v2620 = vmax.f32 %v2524, 0.0
        %v2621 = vmax.f32 %v2526, 0.0
        %v2622 = vmax.f32 %v2606, 0.0
        %v2623 = vmax.f32 %v2608, 0.0
        %v2624 = vld [vmem:[#allocation2] sm:$0xff]
        %v2625 = vld [vmem:[#allocation2 + $0x8] sm:$0xff]
        %v2626 = vld [vmem:[#allocation2 + $0x10] sm:$0xff]
        %v2627 = vpack.c.bf16 %v2612, %v2612
        %v2628 = vpack.c.bf16 %v2613, %v2613
        %v2629 = vpack.c.bf16 %v2614, %v2614
        %v2630 = vpack.c.bf16 %v2615, %v2615
        %v2631 = vpack.c.bf16 %v2616, %v2616
        %v2632 = vpack.c.bf16 %v2617, %v2617
        %v2633 = vpack.c.bf16 %v2618, %v2618
        %v2634 = vpack.c.bf16 %v2619, %v2619
        %v2635 = vpack.c.bf16 %v2620, %v2620
        %v2636 = vpack.c.bf16 %v2621, %v2621
        %v2637 = vpack.c.bf16 %v2622, %v2622
        %v2638 = vpack.c.bf16 %v2623, %v2623
        %v2639 = vld [vmem:[#allocation9] sm:$0xff]
        %v2640 = vld [vmem:[#allocation9 + $0x8] sm:$0xf]
        %v2641 = vld [vmem:[#allocation9 + $0xc] sm:$0xff]
        %v2642 = vld [vmem:[#allocation9 + $0x14] sm:$0xf]
        %v2643 = vld [vmem:[#allocation9 + $0x18] sm:$0xff]
        %v2644 = vld [vmem:[#allocation9 + $0x20] sm:$0xf]
        %v2645 = vld [vmem:[#allocation9 + $0x24] sm:$0xff]
        %v2646 = vld [vmem:[#allocation9 + $0x2c] sm:$0xf]
        %v2647 = vld [vmem:[#allocation9 + $0x30] sm:$0xff]
        %v2648 = vld [vmem:[#allocation9 + $0x38] sm:$0xf]
        %v2649 = vld [vmem:[#allocation9 + $0x3c] sm:$0xff]
        %v2650 = vld [vmem:[#allocation9 + $0x44] sm:$0xf]
        %v2651 = vld [vmem:[#allocation9 + $0x48] sm:$0xff]
        %v2652 = vld [vmem:[#allocation9 + $0x50] sm:$0xf]
        %v2653 = vld [vmem:[#allocation9 + $0x54] sm:$0xff]
        %v2654 = vld [vmem:[#allocation9 + $0x5c] sm:$0xf]
        %v2655 = vld [vmem:[#allocation9 + $0x60] sm:$0xff]
        %v2656 = vld [vmem:[#allocation9 + $0x68] sm:$0xf]
        %v2657 = vld [vmem:[#allocation9 + $0x6c] sm:$0xff]
        %v2658 = vld [vmem:[#allocation9 + $0x74] sm:$0xf]
        %v2659 = vld [vmem:[#allocation9 + $0x78] sm:$0xff]
        %v2660 = vld [vmem:[#allocation9 + $0x80] sm:$0xf]
        %v2661 = vld [vmem:[#allocation9 + $0x84] sm:$0xff]
        %v2662 = vld [vmem:[#allocation9 + $0x8c] sm:$0xf]
        %v2663 = vld [vmem:[#allocation9 + $0x90] sm:$0xff]
        %v2664 = vld [vmem:[#allocation9 + $0x98] sm:$0xf]
        %v2665 = vld [vmem:[#allocation9 + $0x9c] sm:$0xff]
        %v2666 = vld [vmem:[#allocation9 + $0xa4] sm:$0xf]
        %v2667 = vld [vmem:[#allocation9 + $0xa8] sm:$0xff]
        %v2668 = vld [vmem:[#allocation9 + $0xb0] sm:$0xf]
        %v2669 = vld [vmem:[#allocation9 + $0xb4] sm:$0xff]
        %v2670 = vld [vmem:[#allocation9 + $0xbc] sm:$0xf]
        %v2671 = vld [vmem:[#allocation9 + $0xc0] sm:$0xff]
        %v2672 = vld [vmem:[#allocation9 + $0xc8] sm:$0xf]
        %v2673 = vld [vmem:[#allocation9 + $0xcc] sm:$0xff]
        %v2674 = vld [vmem:[#allocation9 + $0xd4] sm:$0xf]
        %v2675 = vld [vmem:[#allocation9 + $0xd8] sm:$0xff]
        %v2676 = vld [vmem:[#allocation9 + $0xe0] sm:$0xf]
        %v2677 = vld [vmem:[#allocation9 + $0xe4] sm:$0xff]
        %v2678 = vld [vmem:[#allocation9 + $0xec] sm:$0xf]
        %v2679 = vld [vmem:[#allocation9 + $0xf0] sm:$0xff]
        %v2680 = vld [vmem:[#allocation9 + $0xf8] sm:$0xf]
        %v2681 = vld [vmem:[#allocation9 + $0xfc] sm:$0xff]
        %v2682 = vld [vmem:[#allocation9 + $0x104] sm:$0xf]
        %v2683 = vld [vmem:[#allocation9 + $0x108] sm:$0xff]
        %v2684 = vld [vmem:[#allocation9 + $0x110] sm:$0xf]
        %v2685 = vld [vmem:[#allocation9 + $0x114] sm:$0xff]
        %v2686 = vld [vmem:[#allocation9 + $0x11c] sm:$0xf]
        %v2687 = vld [vmem:[#allocation9 + $0x120] sm:$0xff]
        %v2688 = vld [vmem:[#allocation9 + $0x128] sm:$0xf]
        %v2689 = vld [vmem:[#allocation9 + $0x12c] sm:$0xff]
        %v2690 = vld [vmem:[#allocation9 + $0x134] sm:$0xf]
        %v2691 = vld [vmem:[#allocation9 + $0x138] sm:$0xff]
        %v2692 = vld [vmem:[#allocation9 + $0x140] sm:$0xf]
        %v2693 = vld [vmem:[#allocation9 + $0x144] sm:$0xff]
        %v2694 = vld [vmem:[#allocation9 + $0x14c] sm:$0xf]
        %v2695 = vld [vmem:[#allocation9 + $0x150] sm:$0xff]
        %v2696 = vld [vmem:[#allocation9 + $0x158] sm:$0xf]
        %v2697 = vld [vmem:[#allocation9 + $0x15c] sm:$0xff]
        %v2698 = vld [vmem:[#allocation9 + $0x164] sm:$0xf]
        %v2699 = vld [vmem:[#allocation9 + $0x168] sm:$0xff]
        %v2700 = vld [vmem:[#allocation9 + $0x170] sm:$0xf]
        %v2701 = vld [vmem:[#allocation9 + $0x174] sm:$0xff]
        %v2702 = vld [vmem:[#allocation9 + $0x17c] sm:$0xf]
        %v2703 = vld [vmem:[#allocation9 + $0x180] sm:$0xff]
        %v2704 = vld [vmem:[#allocation9 + $0x188] sm:$0xf]
        %v2705 = vld [vmem:[#allocation9 + $0x18c] sm:$0xff]
        %v2706 = vld [vmem:[#allocation9 + $0x194] sm:$0xf]
        %v2707 = vld [vmem:[#allocation9 + $0x198] sm:$0xff]
        %v2708 = vld [vmem:[#allocation9 + $0x1a0] sm:$0xf]
        %v2709 = vld [vmem:[#allocation9 + $0x1a4] sm:$0xff]
        %v2710 = vld [vmem:[#allocation9 + $0x1ac] sm:$0xf]
        %v2711 = vld [vmem:[#allocation9 + $0x1b0] sm:$0xff]
        %v2712 = vld [vmem:[#allocation9 + $0x1b8] sm:$0xf]
        %v2713 = vld [vmem:[#allocation9 + $0x1bc] sm:$0xff]
        %v2714 = vld [vmem:[#allocation9 + $0x1c4] sm:$0xf]
        %v2715 = vld [vmem:[#allocation9 + $0x1c8] sm:$0xff]
        %v2716 = vld [vmem:[#allocation9 + $0x1d0] sm:$0xf]
        %v2717 = vld [vmem:[#allocation9 + $0x1d4] sm:$0xff]
        %v2718 = vld [vmem:[#allocation9 + $0x1dc] sm:$0xf]
        %v2719 = vld [vmem:[#allocation9 + $0x1e0] sm:$0xff]
        %v2720 = vld [vmem:[#allocation9 + $0x1e8] sm:$0xf]
        %v2721 = vld [vmem:[#allocation9 + $0x1ec] sm:$0xff]
        %v2722 = vld [vmem:[#allocation9 + $0x1f4] sm:$0xf]
        %v2723 = vld [vmem:[#allocation9 + $0x1f8] sm:$0xff]
        %v2724 = vld [vmem:[#allocation9 + $0x200] sm:$0xf]
        %v2725 = vld [vmem:[#allocation9 + $0x204] sm:$0xff]
        %v2726 = vld [vmem:[#allocation9 + $0x20c] sm:$0xf]
        %v2727 = vld [vmem:[#allocation9 + $0x210] sm:$0xff]
        %v2728 = vld [vmem:[#allocation9 + $0x218] sm:$0xf]
        %v2729 = vld [vmem:[#allocation9 + $0x21c] sm:$0xff]
        %v2730 = vld [vmem:[#allocation9 + $0x224] sm:$0xf]
        %v2731 = vld [vmem:[#allocation9 + $0x228] sm:$0xff]
        %v2732 = vld [vmem:[#allocation9 + $0x230] sm:$0xf]
        %v2733 = vld [vmem:[#allocation9 + $0x234] sm:$0xff]
        %v2734 = vld [vmem:[#allocation9 + $0x23c] sm:$0xf]
        %v2735 = vld [vmem:[#allocation9 + $0x240] sm:$0xff]
        %v2736 = vld [vmem:[#allocation9 + $0x248] sm:$0xf]
        %v2737 = vld [vmem:[#allocation9 + $0x24c] sm:$0xff]
        %v2738 = vld [vmem:[#allocation9 + $0x254] sm:$0xf]
        %v2739 = vld [vmem:[#allocation9 + $0x258] sm:$0xff]
        %v2740 = vld [vmem:[#allocation9 + $0x260] sm:$0xf]
        %v2741 = vld [vmem:[#allocation9 + $0x264] sm:$0xff]
        %v2742 = vld [vmem:[#allocation9 + $0x26c] sm:$0xf]
        %v2743 = vld [vmem:[#allocation9 + $0x270] sm:$0xff]
        %v2744 = vld [vmem:[#allocation9 + $0x278] sm:$0xf]
        %v2745 = vld [vmem:[#allocation9 + $0x27c] sm:$0xff]
        %v2746 = vld [vmem:[#allocation9 + $0x284] sm:$0xf]
        %v2747 = vld [vmem:[#allocation9 + $0x288] sm:$0xff]
        %v2748 = vld [vmem:[#allocation9 + $0x290] sm:$0xf]
        %v2749 = vld [vmem:[#allocation9 + $0x294] sm:$0xff]
        %v2750 = vld [vmem:[#allocation9 + $0x29c] sm:$0xf]
        %v2751 = vld [vmem:[#allocation9 + $0x2a0] sm:$0xff]
        %v2752 = vld [vmem:[#allocation9 + $0x2a8] sm:$0xf]
        %v2753 = vld [vmem:[#allocation9 + $0x2ac] sm:$0xff]
        %v2754 = vld [vmem:[#allocation9 + $0x2b4] sm:$0xf]
        %v2755 = vld [vmem:[#allocation9 + $0x2b8] sm:$0xff]
        %v2756 = vld [vmem:[#allocation9 + $0x2c0] sm:$0xf]
        %v2757 = vld [vmem:[#allocation9 + $0x2c4] sm:$0xff]
        %v2758 = vld [vmem:[#allocation9 + $0x2cc] sm:$0xf]
        %v2759 = vld [vmem:[#allocation9 + $0x2d0] sm:$0xff]
        %v2760 = vld [vmem:[#allocation9 + $0x2d8] sm:$0xf]
        %v2761 = vld [vmem:[#allocation9 + $0x2dc] sm:$0xff]
        %v2762 = vld [vmem:[#allocation9 + $0x2e4] sm:$0xf]
        %v2763 = vld [vmem:[#allocation9 + $0x2e8] sm:$0xff]
        %v2764 = vld [vmem:[#allocation9 + $0x2f0] sm:$0xf]
        %v2765 = vld [vmem:[#allocation9 + $0x2f4] sm:$0xff]
        %v2766 = vld [vmem:[#allocation9 + $0x2fc] sm:$0xf]
        %v2767 = vld [vmem:[#allocation9 + $0x300] sm:$0xff]
        %v2768 = vld [vmem:[#allocation9 + $0x308] sm:$0xf]
        %v2769 = vld [vmem:[#allocation9 + $0x30c] sm:$0xff]
        %v2770 = vld [vmem:[#allocation9 + $0x314] sm:$0xf]
        %v2771 = vld [vmem:[#allocation9 + $0x318] sm:$0xff]
        %v2772 = vld [vmem:[#allocation9 + $0x320] sm:$0xf]
        %v2773 = vld [vmem:[#allocation9 + $0x324] sm:$0xff]
        %v2774 = vld [vmem:[#allocation9 + $0x32c] sm:$0xf]
        %v2775 = vld [vmem:[#allocation9 + $0x330] sm:$0xff]
        %v2776 = vld [vmem:[#allocation9 + $0x338] sm:$0xf]
        %v2777 = vld [vmem:[#allocation9 + $0x33c] sm:$0xff]
        %v2778 = vld [vmem:[#allocation9 + $0x344] sm:$0xf]
        %v2779 = vld [vmem:[#allocation9 + $0x348] sm:$0xff]
        %v2780 = vld [vmem:[#allocation9 + $0x350] sm:$0xf]
        %v2781 = vld [vmem:[#allocation9 + $0x354] sm:$0xff]
        %v2782 = vld [vmem:[#allocation9 + $0x35c] sm:$0xf]
        %v2783 = vld [vmem:[#allocation9 + $0x360] sm:$0xff]
        %v2784 = vld [vmem:[#allocation9 + $0x368] sm:$0xf]
        %v2785 = vld [vmem:[#allocation9 + $0x36c] sm:$0xff]
        %v2786 = vld [vmem:[#allocation9 + $0x374] sm:$0xf]
        %v2787 = vld [vmem:[#allocation9 + $0x378] sm:$0xff]
        %v2788 = vld [vmem:[#allocation9 + $0x380] sm:$0xf]
        %v2789 = vld [vmem:[#allocation9 + $0x384] sm:$0xff]
        %v2790 = vld [vmem:[#allocation9 + $0x38c] sm:$0xf]
        %v2791 = vld [vmem:[#allocation9 + $0x390] sm:$0xff]
        %v2792 = vld [vmem:[#allocation9 + $0x398] sm:$0xf]
        %v2793 = vld [vmem:[#allocation9 + $0x39c] sm:$0xff]
        %v2794 = vld [vmem:[#allocation9 + $0x3a4] sm:$0xf]
        %v2795 = vld [vmem:[#allocation9 + $0x3a8] sm:$0xff]
        %v2796 = vld [vmem:[#allocation9 + $0x3b0] sm:$0xf]
        %v2797 = vld [vmem:[#allocation9 + $0x3b4] sm:$0xff]
        %v2798 = vld [vmem:[#allocation9 + $0x3bc] sm:$0xf]
        %v2799 = vld [vmem:[#allocation9 + $0x3c0] sm:$0xff]
        %v2800 = vld [vmem:[#allocation9 + $0x3c8] sm:$0xf]
        %v2801 = vld [vmem:[#allocation9 + $0x3cc] sm:$0xff]
        %v2802 = vld [vmem:[#allocation9 + $0x3d4] sm:$0xf]
        %v2803 = vld [vmem:[#allocation9 + $0x3d8] sm:$0xff]
        %v2804 = vld [vmem:[#allocation9 + $0x3e0] sm:$0xf]
        %v2805 = vld [vmem:[#allocation9 + $0x3e4] sm:$0xff]
        %v2806 = vld [vmem:[#allocation9 + $0x3ec] sm:$0xf]
        %v2807 = vld [vmem:[#allocation9 + $0x3f0] sm:$0xff]
        %v2808 = vld [vmem:[#allocation9 + $0x3f8] sm:$0xf]
        %v2809 = vld [vmem:[#allocation9 + $0x3fc] sm:$0xff]
        %v2810 = vld [vmem:[#allocation9 + $0x404] sm:$0xf]
        %v2811 = vld [vmem:[#allocation9 + $0x408] sm:$0xff]
        %v2812 = vld [vmem:[#allocation9 + $0x410] sm:$0xf]
        %v2813 = vld [vmem:[#allocation9 + $0x414] sm:$0xff]
        %v2814 = vld [vmem:[#allocation9 + $0x41c] sm:$0xf]
        %v2815 = vld [vmem:[#allocation9 + $0x420] sm:$0xff]
        %v2816 = vld [vmem:[#allocation9 + $0x428] sm:$0xf]
        %v2817 = vld [vmem:[#allocation9 + $0x42c] sm:$0xff]
        %v2818 = vld [vmem:[#allocation9 + $0x434] sm:$0xf]
        %v2819 = vld [vmem:[#allocation9 + $0x438] sm:$0xff]
        %v2820 = vld [vmem:[#allocation9 + $0x440] sm:$0xf]
        %v2821 = vld [vmem:[#allocation9 + $0x444] sm:$0xff]
        %v2822 = vld [vmem:[#allocation9 + $0x44c] sm:$0xf]
        %v2823 = vld [vmem:[#allocation9 + $0x450] sm:$0xff]
        %v2824 = vld [vmem:[#allocation9 + $0x458] sm:$0xf]
        %v2825 = vld [vmem:[#allocation9 + $0x45c] sm:$0xff]
        %v2826 = vld [vmem:[#allocation9 + $0x464] sm:$0xf]
        %v2827 = vld [vmem:[#allocation9 + $0x468] sm:$0xff]
        %v2828 = vld [vmem:[#allocation9 + $0x470] sm:$0xf]
        %v2829 = vld [vmem:[#allocation9 + $0x474] sm:$0xff]
        %v2830 = vld [vmem:[#allocation9 + $0x47c] sm:$0xf]
        %v2831 = vld [vmem:[#allocation9 + $0x480] sm:$0xff]
        %v2832 = vld [vmem:[#allocation9 + $0x488] sm:$0xf]
        %v2833 = vld [vmem:[#allocation9 + $0x48c] sm:$0xff]
        %v2834 = vld [vmem:[#allocation9 + $0x494] sm:$0xf]
        %v2835 = vld [vmem:[#allocation9 + $0x498] sm:$0xff]
        %v2836 = vld [vmem:[#allocation9 + $0x4a0] sm:$0xf]
        %v2837 = vld [vmem:[#allocation9 + $0x4a4] sm:$0xff]
        %v2838 = vld [vmem:[#allocation9 + $0x4ac] sm:$0xf]
        %v2839 = vld [vmem:[#allocation9 + $0x4b0] sm:$0xff]
        %v2840 = vld [vmem:[#allocation9 + $0x4b8] sm:$0xf]
        %v2841 = vld [vmem:[#allocation9 + $0x4bc] sm:$0xff]
        %v2842 = vld [vmem:[#allocation9 + $0x4c4] sm:$0xf]
        %v2843 = vld [vmem:[#allocation9 + $0x4c8] sm:$0xff]
        %v2844 = vld [vmem:[#allocation9 + $0x4d0] sm:$0xf]
        %v2845 = vld [vmem:[#allocation9 + $0x4d4] sm:$0xff]
        %v2846 = vld [vmem:[#allocation9 + $0x4dc] sm:$0xf]
        %v2847 = vld [vmem:[#allocation9 + $0x4e0] sm:$0xff]
        %v2848 = vld [vmem:[#allocation9 + $0x4e8] sm:$0xf]
        %v2849 = vld [vmem:[#allocation9 + $0x4ec] sm:$0xff]
        %v2850 = vld [vmem:[#allocation9 + $0x4f4] sm:$0xf]
        %v2851 = vld [vmem:[#allocation9 + $0x4f8] sm:$0xff]
        %v2852 = vld [vmem:[#allocation9 + $0x500] sm:$0xf]
        %v2853 = vld [vmem:[#allocation9 + $0x504] sm:$0xff]
        %v2854 = vld [vmem:[#allocation9 + $0x50c] sm:$0xf]
        %v2855 = vld [vmem:[#allocation9 + $0x510] sm:$0xff]
        %v2856 = vld [vmem:[#allocation9 + $0x518] sm:$0xf]
        %v2857 = vld [vmem:[#allocation9 + $0x51c] sm:$0xff]
        %v2858 = vld [vmem:[#allocation9 + $0x524] sm:$0xf]
        %v2859 = vld [vmem:[#allocation9 + $0x528] sm:$0xff]
        %v2860 = vld [vmem:[#allocation9 + $0x530] sm:$0xf]
        %v2861 = vld [vmem:[#allocation9 + $0x534] sm:$0xff]
        %v2862 = vld [vmem:[#allocation9 + $0x53c] sm:$0xf]
        %v2863 = vld [vmem:[#allocation9 + $0x540] sm:$0xff]
        %v2864 = vld [vmem:[#allocation9 + $0x548] sm:$0xf]
        %v2865 = vld [vmem:[#allocation9 + $0x54c] sm:$0xff]
        %v2866 = vld [vmem:[#allocation9 + $0x554] sm:$0xf]
        %v2867 = vld [vmem:[#allocation9 + $0x558] sm:$0xff]
        %v2868 = vld [vmem:[#allocation9 + $0x560] sm:$0xf]
        %v2869 = vld [vmem:[#allocation9 + $0x564] sm:$0xff]
        %v2870 = vld [vmem:[#allocation9 + $0x56c] sm:$0xf]
        %v2871 = vld [vmem:[#allocation9 + $0x570] sm:$0xff]
        %v2872 = vld [vmem:[#allocation9 + $0x578] sm:$0xf]
        %v2873 = vld [vmem:[#allocation9 + $0x57c] sm:$0xff]
        %v2874 = vld [vmem:[#allocation9 + $0x584] sm:$0xf]
        %v2875 = vld [vmem:[#allocation9 + $0x588] sm:$0xff]
        %v2876 = vld [vmem:[#allocation9 + $0x590] sm:$0xf]
        %v2877 = vld [vmem:[#allocation9 + $0x594] sm:$0xff]
        %v2878 = vld [vmem:[#allocation9 + $0x59c] sm:$0xf]
        %v2879 = vld [vmem:[#allocation9 + $0x5a0] sm:$0xff]
        %v2880 = vld [vmem:[#allocation9 + $0x5a8] sm:$0xf]
        %v2881 = vld [vmem:[#allocation9 + $0x5ac] sm:$0xff]
        %v2882 = vld [vmem:[#allocation9 + $0x5b4] sm:$0xf]
        %v2883 = vld [vmem:[#allocation9 + $0x5b8] sm:$0xff]
        %v2884 = vld [vmem:[#allocation9 + $0x5c0] sm:$0xf]
        %v2885 = vld [vmem:[#allocation9 + $0x5c4] sm:$0xff]
        %v2886 = vld [vmem:[#allocation9 + $0x5cc] sm:$0xf]
        %v2887 = vld [vmem:[#allocation9 + $0x5d0] sm:$0xff]
        %v2888 = vld [vmem:[#allocation9 + $0x5d8] sm:$0xf]
        %v2889 = vld [vmem:[#allocation9 + $0x5dc] sm:$0xff]
        %v2890 = vld [vmem:[#allocation9 + $0x5e4] sm:$0xf]
        %v2891 = vld [vmem:[#allocation9 + $0x5e8] sm:$0xff]
        %v2892 = vld [vmem:[#allocation9 + $0x5f0] sm:$0xf]
        %v2893 = vld [vmem:[#allocation9 + $0x5f4] sm:$0xff]
        %v2894 = vld [vmem:[#allocation9 + $0x5fc] sm:$0xf]
        %v2895 = vld [vmem:[#allocation9 + $0x600] sm:$0xff]
        %v2896 = vld [vmem:[#allocation9 + $0x608] sm:$0xf]
        %v2897 = vld [vmem:[#allocation9 + $0x60c] sm:$0xff]
        %v2898 = vld [vmem:[#allocation9 + $0x614] sm:$0xf]
        %v2899 = vld [vmem:[#allocation9 + $0x618] sm:$0xff]
        %v2900 = vld [vmem:[#allocation9 + $0x620] sm:$0xf]
        %v2901 = vld [vmem:[#allocation9 + $0x624] sm:$0xff]
        %v2902 = vld [vmem:[#allocation9 + $0x62c] sm:$0xf]
        %v2903 = vld [vmem:[#allocation9 + $0x630] sm:$0xff]
        %v2904 = vld [vmem:[#allocation9 + $0x638] sm:$0xf]
        %v2905 = vld [vmem:[#allocation9 + $0x63c] sm:$0xff]
        %v2906 = vld [vmem:[#allocation9 + $0x644] sm:$0xf]
        %v2907 = vld [vmem:[#allocation9 + $0x648] sm:$0xff]
        %v2908 = vld [vmem:[#allocation9 + $0x650] sm:$0xf]
        %v2909 = vld [vmem:[#allocation9 + $0x654] sm:$0xff]
        %v2910 = vld [vmem:[#allocation9 + $0x65c] sm:$0xf]
        %v2911 = vld [vmem:[#allocation9 + $0x660] sm:$0xff]
        %v2912 = vld [vmem:[#allocation9 + $0x668] sm:$0xf]
        %v2913 = vld [vmem:[#allocation9 + $0x66c] sm:$0xff]
        %v2914 = vld [vmem:[#allocation9 + $0x674] sm:$0xf]
        %v2915 = vld [vmem:[#allocation9 + $0x678] sm:$0xff]
        %v2916 = vld [vmem:[#allocation9 + $0x680] sm:$0xf]
        %v2917 = vld [vmem:[#allocation9 + $0x684] sm:$0xff]
        %v2918 = vld [vmem:[#allocation9 + $0x68c] sm:$0xf]
        %v2919 = vld [vmem:[#allocation9 + $0x690] sm:$0xff]
        %v2920 = vld [vmem:[#allocation9 + $0x698] sm:$0xf]
        %v2921 = vld [vmem:[#allocation9 + $0x69c] sm:$0xff]
        %v2922 = vld [vmem:[#allocation9 + $0x6a4] sm:$0xf]
        %v2923 = vld [vmem:[#allocation9 + $0x6a8] sm:$0xff]
        %v2924 = vld [vmem:[#allocation9 + $0x6b0] sm:$0xf]
        %v2925 = vld [vmem:[#allocation9 + $0x6b4] sm:$0xff]
        %v2926 = vld [vmem:[#allocation9 + $0x6bc] sm:$0xf]
        %v2927 = vld [vmem:[#allocation9 + $0x6c0] sm:$0xff]
        %v2928 = vld [vmem:[#allocation9 + $0x6c8] sm:$0xf]
        %v2929 = vld [vmem:[#allocation9 + $0x6cc] sm:$0xff]
        %v2930 = vld [vmem:[#allocation9 + $0x6d4] sm:$0xf]
        %v2931 = vld [vmem:[#allocation9 + $0x6d8] sm:$0xff]
        %v2932 = vld [vmem:[#allocation9 + $0x6e0] sm:$0xf]
        %v2933 = vld [vmem:[#allocation9 + $0x6e4] sm:$0xff]
        %v2934 = vld [vmem:[#allocation9 + $0x6ec] sm:$0xf]
        %v2935 = vld [vmem:[#allocation9 + $0x6f0] sm:$0xff]
        %v2936 = vld [vmem:[#allocation9 + $0x6f8] sm:$0xf]
        %v2937 = vld [vmem:[#allocation9 + $0x6fc] sm:$0xff]
        %v2938 = vld [vmem:[#allocation9 + $0x704] sm:$0xf]
        %v2939 = vld [vmem:[#allocation9 + $0x708] sm:$0xff]
        %v2940 = vld [vmem:[#allocation9 + $0x710] sm:$0xf]
        %v2941 = vld [vmem:[#allocation9 + $0x714] sm:$0xff]
        %v2942 = vld [vmem:[#allocation9 + $0x71c] sm:$0xf]
        %v2943 = vld [vmem:[#allocation9 + $0x720] sm:$0xff]
        %v2944 = vld [vmem:[#allocation9 + $0x728] sm:$0xf]
        %v2945 = vld [vmem:[#allocation9 + $0x72c] sm:$0xff]
        %v2946 = vld [vmem:[#allocation9 + $0x734] sm:$0xf]
        %v2947 = vld [vmem:[#allocation9 + $0x738] sm:$0xff]
        %v2948 = vld [vmem:[#allocation9 + $0x740] sm:$0xf]
        %v2949 = vld [vmem:[#allocation9 + $0x744] sm:$0xff]
        %v2950 = vld [vmem:[#allocation9 + $0x74c] sm:$0xf]
        %v2951 = vld [vmem:[#allocation9 + $0x750] sm:$0xff]
        %v2952 = vld [vmem:[#allocation9 + $0x758] sm:$0xf]
        %v2953 = vld [vmem:[#allocation9 + $0x75c] sm:$0xff]
        %v2954 = vld [vmem:[#allocation9 + $0x764] sm:$0xf]
        %v2955 = vld [vmem:[#allocation9 + $0x768] sm:$0xff]
        %v2956 = vld [vmem:[#allocation9 + $0x770] sm:$0xf]
        %v2957 = vld [vmem:[#allocation9 + $0x774] sm:$0xff]
        %v2958 = vld [vmem:[#allocation9 + $0x77c] sm:$0xf]
        %v2959 = vld [vmem:[#allocation9 + $0x780] sm:$0xff]
        %v2960 = vld [vmem:[#allocation9 + $0x788] sm:$0xf]
        %v2961 = vld [vmem:[#allocation9 + $0x78c] sm:$0xff]
        %v2962 = vld [vmem:[#allocation9 + $0x794] sm:$0xf]
        %v2963 = vld [vmem:[#allocation9 + $0x798] sm:$0xff]
        %v2964 = vld [vmem:[#allocation9 + $0x7a0] sm:$0xf]
        %v2965 = vld [vmem:[#allocation9 + $0x7a4] sm:$0xff]
        %v2966 = vld [vmem:[#allocation9 + $0x7ac] sm:$0xf]
        %v2967 = vld [vmem:[#allocation9 + $0x7b0] sm:$0xff]
        %v2968 = vld [vmem:[#allocation9 + $0x7b8] sm:$0xf]
        %v2969 = vld [vmem:[#allocation9 + $0x7bc] sm:$0xff]
        %v2970 = vld [vmem:[#allocation9 + $0x7c4] sm:$0xf]
        %v2971 = vld [vmem:[#allocation9 + $0x7c8] sm:$0xff]
        %v2972 = vld [vmem:[#allocation9 + $0x7d0] sm:$0xf]
        %v2973 = vld [vmem:[#allocation9 + $0x7d4] sm:$0xff]
        %v2974 = vld [vmem:[#allocation9 + $0x7dc] sm:$0xf]
        %v2975 = vld [vmem:[#allocation9 + $0x7e0] sm:$0xff]
        %v2976 = vld [vmem:[#allocation9 + $0x7e8] sm:$0xf]
        %v2977 = vld [vmem:[#allocation9 + $0x7ec] sm:$0xff]
        %v2978 = vld [vmem:[#allocation9 + $0x7f4] sm:$0xf]
        %v2979 = vld [vmem:[#allocation9 + $0x7f8] sm:$0xff]
        %v2980 = vld [vmem:[#allocation9 + $0x800] sm:$0xf]
        %v2981 = vld [vmem:[#allocation9 + $0x804] sm:$0xff]
        %v2982 = vld [vmem:[#allocation9 + $0x80c] sm:$0xf]
        %v2983 = vld [vmem:[#allocation9 + $0x810] sm:$0xff]
        %v2984 = vld [vmem:[#allocation9 + $0x818] sm:$0xf]
        %v2985 = vld [vmem:[#allocation9 + $0x81c] sm:$0xff]
        %v2986 = vld [vmem:[#allocation9 + $0x824] sm:$0xf]
        %v2987 = vld [vmem:[#allocation9 + $0x828] sm:$0xff]
        %v2988 = vld [vmem:[#allocation9 + $0x830] sm:$0xf]
        %v2989 = vld [vmem:[#allocation9 + $0x834] sm:$0xff]
        %v2990 = vld [vmem:[#allocation9 + $0x83c] sm:$0xf]
        %v2991 = vld [vmem:[#allocation9 + $0x840] sm:$0xff]
        %v2992 = vld [vmem:[#allocation9 + $0x848] sm:$0xf]
        %v2993 = vld [vmem:[#allocation9 + $0x84c] sm:$0xff]
        %v2994 = vld [vmem:[#allocation9 + $0x854] sm:$0xf]
        %v2995 = vld [vmem:[#allocation9 + $0x858] sm:$0xff]
        %v2996 = vld [vmem:[#allocation9 + $0x860] sm:$0xf]
        %v2997 = vld [vmem:[#allocation9 + $0x864] sm:$0xff]
        %v2998 = vld [vmem:[#allocation9 + $0x86c] sm:$0xf]
        %v2999 = vld [vmem:[#allocation9 + $0x870] sm:$0xff]
        %v3000 = vld [vmem:[#allocation9 + $0x878] sm:$0xf]
        %v3001 = vld [vmem:[#allocation9 + $0x87c] sm:$0xff]
        %v3002 = vld [vmem:[#allocation9 + $0x884] sm:$0xf]
        %v3003 = vld [vmem:[#allocation9 + $0x888] sm:$0xff]
        %v3004 = vld [vmem:[#allocation9 + $0x890] sm:$0xf]
        %v3005 = vld [vmem:[#allocation9 + $0x894] sm:$0xff]
        %v3006 = vld [vmem:[#allocation9 + $0x89c] sm:$0xf]
        %v3007 = vld [vmem:[#allocation9 + $0x8a0] sm:$0xff]
        %v3008 = vld [vmem:[#allocation9 + $0x8a8] sm:$0xf]
        %v3009 = vld [vmem:[#allocation9 + $0x8ac] sm:$0xff]
        %v3010 = vld [vmem:[#allocation9 + $0x8b4] sm:$0xf]
        %v3011 = vld [vmem:[#allocation9 + $0x8b8] sm:$0xff]
        %v3012 = vld [vmem:[#allocation9 + $0x8c0] sm:$0xf]
        %v3013 = vld [vmem:[#allocation9 + $0x8c4] sm:$0xff]
        %v3014 = vld [vmem:[#allocation9 + $0x8cc] sm:$0xf]
        %v3015 = vld [vmem:[#allocation9 + $0x8d0] sm:$0xff]
        %v3016 = vld [vmem:[#allocation9 + $0x8d8] sm:$0xf]
        %v3017 = vld [vmem:[#allocation9 + $0x8dc] sm:$0xff]
        %v3018 = vld [vmem:[#allocation9 + $0x8e4] sm:$0xf]
        %v3019 = vld [vmem:[#allocation9 + $0x8e8] sm:$0xff]
        %v3020 = vld [vmem:[#allocation9 + $0x8f0] sm:$0xf]
        %v3021 = vld [vmem:[#allocation9 + $0x8f4] sm:$0xff]
        %v3022 = vld [vmem:[#allocation9 + $0x8fc] sm:$0xf]
        %v3407 = vunpack.c.l.b16 %v2639
        %v3408 = vunpack.c.h.b16 %v2639
        %v3409 = vunpack.c.l.b16 %v2640
        %v3410 = vunpack.c.l.b16 %v2641
        %v3411 = vunpack.c.h.b16 %v2641
        %v3412 = vunpack.c.l.b16 %v2642
        %v3413 = vunpack.c.l.b16 %v2643
        %v3414 = vunpack.c.h.b16 %v2643
        %v3415 = vunpack.c.l.b16 %v2644
        %v3416 = vunpack.c.l.b16 %v2645
        %v3417 = vunpack.c.h.b16 %v2645
        %v3418 = vunpack.c.l.b16 %v2646
        %v3419 = vunpack.c.l.b16 %v2647
        %v3420 = vunpack.c.h.b16 %v2647
        %v3421 = vunpack.c.l.b16 %v2648
        %v3422 = vunpack.c.l.b16 %v2649
        %v3423 = vunpack.c.h.b16 %v2649
        %v3424 = vunpack.c.l.b16 %v2650
        %v3425 = vunpack.c.l.b16 %v2651
        %v3426 = vunpack.c.h.b16 %v2651
        %v3427 = vunpack.c.l.b16 %v2652
        %v3428 = vunpack.c.l.b16 %v2653
        %v3429 = vunpack.c.h.b16 %v2653
        %v3430 = vunpack.c.l.b16 %v2654
        %v3431 = vunpack.c.l.b16 %v2655
        %v3432 = vunpack.c.h.b16 %v2655
        %v3433 = vunpack.c.l.b16 %v2656
        %v3434 = vunpack.c.l.b16 %v2657
        %v3435 = vunpack.c.h.b16 %v2657
        %v3436 = vunpack.c.l.b16 %v2658
        %v3437 = vunpack.c.l.b16 %v2659
        %v3438 = vunpack.c.h.b16 %v2659
        %v3439 = vunpack.c.l.b16 %v2660
        %v3440 = vunpack.c.l.b16 %v2661
        %v3441 = vunpack.c.h.b16 %v2661
        %v3442 = vunpack.c.l.b16 %v2662
        %v3443 = vunpack.c.l.b16 %v2663
        %v3444 = vunpack.c.h.b16 %v2663
        %v3445 = vunpack.c.l.b16 %v2664
        %v3446 = vunpack.c.l.b16 %v2665
        %v3447 = vunpack.c.h.b16 %v2665
        %v3448 = vunpack.c.l.b16 %v2666
        %v3449 = vunpack.c.l.b16 %v2667
        %v3450 = vunpack.c.h.b16 %v2667
        %v3451 = vunpack.c.l.b16 %v2668
        %v3452 = vunpack.c.l.b16 %v2669
        %v3453 = vunpack.c.h.b16 %v2669
        %v3454 = vunpack.c.l.b16 %v2670
        %v3455 = vunpack.c.l.b16 %v2671
        %v3456 = vunpack.c.h.b16 %v2671
        %v3457 = vunpack.c.l.b16 %v2672
        %v3458 = vunpack.c.l.b16 %v2673
        %v3459 = vunpack.c.h.b16 %v2673
        %v3460 = vunpack.c.l.b16 %v2674
        %v3461 = vunpack.c.l.b16 %v2675
        %v3462 = vunpack.c.h.b16 %v2675
        %v3463 = vunpack.c.l.b16 %v2676
        %v3464 = vunpack.c.l.b16 %v2677
        %v3465 = vunpack.c.h.b16 %v2677
        %v3466 = vunpack.c.l.b16 %v2678
        %v3467 = vunpack.c.l.b16 %v2679
        %v3468 = vunpack.c.h.b16 %v2679
        %v3469 = vunpack.c.l.b16 %v2680
        %v3470 = vunpack.c.l.b16 %v2681
        %v3471 = vunpack.c.h.b16 %v2681
        %v3472 = vunpack.c.l.b16 %v2682
        %v3473 = vunpack.c.l.b16 %v2683
        %v3474 = vunpack.c.h.b16 %v2683
        %v3475 = vunpack.c.l.b16 %v2684
        %v3476 = vunpack.c.l.b16 %v2685
        %v3477 = vunpack.c.h.b16 %v2685
        %v3478 = vunpack.c.l.b16 %v2686
        %v3479 = vunpack.c.l.b16 %v2687
        %v3480 = vunpack.c.h.b16 %v2687
        %v3481 = vunpack.c.l.b16 %v2688
        %v3482 = vunpack.c.l.b16 %v2689
        %v3483 = vunpack.c.h.b16 %v2689
        %v3484 = vunpack.c.l.b16 %v2690
        %v3485 = vunpack.c.l.b16 %v2691
        %v3486 = vunpack.c.h.b16 %v2691
        %v3487 = vunpack.c.l.b16 %v2692
        %v3488 = vunpack.c.l.b16 %v2693
        %v3489 = vunpack.c.h.b16 %v2693
        %v3490 = vunpack.c.l.b16 %v2694
        %v3491 = vunpack.c.l.b16 %v2695
        %v3492 = vunpack.c.h.b16 %v2695
        %v3493 = vunpack.c.l.b16 %v2696
        %v3494 = vunpack.c.l.b16 %v2697
        %v3495 = vunpack.c.h.b16 %v2697
        %v3496 = vunpack.c.l.b16 %v2698
        %v3497 = vunpack.c.l.b16 %v2699
        %v3498 = vunpack.c.h.b16 %v2699
        %v3499 = vunpack.c.l.b16 %v2700
        %v3500 = vunpack.c.l.b16 %v2701
        %v3501 = vunpack.c.h.b16 %v2701
        %v3502 = vunpack.c.l.b16 %v2702
        %v3503 = vunpack.c.l.b16 %v2703
        %v3504 = vunpack.c.h.b16 %v2703
        %v3505 = vunpack.c.l.b16 %v2704
        %v3506 = vunpack.c.l.b16 %v2705
        %v3507 = vunpack.c.h.b16 %v2705
        %v3508 = vunpack.c.l.b16 %v2706
        %v3509 = vunpack.c.l.b16 %v2707
        %v3510 = vunpack.c.h.b16 %v2707
        %v3511 = vunpack.c.l.b16 %v2708
        %v3512 = vunpack.c.l.b16 %v2709
        %v3513 = vunpack.c.h.b16 %v2709
        %v3514 = vunpack.c.l.b16 %v2710
        %v3515 = vunpack.c.l.b16 %v2711
        %v3516 = vunpack.c.h.b16 %v2711
        %v3517 = vunpack.c.l.b16 %v2712
        %v3518 = vunpack.c.l.b16 %v2713
        %v3519 = vunpack.c.h.b16 %v2713
        %v3520 = vunpack.c.l.b16 %v2714
        %v3521 = vunpack.c.l.b16 %v2715
        %v3522 = vunpack.c.h.b16 %v2715
        %v3523 = vunpack.c.l.b16 %v2716
        %v3524 = vunpack.c.l.b16 %v2717
        %v3525 = vunpack.c.h.b16 %v2717
        %v3526 = vunpack.c.l.b16 %v2718
        %v3527 = vunpack.c.l.b16 %v2719
        %v3528 = vunpack.c.h.b16 %v2719
        %v3529 = vunpack.c.l.b16 %v2720
        %v3530 = vunpack.c.l.b16 %v2721
        %v3531 = vunpack.c.h.b16 %v2721
        %v3532 = vunpack.c.l.b16 %v2722
        %v3533 = vunpack.c.l.b16 %v2723
        %v3534 = vunpack.c.h.b16 %v2723
        %v3535 = vunpack.c.l.b16 %v2724
        %v3536 = vunpack.c.l.b16 %v2725
        %v3537 = vunpack.c.h.b16 %v2725
        %v3538 = vunpack.c.l.b16 %v2726
        %v3539 = vunpack.c.l.b16 %v2727
        %v3540 = vunpack.c.h.b16 %v2727
        %v3541 = vunpack.c.l.b16 %v2728
        %v3542 = vunpack.c.l.b16 %v2729
        %v3543 = vunpack.c.h.b16 %v2729
        %v3544 = vunpack.c.l.b16 %v2730
        %v3545 = vunpack.c.l.b16 %v2731
        %v3546 = vunpack.c.h.b16 %v2731
        %v3547 = vunpack.c.l.b16 %v2732
        %v3548 = vunpack.c.l.b16 %v2733
        %v3549 = vunpack.c.h.b16 %v2733
        %v3550 = vunpack.c.l.b16 %v2734
        %v3551 = vunpack.c.l.b16 %v2735
        %v3552 = vunpack.c.h.b16 %v2735
        %v3553 = vunpack.c.l.b16 %v2736
        %v3554 = vunpack.c.l.b16 %v2737
        %v3555 = vunpack.c.h.b16 %v2737
        %v3556 = vunpack.c.l.b16 %v2738
        %v3557 = vunpack.c.l.b16 %v2739
        %v3558 = vunpack.c.h.b16 %v2739
        %v3559 = vunpack.c.l.b16 %v2740
        %v3560 = vunpack.c.l.b16 %v2741
        %v3561 = vunpack.c.h.b16 %v2741
        %v3562 = vunpack.c.l.b16 %v2742
        %v3563 = vunpack.c.l.b16 %v2743
        %v3564 = vunpack.c.h.b16 %v2743
        %v3565 = vunpack.c.l.b16 %v2744
        %v3566 = vunpack.c.l.b16 %v2745
        %v3567 = vunpack.c.h.b16 %v2745
        %v3568 = vunpack.c.l.b16 %v2746
        %v3569 = vunpack.c.l.b16 %v2747
        %v3570 = vunpack.c.h.b16 %v2747
        %v3571 = vunpack.c.l.b16 %v2748
        %v3572 = vunpack.c.l.b16 %v2749
        %v3573 = vunpack.c.h.b16 %v2749
        %v3574 = vunpack.c.l.b16 %v2750
        %v3575 = vunpack.c.l.b16 %v2751
        %v3576 = vunpack.c.h.b16 %v2751
        %v3577 = vunpack.c.l.b16 %v2752
        %v3578 = vunpack.c.l.b16 %v2753
        %v3579 = vunpack.c.h.b16 %v2753
        %v3580 = vunpack.c.l.b16 %v2754
        %v3581 = vunpack.c.l.b16 %v2755
        %v3582 = vunpack.c.h.b16 %v2755
        %v3583 = vunpack.c.l.b16 %v2756
        %v3584 = vunpack.c.l.b16 %v2757
        %v3585 = vunpack.c.h.b16 %v2757
        %v3586 = vunpack.c.l.b16 %v2758
        %v3587 = vunpack.c.l.b16 %v2759
        %v3588 = vunpack.c.h.b16 %v2759
        %v3589 = vunpack.c.l.b16 %v2760
        %v3590 = vunpack.c.l.b16 %v2761
        %v3591 = vunpack.c.h.b16 %v2761
        %v3592 = vunpack.c.l.b16 %v2762
        %v3593 = vunpack.c.l.b16 %v2763
        %v3594 = vunpack.c.h.b16 %v2763
        %v3595 = vunpack.c.l.b16 %v2764
        %v3596 = vunpack.c.l.b16 %v2765
        %v3597 = vunpack.c.h.b16 %v2765
        %v3598 = vunpack.c.l.b16 %v2766
        %v3599 = vunpack.c.l.b16 %v2767
        %v3600 = vunpack.c.h.b16 %v2767
        %v3601 = vunpack.c.l.b16 %v2768
        %v3602 = vunpack.c.l.b16 %v2769
        %v3603 = vunpack.c.h.b16 %v2769
        %v3604 = vunpack.c.l.b16 %v2770
        %v3605 = vunpack.c.l.b16 %v2771
        %v3606 = vunpack.c.h.b16 %v2771
        %v3607 = vunpack.c.l.b16 %v2772
        %v3608 = vunpack.c.l.b16 %v2773
        %v3609 = vunpack.c.h.b16 %v2773
        %v3610 = vunpack.c.l.b16 %v2774
        %v3611 = vunpack.c.l.b16 %v2775
        %v3612 = vunpack.c.h.b16 %v2775
        %v3613 = vunpack.c.l.b16 %v2776
        %v3614 = vunpack.c.l.b16 %v2777
        %v3615 = vunpack.c.h.b16 %v2777
        %v3616 = vunpack.c.l.b16 %v2778
        %v3617 = vunpack.c.l.b16 %v2779
        %v3618 = vunpack.c.h.b16 %v2779
        %v3619 = vunpack.c.l.b16 %v2780
        %v3620 = vunpack.c.l.b16 %v2781
        %v3621 = vunpack.c.h.b16 %v2781
        %v3622 = vunpack.c.l.b16 %v2782
        %v3623 = vunpack.c.l.b16 %v2783
        %v3624 = vunpack.c.h.b16 %v2783
        %v3625 = vunpack.c.l.b16 %v2784
        %v3626 = vunpack.c.l.b16 %v2785
        %v3627 = vunpack.c.h.b16 %v2785
        %v3628 = vunpack.c.l.b16 %v2786
        %v3629 = vunpack.c.l.b16 %v2787
        %v3630 = vunpack.c.h.b16 %v2787
        %v3631 = vunpack.c.l.b16 %v2788
        %v3632 = vunpack.c.l.b16 %v2789
        %v3633 = vunpack.c.h.b16 %v2789
        %v3634 = vunpack.c.l.b16 %v2790
        %v3635 = vunpack.c.l.b16 %v2791
        %v3636 = vunpack.c.h.b16 %v2791
        %v3637 = vunpack.c.l.b16 %v2792
        %v3638 = vunpack.c.l.b16 %v2793
        %v3639 = vunpack.c.h.b16 %v2793
        %v3640 = vunpack.c.l.b16 %v2794
        %v3641 = vunpack.c.l.b16 %v2795
        %v3642 = vunpack.c.h.b16 %v2795
        %v3643 = vunpack.c.l.b16 %v2796
        %v3644 = vunpack.c.l.b16 %v2797
        %v3645 = vunpack.c.h.b16 %v2797
        %v3646 = vunpack.c.l.b16 %v2798
        %v3647 = vunpack.c.l.b16 %v2799
        %v3648 = vunpack.c.h.b16 %v2799
        %v3649 = vunpack.c.l.b16 %v2800
        %v3650 = vunpack.c.l.b16 %v2801
        %v3651 = vunpack.c.h.b16 %v2801
        %v3652 = vunpack.c.l.b16 %v2802
        %v3653 = vunpack.c.l.b16 %v2803
        %v3654 = vunpack.c.h.b16 %v2803
        %v3655 = vunpack.c.l.b16 %v2804
        %v3656 = vunpack.c.l.b16 %v2805
        %v3657 = vunpack.c.h.b16 %v2805
        %v3658 = vunpack.c.l.b16 %v2806
        %v3659 = vunpack.c.l.b16 %v2807
        %v3660 = vunpack.c.h.b16 %v2807
        %v3661 = vunpack.c.l.b16 %v2808
        %v3662 = vunpack.c.l.b16 %v2809
        %v3663 = vunpack.c.h.b16 %v2809
        %v3664 = vunpack.c.l.b16 %v2810
        %v3665 = vunpack.c.l.b16 %v2811
        %v3666 = vunpack.c.h.b16 %v2811
        %v3667 = vunpack.c.l.b16 %v2812
        %v3668 = vunpack.c.l.b16 %v2813
        %v3669 = vunpack.c.h.b16 %v2813
        %v3670 = vunpack.c.l.b16 %v2814
        %v3671 = vunpack.c.l.b16 %v2815
        %v3672 = vunpack.c.h.b16 %v2815
        %v3673 = vunpack.c.l.b16 %v2816
        %v3674 = vunpack.c.l.b16 %v2817
        %v3675 = vunpack.c.h.b16 %v2817
        %v3676 = vunpack.c.l.b16 %v2818
        %v3677 = vunpack.c.l.b16 %v2819
        %v3678 = vunpack.c.h.b16 %v2819
        %v3679 = vunpack.c.l.b16 %v2820
        %v3680 = vunpack.c.l.b16 %v2821
        %v3681 = vunpack.c.h.b16 %v2821
        %v3682 = vunpack.c.l.b16 %v2822
        %v3683 = vunpack.c.l.b16 %v2823
        %v3684 = vunpack.c.h.b16 %v2823
        %v3685 = vunpack.c.l.b16 %v2824
        %v3686 = vunpack.c.l.b16 %v2825
        %v3687 = vunpack.c.h.b16 %v2825
        %v3688 = vunpack.c.l.b16 %v2826
        %v3689 = vunpack.c.l.b16 %v2827
        %v3690 = vunpack.c.h.b16 %v2827
        %v3691 = vunpack.c.l.b16 %v2828
        %v3692 = vunpack.c.l.b16 %v2829
        %v3693 = vunpack.c.h.b16 %v2829
        %v3694 = vunpack.c.l.b16 %v2830
        %v3695 = vunpack.c.l.b16 %v2831
        %v3696 = vunpack.c.h.b16 %v2831
        %v3697 = vunpack.c.l.b16 %v2832
        %v3698 = vunpack.c.l.b16 %v2833
        %v3699 = vunpack.c.h.b16 %v2833
        %v3700 = vunpack.c.l.b16 %v2834
        %v3701 = vunpack.c.l.b16 %v2835
        %v3702 = vunpack.c.h.b16 %v2835
        %v3703 = vunpack.c.l.b16 %v2836
        %v3704 = vunpack.c.l.b16 %v2837
        %v3705 = vunpack.c.h.b16 %v2837
        %v3706 = vunpack.c.l.b16 %v2838
        %v3707 = vunpack.c.l.b16 %v2839
        %v3708 = vunpack.c.h.b16 %v2839
        %v3709 = vunpack.c.l.b16 %v2840
        %v3710 = vunpack.c.l.b16 %v2841
        %v3711 = vunpack.c.h.b16 %v2841
        %v3712 = vunpack.c.l.b16 %v2842
        %v3713 = vunpack.c.l.b16 %v2843
        %v3714 = vunpack.c.h.b16 %v2843
        %v3715 = vunpack.c.l.b16 %v2844
        %v3716 = vunpack.c.l.b16 %v2845
        %v3717 = vunpack.c.h.b16 %v2845
        %v3718 = vunpack.c.l.b16 %v2846
        %v3719 = vunpack.c.l.b16 %v2847
        %v3720 = vunpack.c.h.b16 %v2847
        %v3721 = vunpack.c.l.b16 %v2848
        %v3722 = vunpack.c.l.b16 %v2849
        %v3723 = vunpack.c.h.b16 %v2849
        %v3724 = vunpack.c.l.b16 %v2850
        %v3725 = vunpack.c.l.b16 %v2851
        %v3726 = vunpack.c.h.b16 %v2851
        %v3727 = vunpack.c.l.b16 %v2852
        %v3728 = vunpack.c.l.b16 %v2853
        %v3729 = vunpack.c.h.b16 %v2853
        %v3730 = vunpack.c.l.b16 %v2854
        %v3731 = vunpack.c.l.b16 %v2855
        %v3732 = vunpack.c.h.b16 %v2855
        %v3733 = vunpack.c.l.b16 %v2856
        %v3734 = vunpack.c.l.b16 %v2857
        %v3735 = vunpack.c.h.b16 %v2857
        %v3736 = vunpack.c.l.b16 %v2858
        %v3737 = vunpack.c.l.b16 %v2859
        %v3738 = vunpack.c.h.b16 %v2859
        %v3739 = vunpack.c.l.b16 %v2860
        %v3740 = vunpack.c.l.b16 %v2861
        %v3741 = vunpack.c.h.b16 %v2861
        %v3742 = vunpack.c.l.b16 %v2862
        %v3743 = vunpack.c.l.b16 %v2863
        %v3744 = vunpack.c.h.b16 %v2863
        %v3745 = vunpack.c.l.b16 %v2864
        %v3746 = vunpack.c.l.b16 %v2865
        %v3747 = vunpack.c.h.b16 %v2865
        %v3748 = vunpack.c.l.b16 %v2866
        %v3749 = vunpack.c.l.b16 %v2867
        %v3750 = vunpack.c.h.b16 %v2867
        %v3751 = vunpack.c.l.b16 %v2868
        %v3752 = vunpack.c.l.b16 %v2869
        %v3753 = vunpack.c.h.b16 %v2869
        %v3754 = vunpack.c.l.b16 %v2870
        %v3755 = vunpack.c.l.b16 %v2871
        %v3756 = vunpack.c.h.b16 %v2871
        %v3757 = vunpack.c.l.b16 %v2872
        %v3758 = vunpack.c.l.b16 %v2873
        %v3759 = vunpack.c.h.b16 %v2873
        %v3760 = vunpack.c.l.b16 %v2874
        %v3761 = vunpack.c.l.b16 %v2875
        %v3762 = vunpack.c.h.b16 %v2875
        %v3763 = vunpack.c.l.b16 %v2876
        %v3764 = vunpack.c.l.b16 %v2877
        %v3765 = vunpack.c.h.b16 %v2877
        %v3766 = vunpack.c.l.b16 %v2878
        %v3767 = vunpack.c.l.b16 %v2879
        %v3768 = vunpack.c.h.b16 %v2879
        %v3769 = vunpack.c.l.b16 %v2880
        %v3770 = vunpack.c.l.b16 %v2881
        %v3771 = vunpack.c.h.b16 %v2881
        %v3772 = vunpack.c.l.b16 %v2882
        %v3773 = vunpack.c.l.b16 %v2883
        %v3774 = vunpack.c.h.b16 %v2883
        %v3775 = vunpack.c.l.b16 %v2884
        %v3776 = vunpack.c.l.b16 %v2885
        %v3777 = vunpack.c.h.b16 %v2885
        %v3778 = vunpack.c.l.b16 %v2886
        %v3779 = vunpack.c.l.b16 %v2887
        %v3780 = vunpack.c.h.b16 %v2887
        %v3781 = vunpack.c.l.b16 %v2888
        %v3782 = vunpack.c.l.b16 %v2889
        %v3783 = vunpack.c.h.b16 %v2889
        %v3784 = vunpack.c.l.b16 %v2890
        %v3785 = vunpack.c.l.b16 %v2891
        %v3786 = vunpack.c.h.b16 %v2891
        %v3787 = vunpack.c.l.b16 %v2892
        %v3788 = vunpack.c.l.b16 %v2893
        %v3789 = vunpack.c.h.b16 %v2893
        %v3790 = vunpack.c.l.b16 %v2894
        %v3791 = vunpack.c.l.b16 %v2895
        %v3792 = vunpack.c.h.b16 %v2895
        %v3793 = vunpack.c.l.b16 %v2896
        %v3794 = vunpack.c.l.b16 %v2897
        %v3795 = vunpack.c.h.b16 %v2897
        %v3796 = vunpack.c.l.b16 %v2898
        %v3797 = vunpack.c.l.b16 %v2899
        %v3798 = vunpack.c.h.b16 %v2899
        %v3799 = vunpack.c.l.b16 %v2900
        %v3800 = vunpack.c.l.b16 %v2901
        %v3801 = vunpack.c.h.b16 %v2901
        %v3802 = vunpack.c.l.b16 %v2902
        %v3803 = vunpack.c.l.b16 %v2903
        %v3804 = vunpack.c.h.b16 %v2903
        %v3805 = vunpack.c.l.b16 %v2904
        %v3806 = vunpack.c.l.b16 %v2905
        %v3807 = vunpack.c.h.b16 %v2905
        %v3808 = vunpack.c.l.b16 %v2906
        %v3809 = vunpack.c.l.b16 %v2907
        %v3810 = vunpack.c.h.b16 %v2907
        %v3811 = vunpack.c.l.b16 %v2908
        %v3812 = vunpack.c.l.b16 %v2909
        %v3813 = vunpack.c.h.b16 %v2909
        %v3814 = vunpack.c.l.b16 %v2910
        %v3815 = vunpack.c.l.b16 %v2911
        %v3816 = vunpack.c.h.b16 %v2911
        %v3817 = vunpack.c.l.b16 %v2912
        %v3818 = vunpack.c.l.b16 %v2913
        %v3819 = vunpack.c.h.b16 %v2913
        %v3820 = vunpack.c.l.b16 %v2914
        %v3821 = vunpack.c.l.b16 %v2915
        %v3822 = vunpack.c.h.b16 %v2915
        %v3823 = vunpack.c.l.b16 %v2916
        %v3824 = vunpack.c.l.b16 %v2917
        %v3825 = vunpack.c.h.b16 %v2917
        %v3826 = vunpack.c.l.b16 %v2918
        %v3827 = vunpack.c.l.b16 %v2919
        %v3828 = vunpack.c.h.b16 %v2919
        %v3829 = vunpack.c.l.b16 %v2920
        %v3830 = vunpack.c.l.b16 %v2921
        %v3831 = vunpack.c.h.b16 %v2921
        %v3832 = vunpack.c.l.b16 %v2922
        %v3833 = vunpack.c.l.b16 %v2923
        %v3834 = vunpack.c.h.b16 %v2923
        %v3835 = vunpack.c.l.b16 %v2924
        %v3836 = vunpack.c.l.b16 %v2925
        %v3837 = vunpack.c.h.b16 %v2925
        %v3838 = vunpack.c.l.b16 %v2926
        %v3839 = vunpack.c.l.b16 %v2927
        %v3840 = vunpack.c.h.b16 %v2927
        %v3841 = vunpack.c.l.b16 %v2928
        %v3842 = vunpack.c.l.b16 %v2929
        %v3843 = vunpack.c.h.b16 %v2929
        %v3844 = vunpack.c.l.b16 %v2930
        %v3845 = vunpack.c.l.b16 %v2931
        %v3846 = vunpack.c.h.b16 %v2931
        %v3847 = vunpack.c.l.b16 %v2932
        %v3848 = vunpack.c.l.b16 %v2933
        %v3849 = vunpack.c.h.b16 %v2933
        %v3850 = vunpack.c.l.b16 %v2934
        %v3851 = vunpack.c.l.b16 %v2935
        %v3852 = vunpack.c.h.b16 %v2935
        %v3853 = vunpack.c.l.b16 %v2936
        %v3854 = vunpack.c.l.b16 %v2937
        %v3855 = vunpack.c.h.b16 %v2937
        %v3856 = vunpack.c.l.b16 %v2938
        %v3857 = vunpack.c.l.b16 %v2939
        %v3858 = vunpack.c.h.b16 %v2939
        %v3859 = vunpack.c.l.b16 %v2940
        %v3860 = vunpack.c.l.b16 %v2941
        %v3861 = vunpack.c.h.b16 %v2941
        %v3862 = vunpack.c.l.b16 %v2942
        %v3863 = vunpack.c.l.b16 %v2943
        %v3864 = vunpack.c.h.b16 %v2943
        %v3865 = vunpack.c.l.b16 %v2944
        %v3866 = vunpack.c.l.b16 %v2945
        %v3867 = vunpack.c.h.b16 %v2945
        %v3868 = vunpack.c.l.b16 %v2946
        %v3869 = vunpack.c.l.b16 %v2947
        %v3870 = vunpack.c.h.b16 %v2947
        %v3871 = vunpack.c.l.b16 %v2948
        %v3872 = vunpack.c.l.b16 %v2949
        %v3873 = vunpack.c.h.b16 %v2949
        %v3874 = vunpack.c.l.b16 %v2950
        %v3875 = vunpack.c.l.b16 %v2951
        %v3876 = vunpack.c.h.b16 %v2951
        %v3877 = vunpack.c.l.b16 %v2952
        %v3878 = vunpack.c.l.b16 %v2953
        %v3879 = vunpack.c.h.b16 %v2953
        %v3880 = vunpack.c.l.b16 %v2954
        %v3881 = vunpack.c.l.b16 %v2955
        %v3882 = vunpack.c.h.b16 %v2955
        %v3883 = vunpack.c.l.b16 %v2956
        %v3884 = vunpack.c.l.b16 %v2957
        %v3885 = vunpack.c.h.b16 %v2957
        %v3886 = vunpack.c.l.b16 %v2958
        %v3887 = vunpack.c.l.b16 %v2959
        %v3888 = vunpack.c.h.b16 %v2959
        %v3889 = vunpack.c.l.b16 %v2960
        %v3890 = vunpack.c.l.b16 %v2961
        %v3891 = vunpack.c.h.b16 %v2961
        %v3892 = vunpack.c.l.b16 %v2962
        %v3893 = vunpack.c.l.b16 %v2963
        %v3894 = vunpack.c.h.b16 %v2963
        %v3895 = vunpack.c.l.b16 %v2964
        %v3896 = vunpack.c.l.b16 %v2965
        %v3897 = vunpack.c.h.b16 %v2965
        %v3898 = vunpack.c.l.b16 %v2966
        %v3899 = vunpack.c.l.b16 %v2967
        %v3900 = vunpack.c.h.b16 %v2967
        %v3901 = vunpack.c.l.b16 %v2968
        %v3902 = vunpack.c.l.b16 %v2969
        %v3903 = vunpack.c.h.b16 %v2969
        %v3904 = vunpack.c.l.b16 %v2970
        %v3905 = vunpack.c.l.b16 %v2971
        %v3906 = vunpack.c.h.b16 %v2971
        %v3907 = vunpack.c.l.b16 %v2972
        %v3908 = vunpack.c.l.b16 %v2973
        %v3909 = vunpack.c.h.b16 %v2973
        %v3910 = vunpack.c.l.b16 %v2974
        %v3911 = vunpack.c.l.b16 %v2975
        %v3912 = vunpack.c.h.b16 %v2975
        %v3913 = vunpack.c.l.b16 %v2976
        %v3914 = vunpack.c.l.b16 %v2977
        %v3915 = vunpack.c.h.b16 %v2977
        %v3916 = vunpack.c.l.b16 %v2978
        %v3917 = vunpack.c.l.b16 %v2979
        %v3918 = vunpack.c.h.b16 %v2979
        %v3919 = vunpack.c.l.b16 %v2980
        %v3920 = vunpack.c.l.b16 %v2981
        %v3921 = vunpack.c.h.b16 %v2981
        %v3922 = vunpack.c.l.b16 %v2982
        %v3923 = vunpack.c.l.b16 %v2983
        %v3924 = vunpack.c.h.b16 %v2983
        %v3925 = vunpack.c.l.b16 %v2984
        %v3926 = vunpack.c.l.b16 %v2985
        %v3927 = vunpack.c.h.b16 %v2985
        %v3928 = vunpack.c.l.b16 %v2986
        %v3929 = vunpack.c.l.b16 %v2987
        %v3930 = vunpack.c.h.b16 %v2987
        %v3931 = vunpack.c.l.b16 %v2988
        %v3932 = vunpack.c.l.b16 %v2989
        %v3933 = vunpack.c.h.b16 %v2989
        %v3934 = vunpack.c.l.b16 %v2990
        %v3935 = vunpack.c.l.b16 %v2991
        %v3936 = vunpack.c.h.b16 %v2991
        %v3937 = vunpack.c.l.b16 %v2992
        %v3938 = vunpack.c.l.b16 %v2993
        %v3939 = vunpack.c.h.b16 %v2993
        %v3940 = vunpack.c.l.b16 %v2994
        %v3941 = vunpack.c.l.b16 %v2995
        %v3942 = vunpack.c.h.b16 %v2995
        %v3943 = vunpack.c.l.b16 %v2996
        %v3944 = vunpack.c.l.b16 %v2997
        %v3945 = vunpack.c.h.b16 %v2997
        %v3946 = vunpack.c.l.b16 %v2998
        %v3947 = vunpack.c.l.b16 %v2999
        %v3948 = vunpack.c.h.b16 %v2999
        %v3949 = vunpack.c.l.b16 %v3000
        %v3950 = vunpack.c.l.b16 %v3001
        %v3951 = vunpack.c.h.b16 %v3001
        %v3952 = vunpack.c.l.b16 %v3002
        %v3953 = vunpack.c.l.b16 %v3003
        %v3954 = vunpack.c.h.b16 %v3003
        %v3955 = vunpack.c.l.b16 %v3004
        %v3956 = vunpack.c.l.b16 %v3005
        %v3957 = vunpack.c.h.b16 %v3005
        %v3958 = vunpack.c.l.b16 %v3006
        %v3959 = vunpack.c.l.b16 %v3007
        %v3960 = vunpack.c.h.b16 %v3007
        %v3961 = vunpack.c.l.b16 %v3008
        %v3962 = vunpack.c.l.b16 %v3009
        %v3963 = vunpack.c.h.b16 %v3009
        %v3964 = vunpack.c.l.b16 %v3010
        %v3965 = vunpack.c.l.b16 %v3011
        %v3966 = vunpack.c.h.b16 %v3011
        %v3967 = vunpack.c.l.b16 %v3012
        %v3968 = vunpack.c.l.b16 %v3013
        %v3969 = vunpack.c.h.b16 %v3013
        %v3970 = vunpack.c.l.b16 %v3014
        %v3971 = vunpack.c.l.b16 %v3015
        %v3972 = vunpack.c.h.b16 %v3015
        %v3973 = vunpack.c.l.b16 %v3016
        %v3974 = vunpack.c.l.b16 %v3017
        %v3975 = vunpack.c.h.b16 %v3017
        %v3976 = vunpack.c.l.b16 %v3018
        %v3977 = vunpack.c.l.b16 %v3019
        %v3978 = vunpack.c.h.b16 %v3019
        %v3979 = vunpack.c.l.b16 %v3020
        %v3980 = vunpack.c.l.b16 %v3021
        %v3981 = vunpack.c.h.b16 %v3021
        %v3982 = vunpack.c.l.b16 %v3022
        %v3983 = vpack.c.b16 %v3410, %v3407
        %v3984 = vpack.c.b16 %v3411, %v3408
        %v3985 = vpack.c.b16 %v3412, %v3409
        %v3986 = vpack.c.b16 %v3416, %v3413
        %v3987 = vpack.c.b16 %v3417, %v3414
        %v3988 = vpack.c.b16 %v3418, %v3415
        %v3989 = vpack.c.b16 %v3422, %v3419
        %v3990 = vpack.c.b16 %v3423, %v3420
        %v3991 = vpack.c.b16 %v3424, %v3421
        %v3992 = vpack.c.b16 %v3428, %v3425
        %v3993 = vpack.c.b16 %v3429, %v3426
        %v3994 = vpack.c.b16 %v3430, %v3427
        %v3995 = vpack.c.b16 %v3434, %v3431
        %v3996 = vpack.c.b16 %v3435, %v3432
        %v3997 = vpack.c.b16 %v3436, %v3433
        %v3998 = vpack.c.b16 %v3440, %v3437
        %v3999 = vpack.c.b16 %v3441, %v3438
        %v4000 = vpack.c.b16 %v3442, %v3439
        %v4001 = vpack.c.b16 %v3446, %v3443
        %v4002 = vpack.c.b16 %v3447, %v3444
        %v4003 = vpack.c.b16 %v3448, %v3445
        %v4004 = vpack.c.b16 %v3452, %v3449
        %v4005 = vpack.c.b16 %v3453, %v3450
        %v4006 = vpack.c.b16 %v3454, %v3451
        %v4007 = vpack.c.b16 %v3458, %v3455
        %v4008 = vpack.c.b16 %v3459, %v3456
        %v4009 = vpack.c.b16 %v3460, %v3457
        %v4010 = vpack.c.b16 %v3464, %v3461
        %v4011 = vpack.c.b16 %v3465, %v3462
        %v4012 = vpack.c.b16 %v3466, %v3463
        %v4013 = vpack.c.b16 %v3470, %v3467
        %v4014 = vpack.c.b16 %v3471, %v3468
        %v4015 = vpack.c.b16 %v3472, %v3469
        %v4016 = vpack.c.b16 %v3476, %v3473
        %v4017 = vpack.c.b16 %v3477, %v3474
        %v4018 = vpack.c.b16 %v3478, %v3475
        %v4019 = vpack.c.b16 %v3482, %v3479
        %v4020 = vpack.c.b16 %v3483, %v3480
        %v4021 = vpack.c.b16 %v3484, %v3481
        %v4022 = vpack.c.b16 %v3488, %v3485
        %v4023 = vpack.c.b16 %v3489, %v3486
        %v4024 = vpack.c.b16 %v3490, %v3487
        %v4025 = vpack.c.b16 %v3494, %v3491
        %v4026 = vpack.c.b16 %v3495, %v3492
        %v4027 = vpack.c.b16 %v3496, %v3493
        %v4028 = vpack.c.b16 %v3500, %v3497
        %v4029 = vpack.c.b16 %v3501, %v3498
        %v4030 = vpack.c.b16 %v3502, %v3499
        %v4031 = vpack.c.b16 %v3506, %v3503
        %v4032 = vpack.c.b16 %v3507, %v3504
        %v4033 = vpack.c.b16 %v3508, %v3505
        %v4034 = vpack.c.b16 %v3512, %v3509
        %v4035 = vpack.c.b16 %v3513, %v3510
        %v4036 = vpack.c.b16 %v3514, %v3511
        %v4037 = vpack.c.b16 %v3518, %v3515
        %v4038 = vpack.c.b16 %v3519, %v3516
        %v4039 = vpack.c.b16 %v3520, %v3517
        %v4040 = vpack.c.b16 %v3524, %v3521
        %v4041 = vpack.c.b16 %v3525, %v3522
        %v4042 = vpack.c.b16 %v3526, %v3523
        %v4043 = vpack.c.b16 %v3530, %v3527
        %v4044 = vpack.c.b16 %v3531, %v3528
        %v4045 = vpack.c.b16 %v3532, %v3529
        %v4046 = vpack.c.b16 %v3536, %v3533
        %v4047 = vpack.c.b16 %v3537, %v3534
        %v4048 = vpack.c.b16 %v3538, %v3535
        %v4049 = vpack.c.b16 %v3542, %v3539
        %v4050 = vpack.c.b16 %v3543, %v3540
        %v4051 = vpack.c.b16 %v3544, %v3541
        %v4052 = vpack.c.b16 %v3548, %v3545
        %v4053 = vpack.c.b16 %v3549, %v3546
        %v4054 = vpack.c.b16 %v3550, %v3547
        %v4055 = vpack.c.b16 %v3554, %v3551
        %v4056 = vpack.c.b16 %v3555, %v3552
        %v4057 = vpack.c.b16 %v3556, %v3553
        %v4058 = vpack.c.b16 %v3560, %v3557
        %v4059 = vpack.c.b16 %v3561, %v3558
        %v4060 = vpack.c.b16 %v3562, %v3559
        %v4061 = vpack.c.b16 %v3566, %v3563
        %v4062 = vpack.c.b16 %v3567, %v3564
        %v4063 = vpack.c.b16 %v3568, %v3565
        %v4064 = vpack.c.b16 %v3572, %v3569
        %v4065 = vpack.c.b16 %v3573, %v3570
        %v4066 = vpack.c.b16 %v3574, %v3571
        %v4067 = vpack.c.b16 %v3578, %v3575
        %v4068 = vpack.c.b16 %v3579, %v3576
        %v4069 = vpack.c.b16 %v3580, %v3577
        %v4070 = vpack.c.b16 %v3584, %v3581
        %v4071 = vpack.c.b16 %v3585, %v3582
        %v4072 = vpack.c.b16 %v3586, %v3583
        %v4073 = vpack.c.b16 %v3590, %v3587
        %v4074 = vpack.c.b16 %v3591, %v3588
        %v4075 = vpack.c.b16 %v3592, %v3589
        %v4076 = vpack.c.b16 %v3596, %v3593
        %v4077 = vpack.c.b16 %v3597, %v3594
        %v4078 = vpack.c.b16 %v3598, %v3595
        %v4079 = vpack.c.b16 %v3602, %v3599
        %v4080 = vpack.c.b16 %v3603, %v3600
        %v4081 = vpack.c.b16 %v3604, %v3601
        %v4082 = vpack.c.b16 %v3608, %v3605
        %v4083 = vpack.c.b16 %v3609, %v3606
        %v4084 = vpack.c.b16 %v3610, %v3607
        %v4085 = vpack.c.b16 %v3614, %v3611
        %v4086 = vpack.c.b16 %v3615, %v3612
        %v4087 = vpack.c.b16 %v3616, %v3613
        %v4088 = vpack.c.b16 %v3620, %v3617
        %v4089 = vpack.c.b16 %v3621, %v3618
        %v4090 = vpack.c.b16 %v3622, %v3619
        %v4091 = vpack.c.b16 %v3626, %v3623
        %v4092 = vpack.c.b16 %v3627, %v3624
        %v4093 = vpack.c.b16 %v3628, %v3625
        %v4094 = vpack.c.b16 %v3632, %v3629
        %v4095 = vpack.c.b16 %v3633, %v3630
        %v4096 = vpack.c.b16 %v3634, %v3631
        %v4097 = vpack.c.b16 %v3638, %v3635
        %v4098 = vpack.c.b16 %v3639, %v3636
        %v4099 = vpack.c.b16 %v3640, %v3637
        %v4100 = vpack.c.b16 %v3644, %v3641
        %v4101 = vpack.c.b16 %v3645, %v3642
        %v4102 = vpack.c.b16 %v3646, %v3643
        %v4103 = vpack.c.b16 %v3650, %v3647
        %v4104 = vpack.c.b16 %v3651, %v3648
        %v4105 = vpack.c.b16 %v3652, %v3649
        %v4106 = vpack.c.b16 %v3656, %v3653
        %v4107 = vpack.c.b16 %v3657, %v3654
        %v4108 = vpack.c.b16 %v3658, %v3655
        %v4109 = vpack.c.b16 %v3662, %v3659
        %v4110 = vpack.c.b16 %v3663, %v3660
        %v4111 = vpack.c.b16 %v3664, %v3661
        %v4112 = vpack.c.b16 %v3668, %v3665
        %v4113 = vpack.c.b16 %v3669, %v3666
        %v4114 = vpack.c.b16 %v3670, %v3667
        %v4115 = vpack.c.b16 %v3674, %v3671
        %v4116 = vpack.c.b16 %v3675, %v3672
        %v4117 = vpack.c.b16 %v3676, %v3673
        %v4118 = vpack.c.b16 %v3680, %v3677
        %v4119 = vpack.c.b16 %v3681, %v3678
        %v4120 = vpack.c.b16 %v3682, %v3679
        %v4121 = vpack.c.b16 %v3686, %v3683
        %v4122 = vpack.c.b16 %v3687, %v3684
        %v4123 = vpack.c.b16 %v3688, %v3685
        %v4124 = vpack.c.b16 %v3692, %v3689
        %v4125 = vpack.c.b16 %v3693, %v3690
        %v4126 = vpack.c.b16 %v3694, %v3691
        %v4127 = vpack.c.b16 %v3698, %v3695
        %v4128 = vpack.c.b16 %v3699, %v3696
        %v4129 = vpack.c.b16 %v3700, %v3697
        %v4130 = vpack.c.b16 %v3704, %v3701
        %v4131 = vpack.c.b16 %v3705, %v3702
        %v4132 = vpack.c.b16 %v3706, %v3703
        %v4133 = vpack.c.b16 %v3710, %v3707
        %v4134 = vpack.c.b16 %v3711, %v3708
        %v4135 = vpack.c.b16 %v3712, %v3709
        %v4136 = vpack.c.b16 %v3716, %v3713
        %v4137 = vpack.c.b16 %v3717, %v3714
        %v4138 = vpack.c.b16 %v3718, %v3715
        %v4139 = vpack.c.b16 %v3722, %v3719
        %v4140 = vpack.c.b16 %v3723, %v3720
        %v4141 = vpack.c.b16 %v3724, %v3721
        %v4142 = vpack.c.b16 %v3728, %v3725
        %v4143 = vpack.c.b16 %v3729, %v3726
        %v4144 = vpack.c.b16 %v3730, %v3727
        %v4145 = vpack.c.b16 %v3734, %v3731
        %v4146 = vpack.c.b16 %v3735, %v3732
        %v4147 = vpack.c.b16 %v3736, %v3733
        %v4148 = vpack.c.b16 %v3740, %v3737
        %v4149 = vpack.c.b16 %v3741, %v3738
        %v4150 = vpack.c.b16 %v3742, %v3739
        %v4151 = vpack.c.b16 %v3746, %v3743
        %v4152 = vpack.c.b16 %v3747, %v3744
        %v4153 = vpack.c.b16 %v3748, %v3745
        %v4154 = vpack.c.b16 %v3752, %v3749
        %v4155 = vpack.c.b16 %v3753, %v3750
        %v4156 = vpack.c.b16 %v3754, %v3751
        %v4157 = vpack.c.b16 %v3758, %v3755
        %v4158 = vpack.c.b16 %v3759, %v3756
        %v4159 = vpack.c.b16 %v3760, %v3757
        %v4160 = vpack.c.b16 %v3764, %v3761
        %v4161 = vpack.c.b16 %v3765, %v3762
        %v4162 = vpack.c.b16 %v3766, %v3763
        %v4163 = vpack.c.b16 %v3770, %v3767
        %v4164 = vpack.c.b16 %v3771, %v3768
        %v4165 = vpack.c.b16 %v3772, %v3769
        %v4166 = vpack.c.b16 %v3776, %v3773
        %v4167 = vpack.c.b16 %v3777, %v3774
        %v4168 = vpack.c.b16 %v3778, %v3775
        %v4169 = vpack.c.b16 %v3782, %v3779
        %v4170 = vpack.c.b16 %v3783, %v3780
        %v4171 = vpack.c.b16 %v3784, %v3781
        %v4172 = vpack.c.b16 %v3788, %v3785
        %v4173 = vpack.c.b16 %v3789, %v3786
        %v4174 = vpack.c.b16 %v3790, %v3787
        %v4175 = vpack.c.b16 %v3794, %v3791
        %v4176 = vpack.c.b16 %v3795, %v3792
        %v4177 = vpack.c.b16 %v3796, %v3793
        %v4178 = vpack.c.b16 %v3800, %v3797
        %v4179 = vpack.c.b16 %v3801, %v3798
        %v4180 = vpack.c.b16 %v3802, %v3799
        %v4181 = vpack.c.b16 %v3806, %v3803
        %v4182 = vpack.c.b16 %v3807, %v3804
        %v4183 = vpack.c.b16 %v3808, %v3805
        %v4184 = vpack.c.b16 %v3812, %v3809
        %v4185 = vpack.c.b16 %v3813, %v3810
        %v4186 = vpack.c.b16 %v3814, %v3811
        %v4187 = vpack.c.b16 %v3818, %v3815
        %v4188 = vpack.c.b16 %v3819, %v3816
        %v4189 = vpack.c.b16 %v3820, %v3817
        %v4190 = vpack.c.b16 %v3824, %v3821
        %v4191 = vpack.c.b16 %v3825, %v3822
        %v4192 = vpack.c.b16 %v3826, %v3823
        %v4193 = vpack.c.b16 %v3830, %v3827
        %v4194 = vpack.c.b16 %v3831, %v3828
        %v4195 = vpack.c.b16 %v3832, %v3829
        %v4196 = vpack.c.b16 %v3836, %v3833
        %v4197 = vpack.c.b16 %v3837, %v3834
        %v4198 = vpack.c.b16 %v3838, %v3835
        %v4199 = vpack.c.b16 %v3842, %v3839
        %v4200 = vpack.c.b16 %v3843, %v3840
        %v4201 = vpack.c.b16 %v3844, %v3841
        %v4202 = vpack.c.b16 %v3848, %v3845
        %v4203 = vpack.c.b16 %v3849, %v3846
        %v4204 = vpack.c.b16 %v3850, %v3847
        %v4205 = vpack.c.b16 %v3854, %v3851
        %v4206 = vpack.c.b16 %v3855, %v3852
        %v4207 = vpack.c.b16 %v3856, %v3853
        %v4208 = vpack.c.b16 %v3860, %v3857
        %v4209 = vpack.c.b16 %v3861, %v3858
        %v4210 = vpack.c.b16 %v3862, %v3859
        %v4211 = vpack.c.b16 %v3866, %v3863
        %v4212 = vpack.c.b16 %v3867, %v3864
        %v4213 = vpack.c.b16 %v3868, %v3865
        %v4214 = vpack.c.b16 %v3872, %v3869
        %v4215 = vpack.c.b16 %v3873, %v3870
        %v4216 = vpack.c.b16 %v3874, %v3871
        %v4217 = vpack.c.b16 %v3878, %v3875
        %v4218 = vpack.c.b16 %v3879, %v3876
        %v4219 = vpack.c.b16 %v3880, %v3877
        %v4220 = vpack.c.b16 %v3884, %v3881
        %v4221 = vpack.c.b16 %v3885, %v3882
        %v4222 = vpack.c.b16 %v3886, %v3883
        %v4223 = vpack.c.b16 %v3890, %v3887
        %v4224 = vpack.c.b16 %v3891, %v3888
        %v4225 = vpack.c.b16 %v3892, %v3889
        %v4226 = vpack.c.b16 %v3896, %v3893
        %v4227 = vpack.c.b16 %v3897, %v3894
        %v4228 = vpack.c.b16 %v3898, %v3895
        %v4229 = vpack.c.b16 %v3902, %v3899
        %v4230 = vpack.c.b16 %v3903, %v3900
        %v4231 = vpack.c.b16 %v3904, %v3901
        %v4232 = vpack.c.b16 %v3908, %v3905
        %v4233 = vpack.c.b16 %v3909, %v3906
        %v4234 = vpack.c.b16 %v3910, %v3907
        %v4235 = vpack.c.b16 %v3914, %v3911
        %v4236 = vpack.c.b16 %v3915, %v3912
        %v4237 = vpack.c.b16 %v3916, %v3913
        %v4238 = vpack.c.b16 %v3920, %v3917
        %v4239 = vpack.c.b16 %v3921, %v3918
        %v4240 = vpack.c.b16 %v3922, %v3919
        %v4241 = vpack.c.b16 %v3926, %v3923
        %v4242 = vpack.c.b16 %v3927, %v3924
        %v4243 = vpack.c.b16 %v3928, %v3925
        %v4244 = vpack.c.b16 %v3932, %v3929
        %v4245 = vpack.c.b16 %v3933, %v3930
        %v4246 = vpack.c.b16 %v3934, %v3931
        %v4247 = vpack.c.b16 %v3938, %v3935
        %v4248 = vpack.c.b16 %v3939, %v3936
        %v4249 = vpack.c.b16 %v3940, %v3937
        %v4250 = vpack.c.b16 %v3944, %v3941
        %v4251 = vpack.c.b16 %v3945, %v3942
        %v4252 = vpack.c.b16 %v3946, %v3943
        %v4253 = vpack.c.b16 %v3950, %v3947
        %v4254 = vpack.c.b16 %v3951, %v3948
        %v4255 = vpack.c.b16 %v3952, %v3949
        %v4256 = vpack.c.b16 %v3956, %v3953
        %v4257 = vpack.c.b16 %v3957, %v3954
        %v4258 = vpack.c.b16 %v3958, %v3955
        %v4259 = vpack.c.b16 %v3962, %v3959
        %v4260 = vpack.c.b16 %v3963, %v3960
        %v4261 = vpack.c.b16 %v3964, %v3961
        %v4262 = vpack.c.b16 %v3968, %v3965
        %v4263 = vpack.c.b16 %v3969, %v3966
        %v4264 = vpack.c.b16 %v3970, %v3967
        %v4265 = vpack.c.b16 %v3974, %v3971
        %v4266 = vpack.c.b16 %v3975, %v3972
        %v4267 = vpack.c.b16 %v3976, %v3973
        %v4268 = vpack.c.b16 %v3980, %v3977
        %v4269 = vpack.c.b16 %v3981, %v3978
        %v4270 = vpack.c.b16 %v3982, %v3979
        %4559 = vmatprep.subr.bf16.mxu0 %v3984
        %4560 = vmatpush1.bf16.msra.mxu0 %v3983
        %4561 = vmatprep.subr.bf16.mxu0 %v3987
        %4562 = vmatpush1.bf16.msra.mxu0 %v3986
        %4563 = vmatprep.subr.bf16.mxu0 %v3990
        %4564 = vmatpush1.bf16.msra.mxu0 %v3989
        %4565 = vmatprep.subr.bf16.mxu0 %v3993
        %4566 = vmatpush1.bf16.msra.mxu0 %v3992
        %4567 = vmatprep.subr.bf16.mxu0 %v3996
        %4568 = vmatpush1.bf16.msra.mxu0 %v3995
        %4569 = vmatprep.subr.bf16.mxu0 %v3999
        %4570 = vmatpush1.bf16.msra.mxu0 %v3998
        %4571 = vmatprep.subr.bf16.mxu0 %v4002
        %4572 = vmatpush1.bf16.msra.mxu0 %v4001
        %4573 = vmatprep.subr.bf16.mxu0 %v4005
        %4574 = vmatpush1.bf16.msra.mxu0 %v4004
        %4575 = vmatprep.subr.bf16.mxu0 %v4008
        %4576 = vmatpush1.bf16.msra.mxu0 %v4007
        %4577 = vmatprep.subr.bf16.mxu0 %v4011
        %4578 = vmatpush1.bf16.msra.mxu0 %v4010
        %4579 = vmatprep.subr.bf16.mxu0 %v4014
        %4580 = vmatpush1.bf16.msra.mxu0 %v4013
        %4581 = vmatprep.subr.bf16.mxu0 %v4017
        %4582 = vmatpush1.bf16.msra.mxu0 %v4016
        %4583 = vmatprep.subr.bf16.mxu0 %v4020
        %4584 = vmatpush1.bf16.msra.mxu0 %v4019
        %4585 = vmatprep.subr.bf16.mxu0 %v4023
        %4586 = vmatpush1.bf16.msra.mxu0 %v4022
        %4587 = vmatprep.subr.bf16.mxu0 %v4026
        %4588 = vmatpush1.bf16.msra.mxu0 %v4025
        %4589 = vmatprep.subr.bf16.mxu0 %v4029
        %4590 = vmatpush1.bf16.msra.mxu0 %v4028
        %4591 = vmatprep.mubr.bf16.mxu0 %v2628
        %4592 = vmatmul.mubr.bf16.gmra.mrb[0].mxu0 %v2627
        %v4593 = vpop.f32.mrb[0].mxu0
        %v4594 = vadd.f32 0.0, %v4593
        %v4595 = vpop.f32.mrb[0].mxu0
        %v4596 = vadd.f32 0.0, %v4595
        %v4597 = vpop.f32.mrb[0].mxu0
        %v4598 = vpop.f32.mrb[0].mxu0
        %4599 = vdwg.mxu0
        %4600 = vmatprep.subr.bf16.mxu0 %v4032
        %4601 = vmatpush1.bf16.msra.mxu0 %v4031
        %4602 = vmatprep.subr.bf16.mxu0 %v4035
        %4603 = vmatpush1.bf16.msra.mxu0 %v4034
        %4604 = vmatprep.subr.bf16.mxu0 %v4038
        %4605 = vmatpush1.bf16.msra.mxu0 %v4037
        %4606 = vmatprep.subr.bf16.mxu0 %v4041
        %4607 = vmatpush1.bf16.msra.mxu0 %v4040
        %4608 = vmatprep.subr.bf16.mxu0 %v4044
        %4609 = vmatpush1.bf16.msra.mxu0 %v4043
        %4610 = vmatprep.subr.bf16.mxu0 %v4047
        %4611 = vmatpush1.bf16.msra.mxu0 %v4046
        %4612 = vmatprep.subr.bf16.mxu0 %v4050
        %4613 = vmatpush1.bf16.msra.mxu0 %v4049
        %4614 = vmatprep.subr.bf16.mxu0 %v4053
        %4615 = vmatpush1.bf16.msra.mxu0 %v4052
        %4616 = vmatprep.subr.bf16.mxu0 %v4056
        %4617 = vmatpush1.bf16.msra.mxu0 %v4055
        %4618 = vmatprep.subr.bf16.mxu0 %v4059
        %4619 = vmatpush1.bf16.msra.mxu0 %v4058
        %4620 = vmatprep.subr.bf16.mxu0 %v4062
        %4621 = vmatpush1.bf16.msra.mxu0 %v4061
        %4622 = vmatprep.subr.bf16.mxu0 %v4065
        %4623 = vmatpush1.bf16.msra.mxu0 %v4064
        %4624 = vmatprep.subr.bf16.mxu0 %v4068
        %4625 = vmatpush1.bf16.msra.mxu0 %v4067
        %4626 = vmatprep.subr.bf16.mxu0 %v4071
        %4627 = vmatpush1.bf16.msra.mxu0 %v4070
        %4628 = vmatprep.subr.bf16.mxu0 %v4074
        %4629 = vmatpush1.bf16.msra.mxu0 %v4073
        %4630 = vmatprep.subr.bf16.mxu0 %v4077
        %4631 = vmatpush1.bf16.msra.mxu0 %v4076
        %4632 = vmatprep.mubr.bf16.mxu0 %v2630
        %4633 = vmatmul.mubr.bf16.gmra.mrb[0].mxu0 %v2629
        %v4634 = vpop.f32.mrb[0].mxu0
        %v4635 = vadd.f32 %v4594, %v4634
        %v4636 = vpop.f32.mrb[0].mxu0
        %v4637 = vadd.f32 %v4596, %v4636
        %v4638 = vpop.f32.mrb[0].mxu0
        %v4639 = vpop.f32.mrb[0].mxu0
        %4640 = vdwg.mxu0
        %4641 = vmatprep.subr.bf16.mxu0 %v4080
        %4642 = vmatpush1.bf16.msra.mxu0 %v4079
        %4643 = vmatprep.subr.bf16.mxu0 %v4083
        %4644 = vmatpush1.bf16.msra.mxu0 %v4082
        %4645 = vmatprep.subr.bf16.mxu0 %v4086
        %4646 = vmatpush1.bf16.msra.mxu0 %v4085
        %4647 = vmatprep.subr.bf16.mxu0 %v4089
        %4648 = vmatpush1.bf16.msra.mxu0 %v4088
        %4649 = vmatprep.subr.bf16.mxu0 %v4092
        %4650 = vmatpush1.bf16.msra.mxu0 %v4091
        %4651 = vmatprep.subr.bf16.mxu0 %v4095
        %4652 = vmatpush1.bf16.msra.mxu0 %v4094
        %4653 = vmatprep.subr.bf16.mxu0 %v4098
        %4654 = vmatpush1.bf16.msra.mxu0 %v4097
        %4655 = vmatprep.subr.bf16.mxu0 %v4101
        %4656 = vmatpush1.bf16.msra.mxu0 %v4100
        %4657 = vmatprep.subr.bf16.mxu0 %v4104
        %4658 = vmatpush1.bf16.msra.mxu0 %v4103
        %4659 = vmatprep.subr.bf16.mxu0 %v4107
        %4660 = vmatpush1.bf16.msra.mxu0 %v4106
        %4661 = vmatprep.subr.bf16.mxu0 %v4110
        %4662 = vmatpush1.bf16.msra.mxu0 %v4109
        %4663 = vmatprep.subr.bf16.mxu0 %v4113
        %4664 = vmatpush1.bf16.msra.mxu0 %v4112
        %4665 = vmatprep.subr.bf16.mxu0 %v4116
        %4666 = vmatpush1.bf16.msra.mxu0 %v4115
        %4667 = vmatprep.subr.bf16.mxu0 %v4119
        %4668 = vmatpush1.bf16.msra.mxu0 %v4118
        %4669 = vmatprep.subr.bf16.mxu0 %v4122
        %4670 = vmatpush1.bf16.msra.mxu0 %v4121
        %4671 = vmatprep.subr.bf16.mxu0 %v4125
        %4672 = vmatpush1.bf16.msra.mxu0 %v4124
        %4673 = vmatprep.mubr.bf16.mxu0 %v2632
        %4674 = vmatmul.mubr.bf16.gmra.mrb[0].mxu0 %v2631
        %v4675 = vpop.f32.mrb[0].mxu0
        %v4676 = vadd.f32 %v4635, %v4675
        %v4677 = vpop.f32.mrb[0].mxu0
        %v4678 = vadd.f32 %v4637, %v4677
        %v4679 = vpop.f32.mrb[0].mxu0
        %v4680 = vpop.f32.mrb[0].mxu0
        %4681 = vdwg.mxu0
        %4682 = vmatprep.subr.bf16.mxu0 %v4128
        %4683 = vmatpush1.bf16.msra.mxu0 %v4127
        %4684 = vmatprep.subr.bf16.mxu0 %v4131
        %4685 = vmatpush1.bf16.msra.mxu0 %v4130
        %4686 = vmatprep.subr.bf16.mxu0 %v4134
        %4687 = vmatpush1.bf16.msra.mxu0 %v4133
        %4688 = vmatprep.subr.bf16.mxu0 %v4137
        %4689 = vmatpush1.bf16.msra.mxu0 %v4136
        %4690 = vmatprep.subr.bf16.mxu0 %v4140
        %4691 = vmatpush1.bf16.msra.mxu0 %v4139
        %4692 = vmatprep.subr.bf16.mxu0 %v4143
        %4693 = vmatpush1.bf16.msra.mxu0 %v4142
        %4694 = vmatprep.subr.bf16.mxu0 %v4146
        %4695 = vmatpush1.bf16.msra.mxu0 %v4145
        %4696 = vmatprep.subr.bf16.mxu0 %v4149
        %4697 = vmatpush1.bf16.msra.mxu0 %v4148
        %4698 = vmatprep.subr.bf16.mxu0 %v4152
        %4699 = vmatpush1.bf16.msra.mxu0 %v4151
        %4700 = vmatprep.subr.bf16.mxu0 %v4155
        %4701 = vmatpush1.bf16.msra.mxu0 %v4154
        %4702 = vmatprep.subr.bf16.mxu0 %v4158
        %4703 = vmatpush1.bf16.msra.mxu0 %v4157
        %4704 = vmatprep.subr.bf16.mxu0 %v4161
        %4705 = vmatpush1.bf16.msra.mxu0 %v4160
        %4706 = vmatprep.subr.bf16.mxu0 %v4164
        %4707 = vmatpush1.bf16.msra.mxu0 %v4163
        %4708 = vmatprep.subr.bf16.mxu0 %v4167
        %4709 = vmatpush1.bf16.msra.mxu0 %v4166
        %4710 = vmatprep.subr.bf16.mxu0 %v4170
        %4711 = vmatpush1.bf16.msra.mxu0 %v4169
        %4712 = vmatprep.subr.bf16.mxu0 %v4173
        %4713 = vmatpush1.bf16.msra.mxu0 %v4172
        %4714 = vmatprep.mubr.bf16.mxu0 %v2634
        %4715 = vmatmul.mubr.bf16.gmra.mrb[0].mxu0 %v2633
        %v4716 = vpop.f32.mrb[0].mxu0
        %v4717 = vadd.f32 %v4676, %v4716
        %v4718 = vpop.f32.mrb[0].mxu0
        %v4719 = vadd.f32 %v4678, %v4718
        %v4720 = vpop.f32.mrb[0].mxu0
        %v4721 = vpop.f32.mrb[0].mxu0
        %4722 = vdwg.mxu0
        %4723 = vmatprep.subr.bf16.mxu0 %v4176
        %4724 = vmatpush1.bf16.msra.mxu0 %v4175
        %4725 = vmatprep.subr.bf16.mxu0 %v4179
        %4726 = vmatpush1.bf16.msra.mxu0 %v4178
        %4727 = vmatprep.subr.bf16.mxu0 %v4182
        %4728 = vmatpush1.bf16.msra.mxu0 %v4181
        %4729 = vmatprep.subr.bf16.mxu0 %v4185
        %4730 = vmatpush1.bf16.msra.mxu0 %v4184
        %4731 = vmatprep.subr.bf16.mxu0 %v4188
        %4732 = vmatpush1.bf16.msra.mxu0 %v4187
        %4733 = vmatprep.subr.bf16.mxu0 %v4191
        %4734 = vmatpush1.bf16.msra.mxu0 %v4190
        %4735 = vmatprep.subr.bf16.mxu0 %v4194
        %4736 = vmatpush1.bf16.msra.mxu0 %v4193
        %4737 = vmatprep.subr.bf16.mxu0 %v4197
        %4738 = vmatpush1.bf16.msra.mxu0 %v4196
        %4739 = vmatprep.subr.bf16.mxu0 %v4200
        %4740 = vmatpush1.bf16.msra.mxu0 %v4199
        %4741 = vmatprep.subr.bf16.mxu0 %v4203
        %4742 = vmatpush1.bf16.msra.mxu0 %v4202
        %4743 = vmatprep.subr.bf16.mxu0 %v4206
        %4744 = vmatpush1.bf16.msra.mxu0 %v4205
        %4745 = vmatprep.subr.bf16.mxu0 %v4209
        %4746 = vmatpush1.bf16.msra.mxu0 %v4208
        %4747 = vmatprep.subr.bf16.mxu0 %v4212
        %4748 = vmatpush1.bf16.msra.mxu0 %v4211
        %4749 = vmatprep.subr.bf16.mxu0 %v4215
        %4750 = vmatpush1.bf16.msra.mxu0 %v4214
        %4751 = vmatprep.subr.bf16.mxu0 %v4218
        %4752 = vmatpush1.bf16.msra.mxu0 %v4217
        %4753 = vmatprep.subr.bf16.mxu0 %v4221
        %4754 = vmatpush1.bf16.msra.mxu0 %v4220
        %4755 = vmatprep.mubr.bf16.mxu0 %v2636
        %4756 = vmatmul.mubr.bf16.gmra.mrb[0].mxu0 %v2635
        %v4757 = vpop.f32.mrb[0].mxu0
        %v4758 = vadd.f32 %v4717, %v4757
        %v4759 = vpop.f32.mrb[0].mxu0
        %v4760 = vadd.f32 %v4719, %v4759
        %v4761 = vpop.f32.mrb[0].mxu0
        %v4762 = vpop.f32.mrb[0].mxu0
        %4763 = vdwg.mxu0
        %4764 = vmatprep.subr.bf16.mxu0 %v4224
        %4765 = vmatpush1.bf16.msra.mxu0 %v4223
        %4766 = vmatprep.subr.bf16.mxu0 %v4227
        %4767 = vmatpush1.bf16.msra.mxu0 %v4226
        %4768 = vmatprep.subr.bf16.mxu0 %v4230
        %4769 = vmatpush1.bf16.msra.mxu0 %v4229
        %4770 = vmatprep.subr.bf16.mxu0 %v4233
        %4771 = vmatpush1.bf16.msra.mxu0 %v4232
        %4772 = vmatprep.subr.bf16.mxu0 %v4236
        %4773 = vmatpush1.bf16.msra.mxu0 %v4235
        %4774 = vmatprep.subr.bf16.mxu0 %v4239
        %4775 = vmatpush1.bf16.msra.mxu0 %v4238
        %4776 = vmatprep.subr.bf16.mxu0 %v4242
        %4777 = vmatpush1.bf16.msra.mxu0 %v4241
        %4778 = vmatprep.subr.bf16.mxu0 %v4245
        %4779 = vmatpush1.bf16.msra.mxu0 %v4244
        %4780 = vmatprep.subr.bf16.mxu0 %v4248
        %4781 = vmatpush1.bf16.msra.mxu0 %v4247
        %4782 = vmatprep.subr.bf16.mxu0 %v4251
        %4783 = vmatpush1.bf16.msra.mxu0 %v4250
        %4784 = vmatprep.subr.bf16.mxu0 %v4254
        %4785 = vmatpush1.bf16.msra.mxu0 %v4253
        %4786 = vmatprep.subr.bf16.mxu0 %v4257
        %4787 = vmatpush1.bf16.msra.mxu0 %v4256
        %4788 = vmatprep.subr.bf16.mxu0 %v4260
        %4789 = vmatpush1.bf16.msra.mxu0 %v4259
        %4790 = vmatprep.subr.bf16.mxu0 %v4263
        %4791 = vmatpush1.bf16.msra.mxu0 %v4262
        %4792 = vmatprep.subr.bf16.mxu0 %v4266
        %4793 = vmatpush1.bf16.msra.mxu0 %v4265
        %4794 = vmatprep.subr.bf16.mxu0 %v4269
        %4795 = vmatpush1.bf16.msra.mxu0 %v4268
        %4796 = vmatprep.mubr.bf16.mxu0 %v2638
        %4797 = vmatmul.mubr.bf16.gmra.mrb[0].mxu0 %v2637
        %v4798 = vpop.f32.mrb[0].mxu0
        %v4799 = vadd.f32 %v4758, %v4798
        %v4800 = vpop.f32.mrb[0].mxu0
        %v4801 = vadd.f32 %v4760, %v4800
        %v4802 = vpop.f32.mrb[0].mxu0
        %v4803 = vpop.f32.mrb[0].mxu0
        %4804 = vdwg.mxu0
        %4805 = vmatprep.subr.bf16.mxu0 0
        %4806 = vmatpush1.bf16.msra.mxu0 %v3985
        %4807 = vmatprep.subr.bf16.mxu0 0
        %4808 = vmatpush1.bf16.msra.mxu0 %v3988
        %4809 = vmatprep.subr.bf16.mxu0 0
        %4810 = vmatpush1.bf16.msra.mxu0 %v3991
        %4811 = vmatprep.subr.bf16.mxu0 0
        %4812 = vmatpush1.bf16.msra.mxu0 %v3994
        %4813 = vmatprep.subr.bf16.mxu0 0
        %4814 = vmatpush1.bf16.msra.mxu0 %v3997
        %4815 = vmatprep.subr.bf16.mxu0 0
        %4816 = vmatpush1.bf16.msra.mxu0 %v4000
        %4817 = vmatprep.subr.bf16.mxu0 0
        %4818 = vmatpush1.bf16.msra.mxu0 %v4003
        %4819 = vmatprep.subr.bf16.mxu0 0
        %4820 = vmatpush1.bf16.msra.mxu0 %v4006
        %4821 = vmatprep.subr.bf16.mxu0 0
        %4822 = vmatpush1.bf16.msra.mxu0 %v4009
        %4823 = vmatprep.subr.bf16.mxu0 0
        %4824 = vmatpush1.bf16.msra.mxu0 %v4012
        %4825 = vmatprep.subr.bf16.mxu0 0
        %4826 = vmatpush1.bf16.msra.mxu0 %v4015
        %4827 = vmatprep.subr.bf16.mxu0 0
        %4828 = vmatpush1.bf16.msra.mxu0 %v4018
        %4829 = vmatprep.subr.bf16.mxu0 0
        %4830 = vmatpush1.bf16.msra.mxu0 %v4021
        %4831 = vmatprep.subr.bf16.mxu0 0
        %4832 = vmatpush1.bf16.msra.mxu0 %v4024
        %4833 = vmatprep.subr.bf16.mxu0 0
        %4834 = vmatpush1.bf16.msra.mxu0 %v4027
        %4835 = vmatprep.subr.bf16.mxu0 0
        %4836 = vmatpush1.bf16.msra.mxu0 %v4030
        %4837 = vmatprep.mubr.bf16.mxu0 %v2628
        %4838 = vmatmul.mubr.bf16.gmra.mrb[0].mxu0 %v2627
        %v4839 = vpop.f32.mrb[0].mxu0
        %v4840 = vadd.f32 0.0, %v4839
        %v4841 = vpop.f32.mrb[0].mxu0
        %v4842 = vpop.f32.mrb[0].mxu0
        %v4843 = vpop.f32.mrb[0].mxu0
        %4844 = vdwg.mxu0
        %4845 = vmatprep.subr.bf16.mxu0 0
        %4846 = vmatpush1.bf16.msra.mxu0 %v4033
        %4847 = vmatprep.subr.bf16.mxu0 0
        %4848 = vmatpush1.bf16.msra.mxu0 %v4036
        %4849 = vmatprep.subr.bf16.mxu0 0
        %4850 = vmatpush1.bf16.msra.mxu0 %v4039
        %4851 = vmatprep.subr.bf16.mxu0 0
        %4852 = vmatpush1.bf16.msra.mxu0 %v4042
        %4853 = vmatprep.subr.bf16.mxu0 0
        %4854 = vmatpush1.bf16.msra.mxu0 %v4045
        %4855 = vmatprep.subr.bf16.mxu0 0
        %4856 = vmatpush1.bf16.msra.mxu0 %v4048
        %4857 = vmatprep.subr.bf16.mxu0 0
        %4858 = vmatpush1.bf16.msra.mxu0 %v4051
        %4859 = vmatprep.subr.bf16.mxu0 0
        %4860 = vmatpush1.bf16.msra.mxu0 %v4054
        %4861 = vmatprep.subr.bf16.mxu0 0
        %4862 = vmatpush1.bf16.msra.mxu0 %v4057
        %4863 = vmatprep.subr.bf16.mxu0 0
        %4864 = vmatpush1.bf16.msra.mxu0 %v4060
        %4865 = vmatprep.subr.bf16.mxu0 0
        %4866 = vmatpush1.bf16.msra.mxu0 %v4063
        %4867 = vmatprep.subr.bf16.mxu0 0
        %4868 = vmatpush1.bf16.msra.mxu0 %v4066
        %4869 = vmatprep.subr.bf16.mxu0 0
        %4870 = vmatpush1.bf16.msra.mxu0 %v4069
        %4871 = vmatprep.subr.bf16.mxu0 0
        %4872 = vmatpush1.bf16.msra.mxu0 %v4072
        %4873 = vmatprep.subr.bf16.mxu0 0
        %4874 = vmatpush1.bf16.msra.mxu0 %v4075
        %4875 = vmatprep.subr.bf16.mxu0 0
        %4876 = vmatpush1.bf16.msra.mxu0 %v4078
        %4877 = vmatprep.mubr.bf16.mxu0 %v2630
        %4878 = vmatmul.mubr.bf16.gmra.mrb[0].mxu0 %v2629
        %v4879 = vpop.f32.mrb[0].mxu0
        %v4880 = vadd.f32 %v4840, %v4879
        %v4881 = vpop.f32.mrb[0].mxu0
        %v4882 = vpop.f32.mrb[0].mxu0
        %v4883 = vpop.f32.mrb[0].mxu0
        %4884 = vdwg.mxu0
        %4885 = vmatprep.subr.bf16.mxu0 0
        %4886 = vmatpush1.bf16.msra.mxu0 %v4081
        %4887 = vmatprep.subr.bf16.mxu0 0
        %4888 = vmatpush1.bf16.msra.mxu0 %v4084
        %4889 = vmatprep.subr.bf16.mxu0 0
        %4890 = vmatpush1.bf16.msra.mxu0 %v4087
        %4891 = vmatprep.subr.bf16.mxu0 0
        %4892 = vmatpush1.bf16.msra.mxu0 %v4090
        %4893 = vmatprep.subr.bf16.mxu0 0
        %4894 = vmatpush1.bf16.msra.mxu0 %v4093
        %4895 = vmatprep.subr.bf16.mxu0 0
        %4896 = vmatpush1.bf16.msra.mxu0 %v4096
        %4897 = vmatprep.subr.bf16.mxu0 0
        %4898 = vmatpush1.bf16.msra.mxu0 %v4099
        %4899 = vmatprep.subr.bf16.mxu0 0
        %4900 = vmatpush1.bf16.msra.mxu0 %v4102
        %4901 = vmatprep.subr.bf16.mxu0 0
        %4902 = vmatpush1.bf16.msra.mxu0 %v4105
        %4903 = vmatprep.subr.bf16.mxu0 0
        %4904 = vmatpush1.bf16.msra.mxu0 %v4108
        %4905 = vmatprep.subr.bf16.mxu0 0
        %4906 = vmatpush1.bf16.msra.mxu0 %v4111
        %4907 = vmatprep.subr.bf16.mxu0 0
        %4908 = vmatpush1.bf16.msra.mxu0 %v4114
        %4909 = vmatprep.subr.bf16.mxu0 0
        %4910 = vmatpush1.bf16.msra.mxu0 %v4117
        %4911 = vmatprep.subr.bf16.mxu0 0
        %4912 = vmatpush1.bf16.msra.mxu0 %v4120
        %4913 = vmatprep.subr.bf16.mxu0 0
        %4914 = vmatpush1.bf16.msra.mxu0 %v4123
        %4915 = vmatprep.subr.bf16.mxu0 0
        %4916 = vmatpush1.bf16.msra.mxu0 %v4126
        %4917 = vmatprep.mubr.bf16.mxu0 %v2632
        %4918 = vmatmul.mubr.bf16.gmra.mrb[0].mxu0 %v2631
        %v4919 = vpop.f32.mrb[0].mxu0
        %v4920 = vadd.f32 %v4880, %v4919
        %v4921 = vpop.f32.mrb[0].mxu0
        %v4922 = vpop.f32.mrb[0].mxu0
        %v4923 = vpop.f32.mrb[0].mxu0
        %4924 = vdwg.mxu0
        %4925 = vmatprep.subr.bf16.mxu0 0
        %4926 = vmatpush1.bf16.msra.mxu0 %v4129
        %4927 = vmatprep.subr.bf16.mxu0 0
        %4928 = vmatpush1.bf16.msra.mxu0 %v4132
        %4929 = vmatprep.subr.bf16.mxu0 0
        %4930 = vmatpush1.bf16.msra.mxu0 %v4135
        %4931 = vmatprep.subr.bf16.mxu0 0
        %4932 = vmatpush1.bf16.msra.mxu0 %v4138
        %4933 = vmatprep.subr.bf16.mxu0 0
        %4934 = vmatpush1.bf16.msra.mxu0 %v4141
        %4935 = vmatprep.subr.bf16.mxu0 0
        %4936 = vmatpush1.bf16.msra.mxu0 %v4144
        %4937 = vmatprep.subr.bf16.mxu0 0
        %4938 = vmatpush1.bf16.msra.mxu0 %v4147
        %4939 = vmatprep.subr.bf16.mxu0 0
        %4940 = vmatpush1.bf16.msra.mxu0 %v4150
        %4941 = vmatprep.subr.bf16.mxu0 0
        %4942 = vmatpush1.bf16.msra.mxu0 %v4153
        %4943 = vmatprep.subr.bf16.mxu0 0
        %4944 = vmatpush1.bf16.msra.mxu0 %v4156
        %4945 = vmatprep.subr.bf16.mxu0 0
        %4946 = vmatpush1.bf16.msra.mxu0 %v4159
        %4947 = vmatprep.subr.bf16.mxu0 0
        %4948 = vmatpush1.bf16.msra.mxu0 %v4162
        %4949 = vmatprep.subr.bf16.mxu0 0
        %4950 = vmatpush1.bf16.msra.mxu0 %v4165
        %4951 = vmatprep.subr.bf16.mxu0 0
        %4952 = vmatpush1.bf16.msra.mxu0 %v4168
        %4953 = vmatprep.subr.bf16.mxu0 0
        %4954 = vmatpush1.bf16.msra.mxu0 %v4171
        %4955 = vmatprep.subr.bf16.mxu0 0
        %4956 = vmatpush1.bf16.msra.mxu0 %v4174
        %4957 = vmatprep.mubr.bf16.mxu0 %v2634
        %4958 = vmatmul.mubr.bf16.gmra.mrb[0].mxu0 %v2633
        %v4959 = vpop.f32.mrb[0].mxu0
        %v4960 = vadd.f32 %v4920, %v4959
        %v4961 = vpop.f32.mrb[0].mxu0
        %v4962 = vpop.f32.mrb[0].mxu0
        %v4963 = vpop.f32.mrb[0].mxu0
        %4964 = vdwg.mxu0
        %4965 = vmatprep.subr.bf16.mxu0 0
        %4966 = vmatpush1.bf16.msra.mxu0 %v4177
        %4967 = vmatprep.subr.bf16.mxu0 0
        %4968 = vmatpush1.bf16.msra.mxu0 %v4180
        %4969 = vmatprep.subr.bf16.mxu0 0
        %4970 = vmatpush1.bf16.msra.mxu0 %v4183
        %4971 = vmatprep.subr.bf16.mxu0 0
        %4972 = vmatpush1.bf16.msra.mxu0 %v4186
        %4973 = vmatprep.subr.bf16.mxu0 0
        %4974 = vmatpush1.bf16.msra.mxu0 %v4189
        %4975 = vmatprep.subr.bf16.mxu0 0
        %4976 = vmatpush1.bf16.msra.mxu0 %v4192
        %4977 = vmatprep.subr.bf16.mxu0 0
        %4978 = vmatpush1.bf16.msra.mxu0 %v4195
        %4979 = vmatprep.subr.bf16.mxu0 0
        %4980 = vmatpush1.bf16.msra.mxu0 %v4198
        %4981 = vmatprep.subr.bf16.mxu0 0
        %4982 = vmatpush1.bf16.msra.mxu0 %v4201
        %4983 = vmatprep.subr.bf16.mxu0 0
        %4984 = vmatpush1.bf16.msra.mxu0 %v4204
        %4985 = vmatprep.subr.bf16.mxu0 0
        %4986 = vmatpush1.bf16.msra.mxu0 %v4207
        %4987 = vmatprep.subr.bf16.mxu0 0
        %4988 = vmatpush1.bf16.msra.mxu0 %v4210
        %4989 = vmatprep.subr.bf16.mxu0 0
        %4990 = vmatpush1.bf16.msra.mxu0 %v4213
        %4991 = vmatprep.subr.bf16.mxu0 0
        %4992 = vmatpush1.bf16.msra.mxu0 %v4216
        %4993 = vmatprep.subr.bf16.mxu0 0
        %4994 = vmatpush1.bf16.msra.mxu0 %v4219
        %4995 = vmatprep.subr.bf16.mxu0 0
        %4996 = vmatpush1.bf16.msra.mxu0 %v4222
        %4997 = vmatprep.mubr.bf16.mxu0 %v2636
        %4998 = vmatmul.mubr.bf16.gmra.mrb[0].mxu0 %v2635
        %v4999 = vpop.f32.mrb[0].mxu0
        %v5000 = vadd.f32 %v4960, %v4999
        %v5001 = vpop.f32.mrb[0].mxu0
        %v5002 = vpop.f32.mrb[0].mxu0
        %v5003 = vpop.f32.mrb[0].mxu0
        %5004 = vdwg.mxu0
        %5005 = vmatprep.subr.bf16.mxu0 0
        %5006 = vmatpush1.bf16.msra.mxu0 %v4225
        %5007 = vmatprep.subr.bf16.mxu0 0
        %5008 = vmatpush1.bf16.msra.mxu0 %v4228
        %5009 = vmatprep.subr.bf16.mxu0 0
        %5010 = vmatpush1.bf16.msra.mxu0 %v4231
        %5011 = vmatprep.subr.bf16.mxu0 0
        %5012 = vmatpush1.bf16.msra.mxu0 %v4234
        %5013 = vmatprep.subr.bf16.mxu0 0
        %5014 = vmatpush1.bf16.msra.mxu0 %v4237
        %5015 = vmatprep.subr.bf16.mxu0 0
        %5016 = vmatpush1.bf16.msra.mxu0 %v4240
        %5017 = vmatprep.subr.bf16.mxu0 0
        %5018 = vmatpush1.bf16.msra.mxu0 %v4243
        %5019 = vmatprep.subr.bf16.mxu0 0
        %5020 = vmatpush1.bf16.msra.mxu0 %v4246
        %5021 = vmatprep.subr.bf16.mxu0 0
        %5022 = vmatpush1.bf16.msra.mxu0 %v4249
        %5023 = vmatprep.subr.bf16.mxu0 0
        %5024 = vmatpush1.bf16.msra.mxu0 %v4252
        %5025 = vmatprep.subr.bf16.mxu0 0
        %5026 = vmatpush1.bf16.msra.mxu0 %v4255
        %5027 = vmatprep.subr.bf16.mxu0 0
        %5028 = vmatpush1.bf16.msra.mxu0 %v4258
        %5029 = vmatprep.subr.bf16.mxu0 0
        %5030 = vmatpush1.bf16.msra.mxu0 %v4261
        %5031 = vmatprep.subr.bf16.mxu0 0
        %5032 = vmatpush1.bf16.msra.mxu0 %v4264
        %5033 = vmatprep.subr.bf16.mxu0 0
        %5034 = vmatpush1.bf16.msra.mxu0 %v4267
        %5035 = vmatprep.subr.bf16.mxu0 0
        %5036 = vmatpush1.bf16.msra.mxu0 %v4270
        %5037 = vmatprep.mubr.bf16.mxu0 %v2638
        %5038 = vmatmul.mubr.bf16.gmra.mrb[0].mxu0 %v2637
        %v5039 = vpop.f32.mrb[0].mxu0
        %v5040 = vadd.f32 %v5000, %v5039
        %v5041 = vpop.f32.mrb[0].mxu0
        %v5042 = vpop.f32.mrb[0].mxu0
        %v5043 = vpop.f32.mrb[0].mxu0
        %5044 = vdwg.mxu0
        %v5045 = vadd.f32 %v2624, %v4799
        %v5046 = vadd.f32 %v2625, %v4801
        %v5047 = vadd.f32 %v2626, %v5040
        %5048 = vst [vmem:[#allocation2] sm:$0xff] %v5045
        %5049 = vst [vmem:[#allocation2 + $0x8] sm:$0xff] %v5046
        %5050 = vst [vmem:[#allocation2 + $0x10] sm:$0xff] %v5047
        // Predicated region
        $region65: #{tpu_custom_call.1} parent=39 // pred_check
          %p5051 = pneg %p308
        $region66: #{tpu_custom_call.1} parent=39 // pred_check_branch
          %5053 = sbr.rel (%p5051) target = $region68
        $region67: #{tpu_custom_call.1} parent=39 // pred_region
          %v5054 = vld [vmem:[#allocation2] sm:$0xff]
          %v5055 = vld [vmem:[#allocation2 + $0x8] sm:$0xff]
          %v5056 = vld [vmem:[#allocation2 + $0x10] sm:$0xff]
          %v5057 = vld [vmem:[#allocation11] sm:$0x7]
          %v5059 = vlaneseq
          %v5060 = vshrl.u32 %v5059, 7
          %v5061 = vsub.s32 0, %v5060
          %v5062 = vrot.slane %v5057, %v5061
          %v5063 = vlaneseq
          %v5064 = vshrl.u32 %v5063, 7
          %v5065 = vsub.s32 1, %v5064
          %v5066 = vrot.slane %v5057, %v5065
          %v5067 = vlaneseq
          %v5068 = vshrl.u32 %v5067, 7
          %v5069 = vsub.s32 2, %v5068
          %v5070 = vrot.slane %v5057, %v5069
          %v5074 = vadd.f32 %v5054, %v5062
          %v5075 = vadd.f32 %v5055, %v5066
          %v5076 = vadd.f32 %v5056, %v5070
          %5077 = vst [vmem:[%s306] sm:$0xff] %v5074
          %5078 = vst [vmem:[%s306 + $0x8] sm:$0xff] %v5075
          %5079 = vst [vmem:[%s306 + $0x10] sm:$0xff] %v5076
        $region68: #{tpu_custom_call.1} parent=39 // pred_fallthru
          _
        %s5080 = sand.u32 %s154, 1
        %s5081 = scalar_lea.sflag [#allocation5], %s5080
        %s5082 = sand.u32 %s154, 1
        %s5083 = smul.addr %s5082, 24
        %s5084 = scalar_lea.vmem [#allocation12], %s5083
        // Predicated region
        $region69: #{tpu_custom_call.1} parent=39 // pred_check
          %p5085 = pneg %p164
        $region70: #{tpu_custom_call.1} parent=39 // pred_check_branch
          %5087 = sbr.rel (%p5085) target = $region72
        $region71: #{tpu_custom_call.1} parent=39 // pred_region
          %s5089 = ssub.s32 384, 384
          %5090 = vsyncadd %s5081, %s5089
          %s5091 = smul.addr %s28, 3
          %s5092 = smul.addr %s5091, 128
          %s5093 = scalar_lea.hbm %s5, %s5092
          %s5095 = sshll.u32 %s5084, 4
          %s5096 = int_to_ptr.vmem [resolvable:$true] %s5095
          %5098 = dma.vmem_to_hbm [thread:$0]  %s5096, 384, %s5093, %s5081
        $region72: #{tpu_custom_call.1} parent=39 // pred_fallthru
          _
      $region40: #{tpu_custom_call.1} parent=5 // pred_fallthru
        _
      %p5099 = scmp.le.s32.totalorder 2, %s19
      // Predicated region
      $region73: #{tpu_custom_call.1} parent=5 // pred_check
        %p5100 = pneg %p5099
      $region74: #{tpu_custom_call.1} parent=5 // pred_check_branch
        %5102 = sbr.rel (%p5100) target = $region76
      $region75: #{tpu_custom_call.1} parent=5 // pred_region
        %s5103 = ssub.s32 %s19, 2
        // Predicated region
        $region77: #{tpu_custom_call.1} parent=75 // pred_check
          %p5104 = pneg %p170
        $region78: #{tpu_custom_call.1} parent=75 // pred_check_branch
          %5106 = sbr.rel (%p5104) target = $region80
        $region79: #{tpu_custom_call.1} parent=75 // pred_region
          %s5107 = sand.u32 %s155, 1
          %s5108 = scalar_lea.sflag [#allocation5], %s5107
          %s5109 = sand.u32 %s155, 1
          %s5110 = smul.addr %s5109, 24
          %s5111 = scalar_lea.vmem [#allocation12], %s5110
          %5112 = dma.done %s5108, 384
        $region80: #{tpu_custom_call.1} parent=75 // pred_fallthru
          _
      $region76: #{tpu_custom_call.1} parent=5 // pred_fallthru
        _
    $region6: #{tpu_custom_call.1} parent=1 // loop_footer
      %s23 = sadd.s32 1, %s19
    $region7: #{tpu_custom_call.1} parent=1 // loop_footer_branch
      %18 = sbr.rel target = $region3
    $region8: #{tpu_custom_call.1} parent=1 // loop_exit
      _
    %5113 = vsyncpa [#allocation4], 1
    %s5114 = scalar_lea.sflag [#allocation4], 1
    %5115 = vsyncpa %s5114, 1
    %5116 = vsyncpa [#allocation7], 1
    %5117 = vsyncpa [#allocation10], 1
    %5118 = vsyncpa [#allocation5], 1
    %s5119 = scalar_lea.sflag [#allocation5], 1
    %5120 = vsyncpa %s5119, 1

// kernel: tpu_custom_call.1
$region0: #{tpu_custom_call.1}
  #allocation0 [shape = 'u32[]', space=smem, size = 0x4, offset = 0x4, fixed_abs, tag = 'smem constant byte address 0x4 - core index']
  #allocation1 [shape = 'u32[144,128]{1,0:T(1,128)}', space=vmem, size = 0x12000, scoped, tag = 'internal scratch']
  #allocation2 [shape = 'f32[8,384]{1,0:T(8,128)}', space=vmem, size = 0x3000, scoped, tag = 'scratch operand']
  %s0 = inlined_call_operand.hbm [shape: bf16[16,384], index: 0, kind: input, shape index: {}]
  %s1 = inlined_call_operand.hbm [shape: bf16[384,1536], index: 1, kind: input, shape index: {}]
  %s2 = inlined_call_operand.hbm [shape: f32[1,1536], index: 2, kind: input, shape index: {}]
  %s3 = inlined_call_operand.hbm [shape: bf16[1536,384], index: 3, kind: input, shape index: {}]
  %s4 = inlined_call_operand.hbm [shape: f32[1,384], index: 4, kind: input, shape index: {}]
  %s5 = inlined_call_operand.hbm [shape: f32[16,384], index: 5, kind: output, shape index: {}]
  %s6 = sld [smem:[#allocation0]]
  $region81: #{tpu_custom_call.1} parent=0
    _
  %s8 = ssub.s32 1, %s6
  %s9 = scalar_select 0, %s8, %s6
  $region1: #{tpu_custom_call.1} parent=0
    #allocation3 [shape = 'u8[12288]{0}', space=vmem, size = 0x3000, scoped, tag = 'input window, operand 0']
    #allocation4 [shape = 's32[2]{0}', space=sflag, size = 0x8, scoped, tag = 'scoped memory for tpu_custom_call.1']
    #allocation5 [shape = 's32[2]{0}', space=sflag, size = 0x8, scoped, tag = 'scoped memory for tpu_custom_call.1']
    #allocation6 [shape = 'u8[1179648]{0}', space=vmem, size = 0x120000, scoped, tag = 'input window, operand 1, single buffered']
    #allocation7 [shape = 's32[1]{0}', space=sflag, size = 0x4, scoped, tag = 'scoped memory for tpu_custom_call.1']
    #allocation8 [shape = 'u8[6144]{0}', space=vmem, size = 0x1800, scoped, tag = 'input window, operand 2, single buffered']
    #allocation9 [shape = 'u8[1179648]{0}', space=vmem, size = 0x120000, scoped, tag = 'input window, operand 3, single buffered']
    #allocation10 [shape = 's32[1]{0}', space=sflag, size = 0x4, scoped, tag = 'scoped memory for tpu_custom_call.1']
    #allocation11 [shape = 'u8[1536]{0}', space=vmem, size = 0x800, scoped, tag = 'input window, operand 4, single buffered']
    #allocation12 [shape = 'u8[24576]{0}', space=vmem, size = 0x6000, scoped, tag = 'output window, operand 0']
    %10 = vsyncpa [#allocation4], 0
    %s11 = scalar_lea.sflag [#allocation4], 1
    %12 = vsyncpa %s11, 0
    %13 = vsyncpa [#allocation7], 0
    %14 = vsyncpa [#allocation10], 0
    %15 = vsyncpa [#allocation5], 0
    %s16 = scalar_lea.sflag [#allocation5], 1
    %17 = vsyncpa %s16, 0
    loop: start=0, step=1, limit=4
    $region2: #{tpu_custom_call.1} parent=1 // loop_pre_header
      _
    $region3: #{tpu_custom_call.1} parent=1 // loop_header
      %s19 = sphi 0, %s23
      %p20 = scmp.ge.s32.totalorder %s19, 4
      %s26 = sphi 0, %s38
      %s27 = sphi 0, %s34
      %s28 = sphi 0, %s26
      %s29 = sphi 0, %s27
      %s30 = sphi 0, %s28
      %s31 = sphi 0, %s29
      %s41 = sphi 0, %s43
      %s44 = sphi 0, %s41
      %s45 = sphi 0, %s44
      %s61 = sphi 0, %s45
      %s67 = sphi 0, %s69
      %s70 = sphi 0, %s67
      %s71 = sphi 0, %s70
      %s87 = sphi 0, %s71
      %s93 = sphi 0, %s95
      %s96 = sphi 0, %s93
      %s97 = sphi 0, %s96
      %s113 = sphi 0, %s97
      %s119 = sphi 0, %s121
      %s122 = sphi 0, %s119
      %s123 = sphi 0, %s122
      %s139 = sphi 0, %s123
      %s143 = sphi 0, %s143
      %s145 = sphi 0, %s143
      %s146 = sphi 0, %s145
      %s160 = sphi 0, %s146
      %s166 = sphi 0, %s168
      %s169 = sphi 0, %s166
      %s170 = sphi 0, %s169
      %s186 = sphi 0, %s170
    $region4: #{tpu_custom_call.1} parent=1 // loop_header_branch
      %22 = sbr.rel (%p20) target = $region8
    $region5: #{tpu_custom_call.1} parent=1 // loop_body
      %s24 = ssub.s32 %s19, 1
      %s25 = ssub.s32 %s19, 2
      %s32 = sadd.s32 1, %s27
      %p33 = scmp.ge.s32.totalorder %s32, 1
      %s34 = scalar_select %p33, 0, %s32
      %s35 = sadd.s32 1, %s26
      %s36 = scalar_select %p33, %s35, %s26
      %p37 = scmp.ge.s32.totalorder %s36, 2
      %s38 = scalar_select %p37, 0, %s36
      %s39 = ssub.s32 %s26, %s38
      %p40 = scmp.eq.s32.totalorder %s39, 0
      %s42 = sadd.s32 %s41, 1
      %s43 = scalar_select %p40, %s41, %s42
      %p46 = pneg %p40
      %p47 = scmp.eq.s32.totalorder %s19, 1
      %p48 = por %p46, %p47
      %p49 = scmp.ne.s32.totalorder %s41, %s44
      %p50 = scmp.eq.s32.totalorder %s19, 0
      %p51 = por %p49, %p50
      %p52 = scmp.ne.s32.totalorder %s41, %s44
      %p53 = scmp.eq.s32.totalorder %s24, 1
      %p54 = por %p52, %p53
      %p55 = scmp.ne.s32.totalorder %s44, %s45
      %p56 = scmp.eq.s32.totalorder %s24, 0
      %p57 = por %p55, %p56
      %p58 = scmp.ne.s32.totalorder %s44, %s45
      %p59 = scmp.eq.s32.totalorder %s25, 1
      %p60 = por %p58, %p59
      %p62 = scmp.ne.s32.totalorder %s45, %s61
      %p63 = scmp.eq.s32.totalorder %s25, 0
      %p64 = por %p62, %p63
      %s65 = ssub.s32 %s27, %s34
      %p66 = scmp.eq.s32.totalorder %s65, 0
      %s68 = sadd.s32 %s67, 1
      %s69 = scalar_select %p66, %s67, %s68
      %p72 = pneg %p66
      %p73 = scmp.eq.s32.totalorder %s19, 1
      %p74 = por %p72, %p73
      %p75 = scmp.ne.s32.totalorder %s67, %s70
      %p76 = scmp.eq.s32.totalorder %s19, 0
      %p77 = por %p75, %p76
      %p78 = scmp.ne.s32.totalorder %s67, %s70
      %p79 = scmp.eq.s32.totalorder %s24, 1
      %p80 = por %p78, %p79
      %p81 = scmp.ne.s32.totalorder %s70, %s71
      %p82 = scmp.eq.s32.totalorder %s24, 0
      %p83 = por %p81, %p82
      %p84 = scmp.ne.s32.totalorder %s70, %s71
      %p85 = scmp.eq.s32.totalorder %s25, 1
      %p86 = por %p84, %p85
      %p88 = scmp.ne.s32.totalorder %s71, %s87
      %p89 = scmp.eq.s32.totalorder %s25, 0
      %p90 = por %p88, %p89
      %s91 = ssub.s32 %s27, %s34
      %p92 = scmp.eq.s32.totalorder %s91, 0
      %s94 = sadd.s32 %s93, 1
      %s95 = scalar_select %p92, %s93, %s94
      %p98 = pneg %p92
      %p99 = scmp.eq.s32.totalorder %s19, 1
      %p100 = por %p98, %p99
      %p101 = scmp.ne.s32.totalorder %s93, %s96
      %p102 = scmp.eq.s32.totalorder %s19, 0
      %p103 = por %p101, %p102
      %p104 = scmp.ne.s32.totalorder %s93, %s96
      %p105 = scmp.eq.s32.totalorder %s24, 1
      %p106 = por %p104, %p105
      %p107 = scmp.ne.s32.totalorder %s96, %s97
      %p108 = scmp.eq.s32.totalorder %s24, 0
      %p109 = por %p107, %p108
      %p110 = scmp.ne.s32.totalorder %s96, %s97
      %p111 = scmp.eq.s32.totalorder %s25, 1
      %p112 = por %p110, %p111
      %p114 = scmp.ne.s32.totalorder %s97, %s113
      %p115 = scmp.eq.s32.totalorder %s25, 0
      %p116 = por %p114, %p115
      %s117 = ssub.s32 %s27, %s34
      %p118 = scmp.eq.s32.totalorder %s117, 0
      %s120 = sadd.s32 %s119, 1
      %s121 = scalar_select %p118, %s119, %s120
      %p124 = pneg %p118
      %p125 = scmp.eq.s32.totalorder %s19, 1
      %p126 = por %p124, %p125
      %p127 = scmp.ne.s32.totalorder %s119, %s122
      %p128 = scmp.eq.s32.totalorder %s19, 0
      %p129 = por %p127, %p128
      %p130 = scmp.ne.s32.totalorder %s119, %s122
      %p131 = scmp.eq.s32.totalorder %s24, 1
      %p132 = por %p130, %p131
      %p133 = scmp.ne.s32.totalorder %s122, %s123
      %p134 = scmp.eq.s32.totalorder %s24, 0
      %p135 = por %p133, %p134
      %p136 = scmp.ne.s32.totalorder %s122, %s123
      %p137 = scmp.eq.s32.totalorder %s25, 1
      %p138 = por %p136, %p137
      %p140 = scmp.ne.s32.totalorder %s123, %s139
      %p141 = scmp.eq.s32.totalorder %s25, 0
      %p142 = por %p140, %p141
      %s144 = sadd.s32 %s143, 1
      %p147 = scmp.eq.s32.totalorder %s19, 1
      %p148 = scmp.ne.s32.totalorder %s143, %s145
      %p149 = scmp.eq.s32.totalorder %s19, 0
      %p150 = por %p148, %p149
      %p151 = scmp.ne.s32.totalorder %s143, %s145
      %p152 = scmp.eq.s32.totalorder %s24, 1
      %p153 = por %p151, %p152
      %p154 = scmp.ne.s32.totalorder %s145, %s146
      %p155 = scmp.eq.s32.totalorder %s24, 0
      %p156 = por %p154, %p155
      %p157 = scmp.ne.s32.totalorder %s145, %s146
      %p158 = scmp.eq.s32.totalorder %s25, 1
      %p159 = por %p157, %p158
      %p161 = scmp.ne.s32.totalorder %s146, %s160
      %p162 = scmp.eq.s32.totalorder %s25, 0
      %p163 = por %p161, %p162
      %s164 = ssub.s32 %s26, %s38
      %p165 = scmp.eq.s32.totalorder %s164, 0
      %s167 = sadd.s32 %s166, 1
      %s168 = scalar_select %p165, %s166, %s167
      %p171 = pneg %p165
      %p172 = scmp.eq.s32.totalorder %s19, 1
      %p173 = por %p171, %p172
      %p174 = scmp.ne.s32.totalorder %s166, %s169
      %p175 = scmp.eq.s32.totalorder %s19, 0
      %p176 = por %p174, %p175
      %p177 = scmp.ne.s32.totalorder %s166, %s169
      %p178 = scmp.eq.s32.totalorder %s24, 1
      %p179 = por %p177, %p178
      %p180 = scmp.ne.s32.totalorder %s169, %s170
      %p181 = scmp.eq.s32.totalorder %s24, 0
      %p182 = por %p180, %p181
      %p183 = scmp.ne.s32.totalorder %s169, %s170
      %p184 = scmp.eq.s32.totalorder %s25, 1
      %p185 = por %p183, %p184
      %p187 = scmp.ne.s32.totalorder %s170, %s186
      %p188 = scmp.eq.s32.totalorder %s25, 0
      %p189 = por %p187, %p188
      %p190 = scmp.le.s32.totalorder 1, %s19
      %p191 = scmp.lt.s32.totalorder %s19, 3
      %p192 = pnand %p190, %p191
      %p193 = pneg %p192
      // Predicated region
      $region9: #{tpu_custom_call.1} parent=5 // pred_check
        _
      $region10: #{tpu_custom_call.1} parent=5 // pred_check_branch
        %195 = sbr.rel (%p192) target = $region12
      $region11: #{tpu_custom_call.1} parent=5 // pred_region
        %s196 = ssub.s32 %s19, 1
        // Predicated region
        $region13: #{tpu_custom_call.1} parent=11 // pred_check
          %p197 = pneg %p83
        $region14: #{tpu_custom_call.1} parent=11 // pred_check_branch
          %199 = sbr.rel (%p197) target = $region16
        $region15: #{tpu_custom_call.1} parent=11 // pred_region
          %s200 = smul.u32 12, %s29
          %s202 = ssub.s32 36864, 36864
          %203 = vsyncadd [#allocation7], %s202
          %s204 = smul.addr %s200, 64
          %s205 = scalar_lea.hbm %s1, %s204
          %s206 = sshll.u32 [#allocation6], 4
          %s207 = int_to_ptr.vmem [resolvable:$true] %s206
          %212 = dma.hbm_to_vmem [thread:$0]  %s205, 36864, %s207, [#allocation7], 768, 768, 48
        $region16: #{tpu_custom_call.1} parent=11 // pred_fallthru
          _
        // Predicated region
        $region17: #{tpu_custom_call.1} parent=11 // pred_check
          %p213 = pneg %p109
        $region18: #{tpu_custom_call.1} parent=11 // pred_check_branch
          %215 = sbr.rel (%p213) target = $region20
        $region19: #{tpu_custom_call.1} parent=11 // pred_region
          %s216 = smul.u32 12, %s29
          %s218 = ssub.s32 192, 192
          %219 = vsyncadd [#allocation7], %s218
          %s220 = smul.addr %s216, 16
          %s221 = scalar_lea.hbm %s2, %s220
          %s223 = sshll.u32 [#allocation8], 4
          %s224 = int_to_ptr.vmem [resolvable:$true] %s223
          %226 = dma.hbm_to_vmem [thread:$0]  %s221, 192, %s224, [#allocation7]
        $region20: #{tpu_custom_call.1} parent=11 // pred_fallthru
          _
        // Predicated region
        $region21: #{tpu_custom_call.1} parent=11 // pred_check
          %p227 = pneg %p135
        $region22: #{tpu_custom_call.1} parent=11 // pred_check_branch
          %229 = sbr.rel (%p227) target = $region24
        $region23: #{tpu_custom_call.1} parent=11 // pred_region
          %s230 = smul.u32 192, %s29
          %s232 = ssub.s32 36864, 36864
          %233 = vsyncadd [#allocation10], %s232
          %s234 = smul.addr %s230, 3
          %s235 = smul.addr %s234, 64
          %s236 = scalar_lea.hbm %s3, %s235
          %s237 = sshll.u32 [#allocation9], 4
          %s238 = int_to_ptr.vmem [resolvable:$true] %s237
          %243 = dma.hbm_to_vmem [thread:$0]  %s236, 36864, %s238, [#allocation10], 192, 192, 12
        $region24: #{tpu_custom_call.1} parent=11 // pred_fallthru
          _
        // Predicated region
        $region25: #{tpu_custom_call.1} parent=11 // pred_check
          %p244 = pneg %p156
        $region26: #{tpu_custom_call.1} parent=11 // pred_check_branch
          %246 = sbr.rel (%p244) target = $region28
        $region27: #{tpu_custom_call.1} parent=11 // pred_region
          %s248 = ssub.s32 48, 48
          %249 = vsyncadd [#allocation10], %s248
          %s251 = sshll.u32 [#allocation11], 4
          %s252 = int_to_ptr.vmem [resolvable:$true] %s251
          %254 = dma.hbm_to_vmem [thread:$0]  %s4, 48, %s252, [#allocation10]
        $region28: #{tpu_custom_call.1} parent=11 // pred_fallthru
          _
      $region12: #{tpu_custom_call.1} parent=5 // pred_fallthru
        _
      %p255 = scmp.lt.s32.totalorder %s19, 2
      // Predicated region
      $region29: #{tpu_custom_call.1} parent=5 // pred_check
        %p256 = pneg %p255
      $region30: #{tpu_custom_call.1} parent=5 // pred_check_branch
        %258 = sbr.rel (%p256) target = $region32
      $region31: #{tpu_custom_call.1} parent=5 // pred_region
        // Predicated region
        $region33: #{tpu_custom_call.1} parent=31 // pred_check
          %p259 = pneg %p51
        $region34: #{tpu_custom_call.1} parent=31 // pred_check_branch
          %261 = sbr.rel (%p259) target = $region36
        $region35: #{tpu_custom_call.1} parent=31 // pred_region
          %s262 = sand.u32 %s41, 1
          %s263 = scalar_lea.sflag [#allocation4], %s262
          %s264 = sand.u32 %s41, 1
          %s265 = smul.addr %s264, 12
          %s266 = scalar_lea.vmem [#allocation3], %s265
          %s268 = ssub.s32 192, 192
          %269 = vsyncadd %s263, %s268
          %s270 = smul.addr %s26, 3
          %s271 = smul.addr %s270, 64
          %s272 = scalar_lea.hbm %s0, %s271
          %s274 = sshll.u32 %s266, 4
          %s275 = int_to_ptr.vmem [resolvable:$true] %s274
          %277 = dma.hbm_to_vmem [thread:$0]  %s272, 192, %s275, %s263
        $region36: #{tpu_custom_call.1} parent=31 // pred_fallthru
          _
      $region32: #{tpu_custom_call.1} parent=5 // pred_fallthru
        _
      %p278 = scmp.le.s32.totalorder 1, %s19
      %p279 = scmp.lt.s32.totalorder %s19, 3
      %p280 = pnand %p278, %p279
      %p281 = pneg %p280
      // Predicated region
      $region37: #{tpu_custom_call.1} parent=5 // pred_check
        _
      $region38: #{tpu_custom_call.1} parent=5 // pred_check_branch
        %283 = sbr.rel (%p280) target = $region40
      $region39: #{tpu_custom_call.1} parent=5 // pred_region
        %s284 = ssub.s32 %s19, 1
        %s285 = sand.u32 %s44, 1
        %s286 = scalar_lea.sflag [#allocation4], %s285
        %s287 = sand.u32 %s44, 1
        %s288 = smul.addr %s287, 12
        %s289 = scalar_lea.vmem [#allocation3], %s288
        // Predicated region
        $region41: #{tpu_custom_call.1} parent=39 // pred_check
          %p290 = pneg %p57
        $region42: #{tpu_custom_call.1} parent=39 // pred_check_branch
          %292 = sbr.rel (%p290) target = $region44
        $region43: #{tpu_custom_call.1} parent=39 // pred_region
          %293 = dma.done %s286, 192
        $region44: #{tpu_custom_call.1} parent=39 // pred_fallthru
          _
        // Predicated region
        $region45: #{tpu_custom_call.1} parent=39 // pred_check
          %p294 = pneg %p83
        $region46: #{tpu_custom_call.1} parent=39 // pred_check_branch
          %296 = sbr.rel (%p294) target = $region48
        $region47: #{tpu_custom_call.1} parent=39 // pred_region
          %297 = dma.done [#allocation7], 36864
        $region48: #{tpu_custom_call.1} parent=39 // pred_fallthru
          _
        // Predicated region
        $region49: #{tpu_custom_call.1} parent=39 // pred_check
          %p298 = pneg %p109
        $region50: #{tpu_custom_call.1} parent=39 // pred_check_branch
          %300 = sbr.rel (%p298) target = $region52
        $region51: #{tpu_custom_call.1} parent=39 // pred_region
          %301 = dma.done [#allocation7], 192
        $region52: #{tpu_custom_call.1} parent=39 // pred_fallthru
          _
        // Predicated region
        $region53: #{tpu_custom_call.1} parent=39 // pred_check
          %p302 = pneg %p135
        $region54: #{tpu_custom_call.1} parent=39 // pred_check_branch
          %304 = sbr.rel (%p302) target = $region56
        $region55: #{tpu_custom_call.1} parent=39 // pred_region
          %305 = dma.done [#allocation10], 36864
        $region56: #{tpu_custom_call.1} parent=39 // pred_fallthru
          _
        // Predicated region
        $region57: #{tpu_custom_call.1} parent=39 // pred_check
          %p306 = pneg %p156
        $region58: #{tpu_custom_call.1} parent=39 // pred_check_branch
          %308 = sbr.rel (%p306) target = $region60
        $region59: #{tpu_custom_call.1} parent=39 // pred_region
          %309 = dma.done [#allocation10], 48
        $region60: #{tpu_custom_call.1} parent=39 // pred_fallthru
          _
        %s310 = sand.u32 %s44, 1
        %s311 = scalar_lea.sflag [#allocation4], %s310
        %s312 = sand.u32 %s44, 1
        %s313 = smul.addr %s312, 12
        %s314 = scalar_lea.vmem [#allocation3], %s313
        %p315 = pneg %p57
        %p316 = pneg %p54
        %p317 = pneg %p83
        %p318 = pneg %p80
        %p319 = pneg %p109
        %p320 = pneg %p106
        %p321 = pneg %p135
        %p322 = pneg %p132
        %p323 = pneg %p156
        %p324 = pneg %p153
        %p325 = pneg %p182
        %p326 = pneg %p179
        %s327 = sand.u32 %s169, 1
        %s328 = scalar_lea.sflag [#allocation5], %s327
        %s329 = sand.u32 %s169, 1
        %s330 = smul.addr %s329, 24
        %s331 = scalar_lea.vmem [#allocation12], %s330
        %s332 = smul.u32 12, %s29
        %s333 = smul.u32 12, %s29
        %s334 = smul.u32 192, %s29
        %p336 = scmp.eq.s32.totalorder %s29, 0
        // Predicated region
        $region61: #{tpu_custom_call.1} parent=39 // pred_check
          %p337 = pneg %p336
        $region62: #{tpu_custom_call.1} parent=39 // pred_check_branch
          %339 = sbr.rel (%p337) target = $region64
        $region63: #{tpu_custom_call.1} parent=39 // pred_region
          %340 = vst [vmem:[#allocation2] sm:$0xff] 0.0
          %341 = vst [vmem:[#allocation2 + $0x8] sm:$0xff] 0.0
          %342 = vst [vmem:[#allocation2 + $0x10] sm:$0xff] 0.0
        $region64: #{tpu_custom_call.1} parent=39 // pred_fallthru
          _
        %v343 = vld [vmem:[%s289] sm:$0xff]
        %v344 = vld [vmem:[%s289 + $0x8] sm:$0xf]
        %v345 = vld [vmem:[#allocation6] sm:$0xff]
        %v346 = vld [vmem:[#allocation6 + $0x8] sm:$0xff]
        %v347 = vld [vmem:[#allocation6 + $0x10] sm:$0xff]
        %v348 = vld [vmem:[#allocation6 + $0x18] sm:$0xff]
        %v349 = vld [vmem:[#allocation6 + $0x20] sm:$0xff]
        %v350 = vld [vmem:[#allocation6 + $0x28] sm:$0xff]
        %v351 = vld [vmem:[#allocation6 + $0x30] sm:$0xff]
        %v352 = vld [vmem:[#allocation6 + $0x38] sm:$0xff]
        %v353 = vld [vmem:[#allocation6 + $0x40] sm:$0xff]
        %v354 = vld [vmem:[#allocation6 + $0x48] sm:$0xff]
        %v355 = vld [vmem:[#allocation6 + $0x50] sm:$0xff]
        %v356 = vld [vmem:[#allocation6 + $0x58] sm:$0xff]
        %v357 = vld [vmem:[#allocation6 + $0x60] sm:$0xff]
        %v358 = vld [vmem:[#allocation6 + $0x68] sm:$0xff]
        %v359 = vld [vmem:[#allocation6 + $0x70] sm:$0xff]
        %v360 = vld [vmem:[#allocation6 + $0x78] sm:$0xff]
        %v361 = vld [vmem:[#allocation6 + $0x80] sm:$0xff]
        %v362 = vld [vmem:[#allocation6 + $0x88] sm:$0xff]
        %v363 = vld [vmem:[#allocation6 + $0x90] sm:$0xff]
        %v364 = vld [vmem:[#allocation6 + $0x98] sm:$0xff]
        %v365 = vld [vmem:[#allocation6 + $0xa0] sm:$0xff]
        %v366 = vld [vmem:[#allocation6 + $0xa8] sm:$0xff]
        %v367 = vld [vmem:[#allocation6 + $0xb0] sm:$0xff]
        %v368 = vld [vmem:[#allocation6 + $0xb8] sm:$0xff]
        %v369 = vld [vmem:[#allocation6 + $0xc0] sm:$0xff]
        %v370 = vld [vmem:[#allocation6 + $0xc8] sm:$0xff]
        %v371 = vld [vmem:[#allocation6 + $0xd0] sm:$0xff]
        %v372 = vld [vmem:[#allocation6 + $0xd8] sm:$0xff]
        %v373 = vld [vmem:[#allocation6 + $0xe0] sm:$0xff]
        %v374 = vld [vmem:[#allocation6 + $0xe8] sm:$0xff]
        %v375 = vld [vmem:[#allocation6 + $0xf0] sm:$0xff]
        %v376 = vld [vmem:[#allocation6 + $0xf8] sm:$0xff]
        %v377 = vld [vmem:[#allocation6 + $0x100] sm:$0xff]
        %v378 = vld [vmem:[#allocation6 + $0x108] sm:$0xff]
        %v379 = vld [vmem:[#allocation6 + $0x110] sm:$0xff]
        %v380 = vld [vmem:[#allocation6 + $0x118] sm:$0xff]
        %v381 = vld [vmem:[#allocation6 + $0x120] sm:$0xff]
        %v382 = vld [vmem:[#allocation6 + $0x128] sm:$0xff]
        %v383 = vld [vmem:[#allocation6 + $0x130] sm:$0xff]
        %v384 = vld [vmem:[#allocation6 + $0x138] sm:$0xff]
        %v385 = vld [vmem:[#allocation6 + $0x140] sm:$0xff]
        %v386 = vld [vmem:[#allocation6 + $0x148] sm:$0xff]
        %v387 = vld [vmem:[#allocation6 + $0x150] sm:$0xff]
        %v388 = vld [vmem:[#allocation6 + $0x158] sm:$0xff]
        %v389 = vld [vmem:[#allocation6 + $0x160] sm:$0xff]
        %v390 = vld [vmem:[#allocation6 + $0x168] sm:$0xff]
        %v391 = vld [vmem:[#allocation6 + $0x170] sm:$0xff]
        %v392 = vld [vmem:[#allocation6 + $0x178] sm:$0xff]
        %v393 = vld [vmem:[#allocation6 + $0x180] sm:$0xff]
        %v394 = vld [vmem:[#allocation6 + $0x188] sm:$0xff]
        %v395 = vld [vmem:[#allocation6 + $0x190] sm:$0xff]
        %v396 = vld [vmem:[#allocation6 + $0x198] sm:$0xff]
        %v397 = vld [vmem:[#allocation6 + $0x1a0] sm:$0xff]
        %v398 = vld [vmem:[#allocation6 + $0x1a8] sm:$0xff]
        %v399 = vld [vmem:[#allocation6 + $0x1b0] sm:$0xff]
        %v400 = vld [vmem:[#allocation6 + $0x1b8] sm:$0xff]
        %v401 = vld [vmem:[#allocation6 + $0x1c0] sm:$0xff]
        %v402 = vld [vmem:[#allocation6 + $0x1c8] sm:$0xff]
        %v403 = vld [vmem:[#allocation6 + $0x1d0] sm:$0xff]
        %v404 = vld [vmem:[#allocation6 + $0x1d8] sm:$0xff]
        %v405 = vld [vmem:[#allocation6 + $0x1e0] sm:$0xff]
        %v406 = vld [vmem:[#allocation6 + $0x1e8] sm:$0xff]
        %v407 = vld [vmem:[#allocation6 + $0x1f0] sm:$0xff]
        %v408 = vld [vmem:[#allocation6 + $0x1f8] sm:$0xff]
        %v409 = vld [vmem:[#allocation6 + $0x200] sm:$0xff]
        %v410 = vld [vmem:[#allocation6 + $0x208] sm:$0xff]
        %v411 = vld [vmem:[#allocation6 + $0x210] sm:$0xff]
        %v412 = vld [vmem:[#allocation6 + $0x218] sm:$0xff]
        %v413 = vld [vmem:[#allocation6 + $0x220] sm:$0xff]
        %v414 = vld [vmem:[#allocation6 + $0x228] sm:$0xff]
        %v415 = vld [vmem:[#allocation6 + $0x230] sm:$0xff]
        %v416 = vld [vmem:[#allocation6 + $0x238] sm:$0xff]
        %v417 = vld [vmem:[#allocation6 + $0x240] sm:$0xff]
        %v418 = vld [vmem:[#allocation6 + $0x248] sm:$0xff]
        %v419 = vld [vmem:[#allocation6 + $0x250] sm:$0xff]
        %v420 = vld [vmem:[#allocation6 + $0x258] sm:$0xff]
        %v421 = vld [vmem:[#allocation6 + $0x260] sm:$0xff]
        %v422 = vld [vmem:[#allocation6 + $0x268] sm:$0xff]
        %v423 = vld [vmem:[#allocation6 + $0x270] sm:$0xff]
        %v424 = vld [vmem:[#allocation6 + $0x278] sm:$0xff]
        %v425 = vld [vmem:[#allocation6 + $0x280] sm:$0xff]
        %v426 = vld [vmem:[#allocation6 + $0x288] sm:$0xff]
        %v427 = vld [vmem:[#allocation6 + $0x290] sm:$0xff]
        %v428 = vld [vmem:[#allocation6 + $0x298] sm:$0xff]
        %v429 = vld [vmem:[#allocation6 + $0x2a0] sm:$0xff]
        %v430 = vld [vmem:[#allocation6 + $0x2a8] sm:$0xff]
        %v431 = vld [vmem:[#allocation6 + $0x2b0] sm:$0xff]
        %v432 = vld [vmem:[#allocation6 + $0x2b8] sm:$0xff]
        %v433 = vld [vmem:[#allocation6 + $0x2c0] sm:$0xff]
        %v434 = vld [vmem:[#allocation6 + $0x2c8] sm:$0xff]
        %v435 = vld [vmem:[#allocation6 + $0x2d0] sm:$0xff]
        %v436 = vld [vmem:[#allocation6 + $0x2d8] sm:$0xff]
        %v437 = vld [vmem:[#allocation6 + $0x2e0] sm:$0xff]
        %v438 = vld [vmem:[#allocation6 + $0x2e8] sm:$0xff]
        %v439 = vld [vmem:[#allocation6 + $0x2f0] sm:$0xff]
        %v440 = vld [vmem:[#allocation6 + $0x2f8] sm:$0xff]
        %v441 = vld [vmem:[#allocation6 + $0x300] sm:$0xff]
        %v442 = vld [vmem:[#allocation6 + $0x308] sm:$0xff]
        %v443 = vld [vmem:[#allocation6 + $0x310] sm:$0xff]
        %v444 = vld [vmem:[#allocation6 + $0x318] sm:$0xff]
        %v445 = vld [vmem:[#allocation6 + $0x320] sm:$0xff]
        %v446 = vld [vmem:[#allocation6 + $0x328] sm:$0xff]
        %v447 = vld [vmem:[#allocation6 + $0x330] sm:$0xff]
        %v448 = vld [vmem:[#allocation6 + $0x338] sm:$0xff]
        %v449 = vld [vmem:[#allocation6 + $0x340] sm:$0xff]
        %v450 = vld [vmem:[#allocation6 + $0x348] sm:$0xff]
        %v451 = vld [vmem:[#allocation6 + $0x350] sm:$0xff]
        %v452 = vld [vmem:[#allocation6 + $0x358] sm:$0xff]
        %v453 = vld [vmem:[#allocation6 + $0x360] sm:$0xff]
        %v454 = vld [vmem:[#allocation6 + $0x368] sm:$0xff]
        %v455 = vld [vmem:[#allocation6 + $0x370] sm:$0xff]
        %v456 = vld [vmem:[#allocation6 + $0x378] sm:$0xff]
        %v457 = vld [vmem:[#allocation6 + $0x380] sm:$0xff]
        %v458 = vld [vmem:[#allocation6 + $0x388] sm:$0xff]
        %v459 = vld [vmem:[#allocation6 + $0x390] sm:$0xff]
        %v460 = vld [vmem:[#allocation6 + $0x398] sm:$0xff]
        %v461 = vld [vmem:[#allocation6 + $0x3a0] sm:$0xff]
        %v462 = vld [vmem:[#allocation6 + $0x3a8] sm:$0xff]
        %v463 = vld [vmem:[#allocation6 + $0x3b0] sm:$0xff]
        %v464 = vld [vmem:[#allocation6 + $0x3b8] sm:$0xff]
        %v465 = vld [vmem:[#allocation6 + $0x3c0] sm:$0xff]
        %v466 = vld [vmem:[#allocation6 + $0x3c8] sm:$0xff]
        %v467 = vld [vmem:[#allocation6 + $0x3d0] sm:$0xff]
        %v468 = vld [vmem:[#allocation6 + $0x3d8] sm:$0xff]
        %v469 = vld [vmem:[#allocation6 + $0x3e0] sm:$0xff]
        %v470 = vld [vmem:[#allocation6 + $0x3e8] sm:$0xff]
        %v471 = vld [vmem:[#allocation6 + $0x3f0] sm:$0xff]
        %v472 = vld [vmem:[#allocation6 + $0x3f8] sm:$0xff]
        %v473 = vld [vmem:[#allocation6 + $0x400] sm:$0xff]
        %v474 = vld [vmem:[#allocation6 + $0x408] sm:$0xff]
        %v475 = vld [vmem:[#allocation6 + $0x410] sm:$0xff]
        %v476 = vld [vmem:[#allocation6 + $0x418] sm:$0xff]
        %v477 = vld [vmem:[#allocation6 + $0x420] sm:$0xff]
        %v478 = vld [vmem:[#allocation6 + $0x428] sm:$0xff]
        %v479 = vld [vmem:[#allocation6 + $0x430] sm:$0xff]
        %v480 = vld [vmem:[#allocation6 + $0x438] sm:$0xff]
        %v481 = vld [vmem:[#allocation6 + $0x440] sm:$0xff]
        %v482 = vld [vmem:[#allocation6 + $0x448] sm:$0xff]
        %v483 = vld [vmem:[#allocation6 + $0x450] sm:$0xff]
        %v484 = vld [vmem:[#allocation6 + $0x458] sm:$0xff]
        %v485 = vld [vmem:[#allocation6 + $0x460] sm:$0xff]
        %v486 = vld [vmem:[#allocation6 + $0x468] sm:$0xff]
        %v487 = vld [vmem:[#allocation6 + $0x470] sm:$0xff]
        %v488 = vld [vmem:[#allocation6 + $0x478] sm:$0xff]
        %v489 = vld [vmem:[#allocation6 + $0x480] sm:$0xff]
        %v490 = vld [vmem:[#allocation6 + $0x488] sm:$0xff]
        %v491 = vld [vmem:[#allocation6 + $0x490] sm:$0xff]
        %v492 = vld [vmem:[#allocation6 + $0x498] sm:$0xff]
        %v493 = vld [vmem:[#allocation6 + $0x4a0] sm:$0xff]
        %v494 = vld [vmem:[#allocation6 + $0x4a8] sm:$0xff]
        %v495 = vld [vmem:[#allocation6 + $0x4b0] sm:$0xff]
        %v496 = vld [vmem:[#allocation6 + $0x4b8] sm:$0xff]
        %v497 = vld [vmem:[#allocation6 + $0x4c0] sm:$0xff]
        %v498 = vld [vmem:[#allocation6 + $0x4c8] sm:$0xff]
        %v499 = vld [vmem:[#allocation6 + $0x4d0] sm:$0xff]
        %v500 = vld [vmem:[#allocation6 + $0x4d8] sm:$0xff]
        %v501 = vld [vmem:[#allocation6 + $0x4e0] sm:$0xff]
        %v502 = vld [vmem:[#allocation6 + $0x4e8] sm:$0xff]
        %v503 = vld [vmem:[#allocation6 + $0x4f0] sm:$0xff]
        %v504 = vld [vmem:[#allocation6 + $0x4f8] sm:$0xff]
        %v505 = vld [vmem:[#allocation6 + $0x500] sm:$0xff]
        %v506 = vld [vmem:[#allocation6 + $0x508] sm:$0xff]
        %v507 = vld [vmem:[#allocation6 + $0x510] sm:$0xff]
        %v508 = vld [vmem:[#allocation6 + $0x518] sm:$0xff]
        %v509 = vld [vmem:[#allocation6 + $0x520] sm:$0xff]
        %v510 = vld [vmem:[#allocation6 + $0x528] sm:$0xff]
        %v511 = vld [vmem:[#allocation6 + $0x530] sm:$0xff]
        %v512 = vld [vmem:[#allocation6 + $0x538] sm:$0xff]
        %v513 = vld [vmem:[#allocation6 + $0x540] sm:$0xff]
        %v514 = vld [vmem:[#allocation6 + $0x548] sm:$0xff]
        %v515 = vld [vmem:[#allocation6 + $0x550] sm:$0xff]
        %v516 = vld [vmem:[#allocation6 + $0x558] sm:$0xff]
        %v517 = vld [vmem:[#allocation6 + $0x560] sm:$0xff]
        %v518 = vld [vmem:[#allocation6 + $0x568] sm:$0xff]
        %v519 = vld [vmem:[#allocation6 + $0x570] sm:$0xff]
        %v520 = vld [vmem:[#allocation6 + $0x578] sm:$0xff]
        %v521 = vld [vmem:[#allocation6 + $0x580] sm:$0xff]
        %v522 = vld [vmem:[#allocation6 + $0x588] sm:$0xff]
        %v523 = vld [vmem:[#allocation6 + $0x590] sm:$0xff]
        %v524 = vld [vmem:[#allocation6 + $0x598] sm:$0xff]
        %v525 = vld [vmem:[#allocation6 + $0x5a0] sm:$0xff]
        %v526 = vld [vmem:[#allocation6 + $0x5a8] sm:$0xff]
        %v527 = vld [vmem:[#allocation6 + $0x5b0] sm:$0xff]
        %v528 = vld [vmem:[#allocation6 + $0x5b8] sm:$0xff]
        %v529 = vld [vmem:[#allocation6 + $0x5c0] sm:$0xff]
        %v530 = vld [vmem:[#allocation6 + $0x5c8] sm:$0xff]
        %v531 = vld [vmem:[#allocation6 + $0x5d0] sm:$0xff]
        %v532 = vld [vmem:[#allocation6 + $0x5d8] sm:$0xff]
        %v533 = vld [vmem:[#allocation6 + $0x5e0] sm:$0xff]
        %v534 = vld [vmem:[#allocation6 + $0x5e8] sm:$0xff]
        %v535 = vld [vmem:[#allocation6 + $0x5f0] sm:$0xff]
        %v536 = vld [vmem:[#allocation6 + $0x5f8] sm:$0xff]
        %v537 = vld [vmem:[#allocation6 + $0x600] sm:$0xff]
        %v538 = vld [vmem:[#allocation6 + $0x608] sm:$0xff]
        %v539 = vld [vmem:[#allocation6 + $0x610] sm:$0xff]
        %v540 = vld [vmem:[#allocation6 + $0x618] sm:$0xff]
        %v541 = vld [vmem:[#allocation6 + $0x620] sm:$0xff]
        %v542 = vld [vmem:[#allocation6 + $0x628] sm:$0xff]
        %v543 = vld [vmem:[#allocation6 + $0x630] sm:$0xff]
        %v544 = vld [vmem:[#allocation6 + $0x638] sm:$0xff]
        %v545 = vld [vmem:[#allocation6 + $0x640] sm:$0xff]
        %v546 = vld [vmem:[#allocation6 + $0x648] sm:$0xff]
        %v547 = vld [vmem:[#allocation6 + $0x650] sm:$0xff]
        %v548 = vld [vmem:[#allocation6 + $0x658] sm:$0xff]
        %v549 = vld [vmem:[#allocation6 + $0x660] sm:$0xff]
        %v550 = vld [vmem:[#allocation6 + $0x668] sm:$0xff]
        %v551 = vld [vmem:[#allocation6 + $0x670] sm:$0xff]
        %v552 = vld [vmem:[#allocation6 + $0x678] sm:$0xff]
        %v553 = vld [vmem:[#allocation6 + $0x680] sm:$0xff]
        %v554 = vld [vmem:[#allocation6 + $0x688] sm:$0xff]
        %v555 = vld [vmem:[#allocation6 + $0x690] sm:$0xff]
        %v556 = vld [vmem:[#allocation6 + $0x698] sm:$0xff]
        %v557 = vld [vmem:[#allocation6 + $0x6a0] sm:$0xff]
        %v558 = vld [vmem:[#allocation6 + $0x6a8] sm:$0xff]
        %v559 = vld [vmem:[#allocation6 + $0x6b0] sm:$0xff]
        %v560 = vld [vmem:[#allocation6 + $0x6b8] sm:$0xff]
        %v561 = vld [vmem:[#allocation6 + $0x6c0] sm:$0xff]
        %v562 = vld [vmem:[#allocation6 + $0x6c8] sm:$0xff]
        %v563 = vld [vmem:[#allocation6 + $0x6d0] sm:$0xff]
        %v564 = vld [vmem:[#allocation6 + $0x6d8] sm:$0xff]
        %v565 = vld [vmem:[#allocation6 + $0x6e0] sm:$0xff]
        %v566 = vld [vmem:[#allocation6 + $0x6e8] sm:$0xff]
        %v567 = vld [vmem:[#allocation6 + $0x6f0] sm:$0xff]
        %v568 = vld [vmem:[#allocation6 + $0x6f8] sm:$0xff]
        %v569 = vld [vmem:[#allocation6 + $0x700] sm:$0xff]
        %v570 = vld [vmem:[#allocation6 + $0x708] sm:$0xff]
        %v571 = vld [vmem:[#allocation6 + $0x710] sm:$0xff]
        %v572 = vld [vmem:[#allocation6 + $0x718] sm:$0xff]
        %v573 = vld [vmem:[#allocation6 + $0x720] sm:$0xff]
        %v574 = vld [vmem:[#allocation6 + $0x728] sm:$0xff]
        %v575 = vld [vmem:[#allocation6 + $0x730] sm:$0xff]
        %v576 = vld [vmem:[#allocation6 + $0x738] sm:$0xff]
        %v577 = vld [vmem:[#allocation6 + $0x740] sm:$0xff]
        %v578 = vld [vmem:[#allocation6 + $0x748] sm:$0xff]
        %v579 = vld [vmem:[#allocation6 + $0x750] sm:$0xff]
        %v580 = vld [vmem:[#allocation6 + $0x758] sm:$0xff]
        %v581 = vld [vmem:[#allocation6 + $0x760] sm:$0xff]
        %v582 = vld [vmem:[#allocation6 + $0x768] sm:$0xff]
        %v583 = vld [vmem:[#allocation6 + $0x770] sm:$0xff]
        %v584 = vld [vmem:[#allocation6 + $0x778] sm:$0xff]
        %v585 = vld [vmem:[#allocation6 + $0x780] sm:$0xff]
        %v586 = vld [vmem:[#allocation6 + $0x788] sm:$0xff]
        %v587 = vld [vmem:[#allocation6 + $0x790] sm:$0xff]
        %v588 = vld [vmem:[#allocation6 + $0x798] sm:$0xff]
        %v589 = vld [vmem:[#allocation6 + $0x7a0] sm:$0xff]
        %v590 = vld [vmem:[#allocation6 + $0x7a8] sm:$0xff]
        %v591 = vld [vmem:[#allocation6 + $0x7b0] sm:$0xff]
        %v592 = vld [vmem:[#allocation6 + $0x7b8] sm:$0xff]
        %v593 = vld [vmem:[#allocation6 + $0x7c0] sm:$0xff]
        %v594 = vld [vmem:[#allocation6 + $0x7c8] sm:$0xff]
        %v595 = vld [vmem:[#allocation6 + $0x7d0] sm:$0xff]
        %v596 = vld [vmem:[#allocation6 + $0x7d8] sm:$0xff]
        %v597 = vld [vmem:[#allocation6 + $0x7e0] sm:$0xff]
        %v598 = vld [vmem:[#allocation6 + $0x7e8] sm:$0xff]
        %v599 = vld [vmem:[#allocation6 + $0x7f0] sm:$0xff]
        %v600 = vld [vmem:[#allocation6 + $0x7f8] sm:$0xff]
        %v601 = vld [vmem:[#allocation6 + $0x800] sm:$0xff]
        %v602 = vld [vmem:[#allocation6 + $0x808] sm:$0xff]
        %v603 = vld [vmem:[#allocation6 + $0x810] sm:$0xff]
        %v604 = vld [vmem:[#allocation6 + $0x818] sm:$0xff]
        %v605 = vld [vmem:[#allocation6 + $0x820] sm:$0xff]
        %v606 = vld [vmem:[#allocation6 + $0x828] sm:$0xff]
        %v607 = vld [vmem:[#allocation6 + $0x830] sm:$0xff]
        %v608 = vld [vmem:[#allocation6 + $0x838] sm:$0xff]
        %v609 = vld [vmem:[#allocation6 + $0x840] sm:$0xff]
        %v610 = vld [vmem:[#allocation6 + $0x848] sm:$0xff]
        %v611 = vld [vmem:[#allocation6 + $0x850] sm:$0xff]
        %v612 = vld [vmem:[#allocation6 + $0x858] sm:$0xff]
        %v613 = vld [vmem:[#allocation6 + $0x860] sm:$0xff]
        %v614 = vld [vmem:[#allocation6 + $0x868] sm:$0xff]
        %v615 = vld [vmem:[#allocation6 + $0x870] sm:$0xff]
        %v616 = vld [vmem:[#allocation6 + $0x878] sm:$0xff]
        %v617 = vld [vmem:[#allocation6 + $0x880] sm:$0xff]
        %v618 = vld [vmem:[#allocation6 + $0x888] sm:$0xff]
        %v619 = vld [vmem:[#allocation6 + $0x890] sm:$0xff]
        %v620 = vld [vmem:[#allocation6 + $0x898] sm:$0xff]
        %v621 = vld [vmem:[#allocation6 + $0x8a0] sm:$0xff]
        %v622 = vld [vmem:[#allocation6 + $0x8a8] sm:$0xff]
        %v623 = vld [vmem:[#allocation6 + $0x8b0] sm:$0xff]
        %v624 = vld [vmem:[#allocation6 + $0x8b8] sm:$0xff]
        %v625 = vld [vmem:[#allocation6 + $0x8c0] sm:$0xff]
        %v626 = vld [vmem:[#allocation6 + $0x8c8] sm:$0xff]
        %v627 = vld [vmem:[#allocation6 + $0x8d0] sm:$0xff]
        %v628 = vld [vmem:[#allocation6 + $0x8d8] sm:$0xff]
        %v629 = vld [vmem:[#allocation6 + $0x8e0] sm:$0xff]
        %v630 = vld [vmem:[#allocation6 + $0x8e8] sm:$0xff]
        %v631 = vld [vmem:[#allocation6 + $0x8f0] sm:$0xff]
        %v632 = vld [vmem:[#allocation6 + $0x8f8] sm:$0xff]
        %v633 = vld [vmem:[#allocation8] sm:$0xff]
        %v634 = vld [vmem:[#allocation8 + $0x8] sm:$0xf]
        %v637 = vlaneseq
        %v638 = vshrl.u32 %v637, 7
        %v639 = vsub.s32 0, %v638
        %v640 = vrot.slane %v633, %v639
        %v641 = vlaneseq
        %v642 = vshrl.u32 %v641, 7
        %v643 = vsub.s32 1, %v642
        %v644 = vrot.slane %v633, %v643
        %v645 = vlaneseq
        %v646 = vshrl.u32 %v645, 7
        %v647 = vsub.s32 2, %v646
        %v648 = vrot.slane %v633, %v647
        %v649 = vlaneseq
        %v650 = vshrl.u32 %v649, 7
        %v651 = vsub.s32 3, %v650
        %v652 = vrot.slane %v633, %v651
        %v653 = vlaneseq
        %v654 = vshrl.u32 %v653, 7
        %v655 = vsub.s32 4, %v654
        %v656 = vrot.slane %v633, %v655
        %v657 = vlaneseq
        %v658 = vshrl.u32 %v657, 7
        %v659 = vsub.s32 5, %v658
        %v660 = vrot.slane %v633, %v659
        %v661 = vlaneseq
        %v662 = vshrl.u32 %v661, 7
        %v663 = vsub.s32 6, %v662
        %v664 = vrot.slane %v633, %v663
        %v665 = vlaneseq
        %v666 = vshrl.u32 %v665, 7
        %v667 = vsub.s32 7, %v666
        %v668 = vrot.slane %v633, %v667
        %v669 = vlaneseq
        %v670 = vshrl.u32 %v669, 7
        %v671 = vsub.s32 0, %v670
        %v672 = vrot.slane %v634, %v671
        %v673 = vlaneseq
        %v674 = vshrl.u32 %v673, 7
        %v675 = vsub.s32 1, %v674
        %v676 = vrot.slane %v634, %v675
        %v677 = vlaneseq
        %v678 = vshrl.u32 %v677, 7
        %v679 = vsub.s32 2, %v678
        %v680 = vrot.slane %v634, %v679
        %v681 = vlaneseq
        %v682 = vshrl.u32 %v681, 7
        %v683 = vsub.s32 3, %v682
        %v684 = vrot.slane %v634, %v683
        %v699 = vunpack.c.l.b16 %v343
        %v700 = vunpack.c.h.b16 %v343
        %v701 = vunpack.c.l.b16 %v344
        %v702 = vpack.c.b16 %v699, %v699
        %v703 = vpack.c.b16 %v700, %v700
        %v704 = vpack.c.b16 %v701, %v701
        %v996 = vunpack.c.l.b16 %v345
        %v997 = vunpack.c.h.b16 %v345
        %v998 = vunpack.c.l.b16 %v346
        %v999 = vunpack.c.h.b16 %v346
        %v1000 = vunpack.c.l.b16 %v347
        %v1001 = vunpack.c.h.b16 %v347
        %v1002 = vunpack.c.l.b16 %v348
        %v1003 = vunpack.c.h.b16 %v348
        %v1004 = vunpack.c.l.b16 %v349
        %v1005 = vunpack.c.h.b16 %v349
        %v1006 = vunpack.c.l.b16 %v350
        %v1007 = vunpack.c.h.b16 %v350
        %v1008 = vunpack.c.l.b16 %v351
        %v1009 = vunpack.c.h.b16 %v351
        %v1010 = vunpack.c.l.b16 %v352
        %v1011 = vunpack.c.h.b16 %v352
        %v1012 = vunpack.c.l.b16 %v353
        %v1013 = vunpack.c.h.b16 %v353
        %v1014 = vunpack.c.l.b16 %v354
        %v1015 = vunpack.c.h.b16 %v354
        %v1016 = vunpack.c.l.b16 %v355
        %v1017 = vunpack.c.h.b16 %v355
        %v1018 = vunpack.c.l.b16 %v356
        %v1019 = vunpack.c.h.b16 %v356
        %v1020 = vunpack.c.l.b16 %v357
        %v1021 = vunpack.c.h.b16 %v357
        %v1022 = vunpack.c.l.b16 %v358
        %v1023 = vunpack.c.h.b16 %v358
        %v1024 = vunpack.c.l.b16 %v359
        %v1025 = vunpack.c.h.b16 %v359
        %v1026 = vunpack.c.l.b16 %v360
        %v1027 = vunpack.c.h.b16 %v360
        %v1028 = vunpack.c.l.b16 %v361
        %v1029 = vunpack.c.h.b16 %v361
        %v1030 = vunpack.c.l.b16 %v362
        %v1031 = vunpack.c.h.b16 %v362
        %v1032 = vunpack.c.l.b16 %v363
        %v1033 = vunpack.c.h.b16 %v363
        %v1034 = vunpack.c.l.b16 %v364
        %v1035 = vunpack.c.h.b16 %v364
        %v1036 = vunpack.c.l.b16 %v365
        %v1037 = vunpack.c.h.b16 %v365
        %v1038 = vunpack.c.l.b16 %v366
        %v1039 = vunpack.c.h.b16 %v366
        %v1040 = vunpack.c.l.b16 %v367
        %v1041 = vunpack.c.h.b16 %v367
        %v1042 = vunpack.c.l.b16 %v368
        %v1043 = vunpack.c.h.b16 %v368
        %v1044 = vunpack.c.l.b16 %v369
        %v1045 = vunpack.c.h.b16 %v369
        %v1046 = vunpack.c.l.b16 %v370
        %v1047 = vunpack.c.h.b16 %v370
        %v1048 = vunpack.c.l.b16 %v371
        %v1049 = vunpack.c.h.b16 %v371
        %v1050 = vunpack.c.l.b16 %v372
        %v1051 = vunpack.c.h.b16 %v372
        %v1052 = vunpack.c.l.b16 %v373
        %v1053 = vunpack.c.h.b16 %v373
        %v1054 = vunpack.c.l.b16 %v374
        %v1055 = vunpack.c.h.b16 %v374
        %v1056 = vunpack.c.l.b16 %v375
        %v1057 = vunpack.c.h.b16 %v375
        %v1058 = vunpack.c.l.b16 %v376
        %v1059 = vunpack.c.h.b16 %v376
        %v1060 = vunpack.c.l.b16 %v377
        %v1061 = vunpack.c.h.b16 %v377
        %v1062 = vunpack.c.l.b16 %v378
        %v1063 = vunpack.c.h.b16 %v378
        %v1064 = vunpack.c.l.b16 %v379
        %v1065 = vunpack.c.h.b16 %v379
        %v1066 = vunpack.c.l.b16 %v380
        %v1067 = vunpack.c.h.b16 %v380
        %v1068 = vunpack.c.l.b16 %v381
        %v1069 = vunpack.c.h.b16 %v381
        %v1070 = vunpack.c.l.b16 %v382
        %v1071 = vunpack.c.h.b16 %v382
        %v1072 = vunpack.c.l.b16 %v383
        %v1073 = vunpack.c.h.b16 %v383
        %v1074 = vunpack.c.l.b16 %v384
        %v1075 = vunpack.c.h.b16 %v384
        %v1076 = vunpack.c.l.b16 %v385
        %v1077 = vunpack.c.h.b16 %v385
        %v1078 = vunpack.c.l.b16 %v386
        %v1079 = vunpack.c.h.b16 %v386
        %v1080 = vunpack.c.l.b16 %v387
        %v1081 = vunpack.c.h.b16 %v387
        %v1082 = vunpack.c.l.b16 %v388
        %v1083 = vunpack.c.h.b16 %v388
        %v1084 = vunpack.c.l.b16 %v389
        %v1085 = vunpack.c.h.b16 %v389
        %v1086 = vunpack.c.l.b16 %v390
        %v1087 = vunpack.c.h.b16 %v390
        %v1088 = vunpack.c.l.b16 %v391
        %v1089 = vunpack.c.h.b16 %v391
        %v1090 = vunpack.c.l.b16 %v392
        %v1091 = vunpack.c.h.b16 %v392
        %v1092 = vunpack.c.l.b16 %v393
        %v1093 = vunpack.c.h.b16 %v393
        %v1094 = vunpack.c.l.b16 %v394
        %v1095 = vunpack.c.h.b16 %v394
        %v1096 = vunpack.c.l.b16 %v395
        %v1097 = vunpack.c.h.b16 %v395
        %v1098 = vunpack.c.l.b16 %v396
        %v1099 = vunpack.c.h.b16 %v396
        %v1100 = vunpack.c.l.b16 %v397
        %v1101 = vunpack.c.h.b16 %v397
        %v1102 = vunpack.c.l.b16 %v398
        %v1103 = vunpack.c.h.b16 %v398
        %v1104 = vunpack.c.l.b16 %v399
        %v1105 = vunpack.c.h.b16 %v399
        %v1106 = vunpack.c.l.b16 %v400
        %v1107 = vunpack.c.h.b16 %v400
        %v1108 = vunpack.c.l.b16 %v401
        %v1109 = vunpack.c.h.b16 %v401
        %v1110 = vunpack.c.l.b16 %v402
        %v1111 = vunpack.c.h.b16 %v402
        %v1112 = vunpack.c.l.b16 %v403
        %v1113 = vunpack.c.h.b16 %v403
        %v1114 = vunpack.c.l.b16 %v404
        %v1115 = vunpack.c.h.b16 %v404
        %v1116 = vunpack.c.l.b16 %v405
        %v1117 = vunpack.c.h.b16 %v405
        %v1118 = vunpack.c.l.b16 %v406
        %v1119 = vunpack.c.h.b16 %v406
        %v1120 = vunpack.c.l.b16 %v407
        %v1121 = vunpack.c.h.b16 %v407
        %v1122 = vunpack.c.l.b16 %v408
        %v1123 = vunpack.c.h.b16 %v408
        %v1124 = vunpack.c.l.b16 %v409
        %v1125 = vunpack.c.h.b16 %v409
        %v1126 = vunpack.c.l.b16 %v410
        %v1127 = vunpack.c.h.b16 %v410
        %v1128 = vunpack.c.l.b16 %v411
        %v1129 = vunpack.c.h.b16 %v411
        %v1130 = vunpack.c.l.b16 %v412
        %v1131 = vunpack.c.h.b16 %v412
        %v1132 = vunpack.c.l.b16 %v413
        %v1133 = vunpack.c.h.b16 %v413
        %v1134 = vunpack.c.l.b16 %v414
        %v1135 = vunpack.c.h.b16 %v414
        %v1136 = vunpack.c.l.b16 %v415
        %v1137 = vunpack.c.h.b16 %v415
        %v1138 = vunpack.c.l.b16 %v416
        %v1139 = vunpack.c.h.b16 %v416
        %v1140 = vunpack.c.l.b16 %v417
        %v1141 = vunpack.c.h.b16 %v417
        %v1142 = vunpack.c.l.b16 %v418
        %v1143 = vunpack.c.h.b16 %v418
        %v1144 = vunpack.c.l.b16 %v419
        %v1145 = vunpack.c.h.b16 %v419
        %v1146 = vunpack.c.l.b16 %v420
        %v1147 = vunpack.c.h.b16 %v420
        %v1148 = vunpack.c.l.b16 %v421
        %v1149 = vunpack.c.h.b16 %v421
        %v1150 = vunpack.c.l.b16 %v422
        %v1151 = vunpack.c.h.b16 %v422
        %v1152 = vunpack.c.l.b16 %v423
        %v1153 = vunpack.c.h.b16 %v423
        %v1154 = vunpack.c.l.b16 %v424
        %v1155 = vunpack.c.h.b16 %v424
        %v1156 = vunpack.c.l.b16 %v425
        %v1157 = vunpack.c.h.b16 %v425
        %v1158 = vunpack.c.l.b16 %v426
        %v1159 = vunpack.c.h.b16 %v426
        %v1160 = vunpack.c.l.b16 %v427
        %v1161 = vunpack.c.h.b16 %v427
        %v1162 = vunpack.c.l.b16 %v428
        %v1163 = vunpack.c.h.b16 %v428
        %v1164 = vunpack.c.l.b16 %v429
        %v1165 = vunpack.c.h.b16 %v429
        %v1166 = vunpack.c.l.b16 %v430
        %v1167 = vunpack.c.h.b16 %v430
        %v1168 = vunpack.c.l.b16 %v431
        %v1169 = vunpack.c.h.b16 %v431
        %v1170 = vunpack.c.l.b16 %v432
        %v1171 = vunpack.c.h.b16 %v432
        %v1172 = vunpack.c.l.b16 %v433
        %v1173 = vunpack.c.h.b16 %v433
        %v1174 = vunpack.c.l.b16 %v434
        %v1175 = vunpack.c.h.b16 %v434
        %v1176 = vunpack.c.l.b16 %v435
        %v1177 = vunpack.c.h.b16 %v435
        %v1178 = vunpack.c.l.b16 %v436
        %v1179 = vunpack.c.h.b16 %v436
        %v1180 = vunpack.c.l.b16 %v437
        %v1181 = vunpack.c.h.b16 %v437
        %v1182 = vunpack.c.l.b16 %v438
        %v1183 = vunpack.c.h.b16 %v438
        %v1184 = vunpack.c.l.b16 %v439
        %v1185 = vunpack.c.h.b16 %v439
        %v1186 = vunpack.c.l.b16 %v440
        %v1187 = vunpack.c.h.b16 %v440
        %v1188 = vunpack.c.l.b16 %v441
        %v1189 = vunpack.c.h.b16 %v441
        %v1190 = vunpack.c.l.b16 %v442
        %v1191 = vunpack.c.h.b16 %v442
        %v1192 = vunpack.c.l.b16 %v443
        %v1193 = vunpack.c.h.b16 %v443
        %v1194 = vunpack.c.l.b16 %v444
        %v1195 = vunpack.c.h.b16 %v444
        %v1196 = vunpack.c.l.b16 %v445
        %v1197 = vunpack.c.h.b16 %v445
        %v1198 = vunpack.c.l.b16 %v446
        %v1199 = vunpack.c.h.b16 %v446
        %v1200 = vunpack.c.l.b16 %v447
        %v1201 = vunpack.c.h.b16 %v447
        %v1202 = vunpack.c.l.b16 %v448
        %v1203 = vunpack.c.h.b16 %v448
        %v1204 = vunpack.c.l.b16 %v449
        %v1205 = vunpack.c.h.b16 %v449
        %v1206 = vunpack.c.l.b16 %v450
        %v1207 = vunpack.c.h.b16 %v450
        %v1208 = vunpack.c.l.b16 %v451
        %v1209 = vunpack.c.h.b16 %v451
        %v1210 = vunpack.c.l.b16 %v452
        %v1211 = vunpack.c.h.b16 %v452
        %v1212 = vunpack.c.l.b16 %v453
        %v1213 = vunpack.c.h.b16 %v453
        %v1214 = vunpack.c.l.b16 %v454
        %v1215 = vunpack.c.h.b16 %v454
        %v1216 = vunpack.c.l.b16 %v455
        %v1217 = vunpack.c.h.b16 %v455
        %v1218 = vunpack.c.l.b16 %v456
        %v1219 = vunpack.c.h.b16 %v456
        %v1220 = vunpack.c.l.b16 %v457
        %v1221 = vunpack.c.h.b16 %v457
        %v1222 = vunpack.c.l.b16 %v458
        %v1223 = vunpack.c.h.b16 %v458
        %v1224 = vunpack.c.l.b16 %v459
        %v1225 = vunpack.c.h.b16 %v459
        %v1226 = vunpack.c.l.b16 %v460
        %v1227 = vunpack.c.h.b16 %v460
        %v1228 = vunpack.c.l.b16 %v461
        %v1229 = vunpack.c.h.b16 %v461
        %v1230 = vunpack.c.l.b16 %v462
        %v1231 = vunpack.c.h.b16 %v462
        %v1232 = vunpack.c.l.b16 %v463
        %v1233 = vunpack.c.h.b16 %v463
        %v1234 = vunpack.c.l.b16 %v464
        %v1235 = vunpack.c.h.b16 %v464
        %v1236 = vunpack.c.l.b16 %v465
        %v1237 = vunpack.c.h.b16 %v465
        %v1238 = vunpack.c.l.b16 %v466
        %v1239 = vunpack.c.h.b16 %v466
        %v1240 = vunpack.c.l.b16 %v467
        %v1241 = vunpack.c.h.b16 %v467
        %v1242 = vunpack.c.l.b16 %v468
        %v1243 = vunpack.c.h.b16 %v468
        %v1244 = vunpack.c.l.b16 %v469
        %v1245 = vunpack.c.h.b16 %v469
        %v1246 = vunpack.c.l.b16 %v470
        %v1247 = vunpack.c.h.b16 %v470
        %v1248 = vunpack.c.l.b16 %v471
        %v1249 = vunpack.c.h.b16 %v471
        %v1250 = vunpack.c.l.b16 %v472
        %v1251 = vunpack.c.h.b16 %v472
        %v1252 = vunpack.c.l.b16 %v473
        %v1253 = vunpack.c.h.b16 %v473
        %v1254 = vunpack.c.l.b16 %v474
        %v1255 = vunpack.c.h.b16 %v474
        %v1256 = vunpack.c.l.b16 %v475
        %v1257 = vunpack.c.h.b16 %v475
        %v1258 = vunpack.c.l.b16 %v476
        %v1259 = vunpack.c.h.b16 %v476
        %v1260 = vunpack.c.l.b16 %v477
        %v1261 = vunpack.c.h.b16 %v477
        %v1262 = vunpack.c.l.b16 %v478
        %v1263 = vunpack.c.h.b16 %v478
        %v1264 = vunpack.c.l.b16 %v479
        %v1265 = vunpack.c.h.b16 %v479
        %v1266 = vunpack.c.l.b16 %v480
        %v1267 = vunpack.c.h.b16 %v480
        %v1268 = vunpack.c.l.b16 %v481
        %v1269 = vunpack.c.h.b16 %v481
        %v1270 = vunpack.c.l.b16 %v482
        %v1271 = vunpack.c.h.b16 %v482
        %v1272 = vunpack.c.l.b16 %v483
        %v1273 = vunpack.c.h.b16 %v483
        %v1274 = vunpack.c.l.b16 %v484
        %v1275 = vunpack.c.h.b16 %v484
        %v1276 = vunpack.c.l.b16 %v485
        %v1277 = vunpack.c.h.b16 %v485
        %v1278 = vunpack.c.l.b16 %v486
        %v1279 = vunpack.c.h.b16 %v486
        %v1280 = vunpack.c.l.b16 %v487
        %v1281 = vunpack.c.h.b16 %v487
        %v1282 = vunpack.c.l.b16 %v488
        %v1283 = vunpack.c.h.b16 %v488
        %v1284 = vunpack.c.l.b16 %v489
        %v1285 = vunpack.c.h.b16 %v489
        %v1286 = vunpack.c.l.b16 %v490
        %v1287 = vunpack.c.h.b16 %v490
        %v1288 = vunpack.c.l.b16 %v491
        %v1289 = vunpack.c.h.b16 %v491
        %v1290 = vunpack.c.l.b16 %v492
        %v1291 = vunpack.c.h.b16 %v492
        %v1292 = vunpack.c.l.b16 %v493
        %v1293 = vunpack.c.h.b16 %v493
        %v1294 = vunpack.c.l.b16 %v494
        %v1295 = vunpack.c.h.b16 %v494
        %v1296 = vunpack.c.l.b16 %v495
        %v1297 = vunpack.c.h.b16 %v495
        %v1298 = vunpack.c.l.b16 %v496
        %v1299 = vunpack.c.h.b16 %v496
        %v1300 = vunpack.c.l.b16 %v497
        %v1301 = vunpack.c.h.b16 %v497
        %v1302 = vunpack.c.l.b16 %v498
        %v1303 = vunpack.c.h.b16 %v498
        %v1304 = vunpack.c.l.b16 %v499
        %v1305 = vunpack.c.h.b16 %v499
        %v1306 = vunpack.c.l.b16 %v500
        %v1307 = vunpack.c.h.b16 %v500
        %v1308 = vunpack.c.l.b16 %v501
        %v1309 = vunpack.c.h.b16 %v501
        %v1310 = vunpack.c.l.b16 %v502
        %v1311 = vunpack.c.h.b16 %v502
        %v1312 = vunpack.c.l.b16 %v503
        %v1313 = vunpack.c.h.b16 %v503
        %v1314 = vunpack.c.l.b16 %v504
        %v1315 = vunpack.c.h.b16 %v504
        %v1316 = vunpack.c.l.b16 %v505
        %v1317 = vunpack.c.h.b16 %v505
        %v1318 = vunpack.c.l.b16 %v506
        %v1319 = vunpack.c.h.b16 %v506
        %v1320 = vunpack.c.l.b16 %v507
        %v1321 = vunpack.c.h.b16 %v507
        %v1322 = vunpack.c.l.b16 %v508
        %v1323 = vunpack.c.h.b16 %v508
        %v1324 = vunpack.c.l.b16 %v509
        %v1325 = vunpack.c.h.b16 %v509
        %v1326 = vunpack.c.l.b16 %v510
        %v1327 = vunpack.c.h.b16 %v510
        %v1328 = vunpack.c.l.b16 %v511
        %v1329 = vunpack.c.h.b16 %v511
        %v1330 = vunpack.c.l.b16 %v512
        %v1331 = vunpack.c.h.b16 %v512
        %v1332 = vunpack.c.l.b16 %v513
        %v1333 = vunpack.c.h.b16 %v513
        %v1334 = vunpack.c.l.b16 %v514
        %v1335 = vunpack.c.h.b16 %v514
        %v1336 = vunpack.c.l.b16 %v515
        %v1337 = vunpack.c.h.b16 %v515
        %v1338 = vunpack.c.l.b16 %v516
        %v1339 = vunpack.c.h.b16 %v516
        %v1340 = vunpack.c.l.b16 %v517
        %v1341 = vunpack.c.h.b16 %v517
        %v1342 = vunpack.c.l.b16 %v518
        %v1343 = vunpack.c.h.b16 %v518
        %v1344 = vunpack.c.l.b16 %v519
        %v1345 = vunpack.c.h.b16 %v519
        %v1346 = vunpack.c.l.b16 %v520
        %v1347 = vunpack.c.h.b16 %v520
        %v1348 = vunpack.c.l.b16 %v521
        %v1349 = vunpack.c.h.b16 %v521
        %v1350 = vunpack.c.l.b16 %v522
        %v1351 = vunpack.c.h.b16 %v522
        %v1352 = vunpack.c.l.b16 %v523
        %v1353 = vunpack.c.h.b16 %v523
        %v1354 = vunpack.c.l.b16 %v524
        %v1355 = vunpack.c.h.b16 %v524
        %v1356 = vunpack.c.l.b16 %v525
        %v1357 = vunpack.c.h.b16 %v525
        %v1358 = vunpack.c.l.b16 %v526
        %v1359 = vunpack.c.h.b16 %v526
        %v1360 = vunpack.c.l.b16 %v527
        %v1361 = vunpack.c.h.b16 %v527
        %v1362 = vunpack.c.l.b16 %v528
        %v1363 = vunpack.c.h.b16 %v528
        %v1364 = vunpack.c.l.b16 %v529
        %v1365 = vunpack.c.h.b16 %v529
        %v1366 = vunpack.c.l.b16 %v530
        %v1367 = vunpack.c.h.b16 %v530
        %v1368 = vunpack.c.l.b16 %v531
        %v1369 = vunpack.c.h.b16 %v531
        %v1370 = vunpack.c.l.b16 %v532
        %v1371 = vunpack.c.h.b16 %v532
        %v1372 = vunpack.c.l.b16 %v533
        %v1373 = vunpack.c.h.b16 %v533
        %v1374 = vunpack.c.l.b16 %v534
        %v1375 = vunpack.c.h.b16 %v534
        %v1376 = vunpack.c.l.b16 %v535
        %v1377 = vunpack.c.h.b16 %v535
        %v1378 = vunpack.c.l.b16 %v536
        %v1379 = vunpack.c.h.b16 %v536
        %v1380 = vunpack.c.l.b16 %v537
        %v1381 = vunpack.c.h.b16 %v537
        %v1382 = vunpack.c.l.b16 %v538
        %v1383 = vunpack.c.h.b16 %v538
        %v1384 = vunpack.c.l.b16 %v539
        %v1385 = vunpack.c.h.b16 %v539
        %v1386 = vunpack.c.l.b16 %v540
        %v1387 = vunpack.c.h.b16 %v540
        %v1388 = vunpack.c.l.b16 %v541
        %v1389 = vunpack.c.h.b16 %v541
        %v1390 = vunpack.c.l.b16 %v542
        %v1391 = vunpack.c.h.b16 %v542
        %v1392 = vunpack.c.l.b16 %v543
        %v1393 = vunpack.c.h.b16 %v543
        %v1394 = vunpack.c.l.b16 %v544
        %v1395 = vunpack.c.h.b16 %v544
        %v1396 = vunpack.c.l.b16 %v545
        %v1397 = vunpack.c.h.b16 %v545
        %v1398 = vunpack.c.l.b16 %v546
        %v1399 = vunpack.c.h.b16 %v546
        %v1400 = vunpack.c.l.b16 %v547
        %v1401 = vunpack.c.h.b16 %v547
        %v1402 = vunpack.c.l.b16 %v548
        %v1403 = vunpack.c.h.b16 %v548
        %v1404 = vunpack.c.l.b16 %v549
        %v1405 = vunpack.c.h.b16 %v549
        %v1406 = vunpack.c.l.b16 %v550
        %v1407 = vunpack.c.h.b16 %v550
        %v1408 = vunpack.c.l.b16 %v551
        %v1409 = vunpack.c.h.b16 %v551
        %v1410 = vunpack.c.l.b16 %v552
        %v1411 = vunpack.c.h.b16 %v552
        %v1412 = vunpack.c.l.b16 %v553
        %v1413 = vunpack.c.h.b16 %v553
        %v1414 = vunpack.c.l.b16 %v554
        %v1415 = vunpack.c.h.b16 %v554
        %v1416 = vunpack.c.l.b16 %v555
        %v1417 = vunpack.c.h.b16 %v555
        %v1418 = vunpack.c.l.b16 %v556
        %v1419 = vunpack.c.h.b16 %v556
        %v1420 = vunpack.c.l.b16 %v557
        %v1421 = vunpack.c.h.b16 %v557
        %v1422 = vunpack.c.l.b16 %v558
        %v1423 = vunpack.c.h.b16 %v558
        %v1424 = vunpack.c.l.b16 %v559
        %v1425 = vunpack.c.h.b16 %v559
        %v1426 = vunpack.c.l.b16 %v560
        %v1427 = vunpack.c.h.b16 %v560
        %v1428 = vunpack.c.l.b16 %v561
        %v1429 = vunpack.c.h.b16 %v561
        %v1430 = vunpack.c.l.b16 %v562
        %v1431 = vunpack.c.h.b16 %v562
        %v1432 = vunpack.c.l.b16 %v563
        %v1433 = vunpack.c.h.b16 %v563
        %v1434 = vunpack.c.l.b16 %v564
        %v1435 = vunpack.c.h.b16 %v564
        %v1436 = vunpack.c.l.b16 %v565
        %v1437 = vunpack.c.h.b16 %v565
        %v1438 = vunpack.c.l.b16 %v566
        %v1439 = vunpack.c.h.b16 %v566
        %v1440 = vunpack.c.l.b16 %v567
        %v1441 = vunpack.c.h.b16 %v567
        %v1442 = vunpack.c.l.b16 %v568
        %v1443 = vunpack.c.h.b16 %v568
        %v1444 = vunpack.c.l.b16 %v569
        %v1445 = vunpack.c.h.b16 %v569
        %v1446 = vunpack.c.l.b16 %v570
        %v1447 = vunpack.c.h.b16 %v570
        %v1448 = vunpack.c.l.b16 %v571
        %v1449 = vunpack.c.h.b16 %v571
        %v1450 = vunpack.c.l.b16 %v572
        %v1451 = vunpack.c.h.b16 %v572
        %v1452 = vunpack.c.l.b16 %v573
        %v1453 = vunpack.c.h.b16 %v573
        %v1454 = vunpack.c.l.b16 %v574
        %v1455 = vunpack.c.h.b16 %v574
        %v1456 = vunpack.c.l.b16 %v575
        %v1457 = vunpack.c.h.b16 %v575
        %v1458 = vunpack.c.l.b16 %v576
        %v1459 = vunpack.c.h.b16 %v576
        %v1460 = vunpack.c.l.b16 %v577
        %v1461 = vunpack.c.h.b16 %v577
        %v1462 = vunpack.c.l.b16 %v578
        %v1463 = vunpack.c.h.b16 %v578
        %v1464 = vunpack.c.l.b16 %v579
        %v1465 = vunpack.c.h.b16 %v579
        %v1466 = vunpack.c.l.b16 %v580
        %v1467 = vunpack.c.h.b16 %v580
        %v1468 = vunpack.c.l.b16 %v581
        %v1469 = vunpack.c.h.b16 %v581
        %v1470 = vunpack.c.l.b16 %v582
        %v1471 = vunpack.c.h.b16 %v582
        %v1472 = vunpack.c.l.b16 %v583
        %v1473 = vunpack.c.h.b16 %v583
        %v1474 = vunpack.c.l.b16 %v584
        %v1475 = vunpack.c.h.b16 %v584
        %v1476 = vunpack.c.l.b16 %v585
        %v1477 = vunpack.c.h.b16 %v585
        %v1478 = vunpack.c.l.b16 %v586
        %v1479 = vunpack.c.h.b16 %v586
        %v1480 = vunpack.c.l.b16 %v587
        %v1481 = vunpack.c.h.b16 %v587
        %v1482 = vunpack.c.l.b16 %v588
        %v1483 = vunpack.c.h.b16 %v588
        %v1484 = vunpack.c.l.b16 %v589
        %v1485 = vunpack.c.h.b16 %v589
        %v1486 = vunpack.c.l.b16 %v590
        %v1487 = vunpack.c.h.b16 %v590
        %v1488 = vunpack.c.l.b16 %v591
        %v1489 = vunpack.c.h.b16 %v591
        %v1490 = vunpack.c.l.b16 %v592
        %v1491 = vunpack.c.h.b16 %v592
        %v1492 = vunpack.c.l.b16 %v593
        %v1493 = vunpack.c.h.b16 %v593
        %v1494 = vunpack.c.l.b16 %v594
        %v1495 = vunpack.c.h.b16 %v594
        %v1496 = vunpack.c.l.b16 %v595
        %v1497 = vunpack.c.h.b16 %v595
        %v1498 = vunpack.c.l.b16 %v596
        %v1499 = vunpack.c.h.b16 %v596
        %v1500 = vunpack.c.l.b16 %v597
        %v1501 = vunpack.c.h.b16 %v597
        %v1502 = vunpack.c.l.b16 %v598
        %v1503 = vunpack.c.h.b16 %v598
        %v1504 = vunpack.c.l.b16 %v599
        %v1505 = vunpack.c.h.b16 %v599
        %v1506 = vunpack.c.l.b16 %v600
        %v1507 = vunpack.c.h.b16 %v600
        %v1508 = vunpack.c.l.b16 %v601
        %v1509 = vunpack.c.h.b16 %v601
        %v1510 = vunpack.c.l.b16 %v602
        %v1511 = vunpack.c.h.b16 %v602
        %v1512 = vunpack.c.l.b16 %v603
        %v1513 = vunpack.c.h.b16 %v603
        %v1514 = vunpack.c.l.b16 %v604
        %v1515 = vunpack.c.h.b16 %v604
        %v1516 = vunpack.c.l.b16 %v605
        %v1517 = vunpack.c.h.b16 %v605
        %v1518 = vunpack.c.l.b16 %v606
        %v1519 = vunpack.c.h.b16 %v606
        %v1520 = vunpack.c.l.b16 %v607
        %v1521 = vunpack.c.h.b16 %v607
        %v1522 = vunpack.c.l.b16 %v608
        %v1523 = vunpack.c.h.b16 %v608
        %v1524 = vunpack.c.l.b16 %v609
        %v1525 = vunpack.c.h.b16 %v609
        %v1526 = vunpack.c.l.b16 %v610
        %v1527 = vunpack.c.h.b16 %v610
        %v1528 = vunpack.c.l.b16 %v611
        %v1529 = vunpack.c.h.b16 %v611
        %v1530 = vunpack.c.l.b16 %v612
        %v1531 = vunpack.c.h.b16 %v612
        %v1532 = vunpack.c.l.b16 %v613
        %v1533 = vunpack.c.h.b16 %v613
        %v1534 = vunpack.c.l.b16 %v614
        %v1535 = vunpack.c.h.b16 %v614
        %v1536 = vunpack.c.l.b16 %v615
        %v1537 = vunpack.c.h.b16 %v615
        %v1538 = vunpack.c.l.b16 %v616
        %v1539 = vunpack.c.h.b16 %v616
        %v1540 = vunpack.c.l.b16 %v617
        %v1541 = vunpack.c.h.b16 %v617
        %v1542 = vunpack.c.l.b16 %v618
        %v1543 = vunpack.c.h.b16 %v618
        %v1544 = vunpack.c.l.b16 %v619
        %v1545 = vunpack.c.h.b16 %v619
        %v1546 = vunpack.c.l.b16 %v620
        %v1547 = vunpack.c.h.b16 %v620
        %v1548 = vunpack.c.l.b16 %v621
        %v1549 = vunpack.c.h.b16 %v621
        %v1550 = vunpack.c.l.b16 %v622
        %v1551 = vunpack.c.h.b16 %v622
        %v1552 = vunpack.c.l.b16 %v623
        %v1553 = vunpack.c.h.b16 %v623
        %v1554 = vunpack.c.l.b16 %v624
        %v1555 = vunpack.c.h.b16 %v624
        %v1556 = vunpack.c.l.b16 %v625
        %v1557 = vunpack.c.h.b16 %v625
        %v1558 = vunpack.c.l.b16 %v626
        %v1559 = vunpack.c.h.b16 %v626
        %v1560 = vunpack.c.l.b16 %v627
        %v1561 = vunpack.c.h.b16 %v627
        %v1562 = vunpack.c.l.b16 %v628
        %v1563 = vunpack.c.h.b16 %v628
        %v1564 = vunpack.c.l.b16 %v629
        %v1565 = vunpack.c.h.b16 %v629
        %v1566 = vunpack.c.l.b16 %v630
        %v1567 = vunpack.c.h.b16 %v630
        %v1568 = vunpack.c.l.b16 %v631
        %v1569 = vunpack.c.h.b16 %v631
        %v1570 = vunpack.c.l.b16 %v632
        %v1571 = vunpack.c.h.b16 %v632
        %v1572 = vpack.c.b16 %v1008, %v996
        %v1573 = vpack.c.b16 %v1009, %v997
        %v1574 = vpack.c.b16 %v1010, %v998
        %v1575 = vpack.c.b16 %v1011, %v999
        %v1576 = vpack.c.b16 %v1012, %v1000
        %v1577 = vpack.c.b16 %v1013, %v1001
        %v1578 = vpack.c.b16 %v1014, %v1002
        %v1579 = vpack.c.b16 %v1015, %v1003
        %v1580 = vpack.c.b16 %v1016, %v1004
        %v1581 = vpack.c.b16 %v1017, %v1005
        %v1582 = vpack.c.b16 %v1018, %v1006
        %v1583 = vpack.c.b16 %v1019, %v1007
        %v1584 = vpack.c.b16 %v1032, %v1020
        %v1585 = vpack.c.b16 %v1033, %v1021
        %v1586 = vpack.c.b16 %v1034, %v1022
        %v1587 = vpack.c.b16 %v1035, %v1023
        %v1588 = vpack.c.b16 %v1036, %v1024
        %v1589 = vpack.c.b16 %v1037, %v1025
        %v1590 = vpack.c.b16 %v1038, %v1026
        %v1591 = vpack.c.b16 %v1039, %v1027
        %v1592 = vpack.c.b16 %v1040, %v1028
        %v1593 = vpack.c.b16 %v1041, %v1029
        %v1594 = vpack.c.b16 %v1042, %v1030
        %v1595 = vpack.c.b16 %v1043, %v1031
        %v1596 = vpack.c.b16 %v1056, %v1044
        %v1597 = vpack.c.b16 %v1057, %v1045
        %v1598 = vpack.c.b16 %v1058, %v1046
        %v1599 = vpack.c.b16 %v1059, %v1047
        %v1600 = vpack.c.b16 %v1060, %v1048
        %v1601 = vpack.c.b16 %v1061, %v1049
        %v1602 = vpack.c.b16 %v1062, %v1050
        %v1603 = vpack.c.b16 %v1063, %v1051
        %v1604 = vpack.c.b16 %v1064, %v1052
        %v1605 = vpack.c.b16 %v1065, %v1053
        %v1606 = vpack.c.b16 %v1066, %v1054
        %v1607 = vpack.c.b16 %v1067, %v1055
        %v1608 = vpack.c.b16 %v1080, %v1068
        %v1609 = vpack.c.b16 %v1081, %v1069
        %v1610 = vpack.c.b16 %v1082, %v1070
        %v1611 = vpack.c.b16 %v1083, %v1071
        %v1612 = vpack.c.b16 %v1084, %v1072
        %v1613 = vpack.c.b16 %v1085, %v1073
        %v1614 = vpack.c.b16 %v1086, %v1074
        %v1615 = vpack.c.b16 %v1087, %v1075
        %v1616 = vpack.c.b16 %v1088, %v1076
        %v1617 = vpack.c.b16 %v1089, %v1077
        %v1618 = vpack.c.b16 %v1090, %v1078
        %v1619 = vpack.c.b16 %v1091, %v1079
        %v1620 = vpack.c.b16 %v1104, %v1092
        %v1621 = vpack.c.b16 %v1105, %v1093
        %v1622 = vpack.c.b16 %v1106, %v1094
        %v1623 = vpack.c.b16 %v1107, %v1095
        %v1624 = vpack.c.b16 %v1108, %v1096
        %v1625 = vpack.c.b16 %v1109, %v1097
        %v1626 = vpack.c.b16 %v1110, %v1098
        %v1627 = vpack.c.b16 %v1111, %v1099
        %v1628 = vpack.c.b16 %v1112, %v1100
        %v1629 = vpack.c.b16 %v1113, %v1101
        %v1630 = vpack.c.b16 %v1114, %v1102
        %v1631 = vpack.c.b16 %v1115, %v1103
        %v1632 = vpack.c.b16 %v1128, %v1116
        %v1633 = vpack.c.b16 %v1129, %v1117
        %v1634 = vpack.c.b16 %v1130, %v1118
        %v1635 = vpack.c.b16 %v1131, %v1119
        %v1636 = vpack.c.b16 %v1132, %v1120
        %v1637 = vpack.c.b16 %v1133, %v1121
        %v1638 = vpack.c.b16 %v1134, %v1122
        %v1639 = vpack.c.b16 %v1135, %v1123
        %v1640 = vpack.c.b16 %v1136, %v1124
        %v1641 = vpack.c.b16 %v1137, %v1125
        %v1642 = vpack.c.b16 %v1138, %v1126
        %v1643 = vpack.c.b16 %v1139, %v1127
        %v1644 = vpack.c.b16 %v1152, %v1140
        %v1645 = vpack.c.b16 %v1153, %v1141
        %v1646 = vpack.c.b16 %v1154, %v1142
        %v1647 = vpack.c.b16 %v1155, %v1143
        %v1648 = vpack.c.b16 %v1156, %v1144
        %v1649 = vpack.c.b16 %v1157, %v1145
        %v1650 = vpack.c.b16 %v1158, %v1146
        %v1651 = vpack.c.b16 %v1159, %v1147
        %v1652 = vpack.c.b16 %v1160, %v1148
        %v1653 = vpack.c.b16 %v1161, %v1149
        %v1654 = vpack.c.b16 %v1162, %v1150
        %v1655 = vpack.c.b16 %v1163, %v1151
        %v1656 = vpack.c.b16 %v1176, %v1164
        %v1657 = vpack.c.b16 %v1177, %v1165
        %v1658 = vpack.c.b16 %v1178, %v1166
        %v1659 = vpack.c.b16 %v1179, %v1167
        %v1660 = vpack.c.b16 %v1180, %v1168
        %v1661 = vpack.c.b16 %v1181, %v1169
        %v1662 = vpack.c.b16 %v1182, %v1170
        %v1663 = vpack.c.b16 %v1183, %v1171
        %v1664 = vpack.c.b16 %v1184, %v1172
        %v1665 = vpack.c.b16 %v1185, %v1173
        %v1666 = vpack.c.b16 %v1186, %v1174
        %v1667 = vpack.c.b16 %v1187, %v1175
        %v1668 = vpack.c.b16 %v1200, %v1188
        %v1669 = vpack.c.b16 %v1201, %v1189
        %v1670 = vpack.c.b16 %v1202, %v1190
        %v1671 = vpack.c.b16 %v1203, %v1191
        %v1672 = vpack.c.b16 %v1204, %v1192
        %v1673 = vpack.c.b16 %v1205, %v1193
        %v1674 = vpack.c.b16 %v1206, %v1194
        %v1675 = vpack.c.b16 %v1207, %v1195
        %v1676 = vpack.c.b16 %v1208, %v1196
        %v1677 = vpack.c.b16 %v1209, %v1197
        %v1678 = vpack.c.b16 %v1210, %v1198
        %v1679 = vpack.c.b16 %v1211, %v1199
        %v1680 = vpack.c.b16 %v1224, %v1212
        %v1681 = vpack.c.b16 %v1225, %v1213
        %v1682 = vpack.c.b16 %v1226, %v1214
        %v1683 = vpack.c.b16 %v1227, %v1215
        %v1684 = vpack.c.b16 %v1228, %v1216
        %v1685 = vpack.c.b16 %v1229, %v1217
        %v1686 = vpack.c.b16 %v1230, %v1218
        %v1687 = vpack.c.b16 %v1231, %v1219
        %v1688 = vpack.c.b16 %v1232, %v1220
        %v1689 = vpack.c.b16 %v1233, %v1221
        %v1690 = vpack.c.b16 %v1234, %v1222
        %v1691 = vpack.c.b16 %v1235, %v1223
        %v1692 = vpack.c.b16 %v1248, %v1236
        %v1693 = vpack.c.b16 %v1249, %v1237
        %v1694 = vpack.c.b16 %v1250, %v1238
        %v1695 = vpack.c.b16 %v1251, %v1239
        %v1696 = vpack.c.b16 %v1252, %v1240
        %v1697 = vpack.c.b16 %v1253, %v1241
        %v1698 = vpack.c.b16 %v1254, %v1242
        %v1699 = vpack.c.b16 %v1255, %v1243
        %v1700 = vpack.c.b16 %v1256, %v1244
        %v1701 = vpack.c.b16 %v1257, %v1245
        %v1702 = vpack.c.b16 %v1258, %v1246
        %v1703 = vpack.c.b16 %v1259, %v1247
        %v1704 = vpack.c.b16 %v1272, %v1260
        %v1705 = vpack.c.b16 %v1273, %v1261
        %v1706 = vpack.c.b16 %v1274, %v1262
        %v1707 = vpack.c.b16 %v1275, %v1263
        %v1708 = vpack.c.b16 %v1276, %v1264
        %v1709 = vpack.c.b16 %v1277, %v1265
        %v1710 = vpack.c.b16 %v1278, %v1266
        %v1711 = vpack.c.b16 %v1279, %v1267
        %v1712 = vpack.c.b16 %v1280, %v1268
        %v1713 = vpack.c.b16 %v1281, %v1269
        %v1714 = vpack.c.b16 %v1282, %v1270
        %v1715 = vpack.c.b16 %v1283, %v1271
        %v1716 = vpack.c.b16 %v1296, %v1284
        %v1717 = vpack.c.b16 %v1297, %v1285
        %v1718 = vpack.c.b16 %v1298, %v1286
        %v1719 = vpack.c.b16 %v1299, %v1287
        %v1720 = vpack.c.b16 %v1300, %v1288
        %v1721 = vpack.c.b16 %v1301, %v1289
        %v1722 = vpack.c.b16 %v1302, %v1290
        %v1723 = vpack.c.b16 %v1303, %v1291
        %v1724 = vpack.c.b16 %v1304, %v1292
        %v1725 = vpack.c.b16 %v1305, %v1293
        %v1726 = vpack.c.b16 %v1306, %v1294
        %v1727 = vpack.c.b16 %v1307, %v1295
        %v1728 = vpack.c.b16 %v1320, %v1308
        %v1729 = vpack.c.b16 %v1321, %v1309
        %v1730 = vpack.c.b16 %v1322, %v1310
        %v1731 = vpack.c.b16 %v1323, %v1311
        %v1732 = vpack.c.b16 %v1324, %v1312
        %v1733 = vpack.c.b16 %v1325, %v1313
        %v1734 = vpack.c.b16 %v1326, %v1314
        %v1735 = vpack.c.b16 %v1327, %v1315
        %v1736 = vpack.c.b16 %v1328, %v1316
        %v1737 = vpack.c.b16 %v1329, %v1317
        %v1738 = vpack.c.b16 %v1330, %v1318
        %v1739 = vpack.c.b16 %v1331, %v1319
        %v1740 = vpack.c.b16 %v1344, %v1332
        %v1741 = vpack.c.b16 %v1345, %v1333
        %v1742 = vpack.c.b16 %v1346, %v1334
        %v1743 = vpack.c.b16 %v1347, %v1335
        %v1744 = vpack.c.b16 %v1348, %v1336
        %v1745 = vpack.c.b16 %v1349, %v1337
        %v1746 = vpack.c.b16 %v1350, %v1338
        %v1747 = vpack.c.b16 %v1351, %v1339
        %v1748 = vpack.c.b16 %v1352, %v1340
        %v1749 = vpack.c.b16 %v1353, %v1341
        %v1750 = vpack.c.b16 %v1354, %v1342
        %v1751 = vpack.c.b16 %v1355, %v1343
        %v1752 = vpack.c.b16 %v1368, %v1356
        %v1753 = vpack.c.b16 %v1369, %v1357
        %v1754 = vpack.c.b16 %v1370, %v1358
        %v1755 = vpack.c.b16 %v1371, %v1359
        %v1756 = vpack.c.b16 %v1372, %v1360
        %v1757 = vpack.c.b16 %v1373, %v1361
        %v1758 = vpack.c.b16 %v1374, %v1362
        %v1759 = vpack.c.b16 %v1375, %v1363
        %v1760 = vpack.c.b16 %v1376, %v1364
        %v1761 = vpack.c.b16 %v1377, %v1365
        %v1762 = vpack.c.b16 %v1378, %v1366
        %v1763 = vpack.c.b16 %v1379, %v1367
        %v1764 = vpack.c.b16 %v1392, %v1380
        %v1765 = vpack.c.b16 %v1393, %v1381
        %v1766 = vpack.c.b16 %v1394, %v1382
        %v1767 = vpack.c.b16 %v1395, %v1383
        %v1768 = vpack.c.b16 %v1396, %v1384
        %v1769 = vpack.c.b16 %v1397, %v1385
        %v1770 = vpack.c.b16 %v1398, %v1386
        %v1771 = vpack.c.b16 %v1399, %v1387
        %v1772 = vpack.c.b16 %v1400, %v1388
        %v1773 = vpack.c.b16 %v1401, %v1389
        %v1774 = vpack.c.b16 %v1402, %v1390
        %v1775 = vpack.c.b16 %v1403, %v1391
        %v1776 = vpack.c.b16 %v1416, %v1404
        %v1777 = vpack.c.b16 %v1417, %v1405
        %v1778 = vpack.c.b16 %v1418, %v1406
        %v1779 = vpack.c.b16 %v1419, %v1407
        %v1780 = vpack.c.b16 %v1420, %v1408
        %v1781 = vpack.c.b16 %v1421, %v1409
        %v1782 = vpack.c.b16 %v1422, %v1410
        %v1783 = vpack.c.b16 %v1423, %v1411
        %v1784 = vpack.c.b16 %v1424, %v1412
        %v1785 = vpack.c.b16 %v1425, %v1413
        %v1786 = vpack.c.b16 %v1426, %v1414
        %v1787 = vpack.c.b16 %v1427, %v1415
        %v1788 = vpack.c.b16 %v1440, %v1428
        %v1789 = vpack.c.b16 %v1441, %v1429
        %v1790 = vpack.c.b16 %v1442, %v1430
        %v1791 = vpack.c.b16 %v1443, %v1431
        %v1792 = vpack.c.b16 %v1444, %v1432
        %v1793 = vpack.c.b16 %v1445, %v1433
        %v1794 = vpack.c.b16 %v1446, %v1434
        %v1795 = vpack.c.b16 %v1447, %v1435
        %v1796 = vpack.c.b16 %v1448, %v1436
        %v1797 = vpack.c.b16 %v1449, %v1437
        %v1798 = vpack.c.b16 %v1450, %v1438
        %v1799 = vpack.c.b16 %v1451, %v1439
        %v1800 = vpack.c.b16 %v1464, %v1452
        %v1801 = vpack.c.b16 %v1465, %v1453
        %v1802 = vpack.c.b16 %v1466, %v1454
        %v1803 = vpack.c.b16 %v1467, %v1455
        %v1804 = vpack.c.b16 %v1468, %v1456
        %v1805 = vpack.c.b16 %v1469, %v1457
        %v1806 = vpack.c.b16 %v1470, %v1458
        %v1807 = vpack.c.b16 %v1471, %v1459
        %v1808 = vpack.c.b16 %v1472, %v1460
        %v1809 = vpack.c.b16 %v1473, %v1461
        %v1810 = vpack.c.b16 %v1474, %v1462
        %v1811 = vpack.c.b16 %v1475, %v1463
        %v1812 = vpack.c.b16 %v1488, %v1476
        %v1813 = vpack.c.b16 %v1489, %v1477
        %v1814 = vpack.c.b16 %v1490, %v1478
        %v1815 = vpack.c.b16 %v1491, %v1479
        %v1816 = vpack.c.b16 %v1492, %v1480
        %v1817 = vpack.c.b16 %v1493, %v1481
        %v1818 = vpack.c.b16 %v1494, %v1482
        %v1819 = vpack.c.b16 %v1495, %v1483
        %v1820 = vpack.c.b16 %v1496, %v1484
        %v1821 = vpack.c.b16 %v1497, %v1485
        %v1822 = vpack.c.b16 %v1498, %v1486
        %v1823 = vpack.c.b16 %v1499, %v1487
        %v1824 = vpack.c.b16 %v1512, %v1500
        %v1825 = vpack.c.b16 %v1513, %v1501
        %v1826 = vpack.c.b16 %v1514, %v1502
        %v1827 = vpack.c.b16 %v1515, %v1503
        %v1828 = vpack.c.b16 %v1516, %v1504
        %v1829 = vpack.c.b16 %v1517, %v1505
        %v1830 = vpack.c.b16 %v1518, %v1506
        %v1831 = vpack.c.b16 %v1519, %v1507
        %v1832 = vpack.c.b16 %v1520, %v1508
        %v1833 = vpack.c.b16 %v1521, %v1509
        %v1834 = vpack.c.b16 %v1522, %v1510
        %v1835 = vpack.c.b16 %v1523, %v1511
        %v1836 = vpack.c.b16 %v1536, %v1524
        %v1837 = vpack.c.b16 %v1537, %v1525
        %v1838 = vpack.c.b16 %v1538, %v1526
        %v1839 = vpack.c.b16 %v1539, %v1527
        %v1840 = vpack.c.b16 %v1540, %v1528
        %v1841 = vpack.c.b16 %v1541, %v1529
        %v1842 = vpack.c.b16 %v1542, %v1530
        %v1843 = vpack.c.b16 %v1543, %v1531
        %v1844 = vpack.c.b16 %v1544, %v1532
        %v1845 = vpack.c.b16 %v1545, %v1533
        %v1846 = vpack.c.b16 %v1546, %v1534
        %v1847 = vpack.c.b16 %v1547, %v1535
        %v1848 = vpack.c.b16 %v1560, %v1548
        %v1849 = vpack.c.b16 %v1561, %v1549
        %v1850 = vpack.c.b16 %v1562, %v1550
        %v1851 = vpack.c.b16 %v1563, %v1551
        %v1852 = vpack.c.b16 %v1564, %v1552
        %v1853 = vpack.c.b16 %v1565, %v1553
        %v1854 = vpack.c.b16 %v1566, %v1554
        %v1855 = vpack.c.b16 %v1567, %v1555
        %v1856 = vpack.c.b16 %v1568, %v1556
        %v1857 = vpack.c.b16 %v1569, %v1557
        %v1858 = vpack.c.b16 %v1570, %v1558
        %v1859 = vpack.c.b16 %v1571, %v1559
        %2148 = vmatprep.subr.bf16.mxu0 %v1573
        %2149 = vmatpush1.bf16.msra.mxu0 %v1572
        %2150 = vmatprep.subr.bf16.mxu0 %v1585
        %2151 = vmatpush1.bf16.msra.mxu0 %v1584
        %2152 = vmatprep.subr.bf16.mxu0 %v1597
        %2153 = vmatpush1.bf16.msra.mxu0 %v1596
        %2154 = vmatprep.subr.bf16.mxu0 %v1609
        %2155 = vmatpush1.bf16.msra.mxu0 %v1608
        %2156 = vmatprep.subr.bf16.mxu0 %v1621
        %2157 = vmatpush1.bf16.msra.mxu0 %v1620
        %2158 = vmatprep.subr.bf16.mxu0 %v1633
        %2159 = vmatpush1.bf16.msra.mxu0 %v1632
        %2160 = vmatprep.subr.bf16.mxu0 %v1645
        %2161 = vmatpush1.bf16.msra.mxu0 %v1644
        %2162 = vmatprep.subr.bf16.mxu0 %v1657
        %2163 = vmatpush1.bf16.msra.mxu0 %v1656
        %2164 = vmatprep.subr.bf16.mxu0 %v1669
        %2165 = vmatpush1.bf16.msra.mxu0 %v1668
        %2166 = vmatprep.subr.bf16.mxu0 %v1681
        %2167 = vmatpush1.bf16.msra.mxu0 %v1680
        %2168 = vmatprep.subr.bf16.mxu0 %v1693
        %2169 = vmatpush1.bf16.msra.mxu0 %v1692
        %2170 = vmatprep.subr.bf16.mxu0 %v1705
        %2171 = vmatpush1.bf16.msra.mxu0 %v1704
        %2172 = vmatprep.subr.bf16.mxu0 %v1717
        %2173 = vmatpush1.bf16.msra.mxu0 %v1716
        %2174 = vmatprep.subr.bf16.mxu0 %v1729
        %2175 = vmatpush1.bf16.msra.mxu0 %v1728
        %2176 = vmatprep.subr.bf16.mxu0 %v1741
        %2177 = vmatpush1.bf16.msra.mxu0 %v1740
        %2178 = vmatprep.subr.bf16.mxu0 %v1753
        %2179 = vmatpush1.bf16.msra.mxu0 %v1752
        %2180 = vmatprep.mubr.bf16.mxu0 %v703
        %2181 = vmatmul.mubr.bf16.gmra.mrb[0].mxu0 %v702
        %v2182 = vpop.f32.mrb[0].mxu0
        %v2183 = vadd.f32 %v640, %v2182
        %v2184 = vpop.f32.mrb[0].mxu0
        %v2185 = vadd.f32 %v644, %v2184
        %v2186 = vpop.f32.mrb[0].mxu0
        %v2187 = vpop.f32.mrb[0].mxu0
        %2188 = vdwg.mxu0
        %2189 = vmatprep.subr.bf16.mxu0 %v1765
        %2190 = vmatpush1.bf16.msra.mxu0 %v1764
        %2191 = vmatprep.subr.bf16.mxu0 %v1777
        %2192 = vmatpush1.bf16.msra.mxu0 %v1776
        %2193 = vmatprep.subr.bf16.mxu0 %v1789
        %2194 = vmatpush1.bf16.msra.mxu0 %v1788
        %2195 = vmatprep.subr.bf16.mxu0 %v1801
        %2196 = vmatpush1.bf16.msra.mxu0 %v1800
        %2197 = vmatprep.subr.bf16.mxu0 %v1813
        %2198 = vmatpush1.bf16.msra.mxu0 %v1812
        %2199 = vmatprep.subr.bf16.mxu0 %v1825
        %2200 = vmatpush1.bf16.msra.mxu0 %v1824
        %2201 = vmatprep.subr.bf16.mxu0 %v1837
        %2202 = vmatpush1.bf16.msra.mxu0 %v1836
        %2203 = vmatprep.subr.bf16.mxu0 %v1849
        %2204 = vmatpush1.bf16.msra.mxu0 %v1848
        %2205 = vmatprep.subr.bf16.mxu0 0
        %2206 = vmatpush1.bf16.msra.mxu0 0
        %2207 = vmatprep.subr.bf16.mxu0 0
        %2208 = vmatpush1.bf16.msra.mxu0 0
        %2209 = vmatprep.subr.bf16.mxu0 0
        %2210 = vmatpush1.bf16.msra.mxu0 0
        %2211 = vmatprep.subr.bf16.mxu0 0
        %2212 = vmatpush1.bf16.msra.mxu0 0
        %2213 = vmatprep.subr.bf16.mxu0 0
        %2214 = vmatpush1.bf16.msra.mxu0 0
        %2215 = vmatprep.subr.bf16.mxu0 0
        %2216 = vmatpush1.bf16.msra.mxu0 0
        %2217 = vmatprep.subr.bf16.mxu0 0
        %2218 = vmatpush1.bf16.msra.mxu0 0
        %2219 = vmatprep.subr.bf16.mxu0 0
        %2220 = vmatpush1.bf16.msra.mxu0 0
        %2221 = vmatprep.mubr.bf16.mxu0 0
        %2222 = vmatmul.mubr.bf16.gmra.mrb[0].mxu0 %v704
        %v2223 = vpop.f32.mrb[0].mxu0
        %v2224 = vadd.f32 %v2183, %v2223
        %v2225 = vpop.f32.mrb[0].mxu0
        %v2226 = vadd.f32 %v2185, %v2225
        %v2227 = vpop.f32.mrb[0].mxu0
        %v2228 = vpop.f32.mrb[0].mxu0
        %2229 = vdwg.mxu0
        %2230 = vmatprep.subr.bf16.mxu0 %v1575
        %2231 = vmatpush1.bf16.msra.mxu0 %v1574
        %2232 = vmatprep.subr.bf16.mxu0 %v1587
        %2233 = vmatpush1.bf16.msra.mxu0 %v1586
        %2234 = vmatprep.subr.bf16.mxu0 %v1599
        %2235 = vmatpush1.bf16.msra.mxu0 %v1598
        %2236 = vmatprep.subr.bf16.mxu0 %v1611
        %2237 = vmatpush1.bf16.msra.mxu0 %v1610
        %2238 = vmatprep.subr.bf16.mxu0 %v1623
        %2239 = vmatpush1.bf16.msra.mxu0 %v1622
        %2240 = vmatprep.subr.bf16.mxu0 %v1635
        %2241 = vmatpush1.bf16.msra.mxu0 %v1634
        %2242 = vmatprep.subr.bf16.mxu0 %v1647
        %2243 = vmatpush1.bf16.msra.mxu0 %v1646
        %2244 = vmatprep.subr.bf16.mxu0 %v1659
        %2245 = vmatpush1.bf16.msra.mxu0 %v1658
        %2246 = vmatprep.subr.bf16.mxu0 %v1671
        %2247 = vmatpush1.bf16.msra.mxu0 %v1670
        %2248 = vmatprep.subr.bf16.mxu0 %v1683
        %2249 = vmatpush1.bf16.msra.mxu0 %v1682
        %2250 = vmatprep.subr.bf16.mxu0 %v1695
        %2251 = vmatpush1.bf16.msra.mxu0 %v1694
        %2252 = vmatprep.subr.bf16.mxu0 %v1707
        %2253 = vmatpush1.bf16.msra.mxu0 %v1706
        %2254 = vmatprep.subr.bf16.mxu0 %v1719
        %2255 = vmatpush1.bf16.msra.mxu0 %v1718
        %2256 = vmatprep.subr.bf16.mxu0 %v1731
        %2257 = vmatpush1.bf16.msra.mxu0 %v1730
        %2258 = vmatprep.subr.bf16.mxu0 %v1743
        %2259 = vmatpush1.bf16.msra.mxu0 %v1742
        %2260 = vmatprep.subr.bf16.mxu0 %v1755
        %2261 = vmatpush1.bf16.msra.mxu0 %v1754
        %2262 = vmatprep.mubr.bf16.mxu0 %v703
        %2263 = vmatmul.mubr.bf16.gmra.mrb[0].mxu0 %v702
        %v2264 = vpop.f32.mrb[0].mxu0
        %v2265 = vadd.f32 %v648, %v2264
        %v2266 = vpop.f32.mrb[0].mxu0
        %v2267 = vadd.f32 %v652, %v2266
        %v2268 = vpop.f32.mrb[0].mxu0
        %v2269 = vpop.f32.mrb[0].mxu0
        %2270 = vdwg.mxu0
        %2271 = vmatprep.subr.bf16.mxu0 %v1767
        %2272 = vmatpush1.bf16.msra.mxu0 %v1766
        %2273 = vmatprep.subr.bf16.mxu0 %v1779
        %2274 = vmatpush1.bf16.msra.mxu0 %v1778
        %2275 = vmatprep.subr.bf16.mxu0 %v1791
        %2276 = vmatpush1.bf16.msra.mxu0 %v1790
        %2277 = vmatprep.subr.bf16.mxu0 %v1803
        %2278 = vmatpush1.bf16.msra.mxu0 %v1802
        %2279 = vmatprep.subr.bf16.mxu0 %v1815
        %2280 = vmatpush1.bf16.msra.mxu0 %v1814
        %2281 = vmatprep.subr.bf16.mxu0 %v1827
        %2282 = vmatpush1.bf16.msra.mxu0 %v1826
        %2283 = vmatprep.subr.bf16.mxu0 %v1839
        %2284 = vmatpush1.bf16.msra.mxu0 %v1838
        %2285 = vmatprep.subr.bf16.mxu0 %v1851
        %2286 = vmatpush1.bf16.msra.mxu0 %v1850
        %2287 = vmatprep.subr.bf16.mxu0 0
        %2288 = vmatpush1.bf16.msra.mxu0 0
        %2289 = vmatprep.subr.bf16.mxu0 0
        %2290 = vmatpush1.bf16.msra.mxu0 0
        %2291 = vmatprep.subr.bf16.mxu0 0
        %2292 = vmatpush1.bf16.msra.mxu0 0
        %2293 = vmatprep.subr.bf16.mxu0 0
        %2294 = vmatpush1.bf16.msra.mxu0 0
        %2295 = vmatprep.subr.bf16.mxu0 0
        %2296 = vmatpush1.bf16.msra.mxu0 0
        %2297 = vmatprep.subr.bf16.mxu0 0
        %2298 = vmatpush1.bf16.msra.mxu0 0
        %2299 = vmatprep.subr.bf16.mxu0 0
        %2300 = vmatpush1.bf16.msra.mxu0 0
        %2301 = vmatprep.subr.bf16.mxu0 0
        %2302 = vmatpush1.bf16.msra.mxu0 0
        %2303 = vmatprep.mubr.bf16.mxu0 0
        %2304 = vmatmul.mubr.bf16.gmra.mrb[0].mxu0 %v704
        %v2305 = vpop.f32.mrb[0].mxu0
        %v2306 = vadd.f32 %v2265, %v2305
        %v2307 = vpop.f32.mrb[0].mxu0
        %v2308 = vadd.f32 %v2267, %v2307
        %v2309 = vpop.f32.mrb[0].mxu0
        %v2310 = vpop.f32.mrb[0].mxu0
        %2311 = vdwg.mxu0
        %2312 = vmatprep.subr.bf16.mxu0 %v1577
        %2313 = vmatpush1.bf16.msra.mxu0 %v1576
        %2314 = vmatprep.subr.bf16.mxu0 %v1589
        %2315 = vmatpush1.bf16.msra.mxu0 %v1588
        %2316 = vmatprep.subr.bf16.mxu0 %v1601
        %2317 = vmatpush1.bf16.msra.mxu0 %v1600
        %2318 = vmatprep.subr.bf16.mxu0 %v1613
        %2319 = vmatpush1.bf16.msra.mxu0 %v1612
        %2320 = vmatprep.subr.bf16.mxu0 %v1625
        %2321 = vmatpush1.bf16.msra.mxu0 %v1624
        %2322 = vmatprep.subr.bf16.mxu0 %v1637
        %2323 = vmatpush1.bf16.msra.mxu0 %v1636
        %2324 = vmatprep.subr.bf16.mxu0 %v1649
        %2325 = vmatpush1.bf16.msra.mxu0 %v1648
        %2326 = vmatprep.subr.bf16.mxu0 %v1661
        %2327 = vmatpush1.bf16.msra.mxu0 %v1660
        %2328 = vmatprep.subr.bf16.mxu0 %v1673
        %2329 = vmatpush1.bf16.msra.mxu0 %v1672
        %2330 = vmatprep.subr.bf16.mxu0 %v1685
        %2331 = vmatpush1.bf16.msra.mxu0 %v1684
        %2332 = vmatprep.subr.bf16.mxu0 %v1697
        %2333 = vmatpush1.bf16.msra.mxu0 %v1696
        %2334 = vmatprep.subr.bf16.mxu0 %v1709
        %2335 = vmatpush1.bf16.msra.mxu0 %v1708
        %2336 = vmatprep.subr.bf16.mxu0 %v1721
        %2337 = vmatpush1.bf16.msra.mxu0 %v1720
        %2338 = vmatprep.subr.bf16.mxu0 %v1733
        %2339 = vmatpush1.bf16.msra.mxu0 %v1732
        %2340 = vmatprep.subr.bf16.mxu0 %v1745
        %2341 = vmatpush1.bf16.msra.mxu0 %v1744
        %2342 = vmatprep.subr.bf16.mxu0 %v1757
        %2343 = vmatpush1.bf16.msra.mxu0 %v1756
        %2344 = vmatprep.mubr.bf16.mxu0 %v703
        %2345 = vmatmul.mubr.bf16.gmra.mrb[0].mxu0 %v702
        %v2346 = vpop.f32.mrb[0].mxu0
        %v2347 = vadd.f32 %v656, %v2346
        %v2348 = vpop.f32.mrb[0].mxu0
        %v2349 = vadd.f32 %v660, %v2348
        %v2350 = vpop.f32.mrb[0].mxu0
        %v2351 = vpop.f32.mrb[0].mxu0
        %2352 = vdwg.mxu0
        %2353 = vmatprep.subr.bf16.mxu0 %v1769
        %2354 = vmatpush1.bf16.msra.mxu0 %v1768
        %2355 = vmatprep.subr.bf16.mxu0 %v1781
        %2356 = vmatpush1.bf16.msra.mxu0 %v1780
        %2357 = vmatprep.subr.bf16.mxu0 %v1793
        %2358 = vmatpush1.bf16.msra.mxu0 %v1792
        %2359 = vmatprep.subr.bf16.mxu0 %v1805
        %2360 = vmatpush1.bf16.msra.mxu0 %v1804
        %2361 = vmatprep.subr.bf16.mxu0 %v1817
        %2362 = vmatpush1.bf16.msra.mxu0 %v1816
        %2363 = vmatprep.subr.bf16.mxu0 %v1829
        %2364 = vmatpush1.bf16.msra.mxu0 %v1828
        %2365 = vmatprep.subr.bf16.mxu0 %v1841
        %2366 = vmatpush1.bf16.msra.mxu0 %v1840
        %2367 = vmatprep.subr.bf16.mxu0 %v1853
        %2368 = vmatpush1.bf16.msra.mxu0 %v1852
        %2369 = vmatprep.subr.bf16.mxu0 0
        %2370 = vmatpush1.bf16.msra.mxu0 0
        %2371 = vmatprep.subr.bf16.mxu0 0
        %2372 = vmatpush1.bf16.msra.mxu0 0
        %2373 = vmatprep.subr.bf16.mxu0 0
        %2374 = vmatpush1.bf16.msra.mxu0 0
        %2375 = vmatprep.subr.bf16.mxu0 0
        %2376 = vmatpush1.bf16.msra.mxu0 0
        %2377 = vmatprep.subr.bf16.mxu0 0
        %2378 = vmatpush1.bf16.msra.mxu0 0
        %2379 = vmatprep.subr.bf16.mxu0 0
        %2380 = vmatpush1.bf16.msra.mxu0 0
        %2381 = vmatprep.subr.bf16.mxu0 0
        %2382 = vmatpush1.bf16.msra.mxu0 0
        %2383 = vmatprep.subr.bf16.mxu0 0
        %2384 = vmatpush1.bf16.msra.mxu0 0
        %2385 = vmatprep.mubr.bf16.mxu0 0
        %2386 = vmatmul.mubr.bf16.gmra.mrb[0].mxu0 %v704
        %v2387 = vpop.f32.mrb[0].mxu0
        %v2388 = vadd.f32 %v2347, %v2387
        %v2389 = vpop.f32.mrb[0].mxu0
        %v2390 = vadd.f32 %v2349, %v2389
        %v2391 = vpop.f32.mrb[0].mxu0
        %v2392 = vpop.f32.mrb[0].mxu0
        %2393 = vdwg.mxu0
        %2394 = vmatprep.subr.bf16.mxu0 %v1579
        %2395 = vmatpush1.bf16.msra.mxu0 %v1578
        %2396 = vmatprep.subr.bf16.mxu0 %v1591
        %2397 = vmatpush1.bf16.msra.mxu0 %v1590
        %2398 = vmatprep.subr.bf16.mxu0 %v1603
        %2399 = vmatpush1.bf16.msra.mxu0 %v1602
        %2400 = vmatprep.subr.bf16.mxu0 %v1615
        %2401 = vmatpush1.bf16.msra.mxu0 %v1614
        %2402 = vmatprep.subr.bf16.mxu0 %v1627
        %2403 = vmatpush1.bf16.msra.mxu0 %v1626
        %2404 = vmatprep.subr.bf16.mxu0 %v1639
        %2405 = vmatpush1.bf16.msra.mxu0 %v1638
        %2406 = vmatprep.subr.bf16.mxu0 %v1651
        %2407 = vmatpush1.bf16.msra.mxu0 %v1650
        %2408 = vmatprep.subr.bf16.mxu0 %v1663
        %2409 = vmatpush1.bf16.msra.mxu0 %v1662
        %2410 = vmatprep.subr.bf16.mxu0 %v1675
        %2411 = vmatpush1.bf16.msra.mxu0 %v1674
        %2412 = vmatprep.subr.bf16.mxu0 %v1687
        %2413 = vmatpush1.bf16.msra.mxu0 %v1686
        %2414 = vmatprep.subr.bf16.mxu0 %v1699
        %2415 = vmatpush1.bf16.msra.mxu0 %v1698
        %2416 = vmatprep.subr.bf16.mxu0 %v1711
        %2417 = vmatpush1.bf16.msra.mxu0 %v1710
        %2418 = vmatprep.subr.bf16.mxu0 %v1723
        %2419 = vmatpush1.bf16.msra.mxu0 %v1722
        %2420 = vmatprep.subr.bf16.mxu0 %v1735
        %2421 = vmatpush1.bf16.msra.mxu0 %v1734
        %2422 = vmatprep.subr.bf16.mxu0 %v1747
        %2423 = vmatpush1.bf16.msra.mxu0 %v1746
        %2424 = vmatprep.subr.bf16.mxu0 %v1759
        %2425 = vmatpush1.bf16.msra.mxu0 %v1758
        %2426 = vmatprep.mubr.bf16.mxu0 %v703
        %2427 = vmatmul.mubr.bf16.gmra.mrb[0].mxu0 %v702
        %v2428 = vpop.f32.mrb[0].mxu0
        %v2429 = vadd.f32 %v664, %v2428
        %v2430 = vpop.f32.mrb[0].mxu0
        %v2431 = vadd.f32 %v668, %v2430
        %v2432 = vpop.f32.mrb[0].mxu0
        %v2433 = vpop.f32.mrb[0].mxu0
        %2434 = vdwg.mxu0
        %2435 = vmatprep.subr.bf16.mxu0 %v1771
        %2436 = vmatpush1.bf16.msra.mxu0 %v1770
        %2437 = vmatprep.subr.bf16.mxu0 %v1783
        %2438 = vmatpush1.bf16.msra.mxu0 %v1782
        %2439 = vmatprep.subr.bf16.mxu0 %v1795
        %2440 = vmatpush1.bf16.msra.mxu0 %v1794
        %2441 = vmatprep.subr.bf16.mxu0 %v1807
        %2442 = vmatpush1.bf16.msra.mxu0 %v1806
        %2443 = vmatprep.subr.bf16.mxu0 %v1819
        %2444 = vmatpush1.bf16.msra.mxu0 %v1818
        %2445 = vmatprep.subr.bf16.mxu0 %v1831
        %2446 = vmatpush1.bf16.msra.mxu0 %v1830
        %2447 = vmatprep.subr.bf16.mxu0 %v1843
        %2448 = vmatpush1.bf16.msra.mxu0 %v1842
        %2449 = vmatprep.subr.bf16.mxu0 %v1855
        %2450 = vmatpush1.bf16.msra.mxu0 %v1854
        %2451 = vmatprep.subr.bf16.mxu0 0
        %2452 = vmatpush1.bf16.msra.mxu0 0
        %2453 = vmatprep.subr.bf16.mxu0 0
        %2454 = vmatpush1.bf16.msra.mxu0 0
        %2455 = vmatprep.subr.bf16.mxu0 0
        %2456 = vmatpush1.bf16.msra.mxu0 0
        %2457 = vmatprep.subr.bf16.mxu0 0
        %2458 = vmatpush1.bf16.msra.mxu0 0
        %2459 = vmatprep.subr.bf16.mxu0 0
        %2460 = vmatpush1.bf16.msra.mxu0 0
        %2461 = vmatprep.subr.bf16.mxu0 0
        %2462 = vmatpush1.bf16.msra.mxu0 0
        %2463 = vmatprep.subr.bf16.mxu0 0
        %2464 = vmatpush1.bf16.msra.mxu0 0
        %2465 = vmatprep.subr.bf16.mxu0 0
        %2466 = vmatpush1.bf16.msra.mxu0 0
        %2467 = vmatprep.mubr.bf16.mxu0 0
        %2468 = vmatmul.mubr.bf16.gmra.mrb[0].mxu0 %v704
        %v2469 = vpop.f32.mrb[0].mxu0
        %v2470 = vadd.f32 %v2429, %v2469
        %v2471 = vpop.f32.mrb[0].mxu0
        %v2472 = vadd.f32 %v2431, %v2471
        %v2473 = vpop.f32.mrb[0].mxu0
        %v2474 = vpop.f32.mrb[0].mxu0
        %2475 = vdwg.mxu0
        %2476 = vmatprep.subr.bf16.mxu0 %v1581
        %2477 = vmatpush1.bf16.msra.mxu0 %v1580
        %2478 = vmatprep.subr.bf16.mxu0 %v1593
        %2479 = vmatpush1.bf16.msra.mxu0 %v1592
        %2480 = vmatprep.subr.bf16.mxu0 %v1605
        %2481 = vmatpush1.bf16.msra.mxu0 %v1604
        %2482 = vmatprep.subr.bf16.mxu0 %v1617
        %2483 = vmatpush1.bf16.msra.mxu0 %v1616
        %2484 = vmatprep.subr.bf16.mxu0 %v1629
        %2485 = vmatpush1.bf16.msra.mxu0 %v1628
        %2486 = vmatprep.subr.bf16.mxu0 %v1641
        %2487 = vmatpush1.bf16.msra.mxu0 %v1640
        %2488 = vmatprep.subr.bf16.mxu0 %v1653
        %2489 = vmatpush1.bf16.msra.mxu0 %v1652
        %2490 = vmatprep.subr.bf16.mxu0 %v1665
        %2491 = vmatpush1.bf16.msra.mxu0 %v1664
        %2492 = vmatprep.subr.bf16.mxu0 %v1677
        %2493 = vmatpush1.bf16.msra.mxu0 %v1676
        %2494 = vmatprep.subr.bf16.mxu0 %v1689
        %2495 = vmatpush1.bf16.msra.mxu0 %v1688
        %2496 = vmatprep.subr.bf16.mxu0 %v1701
        %2497 = vmatpush1.bf16.msra.mxu0 %v1700
        %2498 = vmatprep.subr.bf16.mxu0 %v1713
        %2499 = vmatpush1.bf16.msra.mxu0 %v1712
        %2500 = vmatprep.subr.bf16.mxu0 %v1725
        %2501 = vmatpush1.bf16.msra.mxu0 %v1724
        %2502 = vmatprep.subr.bf16.mxu0 %v1737
        %2503 = vmatpush1.bf16.msra.mxu0 %v1736
        %2504 = vmatprep.subr.bf16.mxu0 %v1749
        %2505 = vmatpush1.bf16.msra.mxu0 %v1748
        %2506 = vmatprep.subr.bf16.mxu0 %v1761
        %2507 = vmatpush1.bf16.msra.mxu0 %v1760
        %2508 = vmatprep.mubr.bf16.mxu0 %v703
        %2509 = vmatmul.mubr.bf16.gmra.mrb[0].mxu0 %v702
        %v2510 = vpop.f32.mrb[0].mxu0
        %v2511 = vadd.f32 %v672, %v2510
        %v2512 = vpop.f32.mrb[0].mxu0
        %v2513 = vadd.f32 %v676, %v2512
        %v2514 = vpop.f32.mrb[0].mxu0
        %v2515 = vpop.f32.mrb[0].mxu0
        %2516 = vdwg.mxu0
        %2517 = vmatprep.subr.bf16.mxu0 %v1773
        %2518 = vmatpush1.bf16.msra.mxu0 %v1772
        %2519 = vmatprep.subr.bf16.mxu0 %v1785
        %2520 = vmatpush1.bf16.msra.mxu0 %v1784
        %2521 = vmatprep.subr.bf16.mxu0 %v1797
        %2522 = vmatpush1.bf16.msra.mxu0 %v1796
        %2523 = vmatprep.subr.bf16.mxu0 %v1809
        %2524 = vmatpush1.bf16.msra.mxu0 %v1808
        %2525 = vmatprep.subr.bf16.mxu0 %v1821
        %2526 = vmatpush1.bf16.msra.mxu0 %v1820
        %2527 = vmatprep.subr.bf16.mxu0 %v1833
        %2528 = vmatpush1.bf16.msra.mxu0 %v1832
        %2529 = vmatprep.subr.bf16.mxu0 %v1845
        %2530 = vmatpush1.bf16.msra.mxu0 %v1844
        %2531 = vmatprep.subr.bf16.mxu0 %v1857
        %2532 = vmatpush1.bf16.msra.mxu0 %v1856
        %2533 = vmatprep.subr.bf16.mxu0 0
        %2534 = vmatpush1.bf16.msra.mxu0 0
        %2535 = vmatprep.subr.bf16.mxu0 0
        %2536 = vmatpush1.bf16.msra.mxu0 0
        %2537 = vmatprep.subr.bf16.mxu0 0
        %2538 = vmatpush1.bf16.msra.mxu0 0
        %2539 = vmatprep.subr.bf16.mxu0 0
        %2540 = vmatpush1.bf16.msra.mxu0 0
        %2541 = vmatprep.subr.bf16.mxu0 0
        %2542 = vmatpush1.bf16.msra.mxu0 0
        %2543 = vmatprep.subr.bf16.mxu0 0
        %2544 = vmatpush1.bf16.msra.mxu0 0
        %2545 = vmatprep.subr.bf16.mxu0 0
        %2546 = vmatpush1.bf16.msra.mxu0 0
        %2547 = vmatprep.subr.bf16.mxu0 0
        %2548 = vmatpush1.bf16.msra.mxu0 0
        %2549 = vmatprep.mubr.bf16.mxu0 0
        %2550 = vmatmul.mubr.bf16.gmra.mrb[0].mxu0 %v704
        %v2551 = vpop.f32.mrb[0].mxu0
        %v2552 = vadd.f32 %v2511, %v2551
        %v2553 = vpop.f32.mrb[0].mxu0
        %v2554 = vadd.f32 %v2513, %v2553
        %v2555 = vpop.f32.mrb[0].mxu0
        %v2556 = vpop.f32.mrb[0].mxu0
        %2557 = vdwg.mxu0
        %2558 = vmatprep.subr.bf16.mxu0 %v1583
        %2559 = vmatpush1.bf16.msra.mxu0 %v1582
        %2560 = vmatprep.subr.bf16.mxu0 %v1595
        %2561 = vmatpush1.bf16.msra.mxu0 %v1594
        %2562 = vmatprep.subr.bf16.mxu0 %v1607
        %2563 = vmatpush1.bf16.msra.mxu0 %v1606
        %2564 = vmatprep.subr.bf16.mxu0 %v1619
        %2565 = vmatpush1.bf16.msra.mxu0 %v1618
        %2566 = vmatprep.subr.bf16.mxu0 %v1631
        %2567 = vmatpush1.bf16.msra.mxu0 %v1630
        %2568 = vmatprep.subr.bf16.mxu0 %v1643
        %2569 = vmatpush1.bf16.msra.mxu0 %v1642
        %2570 = vmatprep.subr.bf16.mxu0 %v1655
        %2571 = vmatpush1.bf16.msra.mxu0 %v1654
        %2572 = vmatprep.subr.bf16.mxu0 %v1667
        %2573 = vmatpush1.bf16.msra.mxu0 %v1666
        %2574 = vmatprep.subr.bf16.mxu0 %v1679
        %2575 = vmatpush1.bf16.msra.mxu0 %v1678
        %2576 = vmatprep.subr.bf16.mxu0 %v1691
        %2577 = vmatpush1.bf16.msra.mxu0 %v1690
        %2578 = vmatprep.subr.bf16.mxu0 %v1703
        %2579 = vmatpush1.bf16.msra.mxu0 %v1702
        %2580 = vmatprep.subr.bf16.mxu0 %v1715
        %2581 = vmatpush1.bf16.msra.mxu0 %v1714
        %2582 = vmatprep.subr.bf16.mxu0 %v1727
        %2583 = vmatpush1.bf16.msra.mxu0 %v1726
        %2584 = vmatprep.subr.bf16.mxu0 %v1739
        %2585 = vmatpush1.bf16.msra.mxu0 %v1738
        %2586 = vmatprep.subr.bf16.mxu0 %v1751
        %2587 = vmatpush1.bf16.msra.mxu0 %v1750
        %2588 = vmatprep.subr.bf16.mxu0 %v1763
        %2589 = vmatpush1.bf16.msra.mxu0 %v1762
        %2590 = vmatprep.mubr.bf16.mxu0 %v703
        %2591 = vmatmul.mubr.bf16.gmra.mrb[0].mxu0 %v702
        %v2592 = vpop.f32.mrb[0].mxu0
        %v2593 = vadd.f32 %v680, %v2592
        %v2594 = vpop.f32.mrb[0].mxu0
        %v2595 = vadd.f32 %v684, %v2594
        %v2596 = vpop.f32.mrb[0].mxu0
        %v2597 = vpop.f32.mrb[0].mxu0
        %2598 = vdwg.mxu0
        %2599 = vmatprep.subr.bf16.mxu0 %v1775
        %2600 = vmatpush1.bf16.msra.mxu0 %v1774
        %2601 = vmatprep.subr.bf16.mxu0 %v1787
        %2602 = vmatpush1.bf16.msra.mxu0 %v1786
        %2603 = vmatprep.subr.bf16.mxu0 %v1799
        %2604 = vmatpush1.bf16.msra.mxu0 %v1798
        %2605 = vmatprep.subr.bf16.mxu0 %v1811
        %2606 = vmatpush1.bf16.msra.mxu0 %v1810
        %2607 = vmatprep.subr.bf16.mxu0 %v1823
        %2608 = vmatpush1.bf16.msra.mxu0 %v1822
        %2609 = vmatprep.subr.bf16.mxu0 %v1835
        %2610 = vmatpush1.bf16.msra.mxu0 %v1834
        %2611 = vmatprep.subr.bf16.mxu0 %v1847
        %2612 = vmatpush1.bf16.msra.mxu0 %v1846
        %2613 = vmatprep.subr.bf16.mxu0 %v1859
        %2614 = vmatpush1.bf16.msra.mxu0 %v1858
        %2615 = vmatprep.subr.bf16.mxu0 0
        %2616 = vmatpush1.bf16.msra.mxu0 0
        %2617 = vmatprep.subr.bf16.mxu0 0
        %2618 = vmatpush1.bf16.msra.mxu0 0
        %2619 = vmatprep.subr.bf16.mxu0 0
        %2620 = vmatpush1.bf16.msra.mxu0 0
        %2621 = vmatprep.subr.bf16.mxu0 0
        %2622 = vmatpush1.bf16.msra.mxu0 0
        %2623 = vmatprep.subr.bf16.mxu0 0
        %2624 = vmatpush1.bf16.msra.mxu0 0
        %2625 = vmatprep.subr.bf16.mxu0 0
        %2626 = vmatpush1.bf16.msra.mxu0 0
        %2627 = vmatprep.subr.bf16.mxu0 0
        %2628 = vmatpush1.bf16.msra.mxu0 0
        %2629 = vmatprep.subr.bf16.mxu0 0
        %2630 = vmatpush1.bf16.msra.mxu0 0
        %2631 = vmatprep.mubr.bf16.mxu0 0
        %2632 = vmatmul.mubr.bf16.gmra.mrb[0].mxu0 %v704
        %v2633 = vpop.f32.mrb[0].mxu0
        %v2634 = vadd.f32 %v2593, %v2633
        %v2635 = vpop.f32.mrb[0].mxu0
        %v2636 = vadd.f32 %v2595, %v2635
        %v2637 = vpop.f32.mrb[0].mxu0
        %v2638 = vpop.f32.mrb[0].mxu0
        %2639 = vdwg.mxu0
        %v2640 = vmax.f32 %v2224, 0.0
        %v2641 = vmax.f32 %v2226, 0.0
        %v2642 = vmax.f32 %v2306, 0.0
        %v2643 = vmax.f32 %v2308, 0.0
        %v2644 = vmax.f32 %v2388, 0.0
        %v2645 = vmax.f32 %v2390, 0.0
        %v2646 = vmax.f32 %v2470, 0.0
        %v2647 = vmax.f32 %v2472, 0.0
        %v2648 = vmax.f32 %v2552, 0.0
        %v2649 = vmax.f32 %v2554, 0.0
        %v2650 = vmax.f32 %v2634, 0.0
        %v2651 = vmax.f32 %v2636, 0.0
        %v2652 = vld [vmem:[#allocation2] sm:$0xff]
        %v2653 = vld [vmem:[#allocation2 + $0x8] sm:$0xff]
        %v2654 = vld [vmem:[#allocation2 + $0x10] sm:$0xff]
        %v2655 = vpack.c.bf16 %v2640, %v2640
        %v2656 = vpack.c.bf16 %v2641, %v2641
        %v2657 = vpack.c.bf16 %v2642, %v2642
        %v2658 = vpack.c.bf16 %v2643, %v2643
        %v2659 = vpack.c.bf16 %v2644, %v2644
        %v2660 = vpack.c.bf16 %v2645, %v2645
        %v2661 = vpack.c.bf16 %v2646, %v2646
        %v2662 = vpack.c.bf16 %v2647, %v2647
        %v2663 = vpack.c.bf16 %v2648, %v2648
        %v2664 = vpack.c.bf16 %v2649, %v2649
        %v2665 = vpack.c.bf16 %v2650, %v2650
        %v2666 = vpack.c.bf16 %v2651, %v2651
        %v2667 = vld [vmem:[#allocation9] sm:$0xff]
        %v2668 = vld [vmem:[#allocation9 + $0x8] sm:$0xf]
        %v2669 = vld [vmem:[#allocation9 + $0xc] sm:$0xff]
        %v2670 = vld [vmem:[#allocation9 + $0x14] sm:$0xf]
        %v2671 = vld [vmem:[#allocation9 + $0x18] sm:$0xff]
        %v2672 = vld [vmem:[#allocation9 + $0x20] sm:$0xf]
        %v2673 = vld [vmem:[#allocation9 + $0x24] sm:$0xff]
        %v2674 = vld [vmem:[#allocation9 + $0x2c] sm:$0xf]
        %v2675 = vld [vmem:[#allocation9 + $0x30] sm:$0xff]
        %v2676 = vld [vmem:[#allocation9 + $0x38] sm:$0xf]
        %v2677 = vld [vmem:[#allocation9 + $0x3c] sm:$0xff]
        %v2678 = vld [vmem:[#allocation9 + $0x44] sm:$0xf]
        %v2679 = vld [vmem:[#allocation9 + $0x48] sm:$0xff]
        %v2680 = vld [vmem:[#allocation9 + $0x50] sm:$0xf]
        %v2681 = vld [vmem:[#allocation9 + $0x54] sm:$0xff]
        %v2682 = vld [vmem:[#allocation9 + $0x5c] sm:$0xf]
        %v2683 = vld [vmem:[#allocation9 + $0x60] sm:$0xff]
        %v2684 = vld [vmem:[#allocation9 + $0x68] sm:$0xf]
        %v2685 = vld [vmem:[#allocation9 + $0x6c] sm:$0xff]
        %v2686 = vld [vmem:[#allocation9 + $0x74] sm:$0xf]
        %v2687 = vld [vmem:[#allocation9 + $0x78] sm:$0xff]
        %v2688 = vld [vmem:[#allocation9 + $0x80] sm:$0xf]
        %v2689 = vld [vmem:[#allocation9 + $0x84] sm:$0xff]
        %v2690 = vld [vmem:[#allocation9 + $0x8c] sm:$0xf]
        %v2691 = vld [vmem:[#allocation9 + $0x90] sm:$0xff]
        %v2692 = vld [vmem:[#allocation9 + $0x98] sm:$0xf]
        %v2693 = vld [vmem:[#allocation9 + $0x9c] sm:$0xff]
        %v2694 = vld [vmem:[#allocation9 + $0xa4] sm:$0xf]
        %v2695 = vld [vmem:[#allocation9 + $0xa8] sm:$0xff]
        %v2696 = vld [vmem:[#allocation9 + $0xb0] sm:$0xf]
        %v2697 = vld [vmem:[#allocation9 + $0xb4] sm:$0xff]
        %v2698 = vld [vmem:[#allocation9 + $0xbc] sm:$0xf]
        %v2699 = vld [vmem:[#allocation9 + $0xc0] sm:$0xff]
        %v2700 = vld [vmem:[#allocation9 + $0xc8] sm:$0xf]
        %v2701 = vld [vmem:[#allocation9 + $0xcc] sm:$0xff]
        %v2702 = vld [vmem:[#allocation9 + $0xd4] sm:$0xf]
        %v2703 = vld [vmem:[#allocation9 + $0xd8] sm:$0xff]
        %v2704 = vld [vmem:[#allocation9 + $0xe0] sm:$0xf]
        %v2705 = vld [vmem:[#allocation9 + $0xe4] sm:$0xff]
        %v2706 = vld [vmem:[#allocation9 + $0xec] sm:$0xf]
        %v2707 = vld [vmem:[#allocation9 + $0xf0] sm:$0xff]
        %v2708 = vld [vmem:[#allocation9 + $0xf8] sm:$0xf]
        %v2709 = vld [vmem:[#allocation9 + $0xfc] sm:$0xff]
        %v2710 = vld [vmem:[#allocation9 + $0x104] sm:$0xf]
        %v2711 = vld [vmem:[#allocation9 + $0x108] sm:$0xff]
        %v2712 = vld [vmem:[#allocation9 + $0x110] sm:$0xf]
        %v2713 = vld [vmem:[#allocation9 + $0x114] sm:$0xff]
        %v2714 = vld [vmem:[#allocation9 + $0x11c] sm:$0xf]
        %v2715 = vld [vmem:[#allocation9 + $0x120] sm:$0xff]
        %v2716 = vld [vmem:[#allocation9 + $0x128] sm:$0xf]
        %v2717 = vld [vmem:[#allocation9 + $0x12c] sm:$0xff]
        %v2718 = vld [vmem:[#allocation9 + $0x134] sm:$0xf]
        %v2719 = vld [vmem:[#allocation9 + $0x138] sm:$0xff]
        %v2720 = vld [vmem:[#allocation9 + $0x140] sm:$0xf]
        %v2721 = vld [vmem:[#allocation9 + $0x144] sm:$0xff]
        %v2722 = vld [vmem:[#allocation9 + $0x14c] sm:$0xf]
        %v2723 = vld [vmem:[#allocation9 + $0x150] sm:$0xff]
        %v2724 = vld [vmem:[#allocation9 + $0x158] sm:$0xf]
        %v2725 = vld [vmem:[#allocation9 + $0x15c] sm:$0xff]
        %v2726 = vld [vmem:[#allocation9 + $0x164] sm:$0xf]
        %v2727 = vld [vmem:[#allocation9 + $0x168] sm:$0xff]
        %v2728 = vld [vmem:[#allocation9 + $0x170] sm:$0xf]
        %v2729 = vld [vmem:[#allocation9 + $0x174] sm:$0xff]
        %v2730 = vld [vmem:[#allocation9 + $0x17c] sm:$0xf]
        %v2731 = vld [vmem:[#allocation9 + $0x180] sm:$0xff]
        %v2732 = vld [vmem:[#allocation9 + $0x188] sm:$0xf]
        %v2733 = vld [vmem:[#allocation9 + $0x18c] sm:$0xff]
        %v2734 = vld [vmem:[#allocation9 + $0x194] sm:$0xf]
        %v2735 = vld [vmem:[#allocation9 + $0x198] sm:$0xff]
        %v2736 = vld [vmem:[#allocation9 + $0x1a0] sm:$0xf]
        %v2737 = vld [vmem:[#allocation9 + $0x1a4] sm:$0xff]
        %v2738 = vld [vmem:[#allocation9 + $0x1ac] sm:$0xf]
        %v2739 = vld [vmem:[#allocation9 + $0x1b0] sm:$0xff]
        %v2740 = vld [vmem:[#allocation9 + $0x1b8] sm:$0xf]
        %v2741 = vld [vmem:[#allocation9 + $0x1bc] sm:$0xff]
        %v2742 = vld [vmem:[#allocation9 + $0x1c4] sm:$0xf]
        %v2743 = vld [vmem:[#allocation9 + $0x1c8] sm:$0xff]
        %v2744 = vld [vmem:[#allocation9 + $0x1d0] sm:$0xf]
        %v2745 = vld [vmem:[#allocation9 + $0x1d4] sm:$0xff]
        %v2746 = vld [vmem:[#allocation9 + $0x1dc] sm:$0xf]
        %v2747 = vld [vmem:[#allocation9 + $0x1e0] sm:$0xff]
        %v2748 = vld [vmem:[#allocation9 + $0x1e8] sm:$0xf]
        %v2749 = vld [vmem:[#allocation9 + $0x1ec] sm:$0xff]
        %v2750 = vld [vmem:[#allocation9 + $0x1f4] sm:$0xf]
        %v2751 = vld [vmem:[#allocation9 + $0x1f8] sm:$0xff]
        %v2752 = vld [vmem:[#allocation9 + $0x200] sm:$0xf]
        %v2753 = vld [vmem:[#allocation9 + $0x204] sm:$0xff]
        %v2754 = vld [vmem:[#allocation9 + $0x20c] sm:$0xf]
        %v2755 = vld [vmem:[#allocation9 + $0x210] sm:$0xff]
        %v2756 = vld [vmem:[#allocation9 + $0x218] sm:$0xf]
        %v2757 = vld [vmem:[#allocation9 + $0x21c] sm:$0xff]
        %v2758 = vld [vmem:[#allocation9 + $0x224] sm:$0xf]
        %v2759 = vld [vmem:[#allocation9 + $0x228] sm:$0xff]
        %v2760 = vld [vmem:[#allocation9 + $0x230] sm:$0xf]
        %v2761 = vld [vmem:[#allocation9 + $0x234] sm:$0xff]
        %v2762 = vld [vmem:[#allocation9 + $0x23c] sm:$0xf]
        %v2763 = vld [vmem:[#allocation9 + $0x240] sm:$0xff]
        %v2764 = vld [vmem:[#allocation9 + $0x248] sm:$0xf]
        %v2765 = vld [vmem:[#allocation9 + $0x24c] sm:$0xff]
        %v2766 = vld [vmem:[#allocation9 + $0x254] sm:$0xf]
        %v2767 = vld [vmem:[#allocation9 + $0x258] sm:$0xff]
        %v2768 = vld [vmem:[#allocation9 + $0x260] sm:$0xf]
        %v2769 = vld [vmem:[#allocation9 + $0x264] sm:$0xff]
        %v2770 = vld [vmem:[#allocation9 + $0x26c] sm:$0xf]
        %v2771 = vld [vmem:[#allocation9 + $0x270] sm:$0xff]
        %v2772 = vld [vmem:[#allocation9 + $0x278] sm:$0xf]
        %v2773 = vld [vmem:[#allocation9 + $0x27c] sm:$0xff]
        %v2774 = vld [vmem:[#allocation9 + $0x284] sm:$0xf]
        %v2775 = vld [vmem:[#allocation9 + $0x288] sm:$0xff]
        %v2776 = vld [vmem:[#allocation9 + $0x290] sm:$0xf]
        %v2777 = vld [vmem:[#allocation9 + $0x294] sm:$0xff]
        %v2778 = vld [vmem:[#allocation9 + $0x29c] sm:$0xf]
        %v2779 = vld [vmem:[#allocation9 + $0x2a0] sm:$0xff]
        %v2780 = vld [vmem:[#allocation9 + $0x2a8] sm:$0xf]
        %v2781 = vld [vmem:[#allocation9 + $0x2ac] sm:$0xff]
        %v2782 = vld [vmem:[#allocation9 + $0x2b4] sm:$0xf]
        %v2783 = vld [vmem:[#allocation9 + $0x2b8] sm:$0xff]
        %v2784 = vld [vmem:[#allocation9 + $0x2c0] sm:$0xf]
        %v2785 = vld [vmem:[#allocation9 + $0x2c4] sm:$0xff]
        %v2786 = vld [vmem:[#allocation9 + $0x2cc] sm:$0xf]
        %v2787 = vld [vmem:[#allocation9 + $0x2d0] sm:$0xff]
        %v2788 = vld [vmem:[#allocation9 + $0x2d8] sm:$0xf]
        %v2789 = vld [vmem:[#allocation9 + $0x2dc] sm:$0xff]
        %v2790 = vld [vmem:[#allocation9 + $0x2e4] sm:$0xf]
        %v2791 = vld [vmem:[#allocation9 + $0x2e8] sm:$0xff]
        %v2792 = vld [vmem:[#allocation9 + $0x2f0] sm:$0xf]
        %v2793 = vld [vmem:[#allocation9 + $0x2f4] sm:$0xff]
        %v2794 = vld [vmem:[#allocation9 + $0x2fc] sm:$0xf]
        %v2795 = vld [vmem:[#allocation9 + $0x300] sm:$0xff]
        %v2796 = vld [vmem:[#allocation9 + $0x308] sm:$0xf]
        %v2797 = vld [vmem:[#allocation9 + $0x30c] sm:$0xff]
        %v2798 = vld [vmem:[#allocation9 + $0x314] sm:$0xf]
        %v2799 = vld [vmem:[#allocation9 + $0x318] sm:$0xff]
        %v2800 = vld [vmem:[#allocation9 + $0x320] sm:$0xf]
        %v2801 = vld [vmem:[#allocation9 + $0x324] sm:$0xff]
        %v2802 = vld [vmem:[#allocation9 + $0x32c] sm:$0xf]
        %v2803 = vld [vmem:[#allocation9 + $0x330] sm:$0xff]
        %v2804 = vld [vmem:[#allocation9 + $0x338] sm:$0xf]
        %v2805 = vld [vmem:[#allocation9 + $0x33c] sm:$0xff]
        %v2806 = vld [vmem:[#allocation9 + $0x344] sm:$0xf]
        %v2807 = vld [vmem:[#allocation9 + $0x348] sm:$0xff]
        %v2808 = vld [vmem:[#allocation9 + $0x350] sm:$0xf]
        %v2809 = vld [vmem:[#allocation9 + $0x354] sm:$0xff]
        %v2810 = vld [vmem:[#allocation9 + $0x35c] sm:$0xf]
        %v2811 = vld [vmem:[#allocation9 + $0x360] sm:$0xff]
        %v2812 = vld [vmem:[#allocation9 + $0x368] sm:$0xf]
        %v2813 = vld [vmem:[#allocation9 + $0x36c] sm:$0xff]
        %v2814 = vld [vmem:[#allocation9 + $0x374] sm:$0xf]
        %v2815 = vld [vmem:[#allocation9 + $0x378] sm:$0xff]
        %v2816 = vld [vmem:[#allocation9 + $0x380] sm:$0xf]
        %v2817 = vld [vmem:[#allocation9 + $0x384] sm:$0xff]
        %v2818 = vld [vmem:[#allocation9 + $0x38c] sm:$0xf]
        %v2819 = vld [vmem:[#allocation9 + $0x390] sm:$0xff]
        %v2820 = vld [vmem:[#allocation9 + $0x398] sm:$0xf]
        %v2821 = vld [vmem:[#allocation9 + $0x39c] sm:$0xff]
        %v2822 = vld [vmem:[#allocation9 + $0x3a4] sm:$0xf]
        %v2823 = vld [vmem:[#allocation9 + $0x3a8] sm:$0xff]
        %v2824 = vld [vmem:[#allocation9 + $0x3b0] sm:$0xf]
        %v2825 = vld [vmem:[#allocation9 + $0x3b4] sm:$0xff]
        %v2826 = vld [vmem:[#allocation9 + $0x3bc] sm:$0xf]
        %v2827 = vld [vmem:[#allocation9 + $0x3c0] sm:$0xff]
        %v2828 = vld [vmem:[#allocation9 + $0x3c8] sm:$0xf]
        %v2829 = vld [vmem:[#allocation9 + $0x3cc] sm:$0xff]
        %v2830 = vld [vmem:[#allocation9 + $0x3d4] sm:$0xf]
        %v2831 = vld [vmem:[#allocation9 + $0x3d8] sm:$0xff]
        %v2832 = vld [vmem:[#allocation9 + $0x3e0] sm:$0xf]
        %v2833 = vld [vmem:[#allocation9 + $0x3e4] sm:$0xff]
        %v2834 = vld [vmem:[#allocation9 + $0x3ec] sm:$0xf]
        %v2835 = vld [vmem:[#allocation9 + $0x3f0] sm:$0xff]
        %v2836 = vld [vmem:[#allocation9 + $0x3f8] sm:$0xf]
        %v2837 = vld [vmem:[#allocation9 + $0x3fc] sm:$0xff]
        %v2838 = vld [vmem:[#allocation9 + $0x404] sm:$0xf]
        %v2839 = vld [vmem:[#allocation9 + $0x408] sm:$0xff]
        %v2840 = vld [vmem:[#allocation9 + $0x410] sm:$0xf]
        %v2841 = vld [vmem:[#allocation9 + $0x414] sm:$0xff]
        %v2842 = vld [vmem:[#allocation9 + $0x41c] sm:$0xf]
        %v2843 = vld [vmem:[#allocation9 + $0x420] sm:$0xff]
        %v2844 = vld [vmem:[#allocation9 + $0x428] sm:$0xf]
        %v2845 = vld [vmem:[#allocation9 + $0x42c] sm:$0xff]
        %v2846 = vld [vmem:[#allocation9 + $0x434] sm:$0xf]
        %v2847 = vld [vmem:[#allocation9 + $0x438] sm:$0xff]
        %v2848 = vld [vmem:[#allocation9 + $0x440] sm:$0xf]
        %v2849 = vld [vmem:[#allocation9 + $0x444] sm:$0xff]
        %v2850 = vld [vmem:[#allocation9 + $0x44c] sm:$0xf]
        %v2851 = vld [vmem:[#allocation9 + $0x450] sm:$0xff]
        %v2852 = vld [vmem:[#allocation9 + $0x458] sm:$0xf]
        %v2853 = vld [vmem:[#allocation9 + $0x45c] sm:$0xff]
        %v2854 = vld [vmem:[#allocation9 + $0x464] sm:$0xf]
        %v2855 = vld [vmem:[#allocation9 + $0x468] sm:$0xff]
        %v2856 = vld [vmem:[#allocation9 + $0x470] sm:$0xf]
        %v2857 = vld [vmem:[#allocation9 + $0x474] sm:$0xff]
        %v2858 = vld [vmem:[#allocation9 + $0x47c] sm:$0xf]
        %v2859 = vld [vmem:[#allocation9 + $0x480] sm:$0xff]
        %v2860 = vld [vmem:[#allocation9 + $0x488] sm:$0xf]
        %v2861 = vld [vmem:[#allocation9 + $0x48c] sm:$0xff]
        %v2862 = vld [vmem:[#allocation9 + $0x494] sm:$0xf]
        %v2863 = vld [vmem:[#allocation9 + $0x498] sm:$0xff]
        %v2864 = vld [vmem:[#allocation9 + $0x4a0] sm:$0xf]
        %v2865 = vld [vmem:[#allocation9 + $0x4a4] sm:$0xff]
        %v2866 = vld [vmem:[#allocation9 + $0x4ac] sm:$0xf]
        %v2867 = vld [vmem:[#allocation9 + $0x4b0] sm:$0xff]
        %v2868 = vld [vmem:[#allocation9 + $0x4b8] sm:$0xf]
        %v2869 = vld [vmem:[#allocation9 + $0x4bc] sm:$0xff]
        %v2870 = vld [vmem:[#allocation9 + $0x4c4] sm:$0xf]
        %v2871 = vld [vmem:[#allocation9 + $0x4c8] sm:$0xff]
        %v2872 = vld [vmem:[#allocation9 + $0x4d0] sm:$0xf]
        %v2873 = vld [vmem:[#allocation9 + $0x4d4] sm:$0xff]
        %v2874 = vld [vmem:[#allocation9 + $0x4dc] sm:$0xf]
        %v2875 = vld [vmem:[#allocation9 + $0x4e0] sm:$0xff]
        %v2876 = vld [vmem:[#allocation9 + $0x4e8] sm:$0xf]
        %v2877 = vld [vmem:[#allocation9 + $0x4ec] sm:$0xff]
        %v2878 = vld [vmem:[#allocation9 + $0x4f4] sm:$0xf]
        %v2879 = vld [vmem:[#allocation9 + $0x4f8] sm:$0xff]
        %v2880 = vld [vmem:[#allocation9 + $0x500] sm:$0xf]
        %v2881 = vld [vmem:[#allocation9 + $0x504] sm:$0xff]
        %v2882 = vld [vmem:[#allocation9 + $0x50c] sm:$0xf]
        %v2883 = vld [vmem:[#allocation9 + $0x510] sm:$0xff]
        %v2884 = vld [vmem:[#allocation9 + $0x518] sm:$0xf]
        %v2885 = vld [vmem:[#allocation9 + $0x51c] sm:$0xff]
        %v2886 = vld [vmem:[#allocation9 + $0x524] sm:$0xf]
        %v2887 = vld [vmem:[#allocation9 + $0x528] sm:$0xff]
        %v2888 = vld [vmem:[#allocation9 + $0x530] sm:$0xf]
        %v2889 = vld [vmem:[#allocation9 + $0x534] sm:$0xff]
        %v2890 = vld [vmem:[#allocation9 + $0x53c] sm:$0xf]
        %v2891 = vld [vmem:[#allocation9 + $0x540] sm:$0xff]
        %v2892 = vld [vmem:[#allocation9 + $0x548] sm:$0xf]
        %v2893 = vld [vmem:[#allocation9 + $0x54c] sm:$0xff]
        %v2894 = vld [vmem:[#allocation9 + $0x554] sm:$0xf]
        %v2895 = vld [vmem:[#allocation9 + $0x558] sm:$0xff]
        %v2896 = vld [vmem:[#allocation9 + $0x560] sm:$0xf]
        %v2897 = vld [vmem:[#allocation9 + $0x564] sm:$0xff]
        %v2898 = vld [vmem:[#allocation9 + $0x56c] sm:$0xf]
        %v2899 = vld [vmem:[#allocation9 + $0x570] sm:$0xff]
        %v2900 = vld [vmem:[#allocation9 + $0x578] sm:$0xf]
        %v2901 = vld [vmem:[#allocation9 + $0x57c] sm:$0xff]
        %v2902 = vld [vmem:[#allocation9 + $0x584] sm:$0xf]
        %v2903 = vld [vmem:[#allocation9 + $0x588] sm:$0xff]
        %v2904 = vld [vmem:[#allocation9 + $0x590] sm:$0xf]
        %v2905 = vld [vmem:[#allocation9 + $0x594] sm:$0xff]
        %v2906 = vld [vmem:[#allocation9 + $0x59c] sm:$0xf]
        %v2907 = vld [vmem:[#allocation9 + $0x5a0] sm:$0xff]
        %v2908 = vld [vmem:[#allocation9 + $0x5a8] sm:$0xf]
        %v2909 = vld [vmem:[#allocation9 + $0x5ac] sm:$0xff]
        %v2910 = vld [vmem:[#allocation9 + $0x5b4] sm:$0xf]
        %v2911 = vld [vmem:[#allocation9 + $0x5b8] sm:$0xff]
        %v2912 = vld [vmem:[#allocation9 + $0x5c0] sm:$0xf]
        %v2913 = vld [vmem:[#allocation9 + $0x5c4] sm:$0xff]
        %v2914 = vld [vmem:[#allocation9 + $0x5cc] sm:$0xf]
        %v2915 = vld [vmem:[#allocation9 + $0x5d0] sm:$0xff]
        %v2916 = vld [vmem:[#allocation9 + $0x5d8] sm:$0xf]
        %v2917 = vld [vmem:[#allocation9 + $0x5dc] sm:$0xff]
        %v2918 = vld [vmem:[#allocation9 + $0x5e4] sm:$0xf]
        %v2919 = vld [vmem:[#allocation9 + $0x5e8] sm:$0xff]
        %v2920 = vld [vmem:[#allocation9 + $0x5f0] sm:$0xf]
        %v2921 = vld [vmem:[#allocation9 + $0x5f4] sm:$0xff]
        %v2922 = vld [vmem:[#allocation9 + $0x5fc] sm:$0xf]
        %v2923 = vld [vmem:[#allocation9 + $0x600] sm:$0xff]
        %v2924 = vld [vmem:[#allocation9 + $0x608] sm:$0xf]
        %v2925 = vld [vmem:[#allocation9 + $0x60c] sm:$0xff]
        %v2926 = vld [vmem:[#allocation9 + $0x614] sm:$0xf]
        %v2927 = vld [vmem:[#allocation9 + $0x618] sm:$0xff]
        %v2928 = vld [vmem:[#allocation9 + $0x620] sm:$0xf]
        %v2929 = vld [vmem:[#allocation9 + $0x624] sm:$0xff]
        %v2930 = vld [vmem:[#allocation9 + $0x62c] sm:$0xf]
        %v2931 = vld [vmem:[#allocation9 + $0x630] sm:$0xff]
        %v2932 = vld [vmem:[#allocation9 + $0x638] sm:$0xf]
        %v2933 = vld [vmem:[#allocation9 + $0x63c] sm:$0xff]
        %v2934 = vld [vmem:[#allocation9 + $0x644] sm:$0xf]
        %v2935 = vld [vmem:[#allocation9 + $0x648] sm:$0xff]
        %v2936 = vld [vmem:[#allocation9 + $0x650] sm:$0xf]
        %v2937 = vld [vmem:[#allocation9 + $0x654] sm:$0xff]
        %v2938 = vld [vmem:[#allocation9 + $0x65c] sm:$0xf]
        %v2939 = vld [vmem:[#allocation9 + $0x660] sm:$0xff]
        %v2940 = vld [vmem:[#allocation9 + $0x668] sm:$0xf]
        %v2941 = vld [vmem:[#allocation9 + $0x66c] sm:$0xff]
        %v2942 = vld [vmem:[#allocation9 + $0x674] sm:$0xf]
        %v2943 = vld [vmem:[#allocation9 + $0x678] sm:$0xff]
        %v2944 = vld [vmem:[#allocation9 + $0x680] sm:$0xf]
        %v2945 = vld [vmem:[#allocation9 + $0x684] sm:$0xff]
        %v2946 = vld [vmem:[#allocation9 + $0x68c] sm:$0xf]
        %v2947 = vld [vmem:[#allocation9 + $0x690] sm:$0xff]
        %v2948 = vld [vmem:[#allocation9 + $0x698] sm:$0xf]
        %v2949 = vld [vmem:[#allocation9 + $0x69c] sm:$0xff]
        %v2950 = vld [vmem:[#allocation9 + $0x6a4] sm:$0xf]
        %v2951 = vld [vmem:[#allocation9 + $0x6a8] sm:$0xff]
        %v2952 = vld [vmem:[#allocation9 + $0x6b0] sm:$0xf]
        %v2953 = vld [vmem:[#allocation9 + $0x6b4] sm:$0xff]
        %v2954 = vld [vmem:[#allocation9 + $0x6bc] sm:$0xf]
        %v2955 = vld [vmem:[#allocation9 + $0x6c0] sm:$0xff]
        %v2956 = vld [vmem:[#allocation9 + $0x6c8] sm:$0xf]
        %v2957 = vld [vmem:[#allocation9 + $0x6cc] sm:$0xff]
        %v2958 = vld [vmem:[#allocation9 + $0x6d4] sm:$0xf]
        %v2959 = vld [vmem:[#allocation9 + $0x6d8] sm:$0xff]
        %v2960 = vld [vmem:[#allocation9 + $0x6e0] sm:$0xf]
        %v2961 = vld [vmem:[#allocation9 + $0x6e4] sm:$0xff]
        %v2962 = vld [vmem:[#allocation9 + $0x6ec] sm:$0xf]
        %v2963 = vld [vmem:[#allocation9 + $0x6f0] sm:$0xff]
        %v2964 = vld [vmem:[#allocation9 + $0x6f8] sm:$0xf]
        %v2965 = vld [vmem:[#allocation9 + $0x6fc] sm:$0xff]
        %v2966 = vld [vmem:[#allocation9 + $0x704] sm:$0xf]
        %v2967 = vld [vmem:[#allocation9 + $0x708] sm:$0xff]
        %v2968 = vld [vmem:[#allocation9 + $0x710] sm:$0xf]
        %v2969 = vld [vmem:[#allocation9 + $0x714] sm:$0xff]
        %v2970 = vld [vmem:[#allocation9 + $0x71c] sm:$0xf]
        %v2971 = vld [vmem:[#allocation9 + $0x720] sm:$0xff]
        %v2972 = vld [vmem:[#allocation9 + $0x728] sm:$0xf]
        %v2973 = vld [vmem:[#allocation9 + $0x72c] sm:$0xff]
        %v2974 = vld [vmem:[#allocation9 + $0x734] sm:$0xf]
        %v2975 = vld [vmem:[#allocation9 + $0x738] sm:$0xff]
        %v2976 = vld [vmem:[#allocation9 + $0x740] sm:$0xf]
        %v2977 = vld [vmem:[#allocation9 + $0x744] sm:$0xff]
        %v2978 = vld [vmem:[#allocation9 + $0x74c] sm:$0xf]
        %v2979 = vld [vmem:[#allocation9 + $0x750] sm:$0xff]
        %v2980 = vld [vmem:[#allocation9 + $0x758] sm:$0xf]
        %v2981 = vld [vmem:[#allocation9 + $0x75c] sm:$0xff]
        %v2982 = vld [vmem:[#allocation9 + $0x764] sm:$0xf]
        %v2983 = vld [vmem:[#allocation9 + $0x768] sm:$0xff]
        %v2984 = vld [vmem:[#allocation9 + $0x770] sm:$0xf]
        %v2985 = vld [vmem:[#allocation9 + $0x774] sm:$0xff]
        %v2986 = vld [vmem:[#allocation9 + $0x77c] sm:$0xf]
        %v2987 = vld [vmem:[#allocation9 + $0x780] sm:$0xff]
        %v2988 = vld [vmem:[#allocation9 + $0x788] sm:$0xf]
        %v2989 = vld [vmem:[#allocation9 + $0x78c] sm:$0xff]
        %v2990 = vld [vmem:[#allocation9 + $0x794] sm:$0xf]
        %v2991 = vld [vmem:[#allocation9 + $0x798] sm:$0xff]
        %v2992 = vld [vmem:[#allocation9 + $0x7a0] sm:$0xf]
        %v2993 = vld [vmem:[#allocation9 + $0x7a4] sm:$0xff]
        %v2994 = vld [vmem:[#allocation9 + $0x7ac] sm:$0xf]
        %v2995 = vld [vmem:[#allocation9 + $0x7b0] sm:$0xff]
        %v2996 = vld [vmem:[#allocation9 + $0x7b8] sm:$0xf]
        %v2997 = vld [vmem:[#allocation9 + $0x7bc] sm:$0xff]
        %v2998 = vld [vmem:[#allocation9 + $0x7c4] sm:$0xf]
        %v2999 = vld [vmem:[#allocation9 + $0x7c8] sm:$0xff]
        %v3000 = vld [vmem:[#allocation9 + $0x7d0] sm:$0xf]
        %v3001 = vld [vmem:[#allocation9 + $0x7d4] sm:$0xff]
        %v3002 = vld [vmem:[#allocation9 + $0x7dc] sm:$0xf]
        %v3003 = vld [vmem:[#allocation9 + $0x7e0] sm:$0xff]
        %v3004 = vld [vmem:[#allocation9 + $0x7e8] sm:$0xf]
        %v3005 = vld [vmem:[#allocation9 + $0x7ec] sm:$0xff]
        %v3006 = vld [vmem:[#allocation9 + $0x7f4] sm:$0xf]
        %v3007 = vld [vmem:[#allocation9 + $0x7f8] sm:$0xff]
        %v3008 = vld [vmem:[#allocation9 + $0x800] sm:$0xf]
        %v3009 = vld [vmem:[#allocation9 + $0x804] sm:$0xff]
        %v3010 = vld [vmem:[#allocation9 + $0x80c] sm:$0xf]
        %v3011 = vld [vmem:[#allocation9 + $0x810] sm:$0xff]
        %v3012 = vld [vmem:[#allocation9 + $0x818] sm:$0xf]
        %v3013 = vld [vmem:[#allocation9 + $0x81c] sm:$0xff]
        %v3014 = vld [vmem:[#allocation9 + $0x824] sm:$0xf]
        %v3015 = vld [vmem:[#allocation9 + $0x828] sm:$0xff]
        %v3016 = vld [vmem:[#allocation9 + $0x830] sm:$0xf]
        %v3017 = vld [vmem:[#allocation9 + $0x834] sm:$0xff]
        %v3018 = vld [vmem:[#allocation9 + $0x83c] sm:$0xf]
        %v3019 = vld [vmem:[#allocation9 + $0x840] sm:$0xff]
        %v3020 = vld [vmem:[#allocation9 + $0x848] sm:$0xf]
        %v3021 = vld [vmem:[#allocation9 + $0x84c] sm:$0xff]
        %v3022 = vld [vmem:[#allocation9 + $0x854] sm:$0xf]
        %v3023 = vld [vmem:[#allocation9 + $0x858] sm:$0xff]
        %v3024 = vld [vmem:[#allocation9 + $0x860] sm:$0xf]
        %v3025 = vld [vmem:[#allocation9 + $0x864] sm:$0xff]
        %v3026 = vld [vmem:[#allocation9 + $0x86c] sm:$0xf]
        %v3027 = vld [vmem:[#allocation9 + $0x870] sm:$0xff]
        %v3028 = vld [vmem:[#allocation9 + $0x878] sm:$0xf]
        %v3029 = vld [vmem:[#allocation9 + $0x87c] sm:$0xff]
        %v3030 = vld [vmem:[#allocation9 + $0x884] sm:$0xf]
        %v3031 = vld [vmem:[#allocation9 + $0x888] sm:$0xff]
        %v3032 = vld [vmem:[#allocation9 + $0x890] sm:$0xf]
        %v3033 = vld [vmem:[#allocation9 + $0x894] sm:$0xff]
        %v3034 = vld [vmem:[#allocation9 + $0x89c] sm:$0xf]
        %v3035 = vld [vmem:[#allocation9 + $0x8a0] sm:$0xff]
        %v3036 = vld [vmem:[#allocation9 + $0x8a8] sm:$0xf]
        %v3037 = vld [vmem:[#allocation9 + $0x8ac] sm:$0xff]
        %v3038 = vld [vmem:[#allocation9 + $0x8b4] sm:$0xf]
        %v3039 = vld [vmem:[#allocation9 + $0x8b8] sm:$0xff]
        %v3040 = vld [vmem:[#allocation9 + $0x8c0] sm:$0xf]
        %v3041 = vld [vmem:[#allocation9 + $0x8c4] sm:$0xff]
        %v3042 = vld [vmem:[#allocation9 + $0x8cc] sm:$0xf]
        %v3043 = vld [vmem:[#allocation9 + $0x8d0] sm:$0xff]
        %v3044 = vld [vmem:[#allocation9 + $0x8d8] sm:$0xf]
        %v3045 = vld [vmem:[#allocation9 + $0x8dc] sm:$0xff]
        %v3046 = vld [vmem:[#allocation9 + $0x8e4] sm:$0xf]
        %v3047 = vld [vmem:[#allocation9 + $0x8e8] sm:$0xff]
        %v3048 = vld [vmem:[#allocation9 + $0x8f0] sm:$0xf]
        %v3049 = vld [vmem:[#allocation9 + $0x8f4] sm:$0xff]
        %v3050 = vld [vmem:[#allocation9 + $0x8fc] sm:$0xf]
        %v3435 = vunpack.c.l.b16 %v2667
        %v3436 = vunpack.c.h.b16 %v2667
        %v3437 = vunpack.c.l.b16 %v2668
        %v3438 = vunpack.c.l.b16 %v2669
        %v3439 = vunpack.c.h.b16 %v2669
        %v3440 = vunpack.c.l.b16 %v2670
        %v3441 = vunpack.c.l.b16 %v2671
        %v3442 = vunpack.c.h.b16 %v2671
        %v3443 = vunpack.c.l.b16 %v2672
        %v3444 = vunpack.c.l.b16 %v2673
        %v3445 = vunpack.c.h.b16 %v2673
        %v3446 = vunpack.c.l.b16 %v2674
        %v3447 = vunpack.c.l.b16 %v2675
        %v3448 = vunpack.c.h.b16 %v2675
        %v3449 = vunpack.c.l.b16 %v2676
        %v3450 = vunpack.c.l.b16 %v2677
        %v3451 = vunpack.c.h.b16 %v2677
        %v3452 = vunpack.c.l.b16 %v2678
        %v3453 = vunpack.c.l.b16 %v2679
        %v3454 = vunpack.c.h.b16 %v2679
        %v3455 = vunpack.c.l.b16 %v2680
        %v3456 = vunpack.c.l.b16 %v2681
        %v3457 = vunpack.c.h.b16 %v2681
        %v3458 = vunpack.c.l.b16 %v2682
        %v3459 = vunpack.c.l.b16 %v2683
        %v3460 = vunpack.c.h.b16 %v2683
        %v3461 = vunpack.c.l.b16 %v2684
        %v3462 = vunpack.c.l.b16 %v2685
        %v3463 = vunpack.c.h.b16 %v2685
        %v3464 = vunpack.c.l.b16 %v2686
        %v3465 = vunpack.c.l.b16 %v2687
        %v3466 = vunpack.c.h.b16 %v2687
        %v3467 = vunpack.c.l.b16 %v2688
        %v3468 = vunpack.c.l.b16 %v2689
        %v3469 = vunpack.c.h.b16 %v2689
        %v3470 = vunpack.c.l.b16 %v2690
        %v3471 = vunpack.c.l.b16 %v2691
        %v3472 = vunpack.c.h.b16 %v2691
        %v3473 = vunpack.c.l.b16 %v2692
        %v3474 = vunpack.c.l.b16 %v2693
        %v3475 = vunpack.c.h.b16 %v2693
        %v3476 = vunpack.c.l.b16 %v2694
        %v3477 = vunpack.c.l.b16 %v2695
        %v3478 = vunpack.c.h.b16 %v2695
        %v3479 = vunpack.c.l.b16 %v2696
        %v3480 = vunpack.c.l.b16 %v2697
        %v3481 = vunpack.c.h.b16 %v2697
        %v3482 = vunpack.c.l.b16 %v2698
        %v3483 = vunpack.c.l.b16 %v2699
        %v3484 = vunpack.c.h.b16 %v2699
        %v3485 = vunpack.c.l.b16 %v2700
        %v3486 = vunpack.c.l.b16 %v2701
        %v3487 = vunpack.c.h.b16 %v2701
        %v3488 = vunpack.c.l.b16 %v2702
        %v3489 = vunpack.c.l.b16 %v2703
        %v3490 = vunpack.c.h.b16 %v2703
        %v3491 = vunpack.c.l.b16 %v2704
        %v3492 = vunpack.c.l.b16 %v2705
        %v3493 = vunpack.c.h.b16 %v2705
        %v3494 = vunpack.c.l.b16 %v2706
        %v3495 = vunpack.c.l.b16 %v2707
        %v3496 = vunpack.c.h.b16 %v2707
        %v3497 = vunpack.c.l.b16 %v2708
        %v3498 = vunpack.c.l.b16 %v2709
        %v3499 = vunpack.c.h.b16 %v2709
        %v3500 = vunpack.c.l.b16 %v2710
        %v3501 = vunpack.c.l.b16 %v2711
        %v3502 = vunpack.c.h.b16 %v2711
        %v3503 = vunpack.c.l.b16 %v2712
        %v3504 = vunpack.c.l.b16 %v2713
        %v3505 = vunpack.c.h.b16 %v2713
        %v3506 = vunpack.c.l.b16 %v2714
        %v3507 = vunpack.c.l.b16 %v2715
        %v3508 = vunpack.c.h.b16 %v2715
        %v3509 = vunpack.c.l.b16 %v2716
        %v3510 = vunpack.c.l.b16 %v2717
        %v3511 = vunpack.c.h.b16 %v2717
        %v3512 = vunpack.c.l.b16 %v2718
        %v3513 = vunpack.c.l.b16 %v2719
        %v3514 = vunpack.c.h.b16 %v2719
        %v3515 = vunpack.c.l.b16 %v2720
        %v3516 = vunpack.c.l.b16 %v2721
        %v3517 = vunpack.c.h.b16 %v2721
        %v3518 = vunpack.c.l.b16 %v2722
        %v3519 = vunpack.c.l.b16 %v2723
        %v3520 = vunpack.c.h.b16 %v2723
        %v3521 = vunpack.c.l.b16 %v2724
        %v3522 = vunpack.c.l.b16 %v2725
        %v3523 = vunpack.c.h.b16 %v2725
        %v3524 = vunpack.c.l.b16 %v2726
        %v3525 = vunpack.c.l.b16 %v2727
        %v3526 = vunpack.c.h.b16 %v2727
        %v3527 = vunpack.c.l.b16 %v2728
        %v3528 = vunpack.c.l.b16 %v2729
        %v3529 = vunpack.c.h.b16 %v2729
        %v3530 = vunpack.c.l.b16 %v2730
        %v3531 = vunpack.c.l.b16 %v2731
        %v3532 = vunpack.c.h.b16 %v2731
        %v3533 = vunpack.c.l.b16 %v2732
        %v3534 = vunpack.c.l.b16 %v2733
        %v3535 = vunpack.c.h.b16 %v2733
        %v3536 = vunpack.c.l.b16 %v2734
        %v3537 = vunpack.c.l.b16 %v2735
        %v3538 = vunpack.c.h.b16 %v2735
        %v3539 = vunpack.c.l.b16 %v2736
        %v3540 = vunpack.c.l.b16 %v2737
        %v3541 = vunpack.c.h.b16 %v2737
        %v3542 = vunpack.c.l.b16 %v2738
        %v3543 = vunpack.c.l.b16 %v2739
        %v3544 = vunpack.c.h.b16 %v2739
        %v3545 = vunpack.c.l.b16 %v2740
        %v3546 = vunpack.c.l.b16 %v2741
        %v3547 = vunpack.c.h.b16 %v2741
        %v3548 = vunpack.c.l.b16 %v2742
        %v3549 = vunpack.c.l.b16 %v2743
        %v3550 = vunpack.c.h.b16 %v2743
        %v3551 = vunpack.c.l.b16 %v2744
        %v3552 = vunpack.c.l.b16 %v2745
        %v3553 = vunpack.c.h.b16 %v2745
        %v3554 = vunpack.c.l.b16 %v2746
        %v3555 = vunpack.c.l.b16 %v2747
        %v3556 = vunpack.c.h.b16 %v2747
        %v3557 = vunpack.c.l.b16 %v2748
        %v3558 = vunpack.c.l.b16 %v2749
        %v3559 = vunpack.c.h.b16 %v2749
        %v3560 = vunpack.c.l.b16 %v2750
        %v3561 = vunpack.c.l.b16 %v2751
        %v3562 = vunpack.c.h.b16 %v2751
        %v3563 = vunpack.c.l.b16 %v2752
        %v3564 = vunpack.c.l.b16 %v2753
        %v3565 = vunpack.c.h.b16 %v2753
        %v3566 = vunpack.c.l.b16 %v2754
        %v3567 = vunpack.c.l.b16 %v2755
        %v3568 = vunpack.c.h.b16 %v2755
        %v3569 = vunpack.c.l.b16 %v2756
        %v3570 = vunpack.c.l.b16 %v2757
        %v3571 = vunpack.c.h.b16 %v2757
        %v3572 = vunpack.c.l.b16 %v2758
        %v3573 = vunpack.c.l.b16 %v2759
        %v3574 = vunpack.c.h.b16 %v2759
        %v3575 = vunpack.c.l.b16 %v2760
        %v3576 = vunpack.c.l.b16 %v2761
        %v3577 = vunpack.c.h.b16 %v2761
        %v3578 = vunpack.c.l.b16 %v2762
        %v3579 = vunpack.c.l.b16 %v2763
        %v3580 = vunpack.c.h.b16 %v2763
        %v3581 = vunpack.c.l.b16 %v2764
        %v3582 = vunpack.c.l.b16 %v2765
        %v3583 = vunpack.c.h.b16 %v2765
        %v3584 = vunpack.c.l.b16 %v2766
        %v3585 = vunpack.c.l.b16 %v2767
        %v3586 = vunpack.c.h.b16 %v2767
        %v3587 = vunpack.c.l.b16 %v2768
        %v3588 = vunpack.c.l.b16 %v2769
        %v3589 = vunpack.c.h.b16 %v2769
        %v3590 = vunpack.c.l.b16 %v2770
        %v3591 = vunpack.c.l.b16 %v2771
        %v3592 = vunpack.c.h.b16 %v2771
        %v3593 = vunpack.c.l.b16 %v2772
        %v3594 = vunpack.c.l.b16 %v2773
        %v3595 = vunpack.c.h.b16 %v2773
        %v3596 = vunpack.c.l.b16 %v2774
        %v3597 = vunpack.c.l.b16 %v2775
        %v3598 = vunpack.c.h.b16 %v2775
        %v3599 = vunpack.c.l.b16 %v2776
        %v3600 = vunpack.c.l.b16 %v2777
        %v3601 = vunpack.c.h.b16 %v2777
        %v3602 = vunpack.c.l.b16 %v2778
        %v3603 = vunpack.c.l.b16 %v2779
        %v3604 = vunpack.c.h.b16 %v2779
        %v3605 = vunpack.c.l.b16 %v2780
        %v3606 = vunpack.c.l.b16 %v2781
        %v3607 = vunpack.c.h.b16 %v2781
        %v3608 = vunpack.c.l.b16 %v2782
        %v3609 = vunpack.c.l.b16 %v2783
        %v3610 = vunpack.c.h.b16 %v2783
        %v3611 = vunpack.c.l.b16 %v2784
        %v3612 = vunpack.c.l.b16 %v2785
        %v3613 = vunpack.c.h.b16 %v2785
        %v3614 = vunpack.c.l.b16 %v2786
        %v3615 = vunpack.c.l.b16 %v2787
        %v3616 = vunpack.c.h.b16 %v2787
        %v3617 = vunpack.c.l.b16 %v2788
        %v3618 = vunpack.c.l.b16 %v2789
        %v3619 = vunpack.c.h.b16 %v2789
        %v3620 = vunpack.c.l.b16 %v2790
        %v3621 = vunpack.c.l.b16 %v2791
        %v3622 = vunpack.c.h.b16 %v2791
        %v3623 = vunpack.c.l.b16 %v2792
        %v3624 = vunpack.c.l.b16 %v2793
        %v3625 = vunpack.c.h.b16 %v2793
        %v3626 = vunpack.c.l.b16 %v2794
        %v3627 = vunpack.c.l.b16 %v2795
        %v3628 = vunpack.c.h.b16 %v2795
        %v3629 = vunpack.c.l.b16 %v2796
        %v3630 = vunpack.c.l.b16 %v2797
        %v3631 = vunpack.c.h.b16 %v2797
        %v3632 = vunpack.c.l.b16 %v2798
        %v3633 = vunpack.c.l.b16 %v2799
        %v3634 = vunpack.c.h.b16 %v2799
        %v3635 = vunpack.c.l.b16 %v2800
        %v3636 = vunpack.c.l.b16 %v2801
        %v3637 = vunpack.c.h.b16 %v2801
        %v3638 = vunpack.c.l.b16 %v2802
        %v3639 = vunpack.c.l.b16 %v2803
        %v3640 = vunpack.c.h.b16 %v2803
        %v3641 = vunpack.c.l.b16 %v2804
        %v3642 = vunpack.c.l.b16 %v2805
        %v3643 = vunpack.c.h.b16 %v2805
        %v3644 = vunpack.c.l.b16 %v2806
        %v3645 = vunpack.c.l.b16 %v2807
        %v3646 = vunpack.c.h.b16 %v2807
        %v3647 = vunpack.c.l.b16 %v2808
        %v3648 = vunpack.c.l.b16 %v2809
        %v3649 = vunpack.c.h.b16 %v2809
        %v3650 = vunpack.c.l.b16 %v2810
        %v3651 = vunpack.c.l.b16 %v2811
        %v3652 = vunpack.c.h.b16 %v2811
        %v3653 = vunpack.c.l.b16 %v2812
        %v3654 = vunpack.c.l.b16 %v2813
        %v3655 = vunpack.c.h.b16 %v2813
        %v3656 = vunpack.c.l.b16 %v2814
        %v3657 = vunpack.c.l.b16 %v2815
        %v3658 = vunpack.c.h.b16 %v2815
        %v3659 = vunpack.c.l.b16 %v2816
        %v3660 = vunpack.c.l.b16 %v2817
        %v3661 = vunpack.c.h.b16 %v2817
        %v3662 = vunpack.c.l.b16 %v2818
        %v3663 = vunpack.c.l.b16 %v2819
        %v3664 = vunpack.c.h.b16 %v2819
        %v3665 = vunpack.c.l.b16 %v2820
        %v3666 = vunpack.c.l.b16 %v2821
        %v3667 = vunpack.c.h.b16 %v2821
        %v3668 = vunpack.c.l.b16 %v2822
        %v3669 = vunpack.c.l.b16 %v2823
        %v3670 = vunpack.c.h.b16 %v2823
        %v3671 = vunpack.c.l.b16 %v2824
        %v3672 = vunpack.c.l.b16 %v2825
        %v3673 = vunpack.c.h.b16 %v2825
        %v3674 = vunpack.c.l.b16 %v2826
        %v3675 = vunpack.c.l.b16 %v2827
        %v3676 = vunpack.c.h.b16 %v2827
        %v3677 = vunpack.c.l.b16 %v2828
        %v3678 = vunpack.c.l.b16 %v2829
        %v3679 = vunpack.c.h.b16 %v2829
        %v3680 = vunpack.c.l.b16 %v2830
        %v3681 = vunpack.c.l.b16 %v2831
        %v3682 = vunpack.c.h.b16 %v2831
        %v3683 = vunpack.c.l.b16 %v2832
        %v3684 = vunpack.c.l.b16 %v2833
        %v3685 = vunpack.c.h.b16 %v2833
        %v3686 = vunpack.c.l.b16 %v2834
        %v3687 = vunpack.c.l.b16 %v2835
        %v3688 = vunpack.c.h.b16 %v2835
        %v3689 = vunpack.c.l.b16 %v2836
        %v3690 = vunpack.c.l.b16 %v2837
        %v3691 = vunpack.c.h.b16 %v2837
        %v3692 = vunpack.c.l.b16 %v2838
        %v3693 = vunpack.c.l.b16 %v2839
        %v3694 = vunpack.c.h.b16 %v2839
        %v3695 = vunpack.c.l.b16 %v2840
        %v3696 = vunpack.c.l.b16 %v2841
        %v3697 = vunpack.c.h.b16 %v2841
        %v3698 = vunpack.c.l.b16 %v2842
        %v3699 = vunpack.c.l.b16 %v2843
        %v3700 = vunpack.c.h.b16 %v2843
        %v3701 = vunpack.c.l.b16 %v2844
        %v3702 = vunpack.c.l.b16 %v2845
        %v3703 = vunpack.c.h.b16 %v2845
        %v3704 = vunpack.c.l.b16 %v2846
        %v3705 = vunpack.c.l.b16 %v2847
        %v3706 = vunpack.c.h.b16 %v2847
        %v3707 = vunpack.c.l.b16 %v2848
        %v3708 = vunpack.c.l.b16 %v2849
        %v3709 = vunpack.c.h.b16 %v2849
        %v3710 = vunpack.c.l.b16 %v2850
        %v3711 = vunpack.c.l.b16 %v2851
        %v3712 = vunpack.c.h.b16 %v2851
        %v3713 = vunpack.c.l.b16 %v2852
        %v3714 = vunpack.c.l.b16 %v2853
        %v3715 = vunpack.c.h.b16 %v2853
        %v3716 = vunpack.c.l.b16 %v2854
        %v3717 = vunpack.c.l.b16 %v2855
        %v3718 = vunpack.c.h.b16 %v2855
        %v3719 = vunpack.c.l.b16 %v2856
        %v3720 = vunpack.c.l.b16 %v2857
        %v3721 = vunpack.c.h.b16 %v2857
        %v3722 = vunpack.c.l.b16 %v2858
        %v3723 = vunpack.c.l.b16 %v2859
        %v3724 = vunpack.c.h.b16 %v2859
        %v3725 = vunpack.c.l.b16 %v2860
        %v3726 = vunpack.c.l.b16 %v2861
        %v3727 = vunpack.c.h.b16 %v2861
        %v3728 = vunpack.c.l.b16 %v2862
        %v3729 = vunpack.c.l.b16 %v2863
        %v3730 = vunpack.c.h.b16 %v2863
        %v3731 = vunpack.c.l.b16 %v2864
        %v3732 = vunpack.c.l.b16 %v2865
        %v3733 = vunpack.c.h.b16 %v2865
        %v3734 = vunpack.c.l.b16 %v2866
        %v3735 = vunpack.c.l.b16 %v2867
        %v3736 = vunpack.c.h.b16 %v2867
        %v3737 = vunpack.c.l.b16 %v2868
        %v3738 = vunpack.c.l.b16 %v2869
        %v3739 = vunpack.c.h.b16 %v2869
        %v3740 = vunpack.c.l.b16 %v2870
        %v3741 = vunpack.c.l.b16 %v2871
        %v3742 = vunpack.c.h.b16 %v2871
        %v3743 = vunpack.c.l.b16 %v2872
        %v3744 = vunpack.c.l.b16 %v2873
        %v3745 = vunpack.c.h.b16 %v2873
        %v3746 = vunpack.c.l.b16 %v2874
        %v3747 = vunpack.c.l.b16 %v2875
        %v3748 = vunpack.c.h.b16 %v2875
        %v3749 = vunpack.c.l.b16 %v2876
        %v3750 = vunpack.c.l.b16 %v2877
        %v3751 = vunpack.c.h.b16 %v2877
        %v3752 = vunpack.c.l.b16 %v2878
        %v3753 = vunpack.c.l.b16 %v2879
        %v3754 = vunpack.c.h.b16 %v2879
        %v3755 = vunpack.c.l.b16 %v2880
        %v3756 = vunpack.c.l.b16 %v2881
        %v3757 = vunpack.c.h.b16 %v2881
        %v3758 = vunpack.c.l.b16 %v2882
        %v3759 = vunpack.c.l.b16 %v2883
        %v3760 = vunpack.c.h.b16 %v2883
        %v3761 = vunpack.c.l.b16 %v2884
        %v3762 = vunpack.c.l.b16 %v2885
        %v3763 = vunpack.c.h.b16 %v2885
        %v3764 = vunpack.c.l.b16 %v2886
        %v3765 = vunpack.c.l.b16 %v2887
        %v3766 = vunpack.c.h.b16 %v2887
        %v3767 = vunpack.c.l.b16 %v2888
        %v3768 = vunpack.c.l.b16 %v2889
        %v3769 = vunpack.c.h.b16 %v2889
        %v3770 = vunpack.c.l.b16 %v2890
        %v3771 = vunpack.c.l.b16 %v2891
        %v3772 = vunpack.c.h.b16 %v2891
        %v3773 = vunpack.c.l.b16 %v2892
        %v3774 = vunpack.c.l.b16 %v2893
        %v3775 = vunpack.c.h.b16 %v2893
        %v3776 = vunpack.c.l.b16 %v2894
        %v3777 = vunpack.c.l.b16 %v2895
        %v3778 = vunpack.c.h.b16 %v2895
        %v3779 = vunpack.c.l.b16 %v2896
        %v3780 = vunpack.c.l.b16 %v2897
        %v3781 = vunpack.c.h.b16 %v2897
        %v3782 = vunpack.c.l.b16 %v2898
        %v3783 = vunpack.c.l.b16 %v2899
        %v3784 = vunpack.c.h.b16 %v2899
        %v3785 = vunpack.c.l.b16 %v2900
        %v3786 = vunpack.c.l.b16 %v2901
        %v3787 = vunpack.c.h.b16 %v2901
        %v3788 = vunpack.c.l.b16 %v2902
        %v3789 = vunpack.c.l.b16 %v2903
        %v3790 = vunpack.c.h.b16 %v2903
        %v3791 = vunpack.c.l.b16 %v2904
        %v3792 = vunpack.c.l.b16 %v2905
        %v3793 = vunpack.c.h.b16 %v2905
        %v3794 = vunpack.c.l.b16 %v2906
        %v3795 = vunpack.c.l.b16 %v2907
        %v3796 = vunpack.c.h.b16 %v2907
        %v3797 = vunpack.c.l.b16 %v2908
        %v3798 = vunpack.c.l.b16 %v2909
        %v3799 = vunpack.c.h.b16 %v2909
        %v3800 = vunpack.c.l.b16 %v2910
        %v3801 = vunpack.c.l.b16 %v2911
        %v3802 = vunpack.c.h.b16 %v2911
        %v3803 = vunpack.c.l.b16 %v2912
        %v3804 = vunpack.c.l.b16 %v2913
        %v3805 = vunpack.c.h.b16 %v2913
        %v3806 = vunpack.c.l.b16 %v2914
        %v3807 = vunpack.c.l.b16 %v2915
        %v3808 = vunpack.c.h.b16 %v2915
        %v3809 = vunpack.c.l.b16 %v2916
        %v3810 = vunpack.c.l.b16 %v2917
        %v3811 = vunpack.c.h.b16 %v2917
        %v3812 = vunpack.c.l.b16 %v2918
        %v3813 = vunpack.c.l.b16 %v2919
        %v3814 = vunpack.c.h.b16 %v2919
        %v3815 = vunpack.c.l.b16 %v2920
        %v3816 = vunpack.c.l.b16 %v2921
        %v3817 = vunpack.c.h.b16 %v2921
        %v3818 = vunpack.c.l.b16 %v2922
        %v3819 = vunpack.c.l.b16 %v2923
        %v3820 = vunpack.c.h.b16 %v2923
        %v3821 = vunpack.c.l.b16 %v2924
        %v3822 = vunpack.c.l.b16 %v2925
        %v3823 = vunpack.c.h.b16 %v2925
        %v3824 = vunpack.c.l.b16 %v2926
        %v3825 = vunpack.c.l.b16 %v2927
        %v3826 = vunpack.c.h.b16 %v2927
        %v3827 = vunpack.c.l.b16 %v2928
        %v3828 = vunpack.c.l.b16 %v2929
        %v3829 = vunpack.c.h.b16 %v2929
        %v3830 = vunpack.c.l.b16 %v2930
        %v3831 = vunpack.c.l.b16 %v2931
        %v3832 = vunpack.c.h.b16 %v2931
        %v3833 = vunpack.c.l.b16 %v2932
        %v3834 = vunpack.c.l.b16 %v2933
        %v3835 = vunpack.c.h.b16 %v2933
        %v3836 = vunpack.c.l.b16 %v2934
        %v3837 = vunpack.c.l.b16 %v2935
        %v3838 = vunpack.c.h.b16 %v2935
        %v3839 = vunpack.c.l.b16 %v2936
        %v3840 = vunpack.c.l.b16 %v2937
        %v3841 = vunpack.c.h.b16 %v2937
        %v3842 = vunpack.c.l.b16 %v2938
        %v3843 = vunpack.c.l.b16 %v2939
        %v3844 = vunpack.c.h.b16 %v2939
        %v3845 = vunpack.c.l.b16 %v2940
        %v3846 = vunpack.c.l.b16 %v2941
        %v3847 = vunpack.c.h.b16 %v2941
        %v3848 = vunpack.c.l.b16 %v2942
        %v3849 = vunpack.c.l.b16 %v2943
        %v3850 = vunpack.c.h.b16 %v2943
        %v3851 = vunpack.c.l.b16 %v2944
        %v3852 = vunpack.c.l.b16 %v2945
        %v3853 = vunpack.c.h.b16 %v2945
        %v3854 = vunpack.c.l.b16 %v2946
        %v3855 = vunpack.c.l.b16 %v2947
        %v3856 = vunpack.c.h.b16 %v2947
        %v3857 = vunpack.c.l.b16 %v2948
        %v3858 = vunpack.c.l.b16 %v2949
        %v3859 = vunpack.c.h.b16 %v2949
        %v3860 = vunpack.c.l.b16 %v2950
        %v3861 = vunpack.c.l.b16 %v2951
        %v3862 = vunpack.c.h.b16 %v2951
        %v3863 = vunpack.c.l.b16 %v2952
        %v3864 = vunpack.c.l.b16 %v2953
        %v3865 = vunpack.c.h.b16 %v2953
        %v3866 = vunpack.c.l.b16 %v2954
        %v3867 = vunpack.c.l.b16 %v2955
        %v3868 = vunpack.c.h.b16 %v2955
        %v3869 = vunpack.c.l.b16 %v2956
        %v3870 = vunpack.c.l.b16 %v2957
        %v3871 = vunpack.c.h.b16 %v2957
        %v3872 = vunpack.c.l.b16 %v2958
        %v3873 = vunpack.c.l.b16 %v2959
        %v3874 = vunpack.c.h.b16 %v2959
        %v3875 = vunpack.c.l.b16 %v2960
        %v3876 = vunpack.c.l.b16 %v2961
        %v3877 = vunpack.c.h.b16 %v2961
        %v3878 = vunpack.c.l.b16 %v2962
        %v3879 = vunpack.c.l.b16 %v2963
        %v3880 = vunpack.c.h.b16 %v2963
        %v3881 = vunpack.c.l.b16 %v2964
        %v3882 = vunpack.c.l.b16 %v2965
        %v3883 = vunpack.c.h.b16 %v2965
        %v3884 = vunpack.c.l.b16 %v2966
        %v3885 = vunpack.c.l.b16 %v2967
        %v3886 = vunpack.c.h.b16 %v2967
        %v3887 = vunpack.c.l.b16 %v2968
        %v3888 = vunpack.c.l.b16 %v2969
        %v3889 = vunpack.c.h.b16 %v2969
        %v3890 = vunpack.c.l.b16 %v2970
        %v3891 = vunpack.c.l.b16 %v2971
        %v3892 = vunpack.c.h.b16 %v2971
        %v3893 = vunpack.c.l.b16 %v2972
        %v3894 = vunpack.c.l.b16 %v2973
        %v3895 = vunpack.c.h.b16 %v2973
        %v3896 = vunpack.c.l.b16 %v2974
        %v3897 = vunpack.c.l.b16 %v2975
        %v3898 = vunpack.c.h.b16 %v2975
        %v3899 = vunpack.c.l.b16 %v2976
        %v3900 = vunpack.c.l.b16 %v2977
        %v3901 = vunpack.c.h.b16 %v2977
        %v3902 = vunpack.c.l.b16 %v2978
        %v3903 = vunpack.c.l.b16 %v2979
        %v3904 = vunpack.c.h.b16 %v2979
        %v3905 = vunpack.c.l.b16 %v2980
        %v3906 = vunpack.c.l.b16 %v2981
        %v3907 = vunpack.c.h.b16 %v2981
        %v3908 = vunpack.c.l.b16 %v2982
        %v3909 = vunpack.c.l.b16 %v2983
        %v3910 = vunpack.c.h.b16 %v2983
        %v3911 = vunpack.c.l.b16 %v2984
        %v3912 = vunpack.c.l.b16 %v2985
        %v3913 = vunpack.c.h.b16 %v2985
        %v3914 = vunpack.c.l.b16 %v2986
        %v3915 = vunpack.c.l.b16 %v2987
        %v3916 = vunpack.c.h.b16 %v2987
        %v3917 = vunpack.c.l.b16 %v2988
        %v3918 = vunpack.c.l.b16 %v2989
        %v3919 = vunpack.c.h.b16 %v2989
        %v3920 = vunpack.c.l.b16 %v2990
        %v3921 = vunpack.c.l.b16 %v2991
        %v3922 = vunpack.c.h.b16 %v2991
        %v3923 = vunpack.c.l.b16 %v2992
        %v3924 = vunpack.c.l.b16 %v2993
        %v3925 = vunpack.c.h.b16 %v2993
        %v3926 = vunpack.c.l.b16 %v2994
        %v3927 = vunpack.c.l.b16 %v2995
        %v3928 = vunpack.c.h.b16 %v2995
        %v3929 = vunpack.c.l.b16 %v2996
        %v3930 = vunpack.c.l.b16 %v2997
        %v3931 = vunpack.c.h.b16 %v2997
        %v3932 = vunpack.c.l.b16 %v2998
        %v3933 = vunpack.c.l.b16 %v2999
        %v3934 = vunpack.c.h.b16 %v2999
        %v3935 = vunpack.c.l.b16 %v3000
        %v3936 = vunpack.c.l.b16 %v3001
        %v3937 = vunpack.c.h.b16 %v3001
        %v3938 = vunpack.c.l.b16 %v3002
        %v3939 = vunpack.c.l.b16 %v3003
        %v3940 = vunpack.c.h.b16 %v3003
        %v3941 = vunpack.c.l.b16 %v3004
        %v3942 = vunpack.c.l.b16 %v3005
        %v3943 = vunpack.c.h.b16 %v3005
        %v3944 = vunpack.c.l.b16 %v3006
        %v3945 = vunpack.c.l.b16 %v3007
        %v3946 = vunpack.c.h.b16 %v3007
        %v3947 = vunpack.c.l.b16 %v3008
        %v3948 = vunpack.c.l.b16 %v3009
        %v3949 = vunpack.c.h.b16 %v3009
        %v3950 = vunpack.c.l.b16 %v3010
        %v3951 = vunpack.c.l.b16 %v3011
        %v3952 = vunpack.c.h.b16 %v3011
        %v3953 = vunpack.c.l.b16 %v3012
        %v3954 = vunpack.c.l.b16 %v3013
        %v3955 = vunpack.c.h.b16 %v3013
        %v3956 = vunpack.c.l.b16 %v3014
        %v3957 = vunpack.c.l.b16 %v3015
        %v3958 = vunpack.c.h.b16 %v3015
        %v3959 = vunpack.c.l.b16 %v3016
        %v3960 = vunpack.c.l.b16 %v3017
        %v3961 = vunpack.c.h.b16 %v3017
        %v3962 = vunpack.c.l.b16 %v3018
        %v3963 = vunpack.c.l.b16 %v3019
        %v3964 = vunpack.c.h.b16 %v3019
        %v3965 = vunpack.c.l.b16 %v3020
        %v3966 = vunpack.c.l.b16 %v3021
        %v3967 = vunpack.c.h.b16 %v3021
        %v3968 = vunpack.c.l.b16 %v3022
        %v3969 = vunpack.c.l.b16 %v3023
        %v3970 = vunpack.c.h.b16 %v3023
        %v3971 = vunpack.c.l.b16 %v3024
        %v3972 = vunpack.c.l.b16 %v3025
        %v3973 = vunpack.c.h.b16 %v3025
        %v3974 = vunpack.c.l.b16 %v3026
        %v3975 = vunpack.c.l.b16 %v3027
        %v3976 = vunpack.c.h.b16 %v3027
        %v3977 = vunpack.c.l.b16 %v3028
        %v3978 = vunpack.c.l.b16 %v3029
        %v3979 = vunpack.c.h.b16 %v3029
        %v3980 = vunpack.c.l.b16 %v3030
        %v3981 = vunpack.c.l.b16 %v3031
        %v3982 = vunpack.c.h.b16 %v3031
        %v3983 = vunpack.c.l.b16 %v3032
        %v3984 = vunpack.c.l.b16 %v3033
        %v3985 = vunpack.c.h.b16 %v3033
        %v3986 = vunpack.c.l.b16 %v3034
        %v3987 = vunpack.c.l.b16 %v3035
        %v3988 = vunpack.c.h.b16 %v3035
        %v3989 = vunpack.c.l.b16 %v3036
        %v3990 = vunpack.c.l.b16 %v3037
        %v3991 = vunpack.c.h.b16 %v3037
        %v3992 = vunpack.c.l.b16 %v3038
        %v3993 = vunpack.c.l.b16 %v3039
        %v3994 = vunpack.c.h.b16 %v3039
        %v3995 = vunpack.c.l.b16 %v3040
        %v3996 = vunpack.c.l.b16 %v3041
        %v3997 = vunpack.c.h.b16 %v3041
        %v3998 = vunpack.c.l.b16 %v3042
        %v3999 = vunpack.c.l.b16 %v3043
        %v4000 = vunpack.c.h.b16 %v3043
        %v4001 = vunpack.c.l.b16 %v3044
        %v4002 = vunpack.c.l.b16 %v3045
        %v4003 = vunpack.c.h.b16 %v3045
        %v4004 = vunpack.c.l.b16 %v3046
        %v4005 = vunpack.c.l.b16 %v3047
        %v4006 = vunpack.c.h.b16 %v3047
        %v4007 = vunpack.c.l.b16 %v3048
        %v4008 = vunpack.c.l.b16 %v3049
        %v4009 = vunpack.c.h.b16 %v3049
        %v4010 = vunpack.c.l.b16 %v3050
        %v4011 = vpack.c.b16 %v3438, %v3435
        %v4012 = vpack.c.b16 %v3439, %v3436
        %v4013 = vpack.c.b16 %v3440, %v3437
        %v4014 = vpack.c.b16 %v3444, %v3441
        %v4015 = vpack.c.b16 %v3445, %v3442
        %v4016 = vpack.c.b16 %v3446, %v3443
        %v4017 = vpack.c.b16 %v3450, %v3447
        %v4018 = vpack.c.b16 %v3451, %v3448
        %v4019 = vpack.c.b16 %v3452, %v3449
        %v4020 = vpack.c.b16 %v3456, %v3453
        %v4021 = vpack.c.b16 %v3457, %v3454
        %v4022 = vpack.c.b16 %v3458, %v3455
        %v4023 = vpack.c.b16 %v3462, %v3459
        %v4024 = vpack.c.b16 %v3463, %v3460
        %v4025 = vpack.c.b16 %v3464, %v3461
        %v4026 = vpack.c.b16 %v3468, %v3465
        %v4027 = vpack.c.b16 %v3469, %v3466
        %v4028 = vpack.c.b16 %v3470, %v3467
        %v4029 = vpack.c.b16 %v3474, %v3471
        %v4030 = vpack.c.b16 %v3475, %v3472
        %v4031 = vpack.c.b16 %v3476, %v3473
        %v4032 = vpack.c.b16 %v3480, %v3477
        %v4033 = vpack.c.b16 %v3481, %v3478
        %v4034 = vpack.c.b16 %v3482, %v3479
        %v4035 = vpack.c.b16 %v3486, %v3483
        %v4036 = vpack.c.b16 %v3487, %v3484
        %v4037 = vpack.c.b16 %v3488, %v3485
        %v4038 = vpack.c.b16 %v3492, %v3489
        %v4039 = vpack.c.b16 %v3493, %v3490
        %v4040 = vpack.c.b16 %v3494, %v3491
        %v4041 = vpack.c.b16 %v3498, %v3495
        %v4042 = vpack.c.b16 %v3499, %v3496
        %v4043 = vpack.c.b16 %v3500, %v3497
        %v4044 = vpack.c.b16 %v3504, %v3501
        %v4045 = vpack.c.b16 %v3505, %v3502
        %v4046 = vpack.c.b16 %v3506, %v3503
        %v4047 = vpack.c.b16 %v3510, %v3507
        %v4048 = vpack.c.b16 %v3511, %v3508
        %v4049 = vpack.c.b16 %v3512, %v3509
        %v4050 = vpack.c.b16 %v3516, %v3513
        %v4051 = vpack.c.b16 %v3517, %v3514
        %v4052 = vpack.c.b16 %v3518, %v3515
        %v4053 = vpack.c.b16 %v3522, %v3519
        %v4054 = vpack.c.b16 %v3523, %v3520
        %v4055 = vpack.c.b16 %v3524, %v3521
        %v4056 = vpack.c.b16 %v3528, %v3525
        %v4057 = vpack.c.b16 %v3529, %v3526
        %v4058 = vpack.c.b16 %v3530, %v3527
        %v4059 = vpack.c.b16 %v3534, %v3531
        %v4060 = vpack.c.b16 %v3535, %v3532
        %v4061 = vpack.c.b16 %v3536, %v3533
        %v4062 = vpack.c.b16 %v3540, %v3537
        %v4063 = vpack.c.b16 %v3541, %v3538
        %v4064 = vpack.c.b16 %v3542, %v3539
        %v4065 = vpack.c.b16 %v3546, %v3543
        %v4066 = vpack.c.b16 %v3547, %v3544
        %v4067 = vpack.c.b16 %v3548, %v3545
        %v4068 = vpack.c.b16 %v3552, %v3549
        %v4069 = vpack.c.b16 %v3553, %v3550
        %v4070 = vpack.c.b16 %v3554, %v3551
        %v4071 = vpack.c.b16 %v3558, %v3555
        %v4072 = vpack.c.b16 %v3559, %v3556
        %v4073 = vpack.c.b16 %v3560, %v3557
        %v4074 = vpack.c.b16 %v3564, %v3561
        %v4075 = vpack.c.b16 %v3565, %v3562
        %v4076 = vpack.c.b16 %v3566, %v3563
        %v4077 = vpack.c.b16 %v3570, %v3567
        %v4078 = vpack.c.b16 %v3571, %v3568
        %v4079 = vpack.c.b16 %v3572, %v3569
        %v4080 = vpack.c.b16 %v3576, %v3573
        %v4081 = vpack.c.b16 %v3577, %v3574
        %v4082 = vpack.c.b16 %v3578, %v3575
        %v4083 = vpack.c.b16 %v3582, %v3579
        %v4084 = vpack.c.b16 %v3583, %v3580
        %v4085 = vpack.c.b16 %v3584, %v3581
        %v4086 = vpack.c.b16 %v3588, %v3585
        %v4087 = vpack.c.b16 %v3589, %v3586
        %v4088 = vpack.c.b16 %v3590, %v3587
        %v4089 = vpack.c.b16 %v3594, %v3591
        %v4090 = vpack.c.b16 %v3595, %v3592
        %v4091 = vpack.c.b16 %v3596, %v3593
        %v4092 = vpack.c.b16 %v3600, %v3597
        %v4093 = vpack.c.b16 %v3601, %v3598
        %v4094 = vpack.c.b16 %v3602, %v3599
        %v4095 = vpack.c.b16 %v3606, %v3603
        %v4096 = vpack.c.b16 %v3607, %v3604
        %v4097 = vpack.c.b16 %v3608, %v3605
        %v4098 = vpack.c.b16 %v3612, %v3609
        %v4099 = vpack.c.b16 %v3613, %v3610
        %v4100 = vpack.c.b16 %v3614, %v3611
        %v4101 = vpack.c.b16 %v3618, %v3615
        %v4102 = vpack.c.b16 %v3619, %v3616
        %v4103 = vpack.c.b16 %v3620, %v3617
        %v4104 = vpack.c.b16 %v3624, %v3621
        %v4105 = vpack.c.b16 %v3625, %v3622
        %v4106 = vpack.c.b16 %v3626, %v3623
        %v4107 = vpack.c.b16 %v3630, %v3627
        %v4108 = vpack.c.b16 %v3631, %v3628
        %v4109 = vpack.c.b16 %v3632, %v3629
        %v4110 = vpack.c.b16 %v3636, %v3633
        %v4111 = vpack.c.b16 %v3637, %v3634
        %v4112 = vpack.c.b16 %v3638, %v3635
        %v4113 = vpack.c.b16 %v3642, %v3639
        %v4114 = vpack.c.b16 %v3643, %v3640
        %v4115 = vpack.c.b16 %v3644, %v3641
        %v4116 = vpack.c.b16 %v3648, %v3645
        %v4117 = vpack.c.b16 %v3649, %v3646
        %v4118 = vpack.c.b16 %v3650, %v3647
        %v4119 = vpack.c.b16 %v3654, %v3651
        %v4120 = vpack.c.b16 %v3655, %v3652
        %v4121 = vpack.c.b16 %v3656, %v3653
        %v4122 = vpack.c.b16 %v3660, %v3657
        %v4123 = vpack.c.b16 %v3661, %v3658
        %v4124 = vpack.c.b16 %v3662, %v3659
        %v4125 = vpack.c.b16 %v3666, %v3663
        %v4126 = vpack.c.b16 %v3667, %v3664
        %v4127 = vpack.c.b16 %v3668, %v3665
        %v4128 = vpack.c.b16 %v3672, %v3669
        %v4129 = vpack.c.b16 %v3673, %v3670
        %v4130 = vpack.c.b16 %v3674, %v3671
        %v4131 = vpack.c.b16 %v3678, %v3675
        %v4132 = vpack.c.b16 %v3679, %v3676
        %v4133 = vpack.c.b16 %v3680, %v3677
        %v4134 = vpack.c.b16 %v3684, %v3681
        %v4135 = vpack.c.b16 %v3685, %v3682
        %v4136 = vpack.c.b16 %v3686, %v3683
        %v4137 = vpack.c.b16 %v3690, %v3687
        %v4138 = vpack.c.b16 %v3691, %v3688
        %v4139 = vpack.c.b16 %v3692, %v3689
        %v4140 = vpack.c.b16 %v3696, %v3693
        %v4141 = vpack.c.b16 %v3697, %v3694
        %v4142 = vpack.c.b16 %v3698, %v3695
        %v4143 = vpack.c.b16 %v3702, %v3699
        %v4144 = vpack.c.b16 %v3703, %v3700
        %v4145 = vpack.c.b16 %v3704, %v3701
        %v4146 = vpack.c.b16 %v3708, %v3705
        %v4147 = vpack.c.b16 %v3709, %v3706
        %v4148 = vpack.c.b16 %v3710, %v3707
        %v4149 = vpack.c.b16 %v3714, %v3711
        %v4150 = vpack.c.b16 %v3715, %v3712
        %v4151 = vpack.c.b16 %v3716, %v3713
        %v4152 = vpack.c.b16 %v3720, %v3717
        %v4153 = vpack.c.b16 %v3721, %v3718
        %v4154 = vpack.c.b16 %v3722, %v3719
        %v4155 = vpack.c.b16 %v3726, %v3723
        %v4156 = vpack.c.b16 %v3727, %v3724
        %v4157 = vpack.c.b16 %v3728, %v3725
        %v4158 = vpack.c.b16 %v3732, %v3729
        %v4159 = vpack.c.b16 %v3733, %v3730
        %v4160 = vpack.c.b16 %v3734, %v3731
        %v4161 = vpack.c.b16 %v3738, %v3735
        %v4162 = vpack.c.b16 %v3739, %v3736
        %v4163 = vpack.c.b16 %v3740, %v3737
        %v4164 = vpack.c.b16 %v3744, %v3741
        %v4165 = vpack.c.b16 %v3745, %v3742
        %v4166 = vpack.c.b16 %v3746, %v3743
        %v4167 = vpack.c.b16 %v3750, %v3747
        %v4168 = vpack.c.b16 %v3751, %v3748
        %v4169 = vpack.c.b16 %v3752, %v3749
        %v4170 = vpack.c.b16 %v3756, %v3753
        %v4171 = vpack.c.b16 %v3757, %v3754
        %v4172 = vpack.c.b16 %v3758, %v3755
        %v4173 = vpack.c.b16 %v3762, %v3759
        %v4174 = vpack.c.b16 %v3763, %v3760
        %v4175 = vpack.c.b16 %v3764, %v3761
        %v4176 = vpack.c.b16 %v3768, %v3765
        %v4177 = vpack.c.b16 %v3769, %v3766
        %v4178 = vpack.c.b16 %v3770, %v3767
        %v4179 = vpack.c.b16 %v3774, %v3771
        %v4180 = vpack.c.b16 %v3775, %v3772
        %v4181 = vpack.c.b16 %v3776, %v3773
        %v4182 = vpack.c.b16 %v3780, %v3777
        %v4183 = vpack.c.b16 %v3781, %v3778
        %v4184 = vpack.c.b16 %v3782, %v3779
        %v4185 = vpack.c.b16 %v3786, %v3783
        %v4186 = vpack.c.b16 %v3787, %v3784
        %v4187 = vpack.c.b16 %v3788, %v3785
        %v4188 = vpack.c.b16 %v3792, %v3789
        %v4189 = vpack.c.b16 %v3793, %v3790
        %v4190 = vpack.c.b16 %v3794, %v3791
        %v4191 = vpack.c.b16 %v3798, %v3795
        %v4192 = vpack.c.b16 %v3799, %v3796
        %v4193 = vpack.c.b16 %v3800, %v3797
        %v4194 = vpack.c.b16 %v3804, %v3801
        %v4195 = vpack.c.b16 %v3805, %v3802
        %v4196 = vpack.c.b16 %v3806, %v3803
        %v4197 = vpack.c.b16 %v3810, %v3807
        %v4198 = vpack.c.b16 %v3811, %v3808
        %v4199 = vpack.c.b16 %v3812, %v3809
        %v4200 = vpack.c.b16 %v3816, %v3813
        %v4201 = vpack.c.b16 %v3817, %v3814
        %v4202 = vpack.c.b16 %v3818, %v3815
        %v4203 = vpack.c.b16 %v3822, %v3819
        %v4204 = vpack.c.b16 %v3823, %v3820
        %v4205 = vpack.c.b16 %v3824, %v3821
        %v4206 = vpack.c.b16 %v3828, %v3825
        %v4207 = vpack.c.b16 %v3829, %v3826
        %v4208 = vpack.c.b16 %v3830, %v3827
        %v4209 = vpack.c.b16 %v3834, %v3831
        %v4210 = vpack.c.b16 %v3835, %v3832
        %v4211 = vpack.c.b16 %v3836, %v3833
        %v4212 = vpack.c.b16 %v3840, %v3837
        %v4213 = vpack.c.b16 %v3841, %v3838
        %v4214 = vpack.c.b16 %v3842, %v3839
        %v4215 = vpack.c.b16 %v3846, %v3843
        %v4216 = vpack.c.b16 %v3847, %v3844
        %v4217 = vpack.c.b16 %v3848, %v3845
        %v4218 = vpack.c.b16 %v3852, %v3849
        %v4219 = vpack.c.b16 %v3853, %v3850
        %v4220 = vpack.c.b16 %v3854, %v3851
        %v4221 = vpack.c.b16 %v3858, %v3855
        %v4222 = vpack.c.b16 %v3859, %v3856
        %v4223 = vpack.c.b16 %v3860, %v3857
        %v4224 = vpack.c.b16 %v3864, %v3861
        %v4225 = vpack.c.b16 %v3865, %v3862
        %v4226 = vpack.c.b16 %v3866, %v3863
        %v4227 = vpack.c.b16 %v3870, %v3867
        %v4228 = vpack.c.b16 %v3871, %v3868
        %v4229 = vpack.c.b16 %v3872, %v3869
        %v4230 = vpack.c.b16 %v3876, %v3873
        %v4231 = vpack.c.b16 %v3877, %v3874
        %v4232 = vpack.c.b16 %v3878, %v3875
        %v4233 = vpack.c.b16 %v3882, %v3879
        %v4234 = vpack.c.b16 %v3883, %v3880
        %v4235 = vpack.c.b16 %v3884, %v3881
        %v4236 = vpack.c.b16 %v3888, %v3885
        %v4237 = vpack.c.b16 %v3889, %v3886
        %v4238 = vpack.c.b16 %v3890, %v3887
        %v4239 = vpack.c.b16 %v3894, %v3891
        %v4240 = vpack.c.b16 %v3895, %v3892
        %v4241 = vpack.c.b16 %v3896, %v3893
        %v4242 = vpack.c.b16 %v3900, %v3897
        %v4243 = vpack.c.b16 %v3901, %v3898
        %v4244 = vpack.c.b16 %v3902, %v3899
        %v4245 = vpack.c.b16 %v3906, %v3903
        %v4246 = vpack.c.b16 %v3907, %v3904
        %v4247 = vpack.c.b16 %v3908, %v3905
        %v4248 = vpack.c.b16 %v3912, %v3909
        %v4249 = vpack.c.b16 %v3913, %v3910
        %v4250 = vpack.c.b16 %v3914, %v3911
        %v4251 = vpack.c.b16 %v3918, %v3915
        %v4252 = vpack.c.b16 %v3919, %v3916
        %v4253 = vpack.c.b16 %v3920, %v3917
        %v4254 = vpack.c.b16 %v3924, %v3921
        %v4255 = vpack.c.b16 %v3925, %v3922
        %v4256 = vpack.c.b16 %v3926, %v3923
        %v4257 = vpack.c.b16 %v3930, %v3927
        %v4258 = vpack.c.b16 %v3931, %v3928
        %v4259 = vpack.c.b16 %v3932, %v3929
        %v4260 = vpack.c.b16 %v3936, %v3933
        %v4261 = vpack.c.b16 %v3937, %v3934
        %v4262 = vpack.c.b16 %v3938, %v3935
        %v4263 = vpack.c.b16 %v3942, %v3939
        %v4264 = vpack.c.b16 %v3943, %v3940
        %v4265 = vpack.c.b16 %v3944, %v3941
        %v4266 = vpack.c.b16 %v3948, %v3945
        %v4267 = vpack.c.b16 %v3949, %v3946
        %v4268 = vpack.c.b16 %v3950, %v3947
        %v4269 = vpack.c.b16 %v3954, %v3951
        %v4270 = vpack.c.b16 %v3955, %v3952
        %v4271 = vpack.c.b16 %v3956, %v3953
        %v4272 = vpack.c.b16 %v3960, %v3957
        %v4273 = vpack.c.b16 %v3961, %v3958
        %v4274 = vpack.c.b16 %v3962, %v3959
        %v4275 = vpack.c.b16 %v3966, %v3963
        %v4276 = vpack.c.b16 %v3967, %v3964
        %v4277 = vpack.c.b16 %v3968, %v3965
        %v4278 = vpack.c.b16 %v3972, %v3969
        %v4279 = vpack.c.b16 %v3973, %v3970
        %v4280 = vpack.c.b16 %v3974, %v3971
        %v4281 = vpack.c.b16 %v3978, %v3975
        %v4282 = vpack.c.b16 %v3979, %v3976
        %v4283 = vpack.c.b16 %v3980, %v3977
        %v4284 = vpack.c.b16 %v3984, %v3981
        %v4285 = vpack.c.b16 %v3985, %v3982
        %v4286 = vpack.c.b16 %v3986, %v3983
        %v4287 = vpack.c.b16 %v3990, %v3987
        %v4288 = vpack.c.b16 %v3991, %v3988
        %v4289 = vpack.c.b16 %v3992, %v3989
        %v4290 = vpack.c.b16 %v3996, %v3993
        %v4291 = vpack.c.b16 %v3997, %v3994
        %v4292 = vpack.c.b16 %v3998, %v3995
        %v4293 = vpack.c.b16 %v4002, %v3999
        %v4294 = vpack.c.b16 %v4003, %v4000
        %v4295 = vpack.c.b16 %v4004, %v4001
        %v4296 = vpack.c.b16 %v4008, %v4005
        %v4297 = vpack.c.b16 %v4009, %v4006
        %v4298 = vpack.c.b16 %v4010, %v4007
        %4587 = vmatprep.subr.bf16.mxu0 %v4012
        %4588 = vmatpush1.bf16.msra.mxu0 %v4011
        %4589 = vmatprep.subr.bf16.mxu0 %v4015
        %4590 = vmatpush1.bf16.msra.mxu0 %v4014
        %4591 = vmatprep.subr.bf16.mxu0 %v4018
        %4592 = vmatpush1.bf16.msra.mxu0 %v4017
        %4593 = vmatprep.subr.bf16.mxu0 %v4021
        %4594 = vmatpush1.bf16.msra.mxu0 %v4020
        %4595 = vmatprep.subr.bf16.mxu0 %v4024
        %4596 = vmatpush1.bf16.msra.mxu0 %v4023
        %4597 = vmatprep.subr.bf16.mxu0 %v4027
        %4598 = vmatpush1.bf16.msra.mxu0 %v4026
        %4599 = vmatprep.subr.bf16.mxu0 %v4030
        %4600 = vmatpush1.bf16.msra.mxu0 %v4029
        %4601 = vmatprep.subr.bf16.mxu0 %v4033
        %4602 = vmatpush1.bf16.msra.mxu0 %v4032
        %4603 = vmatprep.subr.bf16.mxu0 %v4036
        %4604 = vmatpush1.bf16.msra.mxu0 %v4035
        %4605 = vmatprep.subr.bf16.mxu0 %v4039
        %4606 = vmatpush1.bf16.msra.mxu0 %v4038
        %4607 = vmatprep.subr.bf16.mxu0 %v4042
        %4608 = vmatpush1.bf16.msra.mxu0 %v4041
        %4609 = vmatprep.subr.bf16.mxu0 %v4045
        %4610 = vmatpush1.bf16.msra.mxu0 %v4044
        %4611 = vmatprep.subr.bf16.mxu0 %v4048
        %4612 = vmatpush1.bf16.msra.mxu0 %v4047
        %4613 = vmatprep.subr.bf16.mxu0 %v4051
        %4614 = vmatpush1.bf16.msra.mxu0 %v4050
        %4615 = vmatprep.subr.bf16.mxu0 %v4054
        %4616 = vmatpush1.bf16.msra.mxu0 %v4053
        %4617 = vmatprep.subr.bf16.mxu0 %v4057
        %4618 = vmatpush1.bf16.msra.mxu0 %v4056
        %4619 = vmatprep.mubr.bf16.mxu0 %v2656
        %4620 = vmatmul.mubr.bf16.gmra.mrb[0].mxu0 %v2655
        %v4621 = vpop.f32.mrb[0].mxu0
        %v4622 = vadd.f32 0.0, %v4621
        %v4623 = vpop.f32.mrb[0].mxu0
        %v4624 = vadd.f32 0.0, %v4623
        %v4625 = vpop.f32.mrb[0].mxu0
        %v4626 = vpop.f32.mrb[0].mxu0
        %4627 = vdwg.mxu0
        %4628 = vmatprep.subr.bf16.mxu0 %v4060
        %4629 = vmatpush1.bf16.msra.mxu0 %v4059
        %4630 = vmatprep.subr.bf16.mxu0 %v4063
        %4631 = vmatpush1.bf16.msra.mxu0 %v4062
        %4632 = vmatprep.subr.bf16.mxu0 %v4066
        %4633 = vmatpush1.bf16.msra.mxu0 %v4065
        %4634 = vmatprep.subr.bf16.mxu0 %v4069
        %4635 = vmatpush1.bf16.msra.mxu0 %v4068
        %4636 = vmatprep.subr.bf16.mxu0 %v4072
        %4637 = vmatpush1.bf16.msra.mxu0 %v4071
        %4638 = vmatprep.subr.bf16.mxu0 %v4075
        %4639 = vmatpush1.bf16.msra.mxu0 %v4074
        %4640 = vmatprep.subr.bf16.mxu0 %v4078
        %4641 = vmatpush1.bf16.msra.mxu0 %v4077
        %4642 = vmatprep.subr.bf16.mxu0 %v4081
        %4643 = vmatpush1.bf16.msra.mxu0 %v4080
        %4644 = vmatprep.subr.bf16.mxu0 %v4084
        %4645 = vmatpush1.bf16.msra.mxu0 %v4083
        %4646 = vmatprep.subr.bf16.mxu0 %v4087
        %4647 = vmatpush1.bf16.msra.mxu0 %v4086
        %4648 = vmatprep.subr.bf16.mxu0 %v4090
        %4649 = vmatpush1.bf16.msra.mxu0 %v4089
        %4650 = vmatprep.subr.bf16.mxu0 %v4093
        %4651 = vmatpush1.bf16.msra.mxu0 %v4092
        %4652 = vmatprep.subr.bf16.mxu0 %v4096
        %4653 = vmatpush1.bf16.msra.mxu0 %v4095
        %4654 = vmatprep.subr.bf16.mxu0 %v4099
        %4655 = vmatpush1.bf16.msra.mxu0 %v4098
        %4656 = vmatprep.subr.bf16.mxu0 %v4102
        %4657 = vmatpush1.bf16.msra.mxu0 %v4101
        %4658 = vmatprep.subr.bf16.mxu0 %v4105
        %4659 = vmatpush1.bf16.msra.mxu0 %v4104
        %4660 = vmatprep.mubr.bf16.mxu0 %v2658
        %4661 = vmatmul.mubr.bf16.gmra.mrb[0].mxu0 %v2657
        %v4662 = vpop.f32.mrb[0].mxu0
        %v4663 = vadd.f32 %v4622, %v4662
        %v4664 = vpop.f32.mrb[0].mxu0
        %v4665 = vadd.f32 %v4624, %v4664
        %v4666 = vpop.f32.mrb[0].mxu0
        %v4667 = vpop.f32.mrb[0].mxu0
        %4668 = vdwg.mxu0
        %4669 = vmatprep.subr.bf16.mxu0 %v4108
        %4670 = vmatpush1.bf16.msra.mxu0 %v4107
        %4671 = vmatprep.subr.bf16.mxu0 %v4111
        %4672 = vmatpush1.bf16.msra.mxu0 %v4110
        %4673 = vmatprep.subr.bf16.mxu0 %v4114
        %4674 = vmatpush1.bf16.msra.mxu0 %v4113
        %4675 = vmatprep.subr.bf16.mxu0 %v4117
        %4676 = vmatpush1.bf16.msra.mxu0 %v4116
        %4677 = vmatprep.subr.bf16.mxu0 %v4120
        %4678 = vmatpush1.bf16.msra.mxu0 %v4119
        %4679 = vmatprep.subr.bf16.mxu0 %v4123
        %4680 = vmatpush1.bf16.msra.mxu0 %v4122
        %4681 = vmatprep.subr.bf16.mxu0 %v4126
        %4682 = vmatpush1.bf16.msra.mxu0 %v4125
        %4683 = vmatprep.subr.bf16.mxu0 %v4129
        %4684 = vmatpush1.bf16.msra.mxu0 %v4128
        %4685 = vmatprep.subr.bf16.mxu0 %v4132
        %4686 = vmatpush1.bf16.msra.mxu0 %v4131
        %4687 = vmatprep.subr.bf16.mxu0 %v4135
        %4688 = vmatpush1.bf16.msra.mxu0 %v4134
        %4689 = vmatprep.subr.bf16.mxu0 %v4138
        %4690 = vmatpush1.bf16.msra.mxu0 %v4137
        %4691 = vmatprep.subr.bf16.mxu0 %v4141
        %4692 = vmatpush1.bf16.msra.mxu0 %v4140
        %4693 = vmatprep.subr.bf16.mxu0 %v4144
        %4694 = vmatpush1.bf16.msra.mxu0 %v4143
        %4695 = vmatprep.subr.bf16.mxu0 %v4147
        %4696 = vmatpush1.bf16.msra.mxu0 %v4146
        %4697 = vmatprep.subr.bf16.mxu0 %v4150
        %4698 = vmatpush1.bf16.msra.mxu0 %v4149
        %4699 = vmatprep.subr.bf16.mxu0 %v4153
        %4700 = vmatpush1.bf16.msra.mxu0 %v4152
        %4701 = vmatprep.mubr.bf16.mxu0 %v2660
        %4702 = vmatmul.mubr.bf16.gmra.mrb[0].mxu0 %v2659
        %v4703 = vpop.f32.mrb[0].mxu0
        %v4704 = vadd.f32 %v4663, %v4703
        %v4705 = vpop.f32.mrb[0].mxu0
        %v4706 = vadd.f32 %v4665, %v4705
        %v4707 = vpop.f32.mrb[0].mxu0
        %v4708 = vpop.f32.mrb[0].mxu0
        %4709 = vdwg.mxu0
        %4710 = vmatprep.subr.bf16.mxu0 %v4156
        %4711 = vmatpush1.bf16.msra.mxu0 %v4155
        %4712 = vmatprep.subr.bf16.mxu0 %v4159
        %4713 = vmatpush1.bf16.msra.mxu0 %v4158
        %4714 = vmatprep.subr.bf16.mxu0 %v4162
        %4715 = vmatpush1.bf16.msra.mxu0 %v4161
        %4716 = vmatprep.subr.bf16.mxu0 %v4165
        %4717 = vmatpush1.bf16.msra.mxu0 %v4164
        %4718 = vmatprep.subr.bf16.mxu0 %v4168
        %4719 = vmatpush1.bf16.msra.mxu0 %v4167
        %4720 = vmatprep.subr.bf16.mxu0 %v4171
        %4721 = vmatpush1.bf16.msra.mxu0 %v4170
        %4722 = vmatprep.subr.bf16.mxu0 %v4174
        %4723 = vmatpush1.bf16.msra.mxu0 %v4173
        %4724 = vmatprep.subr.bf16.mxu0 %v4177
        %4725 = vmatpush1.bf16.msra.mxu0 %v4176
        %4726 = vmatprep.subr.bf16.mxu0 %v4180
        %4727 = vmatpush1.bf16.msra.mxu0 %v4179
        %4728 = vmatprep.subr.bf16.mxu0 %v4183
        %4729 = vmatpush1.bf16.msra.mxu0 %v4182
        %4730 = vmatprep.subr.bf16.mxu0 %v4186
        %4731 = vmatpush1.bf16.msra.mxu0 %v4185
        %4732 = vmatprep.subr.bf16.mxu0 %v4189
        %4733 = vmatpush1.bf16.msra.mxu0 %v4188
        %4734 = vmatprep.subr.bf16.mxu0 %v4192
        %4735 = vmatpush1.bf16.msra.mxu0 %v4191
        %4736 = vmatprep.subr.bf16.mxu0 %v4195
        %4737 = vmatpush1.bf16.msra.mxu0 %v4194
        %4738 = vmatprep.subr.bf16.mxu0 %v4198
        %4739 = vmatpush1.bf16.msra.mxu0 %v4197
        %4740 = vmatprep.subr.bf16.mxu0 %v4201
        %4741 = vmatpush1.bf16.msra.mxu0 %v4200
        %4742 = vmatprep.mubr.bf16.mxu0 %v2662
        %4743 = vmatmul.mubr.bf16.gmra.mrb[0].mxu0 %v2661
        %v4744 = vpop.f32.mrb[0].mxu0
        %v4745 = vadd.f32 %v4704, %v4744
        %v4746 = vpop.f32.mrb[0].mxu0
        %v4747 = vadd.f32 %v4706, %v4746
        %v4748 = vpop.f32.mrb[0].mxu0
        %v4749 = vpop.f32.mrb[0].mxu0
        %4750 = vdwg.mxu0
        %4751 = vmatprep.subr.bf16.mxu0 %v4204
        %4752 = vmatpush1.bf16.msra.mxu0 %v4203
        %4753 = vmatprep.subr.bf16.mxu0 %v4207
        %4754 = vmatpush1.bf16.msra.mxu0 %v4206
        %4755 = vmatprep.subr.bf16.mxu0 %v4210
        %4756 = vmatpush1.bf16.msra.mxu0 %v4209
        %4757 = vmatprep.subr.bf16.mxu0 %v4213
        %4758 = vmatpush1.bf16.msra.mxu0 %v4212
        %4759 = vmatprep.subr.bf16.mxu0 %v4216
        %4760 = vmatpush1.bf16.msra.mxu0 %v4215
        %4761 = vmatprep.subr.bf16.mxu0 %v4219
        %4762 = vmatpush1.bf16.msra.mxu0 %v4218
        %4763 = vmatprep.subr.bf16.mxu0 %v4222
        %4764 = vmatpush1.bf16.msra.mxu0 %v4221
        %4765 = vmatprep.subr.bf16.mxu0 %v4225
        %4766 = vmatpush1.bf16.msra.mxu0 %v4224
        %4767 = vmatprep.subr.bf16.mxu0 %v4228
        %4768 = vmatpush1.bf16.msra.mxu0 %v4227
        %4769 = vmatprep.subr.bf16.mxu0 %v4231
        %4770 = vmatpush1.bf16.msra.mxu0 %v4230
        %4771 = vmatprep.subr.bf16.mxu0 %v4234
        %4772 = vmatpush1.bf16.msra.mxu0 %v4233
        %4773 = vmatprep.subr.bf16.mxu0 %v4237
        %4774 = vmatpush1.bf16.msra.mxu0 %v4236
        %4775 = vmatprep.subr.bf16.mxu0 %v4240
        %4776 = vmatpush1.bf16.msra.mxu0 %v4239
        %4777 = vmatprep.subr.bf16.mxu0 %v4243
        %4778 = vmatpush1.bf16.msra.mxu0 %v4242
        %4779 = vmatprep.subr.bf16.mxu0 %v4246
        %4780 = vmatpush1.bf16.msra.mxu0 %v4245
        %4781 = vmatprep.subr.bf16.mxu0 %v4249
        %4782 = vmatpush1.bf16.msra.mxu0 %v4248
        %4783 = vmatprep.mubr.bf16.mxu0 %v2664
        %4784 = vmatmul.mubr.bf16.gmra.mrb[0].mxu0 %v2663
        %v4785 = vpop.f32.mrb[0].mxu0
        %v4786 = vadd.f32 %v4745, %v4785
        %v4787 = vpop.f32.mrb[0].mxu0
        %v4788 = vadd.f32 %v4747, %v4787
        %v4789 = vpop.f32.mrb[0].mxu0
        %v4790 = vpop.f32.mrb[0].mxu0
        %4791 = vdwg.mxu0
        %4792 = vmatprep.subr.bf16.mxu0 %v4252
        %4793 = vmatpush1.bf16.msra.mxu0 %v4251
        %4794 = vmatprep.subr.bf16.mxu0 %v4255
        %4795 = vmatpush1.bf16.msra.mxu0 %v4254
        %4796 = vmatprep.subr.bf16.mxu0 %v4258
        %4797 = vmatpush1.bf16.msra.mxu0 %v4257
        %4798 = vmatprep.subr.bf16.mxu0 %v4261
        %4799 = vmatpush1.bf16.msra.mxu0 %v4260
        %4800 = vmatprep.subr.bf16.mxu0 %v4264
        %4801 = vmatpush1.bf16.msra.mxu0 %v4263
        %4802 = vmatprep.subr.bf16.mxu0 %v4267
        %4803 = vmatpush1.bf16.msra.mxu0 %v4266
        %4804 = vmatprep.subr.bf16.mxu0 %v4270
        %4805 = vmatpush1.bf16.msra.mxu0 %v4269
        %4806 = vmatprep.subr.bf16.mxu0 %v4273
        %4807 = vmatpush1.bf16.msra.mxu0 %v4272
        %4808 = vmatprep.subr.bf16.mxu0 %v4276
        %4809 = vmatpush1.bf16.msra.mxu0 %v4275
        %4810 = vmatprep.subr.bf16.mxu0 %v4279
        %4811 = vmatpush1.bf16.msra.mxu0 %v4278
        %4812 = vmatprep.subr.bf16.mxu0 %v4282
        %4813 = vmatpush1.bf16.msra.mxu0 %v4281
        %4814 = vmatprep.subr.bf16.mxu0 %v4285
        %4815 = vmatpush1.bf16.msra.mxu0 %v4284
        %4816 = vmatprep.subr.bf16.mxu0 %v4288
        %4817 = vmatpush1.bf16.msra.mxu0 %v4287
        %4818 = vmatprep.subr.bf16.mxu0 %v4291
        %4819 = vmatpush1.bf16.msra.mxu0 %v4290
        %4820 = vmatprep.subr.bf16.mxu0 %v4294
        %4821 = vmatpush1.bf16.msra.mxu0 %v4293
        %4822 = vmatprep.subr.bf16.mxu0 %v4297
        %4823 = vmatpush1.bf16.msra.mxu0 %v4296
        %4824 = vmatprep.mubr.bf16.mxu0 %v2666
        %4825 = vmatmul.mubr.bf16.gmra.mrb[0].mxu0 %v2665
        %v4826 = vpop.f32.mrb[0].mxu0
        %v4827 = vadd.f32 %v4786, %v4826
        %v4828 = vpop.f32.mrb[0].mxu0
        %v4829 = vadd.f32 %v4788, %v4828
        %v4830 = vpop.f32.mrb[0].mxu0
        %v4831 = vpop.f32.mrb[0].mxu0
        %4832 = vdwg.mxu0
        %4833 = vmatprep.subr.bf16.mxu0 0
        %4834 = vmatpush1.bf16.msra.mxu0 %v4013
        %4835 = vmatprep.subr.bf16.mxu0 0
        %4836 = vmatpush1.bf16.msra.mxu0 %v4016
        %4837 = vmatprep.subr.bf16.mxu0 0
        %4838 = vmatpush1.bf16.msra.mxu0 %v4019
        %4839 = vmatprep.subr.bf16.mxu0 0
        %4840 = vmatpush1.bf16.msra.mxu0 %v4022
        %4841 = vmatprep.subr.bf16.mxu0 0
        %4842 = vmatpush1.bf16.msra.mxu0 %v4025
        %4843 = vmatprep.subr.bf16.mxu0 0
        %4844 = vmatpush1.bf16.msra.mxu0 %v4028
        %4845 = vmatprep.subr.bf16.mxu0 0
        %4846 = vmatpush1.bf16.msra.mxu0 %v4031
        %4847 = vmatprep.subr.bf16.mxu0 0
        %4848 = vmatpush1.bf16.msra.mxu0 %v4034
        %4849 = vmatprep.subr.bf16.mxu0 0
        %4850 = vmatpush1.bf16.msra.mxu0 %v4037
        %4851 = vmatprep.subr.bf16.mxu0 0
        %4852 = vmatpush1.bf16.msra.mxu0 %v4040
        %4853 = vmatprep.subr.bf16.mxu0 0
        %4854 = vmatpush1.bf16.msra.mxu0 %v4043
        %4855 = vmatprep.subr.bf16.mxu0 0
        %4856 = vmatpush1.bf16.msra.mxu0 %v4046
        %4857 = vmatprep.subr.bf16.mxu0 0
        %4858 = vmatpush1.bf16.msra.mxu0 %v4049
        %4859 = vmatprep.subr.bf16.mxu0 0
        %4860 = vmatpush1.bf16.msra.mxu0 %v4052
        %4861 = vmatprep.subr.bf16.mxu0 0
        %4862 = vmatpush1.bf16.msra.mxu0 %v4055
        %4863 = vmatprep.subr.bf16.mxu0 0
        %4864 = vmatpush1.bf16.msra.mxu0 %v4058
        %4865 = vmatprep.mubr.bf16.mxu0 %v2656
        %4866 = vmatmul.mubr.bf16.gmra.mrb[0].mxu0 %v2655
        %v4867 = vpop.f32.mrb[0].mxu0
        %v4868 = vadd.f32 0.0, %v4867
        %v4869 = vpop.f32.mrb[0].mxu0
        %v4870 = vpop.f32.mrb[0].mxu0
        %v4871 = vpop.f32.mrb[0].mxu0
        %4872 = vdwg.mxu0
        %4873 = vmatprep.subr.bf16.mxu0 0
        %4874 = vmatpush1.bf16.msra.mxu0 %v4061
        %4875 = vmatprep.subr.bf16.mxu0 0
        %4876 = vmatpush1.bf16.msra.mxu0 %v4064
        %4877 = vmatprep.subr.bf16.mxu0 0
        %4878 = vmatpush1.bf16.msra.mxu0 %v4067
        %4879 = vmatprep.subr.bf16.mxu0 0
        %4880 = vmatpush1.bf16.msra.mxu0 %v4070
        %4881 = vmatprep.subr.bf16.mxu0 0
        %4882 = vmatpush1.bf16.msra.mxu0 %v4073
        %4883 = vmatprep.subr.bf16.mxu0 0
        %4884 = vmatpush1.bf16.msra.mxu0 %v4076
        %4885 = vmatprep.subr.bf16.mxu0 0
        %4886 = vmatpush1.bf16.msra.mxu0 %v4079
        %4887 = vmatprep.subr.bf16.mxu0 0
        %4888 = vmatpush1.bf16.msra.mxu0 %v4082
        %4889 = vmatprep.subr.bf16.mxu0 0
        %4890 = vmatpush1.bf16.msra.mxu0 %v4085
        %4891 = vmatprep.subr.bf16.mxu0 0
        %4892 = vmatpush1.bf16.msra.mxu0 %v4088
        %4893 = vmatprep.subr.bf16.mxu0 0
        %4894 = vmatpush1.bf16.msra.mxu0 %v4091
        %4895 = vmatprep.subr.bf16.mxu0 0
        %4896 = vmatpush1.bf16.msra.mxu0 %v4094
        %4897 = vmatprep.subr.bf16.mxu0 0
        %4898 = vmatpush1.bf16.msra.mxu0 %v4097
        %4899 = vmatprep.subr.bf16.mxu0 0
        %4900 = vmatpush1.bf16.msra.mxu0 %v4100
        %4901 = vmatprep.subr.bf16.mxu0 0
        %4902 = vmatpush1.bf16.msra.mxu0 %v4103
        %4903 = vmatprep.subr.bf16.mxu0 0
        %4904 = vmatpush1.bf16.msra.mxu0 %v4106
        %4905 = vmatprep.mubr.bf16.mxu0 %v2658
        %4906 = vmatmul.mubr.bf16.gmra.mrb[0].mxu0 %v2657
        %v4907 = vpop.f32.mrb[0].mxu0
        %v4908 = vadd.f32 %v4868, %v4907
        %v4909 = vpop.f32.mrb[0].mxu0
        %v4910 = vpop.f32.mrb[0].mxu0
        %v4911 = vpop.f32.mrb[0].mxu0
        %4912 = vdwg.mxu0
        %4913 = vmatprep.subr.bf16.mxu0 0
        %4914 = vmatpush1.bf16.msra.mxu0 %v4109
        %4915 = vmatprep.subr.bf16.mxu0 0
        %4916 = vmatpush1.bf16.msra.mxu0 %v4112
        %4917 = vmatprep.subr.bf16.mxu0 0
        %4918 = vmatpush1.bf16.msra.mxu0 %v4115
        %4919 = vmatprep.subr.bf16.mxu0 0
        %4920 = vmatpush1.bf16.msra.mxu0 %v4118
        %4921 = vmatprep.subr.bf16.mxu0 0
        %4922 = vmatpush1.bf16.msra.mxu0 %v4121
        %4923 = vmatprep.subr.bf16.mxu0 0
        %4924 = vmatpush1.bf16.msra.mxu0 %v4124
        %4925 = vmatprep.subr.bf16.mxu0 0
        %4926 = vmatpush1.bf16.msra.mxu0 %v4127
        %4927 = vmatprep.subr.bf16.mxu0 0
        %4928 = vmatpush1.bf16.msra.mxu0 %v4130
        %4929 = vmatprep.subr.bf16.mxu0 0
        %4930 = vmatpush1.bf16.msra.mxu0 %v4133
        %4931 = vmatprep.subr.bf16.mxu0 0
        %4932 = vmatpush1.bf16.msra.mxu0 %v4136
        %4933 = vmatprep.subr.bf16.mxu0 0
        %4934 = vmatpush1.bf16.msra.mxu0 %v4139
        %4935 = vmatprep.subr.bf16.mxu0 0
        %4936 = vmatpush1.bf16.msra.mxu0 %v4142
        %4937 = vmatprep.subr.bf16.mxu0 0
        %4938 = vmatpush1.bf16.msra.mxu0 %v4145
        %4939 = vmatprep.subr.bf16.mxu0 0
        %4940 = vmatpush1.bf16.msra.mxu0 %v4148
        %4941 = vmatprep.subr.bf16.mxu0 0
        %4942 = vmatpush1.bf16.msra.mxu0 %v4151
        %4943 = vmatprep.subr.bf16.mxu0 0
        %4944 = vmatpush1.bf16.msra.mxu0 %v4154
        %4945 = vmatprep.mubr.bf16.mxu0 %v2660
        %4946 = vmatmul.mubr.bf16.gmra.mrb[0].mxu0 %v2659
        %v4947 = vpop.f32.mrb[0].mxu0
        %v4948 = vadd.f32 %v4908, %v4947
        %v4949 = vpop.f32.mrb[0].mxu0
        %v4950 = vpop.f32.mrb[0].mxu0
        %v4951 = vpop.f32.mrb[0].mxu0
        %4952 = vdwg.mxu0
        %4953 = vmatprep.subr.bf16.mxu0 0
        %4954 = vmatpush1.bf16.msra.mxu0 %v4157
        %4955 = vmatprep.subr.bf16.mxu0 0
        %4956 = vmatpush1.bf16.msra.mxu0 %v4160
        %4957 = vmatprep.subr.bf16.mxu0 0
        %4958 = vmatpush1.bf16.msra.mxu0 %v4163
        %4959 = vmatprep.subr.bf16.mxu0 0
        %4960 = vmatpush1.bf16.msra.mxu0 %v4166
        %4961 = vmatprep.subr.bf16.mxu0 0
        %4962 = vmatpush1.bf16.msra.mxu0 %v4169
        %4963 = vmatprep.subr.bf16.mxu0 0
        %4964 = vmatpush1.bf16.msra.mxu0 %v4172
        %4965 = vmatprep.subr.bf16.mxu0 0
        %4966 = vmatpush1.bf16.msra.mxu0 %v4175
        %4967 = vmatprep.subr.bf16.mxu0 0
        %4968 = vmatpush1.bf16.msra.mxu0 %v4178
        %4969 = vmatprep.subr.bf16.mxu0 0
        %4970 = vmatpush1.bf16.msra.mxu0 %v4181
        %4971 = vmatprep.subr.bf16.mxu0 0
        %4972 = vmatpush1.bf16.msra.mxu0 %v4184
        %4973 = vmatprep.subr.bf16.mxu0 0
        %4974 = vmatpush1.bf16.msra.mxu0 %v4187
        %4975 = vmatprep.subr.bf16.mxu0 0
        %4976 = vmatpush1.bf16.msra.mxu0 %v4190
        %4977 = vmatprep.subr.bf16.mxu0 0
        %4978 = vmatpush1.bf16.msra.mxu0 %v4193
        %4979 = vmatprep.subr.bf16.mxu0 0
        %4980 = vmatpush1.bf16.msra.mxu0 %v4196
        %4981 = vmatprep.subr.bf16.mxu0 0
        %4982 = vmatpush1.bf16.msra.mxu0 %v4199
        %4983 = vmatprep.subr.bf16.mxu0 0
        %4984 = vmatpush1.bf16.msra.mxu0 %v4202
        %4985 = vmatprep.mubr.bf16.mxu0 %v2662
        %4986 = vmatmul.mubr.bf16.gmra.mrb[0].mxu0 %v2661
        %v4987 = vpop.f32.mrb[0].mxu0
        %v4988 = vadd.f32 %v4948, %v4987
        %v4989 = vpop.f32.mrb[0].mxu0
        %v4990 = vpop.f32.mrb[0].mxu0
        %v4991 = vpop.f32.mrb[0].mxu0
        %4992 = vdwg.mxu0
        %4993 = vmatprep.subr.bf16.mxu0 0
        %4994 = vmatpush1.bf16.msra.mxu0 %v4205
        %4995 = vmatprep.subr.bf16.mxu0 0
        %4996 = vmatpush1.bf16.msra.mxu0 %v4208
        %4997 = vmatprep.subr.bf16.mxu0 0
        %4998 = vmatpush1.bf16.msra.mxu0 %v4211
        %4999 = vmatprep.subr.bf16.mxu0 0
        %5000 = vmatpush1.bf16.msra.mxu0 %v4214
        %5001 = vmatprep.subr.bf16.mxu0 0
        %5002 = vmatpush1.bf16.msra.mxu0 %v4217
        %5003 = vmatprep.subr.bf16.mxu0 0
        %5004 = vmatpush1.bf16.msra.mxu0 %v4220
        %5005 = vmatprep.subr.bf16.mxu0 0
        %5006 = vmatpush1.bf16.msra.mxu0 %v4223
        %5007 = vmatprep.subr.bf16.mxu0 0
        %5008 = vmatpush1.bf16.msra.mxu0 %v4226
        %5009 = vmatprep.subr.bf16.mxu0 0
        %5010 = vmatpush1.bf16.msra.mxu0 %v4229
        %5011 = vmatprep.subr.bf16.mxu0 0
        %5012 = vmatpush1.bf16.msra.mxu0 %v4232
        %5013 = vmatprep.subr.bf16.mxu0 0
        %5014 = vmatpush1.bf16.msra.mxu0 %v4235
        %5015 = vmatprep.subr.bf16.mxu0 0
        %5016 = vmatpush1.bf16.msra.mxu0 %v4238
        %5017 = vmatprep.subr.bf16.mxu0 0
        %5018 = vmatpush1.bf16.msra.mxu0 %v4241
        %5019 = vmatprep.subr.bf16.mxu0 0
        %5020 = vmatpush1.bf16.msra.mxu0 %v4244
        %5021 = vmatprep.subr.bf16.mxu0 0
        %5022 = vmatpush1.bf16.msra.mxu0 %v4247
        %5023 = vmatprep.subr.bf16.mxu0 0
        %5024 = vmatpush1.bf16.msra.mxu0 %v4250
        %5025 = vmatprep.mubr.bf16.mxu0 %v2664
        %5026 = vmatmul.mubr.bf16.gmra.mrb[0].mxu0 %v2663
        %v5027 = vpop.f32.mrb[0].mxu0
        %v5028 = vadd.f32 %v4988, %v5027
        %v5029 = vpop.f32.mrb[0].mxu0
        %v5030 = vpop.f32.mrb[0].mxu0
        %v5031 = vpop.f32.mrb[0].mxu0
        %5032 = vdwg.mxu0
        %5033 = vmatprep.subr.bf16.mxu0 0
        %5034 = vmatpush1.bf16.msra.mxu0 %v4253
        %5035 = vmatprep.subr.bf16.mxu0 0
        %5036 = vmatpush1.bf16.msra.mxu0 %v4256
        %5037 = vmatprep.subr.bf16.mxu0 0
        %5038 = vmatpush1.bf16.msra.mxu0 %v4259
        %5039 = vmatprep.subr.bf16.mxu0 0
        %5040 = vmatpush1.bf16.msra.mxu0 %v4262
        %5041 = vmatprep.subr.bf16.mxu0 0
        %5042 = vmatpush1.bf16.msra.mxu0 %v4265
        %5043 = vmatprep.subr.bf16.mxu0 0
        %5044 = vmatpush1.bf16.msra.mxu0 %v4268
        %5045 = vmatprep.subr.bf16.mxu0 0
        %5046 = vmatpush1.bf16.msra.mxu0 %v4271
        %5047 = vmatprep.subr.bf16.mxu0 0
        %5048 = vmatpush1.bf16.msra.mxu0 %v4274
        %5049 = vmatprep.subr.bf16.mxu0 0
        %5050 = vmatpush1.bf16.msra.mxu0 %v4277
        %5051 = vmatprep.subr.bf16.mxu0 0
        %5052 = vmatpush1.bf16.msra.mxu0 %v4280
        %5053 = vmatprep.subr.bf16.mxu0 0
        %5054 = vmatpush1.bf16.msra.mxu0 %v4283
        %5055 = vmatprep.subr.bf16.mxu0 0
        %5056 = vmatpush1.bf16.msra.mxu0 %v4286
        %5057 = vmatprep.subr.bf16.mxu0 0
        %5058 = vmatpush1.bf16.msra.mxu0 %v4289
        %5059 = vmatprep.subr.bf16.mxu0 0
        %5060 = vmatpush1.bf16.msra.mxu0 %v4292
        %5061 = vmatprep.subr.bf16.mxu0 0
        %5062 = vmatpush1.bf16.msra.mxu0 %v4295
        %5063 = vmatprep.subr.bf16.mxu0 0
        %5064 = vmatpush1.bf16.msra.mxu0 %v4298
        %5065 = vmatprep.mubr.bf16.mxu0 %v2666
        %5066 = vmatmul.mubr.bf16.gmra.mrb[0].mxu0 %v2665
        %v5067 = vpop.f32.mrb[0].mxu0
        %v5068 = vadd.f32 %v5028, %v5067
        %v5069 = vpop.f32.mrb[0].mxu0
        %v5070 = vpop.f32.mrb[0].mxu0
        %v5071 = vpop.f32.mrb[0].mxu0
        %5072 = vdwg.mxu0
        %v5073 = vadd.f32 %v2652, %v4827
        %v5074 = vadd.f32 %v2653, %v4829
        %v5075 = vadd.f32 %v2654, %v5068
        %5076 = vst [vmem:[#allocation2] sm:$0xff] %v5073
        %5077 = vst [vmem:[#allocation2 + $0x8] sm:$0xff] %v5074
        %5078 = vst [vmem:[#allocation2 + $0x10] sm:$0xff] %v5075
        // Predicated region
        $region65: #{tpu_custom_call.1} parent=39 // pred_check
          %p5079 = pneg %p336
        $region66: #{tpu_custom_call.1} parent=39 // pred_check_branch
          %5081 = sbr.rel (%p5079) target = $region68
        $region67: #{tpu_custom_call.1} parent=39 // pred_region
          %v5082 = vld [vmem:[#allocation2] sm:$0xff]
          %v5083 = vld [vmem:[#allocation2 + $0x8] sm:$0xff]
          %v5084 = vld [vmem:[#allocation2 + $0x10] sm:$0xff]
          %v5085 = vld [vmem:[#allocation11] sm:$0x7]
          %v5087 = vlaneseq
          %v5088 = vshrl.u32 %v5087, 7
          %v5089 = vsub.s32 0, %v5088
          %v5090 = vrot.slane %v5085, %v5089
          %v5091 = vlaneseq
          %v5092 = vshrl.u32 %v5091, 7
          %v5093 = vsub.s32 1, %v5092
          %v5094 = vrot.slane %v5085, %v5093
          %v5095 = vlaneseq
          %v5096 = vshrl.u32 %v5095, 7
          %v5097 = vsub.s32 2, %v5096
          %v5098 = vrot.slane %v5085, %v5097
          %v5102 = vadd.f32 %v5082, %v5090
          %v5103 = vadd.f32 %v5083, %v5094
          %v5104 = vadd.f32 %v5084, %v5098
          %5105 = vst [vmem:[%s331] sm:$0xff] %v5102
          %5106 = vst [vmem:[%s331 + $0x8] sm:$0xff] %v5103
          %5107 = vst [vmem:[%s331 + $0x10] sm:$0xff] %v5104
        $region68: #{tpu_custom_call.1} parent=39 // pred_fallthru
          _
        %s5108 = sand.u32 %s169, 1
        %s5109 = scalar_lea.sflag [#allocation5], %s5108
        %s5110 = sand.u32 %s169, 1
        %s5111 = smul.addr %s5110, 24
        %s5112 = scalar_lea.vmem [#allocation12], %s5111
        // Predicated region
        $region69: #{tpu_custom_call.1} parent=39 // pred_check
          %p5113 = pneg %p179
        $region70: #{tpu_custom_call.1} parent=39 // pred_check_branch
          %5115 = sbr.rel (%p5113) target = $region72
        $region71: #{tpu_custom_call.1} parent=39 // pred_region
          %s5117 = ssub.s32 384, 384
          %5118 = vsyncadd %s5109, %s5117
          %s5119 = smul.addr %s28, 3
          %s5120 = smul.addr %s5119, 128
          %s5121 = scalar_lea.hbm %s5, %s5120
          %s5123 = sshll.u32 %s5112, 4
          %s5124 = int_to_ptr.vmem [resolvable:$true] %s5123
          %5126 = dma.vmem_to_hbm [thread:$0]  %s5124, 384, %s5121, %s5109
        $region72: #{tpu_custom_call.1} parent=39 // pred_fallthru
          _
      $region40: #{tpu_custom_call.1} parent=5 // pred_fallthru
        _
      %p5127 = scmp.le.s32.totalorder 2, %s19
      // Predicated region
      $region73: #{tpu_custom_call.1} parent=5 // pred_check
        %p5128 = pneg %p5127
      $region74: #{tpu_custom_call.1} parent=5 // pred_check_branch
        %5130 = sbr.rel (%p5128) target = $region76
      $region75: #{tpu_custom_call.1} parent=5 // pred_region
        %s5131 = ssub.s32 %s19, 2
        // Predicated region
        $region77: #{tpu_custom_call.1} parent=75 // pred_check
          %p5132 = pneg %p185
        $region78: #{tpu_custom_call.1} parent=75 // pred_check_branch
          %5134 = sbr.rel (%p5132) target = $region80
        $region79: #{tpu_custom_call.1} parent=75 // pred_region
          %s5135 = sand.u32 %s170, 1
          %s5136 = scalar_lea.sflag [#allocation5], %s5135
          %s5137 = sand.u32 %s170, 1
          %s5138 = smul.addr %s5137, 24
          %s5139 = scalar_lea.vmem [#allocation12], %s5138
          %5140 = dma.done %s5136, 384
        $region80: #{tpu_custom_call.1} parent=75 // pred_fallthru
          _
      $region76: #{tpu_custom_call.1} parent=5 // pred_fallthru
        _
    $region6: #{tpu_custom_call.1} parent=1 // loop_footer
      %s23 = sadd.s32 1, %s19
    $region7: #{tpu_custom_call.1} parent=1 // loop_footer_branch
      %18 = sbr.rel target = $region3
    $region8: #{tpu_custom_call.1} parent=1 // loop_exit
      _
    %5141 = vsyncpa [#allocation4], 1
    %s5142 = scalar_lea.sflag [#allocation4], 1
    %5143 = vsyncpa %s5142, 1
    %5144 = vsyncpa [#allocation7], 1
    %5145 = vsyncpa [#allocation10], 1
    %5146 = vsyncpa [#allocation5], 1
    %s5147 = scalar_lea.sflag [#allocation5], 1
    %5148 = vsyncpa %s5147, 1

</llo_original>
